<compile_context>
chip_gen: v5e
topology: v5e:2x2
jax: 0.10.0
libtpu: 0.0.40
codegen_flags: <defaults>
</compile_context>

<pallas_src>
import jax
import jax.numpy as jnp
from jax.experimental import pallas as pl
from jax.experimental.pallas import tpu as pltpu

# ---------------- module hyper-parameters (defaults of Wav2Spec) -------------
SAMPLE_RATE = 32000
N_FFT = 1024
WIN_LENGTH = 1024
HOP_LENGTH = 320
F_MIN = 50.0
F_MAX = 14000.0
N_MELS = 64
N_FREQS_FULL = N_FFT // 2 + 1       # onesided STFT -> 513 bins
N_FREQS = 512                       # bins >= 449 have exactly-zero mel weight (f_max=14k)
N_MELS_PAD = 128                    # mel matmul width padded to a full 128-lane tile
AMIN = 1e-10                        # AmplitudeToDB amin (ref=1.0 -> db_multiplier=0)
TILE_F_MAX = 256                    # frame-axis tile = M of the MXU matmuls
_LAST_CHUNK = N_FFT - 3 * HOP_LENGTH   # 64: tail of each frame beyond 3 hops


def _round_up(x, m):
    return ((x + m - 1) // m) * m


# ---------------- deterministic "parameters" (window, DFT, mel fbank) --------
def _hz_to_mel(f):
    return 2595.0 * jnp.log10(1.0 + f / 700.0)


def _mel_to_hz(m):
    return 700.0 * (10.0 ** (m / 2595.0) - 1.0)


def melscale_fbanks(n_freqs, f_min, f_max, n_mels, sample_rate):
    """torchaudio.functional.melscale_fbanks, mel_scale='htk', norm=None."""
    all_freqs = jnp.linspace(0.0, sample_rate // 2, n_freqs)
    m_pts = jnp.linspace(_hz_to_mel(f_min), _hz_to_mel(f_max), n_mels + 2)
    f_pts = _mel_to_hz(m_pts)
    f_diff = f_pts[1:] - f_pts[:-1]                       # (n_mels + 1,)
    slopes = f_pts[None, :] - all_freqs[:, None]          # (n_freqs, n_mels + 2)
    down = (-1.0 * slopes[:, :-2]) / f_diff[:-1]
    up = slopes[:, 2:] / f_diff[1:]
    fb = jnp.maximum(0.0, jnp.minimum(down, up))
    return fb.astype(jnp.float32)                         # (n_freqs, n_mels)


def make_mel_fbank_padded():
    """(N_FREQS, N_MELS_PAD): drop exact-zero rows >= 512, pad mel cols 64 -> 128."""
    fb = melscale_fbanks(N_FREQS_FULL, F_MIN, F_MAX, N_MELS, SAMPLE_RATE)  # (513, 64)
    fb = fb[:N_FREQS, :]                                   # exact (zero weight above f_max)
    return jnp.pad(fb, ((0, 0), (0, N_MELS_PAD - N_MELS))).astype(jnp.float32)


def make_fused_dft_matrices():
    """Windowed [cos | sin] DFT matrix (n_fft, 2*N_FREQS), split into bf16 hi/lo."""
    n = jnp.arange(N_FFT, dtype=jnp.float32)[:, None]
    f = jnp.arange(N_FREQS, dtype=jnp.float32)[None, :]
    ang = 2.0 * jnp.pi * n * f / N_FFT
    # periodic Hann window (torch.hann_window default)
    window = 0.5 * (1.0 - jnp.cos(2.0 * jnp.pi *
                                  jnp.arange(WIN_LENGTH, dtype=jnp.float32) / WIN_LENGTH))
    wdft = jnp.concatenate([window[:, None] * jnp.cos(ang),
                            window[:, None] * jnp.sin(ang)], axis=1)       # (1024, 1024) f32
    w_hi = wdft.astype(jnp.bfloat16)
    w_lo = (wdft - w_hi.astype(jnp.float32)).astype(jnp.bfloat16)
    return w_hi, w_lo


# ---------------- Pallas kernel ----------------------------------------------
def wav2spec_kernel(frames_ref, whi_ref, wlo_ref, mel_ref, out_ref):
    # frames_ref: (1, tile_f, n_fft) f32 block of frames for (batch b, frame-tile f).
    fr = frames_ref[0]                                           # (tile_f, 1024)
    # bf16 hi/lo split of the frames (the DFT matrix is pre-split on the host):
    #   fr @ W ~= fr_hi@W_hi + fr_lo@W_hi + fr_hi@W_lo
    # three native-rate bf16 MXU matmuls with f32 accumulation; dropped terms are
    # O(2^-16) relative (<1e-3 dB after the log).
    fr_hi = fr.astype(jnp.bfloat16)
    fr_lo = (fr - fr_hi.astype(jnp.float32)).astype(jnp.bfloat16)
    spec = jnp.dot(fr_hi, whi_ref[...], preferred_element_type=jnp.float32)
    spec = spec + jnp.dot(fr_lo, whi_ref[...], preferred_element_type=jnp.float32)
    spec = spec + jnp.dot(fr_hi, wlo_ref[...], preferred_element_type=jnp.float32)
    re = spec[:, :N_FREQS]                                       # tile-aligned lane slices
    im = spec[:, N_FREQS:]
    power = re * re + im * im                                    # power=2.0 spectrogram (f32)
    mel = jnp.dot(power, mel_ref[...],
                  preferred_element_type=jnp.float32)            # (tile_f, 128) f32
    # Fused AmplitudeToDB + (mel, time) transpose: XLU transpose, log10 only on the
    # 64 real mel rows; the output is written lane-dense along the time axis.
    mel_t = jnp.transpose(mel)[:N_MELS, :]                       # (64, tile_f)
    out_ref[0] = 10.0 * jnp.log10(jnp.maximum(mel_t, AMIN))


# ---------------- host-side glue ----------------------------------------------
def _frame_signal(x, f_pad):
    """center=True reflect pad + framing, built from slices + one concat (no gather).

    frame[i] = x_pad[i*hop : i*hop + n_fft]
             = [X[i] | X[i+1] | X[i+2] | X[i+3][:64]],  X[t] = x_pad[t*hop : (t+1)*hop]
    Junk frames (i >= F) read only the zero tail padding and are discarded later.
    """
    B = x.shape[0]
    pad = N_FFT // 2
    x_pad = jnp.pad(x, ((0, 0), (pad, pad)), mode="reflect")
    n_rows = f_pad + 4                                           # need rows up to f_pad + 2
    x_ext = jnp.pad(x_pad, ((0, 0), (0, n_rows * HOP_LENGTH - x_pad.shape[-1])))
    X = x_ext.reshape(B, n_rows, HOP_LENGTH)                     # (B, T, hop)
    return jnp.concatenate(
        [X[:, 0:f_pad], X[:, 1:f_pad + 1], X[:, 2:f_pad + 2],
         X[:, 3:f_pad + 3, :_LAST_CHUNK]], axis=-1)              # (B, f_pad, n_fft)


@jax.jit
def wav2spec(x):
    """x: (B, num_samples) float32 waveform -> (B, n_mels, F) dB mel spectrogram."""
    x = x.astype(jnp.float32)
    B, num_samples = x.shape
    assert num_samples > N_FFT // 2, "reflect padding needs more than n_fft//2 samples"
    F = 1 + num_samples // HOP_LENGTH            # torchaudio center=True frame count

    F8 = _round_up(F, 8)
    tile_f = min(TILE_F_MAX, F8)                 # frame tile (multiple of 8)
    num_f_tiles = -(-F8 // tile_f)
    f_pad = num_f_tiles * tile_f                 # residual padding = zero junk frames only

    frames = _frame_signal(x, f_pad)             # (B, f_pad, n_fft) f32
    w_hi, w_lo = make_fused_dft_matrices()       # 2x (n_fft, 2*N_FREQS) bf16
    mel_fb = make_mel_fbank_padded()             # (N_FREQS, N_MELS_PAD) f32

    out = pl.pallas_call(
        wav2spec_kernel,
        out_shape=jax.ShapeDtypeStruct((B, N_MELS, f_pad), jnp.float32),
        grid_spec=pltpu.PrefetchScalarGridSpec(
            num_scalar_prefetch=0,
            grid=(B, num_f_tiles),
            in_specs=[
                pl.BlockSpec((1, tile_f, N_FFT), lambda b, f: (b, f, 0)),
                # weights: constant index_maps -> DMA'd once and kept VMEM-resident
                pl.BlockSpec((N_FFT, 2 * N_FREQS), lambda b, f: (0, 0)),
                pl.BlockSpec((N_FFT, 2 * N_FREQS), lambda b, f: (0, 0)),
                pl.BlockSpec((N_FREQS, N_MELS_PAD), lambda b, f: (0, 0)),
            ],
            out_specs=pl.BlockSpec((1, N_MELS, tile_f), lambda b, f: (b, 0, f)),
        ),
        compiler_params=pltpu.CompilerParams(
            dimension_semantics=("parallel", "parallel"),
            vmem_limit_bytes=32 << 20,   # ~18 MiB used at tile_f=256 (8 MiB double-
                                         # buffered bf16 weights + frame blocks + temps)
        ),
    )(frames, w_hi, w_lo, mel_fb)

    # drop frame padding; layout is already torchaudio's (batch, n_mels, time)
    return out[:, :, :F]


def wav2spec_forward(d):
    """Mirrors Wav2Spec.forward: replaces d['x'] with its dB mel spectrogram."""
    d = dict(d)
    d["x"] = wav2spec(d["x"])
    return d


# ---------------- pure-JAX reference (full 513-bin f32 path, independent framing) ---
def _frame_signal_gather(x, num_frames):
    """Reference framing via an explicit element gather (cross-checks _frame_signal)."""
    pad = N_FFT // 2
    x_pad = jnp.pad(x, ((0, 0), (pad, pad)), mode="reflect")
    idx = (jnp.arange(num_frames)[:, None] * HOP_LENGTH
           + jnp.arange(N_FFT)[None, :])                          # (F, n_fft)
    return x_pad[:, idx]                                          # (B, F, n_fft)


def wav2spec_ref(x):
    x = x.astype(jnp.float32)
    F = 1 + x.shape[-1] // HOP_LENGTH
    frames = _frame_signal_gather(x, F)
    n = jnp.arange(N_FFT, dtype=jnp.float32)[:, None]
    f = jnp.arange(N_FREQS_FULL, dtype=jnp.float32)[None, :]
    ang = 2.0 * jnp.pi * n * f / N_FFT
    window = 0.5 * (1.0 - jnp.cos(2.0 * jnp.pi *
                                  jnp.arange(WIN_LENGTH, dtype=jnp.float32) / WIN_LENGTH))
    wcos = (window[:, None] * jnp.cos(ang)).astype(jnp.float32)
    wsin = (window[:, None] * jnp.sin(ang)).astype(jnp.float32)
    mel_fb = melscale_fbanks(N_FREQS_FULL, F_MIN, F_MAX, N_MELS, SAMPLE_RATE)
    re = jnp.einsum("bfn,nk->bfk", frames, wcos)
    im = jnp.einsum("bfn,nk->bfk", frames, wsin)
    power = re * re + im * im
    mel = jnp.einsum("bfk,km->bfm", power, mel_fb)
    db = 10.0 * jnp.log10(jnp.maximum(mel, AMIN))
    return jnp.transpose(db, (0, 2, 1))


if __name__ == "__main__":
    key = jax.random.PRNGKey(0)
    k1, k2 = jax.random.split(key)

    # Case 1: tiny clip (0.1 s at 32 kHz -> F=11 frames, single partially-junk tile).
    B1, N1 = 2, 3200
    x1 = jax.random.normal(k1, (B1, N1), dtype=jnp.float32)
    y1 = jax.block_until_ready(wav2spec_forward({"x": x1})["x"])
    F1 = 1 + N1 // HOP_LENGTH
    assert y1.shape == (B1, N_MELS, F1), y1.shape
    assert y1.dtype == jnp.float32
    y1_ref = jax.block_until_ready(wav2spec_ref(x1))
    err1 = float(jnp.max(jnp.abs(y1 - y1_ref)))
    assert jnp.allclose(y1, y1_ref, atol=5e-2, rtol=1e-3), err1

    # Case 2: multi-tile with a ragged tail (F=301 > tile_f=256, not a tile multiple);
    # exercises the junk-frame padding path and the multi-step grid.
    B2, N2 = 1, 96123
    x2 = jax.random.normal(k2, (B2, N2), dtype=jnp.float32)
    y2 = jax.block_until_ready(wav2spec(x2))
    F2 = 1 + N2 // HOP_LENGTH
    assert y2.shape == (B2, N_MELS, F2), y2.shape
    y2_ref = jax.block_until_ready(wav2spec_ref(x2))
    err2 = float(jnp.max(jnp.abs(y2 - y2_ref)))
    assert jnp.allclose(y2, y2_ref, atol=5e-2, rtol=1e-3), err2

    print("KERNEL_OK")
</pallas_src>

<mosaic_0001>
module attributes {stable_mosaic.version = 11 : i64} {
  func.func @wav2spec_kernel(%arg0: i32, %arg1: i32, %arg2: memref<1x16x1024xf32, #tpu.memory_space<vmem>>, %arg3: memref<1024x1024xbf16, #tpu.memory_space<vmem>>, %arg4: memref<1024x1024xbf16, #tpu.memory_space<vmem>>, %arg5: memref<512x128xf32, #tpu.memory_space<vmem>>, %arg6: memref<1x64x16xf32, #tpu.memory_space<vmem>>) attributes {dimension_semantics = [#tpu.dimension_semantics<parallel>, #tpu.dimension_semantics<parallel>], iteration_bounds = array<i64: 2, 1>, scalar_prefetch = 0 : i64, scratch_operands = 0 : i64, tpu.core_type = #tpu.core_type<tc>, window_params = [{transform_indices = @transform_0, window_bounds = array<i64: 1, 16, 1024>}, {pipeline_mode = #tpu.pipeline_mode<synchronous>, transform_indices = @transform_1, window_bounds = array<i64: 1024, 1024>}, {pipeline_mode = #tpu.pipeline_mode<synchronous>, transform_indices = @transform_2, window_bounds = array<i64: 1024, 1024>}, {pipeline_mode = #tpu.pipeline_mode<synchronous>, transform_indices = @transform_3, window_bounds = array<i64: 512, 128>}, {transform_indices = @transform_4, window_bounds = array<i64: 1, 64, 16>}]} {
    %c0 = arith.constant 0 : index
    %c0_0 = arith.constant 0 : index
    %c0_1 = arith.constant 0 : index
    %0 = vector.load %arg2[%c0, %c0_0, %c0_1] : memref<1x16x1024xf32, #tpu.memory_space<vmem>>, vector<1x16x1024xf32>
    %1 = vector.shape_cast %0 : vector<1x16x1024xf32> to vector<16x1024xf32>
    %2 = arith.truncf %1 : vector<16x1024xf32> to vector<16x1024xbf16>
    %3 = arith.extf %2 : vector<16x1024xbf16> to vector<16x1024xf32>
    %4 = arith.subf %1, %3 : vector<16x1024xf32>
    %5 = arith.truncf %4 : vector<16x1024xf32> to vector<16x1024xbf16>
    %c0_2 = arith.constant 0 : index
    %c0_3 = arith.constant 0 : index
    %6 = vector.load %arg3[%c0_2, %c0_3] : memref<1024x1024xbf16, #tpu.memory_space<vmem>>, vector<1024x1024xbf16>
    %cst = arith.constant dense<0.000000e+00> : vector<16x1024xf32>
    %7 = tpu.matmul %2, %6, %cst {dimension_numbers = #tpu.dot_dimension_numbers<[1], [0], [0], [1], [0, 0, 1, 1], [], []>} : vector<16x1024xbf16>, vector<1024x1024xbf16>, vector<16x1024xf32> -> vector<16x1024xf32>
    %c0_4 = arith.constant 0 : index
    %c0_5 = arith.constant 0 : index
    %8 = vector.load %arg3[%c0_4, %c0_5] : memref<1024x1024xbf16, #tpu.memory_space<vmem>>, vector<1024x1024xbf16>
    %cst_6 = arith.constant dense<0.000000e+00> : vector<16x1024xf32>
    %9 = tpu.matmul %5, %8, %cst_6 {dimension_numbers = #tpu.dot_dimension_numbers<[1], [0], [0], [1], [0, 0, 1, 1], [], []>} : vector<16x1024xbf16>, vector<1024x1024xbf16>, vector<16x1024xf32> -> vector<16x1024xf32>
    %10 = arith.addf %7, %9 : vector<16x1024xf32>
    %c0_7 = arith.constant 0 : index
    %c0_8 = arith.constant 0 : index
    %11 = vector.load %arg4[%c0_7, %c0_8] : memref<1024x1024xbf16, #tpu.memory_space<vmem>>, vector<1024x1024xbf16>
    %cst_9 = arith.constant dense<0.000000e+00> : vector<16x1024xf32>
    %12 = tpu.matmul %2, %11, %cst_9 {dimension_numbers = #tpu.dot_dimension_numbers<[1], [0], [0], [1], [0, 0, 1, 1], [], []>} : vector<16x1024xbf16>, vector<1024x1024xbf16>, vector<16x1024xf32> -> vector<16x1024xf32>
    %13 = arith.addf %10, %12 : vector<16x1024xf32>
    %14 = vector.extract_strided_slice %13 {offsets = [0, 0], sizes = [16, 512], strides = [1, 1]} : vector<16x1024xf32> to vector<16x512xf32>
    %15 = vector.extract_strided_slice %13 {offsets = [0, 512], sizes = [16, 512], strides = [1, 1]} : vector<16x1024xf32> to vector<16x512xf32>
    %16 = arith.mulf %14, %14 : vector<16x512xf32>
    %17 = arith.mulf %15, %15 : vector<16x512xf32>
    %18 = arith.addf %16, %17 : vector<16x512xf32>
    %c0_10 = arith.constant 0 : index
    %c0_11 = arith.constant 0 : index
    %19 = vector.load %arg5[%c0_10, %c0_11] : memref<512x128xf32, #tpu.memory_space<vmem>>, vector<512x128xf32>
    %cst_12 = arith.constant dense<0.000000e+00> : vector<16x128xf32>
    %20 = tpu.matmul %18, %19, %cst_12 {dimension_numbers = #tpu.dot_dimension_numbers<[1], [0], [0], [1], [0, 0, 1, 1], [], []>} : vector<16x512xf32>, vector<512x128xf32>, vector<16x128xf32> -> vector<16x128xf32>
    %21 = tpu.transpose %20, [1, 0] : vector<16x128xf32> -> vector<128x16xf32>
    %22 = vector.extract_strided_slice %21 {offsets = [0, 0], sizes = [64, 16], strides = [1, 1]} : vector<128x16xf32> to vector<64x16xf32>
    %cst_13 = arith.constant 1.000000e-10 : f32
    %23 = vector.broadcast %cst_13 : f32 to vector<64x16xf32>
    %24 = arith.maximumf %22, %23 : vector<64x16xf32>
    %25 = math.log %24 : vector<64x16xf32>
    %cst_14 = arith.constant 0.434294492 : f32
    %26 = vector.broadcast %cst_14 : f32 to vector<64x16xf32>
    %27 = arith.mulf %25, %26 : vector<64x16xf32>
    %cst_15 = arith.constant 1.000000e+01 : f32
    %28 = vector.broadcast %cst_15 : f32 to vector<64x16xf32>
    %29 = arith.mulf %28, %27 : vector<64x16xf32>
    %c0_16 = arith.constant 0 : index
    %c0_17 = arith.constant 0 : index
    %c0_18 = arith.constant 0 : index
    %30 = vector.load %arg6[%c0_16, %c0_17, %c0_18] : memref<1x64x16xf32, #tpu.memory_space<vmem>>, vector<1x64x16xf32>
    %31 = vector.shape_cast %30 : vector<1x64x16xf32> to vector<64x16xf32>
    %32 = vector.shape_cast %29 : vector<64x16xf32> to vector<1x64x16xf32>
    tpu.vector_store %arg6[%c0_16, %c0_17, %c0_18], %32 {strides = array<i32>} : memref<1x64x16xf32, #tpu.memory_space<vmem>>, vector<1x64x16xf32>,
    return
  }
  func.func @transform_0(%arg0: i32, %arg1: i32) -> (i32, i32, i32) {
    %c0_i32 = arith.constant 0 : i32
    %c0_i32_0 = arith.constant 0 : i32
    return %arg0, %arg1, %c0_i32 : i32, i32, i32
  }
  func.func @transform_1(%arg0: i32, %arg1: i32) -> (i32, i32) {
    %c0_i32 = arith.constant 0 : i32
    %c0_i32_0 = arith.constant 0 : i32
    %c0_i32_1 = arith.constant 0 : i32
    return %c0_i32, %c0_i32_0 : i32, i32
  }
  func.func @transform_2(%arg0: i32, %arg1: i32) -> (i32, i32) {
    %c0_i32 = arith.constant 0 : i32
    %c0_i32_0 = arith.constant 0 : i32
    %c0_i32_1 = arith.constant 0 : i32
    return %c0_i32, %c0_i32_0 : i32, i32
  }
  func.func @transform_3(%arg0: i32, %arg1: i32) -> (i32, i32) {
    %c0_i32 = arith.constant 0 : i32
    %c0_i32_0 = arith.constant 0 : i32
    %c0_i32_1 = arith.constant 0 : i32
    return %c0_i32, %c0_i32_0 : i32, i32
  }
  func.func @transform_4(%arg0: i32, %arg1: i32) -> (i32, i32, i32) {
    %c0_i32 = arith.constant 0 : i32
    %c0_i32_0 = arith.constant 0 : i32
    return %arg0, %c0_i32, %arg1 : i32, i32, i32
  }
}

</mosaic_0001>

<llo_original>
// kernel: wav2spec.1
$region0: #{wav2spec.1}
  #allocation0 [shape = 'u32[]', space=smem, size = 0x4, offset = 0x4, fixed_abs, tag = 'smem constant byte address 0x4 - core index']
  #allocation1 [shape = 'u32[72,128]{1,0:T(1,128)}', space=vmem, size = 0x9000, scoped, tag = 'internal scratch']
  %s0 = inlined_call_operand.vmem [shape: f32[2,16,1024], index: 0, kind: input, shape index: {}]
  %s1 = inlined_call_operand.vmem [shape: bf16[1024,1024], index: 1, kind: input, shape index: {}]
  %s2 = inlined_call_operand.vmem [shape: bf16[1024,1024], index: 2, kind: input, shape index: {}]
  %s3 = inlined_call_operand.vmem [shape: f32[512,128], index: 3, kind: input, shape index: {}]
  %s4 = inlined_call_operand.vmem [shape: f32[2,64,16], index: 4, kind: output, shape index: {}]
  %s5 = sld [smem:[#allocation0]]
  $region49: #{wav2spec.1} parent=0
    _
  %s7 = ssub.s32 1, %s5
  %s8 = scalar_select 0, %s7, %s5
  loop: start=0, step=1, limit=4
  $region2: #{wav2spec.1} parent=0 // loop_pre_header
    _
  $region3: #{wav2spec.1} parent=0 // loop_header
    %s10 = sphi 0, %s14
    %p11 = scmp.ge.s32.totalorder %s10, 4
    %s17 = sphi 0, %s29
    %s18 = sphi 0, %s25
    %s19 = sphi 0, %s17
    %s20 = sphi 0, %s18
    %s21 = sphi 0, %s19
    %s22 = sphi 0, %s20
    %s34 = sphi 0, %s36
    %s37 = sphi 0, %s34
    %s38 = sphi 0, %s37
    %s54 = sphi 0, %s38
    %s58 = sphi 0, %s58
    %s60 = sphi 0, %s58
    %s61 = sphi 0, %s60
    %s75 = sphi 0, %s61
    %s79 = sphi 0, %s79
    %s81 = sphi 0, %s79
    %s82 = sphi 0, %s81
    %s96 = sphi 0, %s82
    %s100 = sphi 0, %s100
    %s102 = sphi 0, %s100
    %s103 = sphi 0, %s102
    %s117 = sphi 0, %s103
    %s125 = sphi 0, %s127
    %s128 = sphi 0, %s125
    %s129 = sphi 0, %s128
    %s145 = sphi 0, %s129
  $region4: #{wav2spec.1} parent=0 // loop_header_branch
    %13 = sbr.rel (%p11) target = $region8
  $region5: #{wav2spec.1} parent=0 // loop_body
    %s15 = ssub.s32 %s10, 1
    %s16 = ssub.s32 %s10, 2
    %s23 = sadd.s32 1, %s18
    %p24 = scmp.ge.s32.totalorder %s23, 1
    %s25 = scalar_select %p24, 0, %s23
    %s26 = sadd.s32 1, %s17
    %s27 = scalar_select %p24, %s26, %s17
    %p28 = scmp.ge.s32.totalorder %s27, 2
    %s29 = scalar_select %p28, 0, %s27
    %s30 = ssub.s32 %s17, %s29
    %s31 = ssub.s32 %s18, %s25
    %s32 = sor.u32 %s30, %s31
    %p33 = scmp.eq.s32.totalorder %s32, 0
    %s35 = sadd.s32 %s34, 1
    %s36 = scalar_select %p33, %s34, %s35
    %p39 = pneg %p33
    %p40 = scmp.eq.s32.totalorder %s10, 1
    %p41 = por %p39, %p40
    %p42 = scmp.ne.s32.totalorder %s34, %s37
    %p43 = scmp.eq.s32.totalorder %s10, 0
    %p44 = por %p42, %p43
    %p45 = scmp.ne.s32.totalorder %s34, %s37
    %p46 = scmp.eq.s32.totalorder %s15, 1
    %p47 = por %p45, %p46
    %p48 = scmp.ne.s32.totalorder %s37, %s38
    %p49 = scmp.eq.s32.totalorder %s15, 0
    %p50 = por %p48, %p49
    %p51 = scmp.ne.s32.totalorder %s37, %s38
    %p52 = scmp.eq.s32.totalorder %s16, 1
    %p53 = por %p51, %p52
    %p55 = scmp.ne.s32.totalorder %s38, %s54
    %p56 = scmp.eq.s32.totalorder %s16, 0
    %p57 = por %p55, %p56
    %s59 = sadd.s32 %s58, 1
    %p62 = scmp.eq.s32.totalorder %s10, 1
    %p63 = scmp.ne.s32.totalorder %s58, %s60
    %p64 = scmp.eq.s32.totalorder %s10, 0
    %p65 = por %p63, %p64
    %p66 = scmp.ne.s32.totalorder %s58, %s60
    %p67 = scmp.eq.s32.totalorder %s15, 1
    %p68 = por %p66, %p67
    %p69 = scmp.ne.s32.totalorder %s60, %s61
    %p70 = scmp.eq.s32.totalorder %s15, 0
    %p71 = por %p69, %p70
    %p72 = scmp.ne.s32.totalorder %s60, %s61
    %p73 = scmp.eq.s32.totalorder %s16, 1
    %p74 = por %p72, %p73
    %p76 = scmp.ne.s32.totalorder %s61, %s75
    %p77 = scmp.eq.s32.totalorder %s16, 0
    %p78 = por %p76, %p77
    %s80 = sadd.s32 %s79, 1
    %p83 = scmp.eq.s32.totalorder %s10, 1
    %p84 = scmp.ne.s32.totalorder %s79, %s81
    %p85 = scmp.eq.s32.totalorder %s10, 0
    %p86 = por %p84, %p85
    %p87 = scmp.ne.s32.totalorder %s79, %s81
    %p88 = scmp.eq.s32.totalorder %s15, 1
    %p89 = por %p87, %p88
    %p90 = scmp.ne.s32.totalorder %s81, %s82
    %p91 = scmp.eq.s32.totalorder %s15, 0
    %p92 = por %p90, %p91
    %p93 = scmp.ne.s32.totalorder %s81, %s82
    %p94 = scmp.eq.s32.totalorder %s16, 1
    %p95 = por %p93, %p94
    %p97 = scmp.ne.s32.totalorder %s82, %s96
    %p98 = scmp.eq.s32.totalorder %s16, 0
    %p99 = por %p97, %p98
    %s101 = sadd.s32 %s100, 1
    %p104 = scmp.eq.s32.totalorder %s10, 1
    %p105 = scmp.ne.s32.totalorder %s100, %s102
    %p106 = scmp.eq.s32.totalorder %s10, 0
    %p107 = por %p105, %p106
    %p108 = scmp.ne.s32.totalorder %s100, %s102
    %p109 = scmp.eq.s32.totalorder %s15, 1
    %p110 = por %p108, %p109
    %p111 = scmp.ne.s32.totalorder %s102, %s103
    %p112 = scmp.eq.s32.totalorder %s15, 0
    %p113 = por %p111, %p112
    %p114 = scmp.ne.s32.totalorder %s102, %s103
    %p115 = scmp.eq.s32.totalorder %s16, 1
    %p116 = por %p114, %p115
    %p118 = scmp.ne.s32.totalorder %s103, %s117
    %p119 = scmp.eq.s32.totalorder %s16, 0
    %p120 = por %p118, %p119
    %s121 = ssub.s32 %s17, %s29
    %s122 = ssub.s32 %s18, %s25
    %s123 = sor.u32 %s121, %s122
    %p124 = scmp.eq.s32.totalorder %s123, 0
    %s126 = sadd.s32 %s125, 1
    %s127 = scalar_select %p124, %s125, %s126
    %p130 = pneg %p124
    %p131 = scmp.eq.s32.totalorder %s10, 1
    %p132 = por %p130, %p131
    %p133 = scmp.ne.s32.totalorder %s125, %s128
    %p134 = scmp.eq.s32.totalorder %s10, 0
    %p135 = por %p133, %p134
    %p136 = scmp.ne.s32.totalorder %s125, %s128
    %p137 = scmp.eq.s32.totalorder %s15, 1
    %p138 = por %p136, %p137
    %p139 = scmp.ne.s32.totalorder %s128, %s129
    %p140 = scmp.eq.s32.totalorder %s15, 0
    %p141 = por %p139, %p140
    %p142 = scmp.ne.s32.totalorder %s128, %s129
    %p143 = scmp.eq.s32.totalorder %s16, 1
    %p144 = por %p142, %p143
    %p146 = scmp.ne.s32.totalorder %s129, %s145
    %p147 = scmp.eq.s32.totalorder %s16, 0
    %p148 = por %p146, %p147
    %p149 = scmp.le.s32.totalorder 1, %s10
    %p150 = scmp.lt.s32.totalorder %s10, 3
    %p151 = pnand %p149, %p150
    %p152 = pneg %p151
    // Predicated region
    $region9: #{wav2spec.1} parent=5 // pred_check
      _
    $region10: #{wav2spec.1} parent=5 // pred_check_branch
      %154 = sbr.rel (%p151) target = $region12
    $region11: #{wav2spec.1} parent=5 // pred_region
      %s155 = ssub.s32 %s10, 1
      // Predicated region
      $region13: #{wav2spec.1} parent=11 // pred_check
        %p156 = pneg %p71
      $region14: #{wav2spec.1} parent=11 // pred_check_branch
        %158 = sbr.rel (%p156) target = $region16
      $region15: #{wav2spec.1} parent=11 // pred_region
        _
      $region16: #{wav2spec.1} parent=11 // pred_fallthru
        _
      // Predicated region
      $region17: #{wav2spec.1} parent=11 // pred_check
        %p159 = pneg %p92
      $region18: #{wav2spec.1} parent=11 // pred_check_branch
        %161 = sbr.rel (%p159) target = $region20
      $region19: #{wav2spec.1} parent=11 // pred_region
        _
      $region20: #{wav2spec.1} parent=11 // pred_fallthru
        _
      // Predicated region
      $region21: #{wav2spec.1} parent=11 // pred_check
        %p162 = pneg %p113
      $region22: #{wav2spec.1} parent=11 // pred_check_branch
        %164 = sbr.rel (%p162) target = $region24
      $region23: #{wav2spec.1} parent=11 // pred_region
        _
      $region24: #{wav2spec.1} parent=11 // pred_fallthru
        _
    $region12: #{wav2spec.1} parent=5 // pred_fallthru
      _
    %p165 = scmp.lt.s32.totalorder %s10, 2
    // Predicated region
    $region25: #{wav2spec.1} parent=5 // pred_check
      %p166 = pneg %p165
    $region26: #{wav2spec.1} parent=5 // pred_check_branch
      %168 = sbr.rel (%p166) target = $region28
    $region27: #{wav2spec.1} parent=5 // pred_region
      // Predicated region
      $region29: #{wav2spec.1} parent=27 // pred_check
        %p169 = pneg %p44
      $region30: #{wav2spec.1} parent=27 // pred_check_branch
        %171 = sbr.rel (%p169) target = $region32
      $region31: #{wav2spec.1} parent=27 // pred_region
        %s172 = smul.u32 2, %s18
        %p173 = scmp.lt.s32.totalorder %s17, 1
        %s174 = scalar_select %p173, %s17, 1
        %p175 = scmp.lt.s32.totalorder %s172, 1
        %s176 = scalar_select %p175, %s172, 1
        %s177 = smul.addr %s176, 8
        %s178 = smul.addr %s174, 16
        %s179 = sadd.s32 %s177, %s178
        %s180 = smul.addr %s179, 8
        %s181 = scalar_lea.vmem %s0, %s180
        %s182 = smul.u32 2, %s18
      $region32: #{wav2spec.1} parent=27 // pred_fallthru
        _
    $region28: #{wav2spec.1} parent=5 // pred_fallthru
      _
    %p183 = scmp.le.s32.totalorder 1, %s10
    %p184 = scmp.lt.s32.totalorder %s10, 3
    %p185 = pnand %p183, %p184
    %p186 = pneg %p185
    // Predicated region
    $region33: #{wav2spec.1} parent=5 // pred_check
      _
    $region34: #{wav2spec.1} parent=5 // pred_check_branch
      %188 = sbr.rel (%p185) target = $region36
    $region35: #{wav2spec.1} parent=5 // pred_region
      %s189 = ssub.s32 %s10, 1
      %s190 = smul.u32 2, %s20
      %p191 = scmp.lt.s32.totalorder %s19, 1
      %s192 = scalar_select %p191, %s19, 1
      %p193 = scmp.lt.s32.totalorder %s190, 1
      %s194 = scalar_select %p193, %s190, 1
      %s195 = smul.addr %s194, 8
      %s196 = smul.addr %s192, 16
      %s197 = sadd.s32 %s195, %s196
      %s198 = smul.addr %s197, 8
      %s199 = scalar_lea.vmem %s0, %s198
      %p200 = pneg %p50
      %p201 = pneg %p47
      %p202 = pneg %p71
      %p203 = pneg %p68
      %p204 = pneg %p92
      %p205 = pneg %p89
      %p206 = pneg %p113
      %p207 = pneg %p110
      %p208 = pneg %p141
      %p209 = pneg %p138
      %p210 = scmp.lt.s32.totalorder %s19, 1
      %s211 = scalar_select %p210, %s19, 1
      %p212 = scmp.lt.s32.totalorder %s20, 0
      %s213 = scalar_select %p212, %s20, 0
      %s214 = smul.addr %s211, 8
      %s215 = sadd.s32 %s213, %s214
      %s216 = smul.addr %s215, 8
      %s217 = scalar_lea.vmem %s4, %s216
      %s218 = smul.u32 2, %s20
      %p219 = scmp.lt.s32.totalorder %s19, 1
      %s220 = scalar_select %p219, %s19, 1
      %p221 = scmp.lt.s32.totalorder %s218, 1
      %s222 = scalar_select %p221, %s218, 1
      %s223 = smul.addr %s222, 8
      %s224 = smul.addr %s220, 16
      %s225 = sadd.s32 %s223, %s224
      %s226 = smul.addr %s225, 8
      %s227 = scalar_lea.vmem %s0, %s226
      %s228 = smul.u32 2, %s20
      %p229 = scmp.lt.s32.totalorder %s19, 1
      %s230 = scalar_select %p229, %s19, 1
      %p231 = scmp.lt.s32.totalorder %s20, 0
      %s232 = scalar_select %p231, %s20, 0
      %s233 = smul.addr %s230, 8
      %s234 = sadd.s32 %s232, %s233
      %s235 = smul.addr %s234, 8
      %s236 = scalar_lea.vmem %s4, %s235
      %v237 = vld [vmem:[%s227] sm:$0xff]
      %v238 = vld [vmem:[%s227 + $0x8] sm:$0xff]
      %v239 = vld [vmem:[%s227 + $0x10] sm:$0xff]
      %v240 = vld [vmem:[%s227 + $0x18] sm:$0xff]
      %v241 = vld [vmem:[%s227 + $0x20] sm:$0xff]
      %v242 = vld [vmem:[%s227 + $0x28] sm:$0xff]
      %v243 = vld [vmem:[%s227 + $0x30] sm:$0xff]
      %v244 = vld [vmem:[%s227 + $0x38] sm:$0xff]
      %v245 = vld [vmem:[%s227 + $0x40] sm:$0xff]
      %v246 = vld [vmem:[%s227 + $0x48] sm:$0xff]
      %v247 = vld [vmem:[%s227 + $0x50] sm:$0xff]
      %v248 = vld [vmem:[%s227 + $0x58] sm:$0xff]
      %v249 = vld [vmem:[%s227 + $0x60] sm:$0xff]
      %v250 = vld [vmem:[%s227 + $0x68] sm:$0xff]
      %v251 = vld [vmem:[%s227 + $0x70] sm:$0xff]
      %v252 = vld [vmem:[%s227 + $0x78] sm:$0xff]
      %v253 = vpack.c.bf16 %v238, %v237
      %v254 = vpack.c.bf16 %v240, %v239
      %v255 = vpack.c.bf16 %v242, %v241
      %v256 = vpack.c.bf16 %v244, %v243
      %v257 = vpack.c.bf16 %v246, %v245
      %v258 = vpack.c.bf16 %v248, %v247
      %v259 = vpack.c.bf16 %v250, %v249
      %v260 = vpack.c.bf16 %v252, %v251
      %v261 = vunpack.c.l.bf16 %v253
      %v262 = vunpack.c.h.bf16 %v253
      %v263 = vunpack.c.l.bf16 %v254
      %v264 = vunpack.c.h.bf16 %v254
      %v265 = vunpack.c.l.bf16 %v255
      %v266 = vunpack.c.h.bf16 %v255
      %v267 = vunpack.c.l.bf16 %v256
      %v268 = vunpack.c.h.bf16 %v256
      %v269 = vunpack.c.l.bf16 %v257
      %v270 = vunpack.c.h.bf16 %v257
      %v271 = vunpack.c.l.bf16 %v258
      %v272 = vunpack.c.h.bf16 %v258
      %v273 = vunpack.c.l.bf16 %v259
      %v274 = vunpack.c.h.bf16 %v259
      %v275 = vunpack.c.l.bf16 %v260
      %v276 = vunpack.c.h.bf16 %v260
      %v277 = vsub.f32 %v237, %v261
      %v278 = vsub.f32 %v238, %v262
      %v279 = vsub.f32 %v239, %v263
      %v280 = vsub.f32 %v240, %v264
      %v281 = vsub.f32 %v241, %v265
      %v282 = vsub.f32 %v242, %v266
      %v283 = vsub.f32 %v243, %v267
      %v284 = vsub.f32 %v244, %v268
      %v285 = vsub.f32 %v245, %v269
      %v286 = vsub.f32 %v246, %v270
      %v287 = vsub.f32 %v247, %v271
      %v288 = vsub.f32 %v248, %v272
      %v289 = vsub.f32 %v249, %v273
      %v290 = vsub.f32 %v250, %v274
      %v291 = vsub.f32 %v251, %v275
      %v292 = vsub.f32 %v252, %v276
      %v293 = vpack.c.bf16 %v285, %v277
      %v294 = vpack.c.bf16 %v286, %v278
      %v295 = vpack.c.bf16 %v287, %v279
      %v296 = vpack.c.bf16 %v288, %v280
      %v297 = vpack.c.bf16 %v289, %v281
      %v298 = vpack.c.bf16 %v290, %v282
      %v299 = vpack.c.bf16 %v291, %v283
      %v300 = vpack.c.bf16 %v292, %v284
      %v301 = vld [vmem:[%s1] sm:$0xff]
      %v302 = vld [vmem:[%s1 + $0x8] sm:$0xff]
      %v303 = vld [vmem:[%s1 + $0x10] sm:$0xff]
      %v304 = vld [vmem:[%s1 + $0x18] sm:$0xff]
      %v305 = vld [vmem:[%s1 + $0x20] sm:$0xff]
      %v306 = vld [vmem:[%s1 + $0x28] sm:$0xff]
      %v307 = vld [vmem:[%s1 + $0x30] sm:$0xff]
      %v308 = vld [vmem:[%s1 + $0x38] sm:$0xff]
      %v309 = vld [vmem:[%s1 + $0x40] sm:$0xff]
      %v310 = vld [vmem:[%s1 + $0x48] sm:$0xff]
      %v311 = vld [vmem:[%s1 + $0x50] sm:$0xff]
      %v312 = vld [vmem:[%s1 + $0x58] sm:$0xff]
      %v313 = vld [vmem:[%s1 + $0x60] sm:$0xff]
      %v314 = vld [vmem:[%s1 + $0x68] sm:$0xff]
      %v315 = vld [vmem:[%s1 + $0x70] sm:$0xff]
      %v316 = vld [vmem:[%s1 + $0x78] sm:$0xff]
      %v317 = vld [vmem:[%s1 + $0x80] sm:$0xff]
      %v318 = vld [vmem:[%s1 + $0x88] sm:$0xff]
      %v319 = vld [vmem:[%s1 + $0x90] sm:$0xff]
      %v320 = vld [vmem:[%s1 + $0x98] sm:$0xff]
      %v321 = vld [vmem:[%s1 + $0xa0] sm:$0xff]
      %v322 = vld [vmem:[%s1 + $0xa8] sm:$0xff]
      %v323 = vld [vmem:[%s1 + $0xb0] sm:$0xff]
      %v324 = vld [vmem:[%s1 + $0xb8] sm:$0xff]
      %v325 = vld [vmem:[%s1 + $0xc0] sm:$0xff]
      %v326 = vld [vmem:[%s1 + $0xc8] sm:$0xff]
      %v327 = vld [vmem:[%s1 + $0xd0] sm:$0xff]
      %v328 = vld [vmem:[%s1 + $0xd8] sm:$0xff]
      %v329 = vld [vmem:[%s1 + $0xe0] sm:$0xff]
      %v330 = vld [vmem:[%s1 + $0xe8] sm:$0xff]
      %v331 = vld [vmem:[%s1 + $0xf0] sm:$0xff]
      %v332 = vld [vmem:[%s1 + $0xf8] sm:$0xff]
      %v333 = vld [vmem:[%s1 + $0x100] sm:$0xff]
      %v334 = vld [vmem:[%s1 + $0x108] sm:$0xff]
      %v335 = vld [vmem:[%s1 + $0x110] sm:$0xff]
      %v336 = vld [vmem:[%s1 + $0x118] sm:$0xff]
      %v337 = vld [vmem:[%s1 + $0x120] sm:$0xff]
      %v338 = vld [vmem:[%s1 + $0x128] sm:$0xff]
      %v339 = vld [vmem:[%s1 + $0x130] sm:$0xff]
      %v340 = vld [vmem:[%s1 + $0x138] sm:$0xff]
      %v341 = vld [vmem:[%s1 + $0x140] sm:$0xff]
      %v342 = vld [vmem:[%s1 + $0x148] sm:$0xff]
      %v343 = vld [vmem:[%s1 + $0x150] sm:$0xff]
      %v344 = vld [vmem:[%s1 + $0x158] sm:$0xff]
      %v345 = vld [vmem:[%s1 + $0x160] sm:$0xff]
      %v346 = vld [vmem:[%s1 + $0x168] sm:$0xff]
      %v347 = vld [vmem:[%s1 + $0x170] sm:$0xff]
      %v348 = vld [vmem:[%s1 + $0x178] sm:$0xff]
      %v349 = vld [vmem:[%s1 + $0x180] sm:$0xff]
      %v350 = vld [vmem:[%s1 + $0x188] sm:$0xff]
      %v351 = vld [vmem:[%s1 + $0x190] sm:$0xff]
      %v352 = vld [vmem:[%s1 + $0x198] sm:$0xff]
      %v353 = vld [vmem:[%s1 + $0x1a0] sm:$0xff]
      %v354 = vld [vmem:[%s1 + $0x1a8] sm:$0xff]
      %v355 = vld [vmem:[%s1 + $0x1b0] sm:$0xff]
      %v356 = vld [vmem:[%s1 + $0x1b8] sm:$0xff]
      %v357 = vld [vmem:[%s1 + $0x1c0] sm:$0xff]
      %v358 = vld [vmem:[%s1 + $0x1c8] sm:$0xff]
      %v359 = vld [vmem:[%s1 + $0x1d0] sm:$0xff]
      %v360 = vld [vmem:[%s1 + $0x1d8] sm:$0xff]
      %v361 = vld [vmem:[%s1 + $0x1e0] sm:$0xff]
      %v362 = vld [vmem:[%s1 + $0x1e8] sm:$0xff]
      %v363 = vld [vmem:[%s1 + $0x1f0] sm:$0xff]
      %v364 = vld [vmem:[%s1 + $0x1f8] sm:$0xff]
      %v365 = vld [vmem:[%s1 + $0x200] sm:$0xff]
      %v366 = vld [vmem:[%s1 + $0x208] sm:$0xff]
      %v367 = vld [vmem:[%s1 + $0x210] sm:$0xff]
      %v368 = vld [vmem:[%s1 + $0x218] sm:$0xff]
      %v369 = vld [vmem:[%s1 + $0x220] sm:$0xff]
      %v370 = vld [vmem:[%s1 + $0x228] sm:$0xff]
      %v371 = vld [vmem:[%s1 + $0x230] sm:$0xff]
      %v372 = vld [vmem:[%s1 + $0x238] sm:$0xff]
      %v373 = vld [vmem:[%s1 + $0x240] sm:$0xff]
      %v374 = vld [vmem:[%s1 + $0x248] sm:$0xff]
      %v375 = vld [vmem:[%s1 + $0x250] sm:$0xff]
      %v376 = vld [vmem:[%s1 + $0x258] sm:$0xff]
      %v377 = vld [vmem:[%s1 + $0x260] sm:$0xff]
      %v378 = vld [vmem:[%s1 + $0x268] sm:$0xff]
      %v379 = vld [vmem:[%s1 + $0x270] sm:$0xff]
      %v380 = vld [vmem:[%s1 + $0x278] sm:$0xff]
      %v381 = vld [vmem:[%s1 + $0x280] sm:$0xff]
      %v382 = vld [vmem:[%s1 + $0x288] sm:$0xff]
      %v383 = vld [vmem:[%s1 + $0x290] sm:$0xff]
      %v384 = vld [vmem:[%s1 + $0x298] sm:$0xff]
      %v385 = vld [vmem:[%s1 + $0x2a0] sm:$0xff]
      %v386 = vld [vmem:[%s1 + $0x2a8] sm:$0xff]
      %v387 = vld [vmem:[%s1 + $0x2b0] sm:$0xff]
      %v388 = vld [vmem:[%s1 + $0x2b8] sm:$0xff]
      %v389 = vld [vmem:[%s1 + $0x2c0] sm:$0xff]
      %v390 = vld [vmem:[%s1 + $0x2c8] sm:$0xff]
      %v391 = vld [vmem:[%s1 + $0x2d0] sm:$0xff]
      %v392 = vld [vmem:[%s1 + $0x2d8] sm:$0xff]
      %v393 = vld [vmem:[%s1 + $0x2e0] sm:$0xff]
      %v394 = vld [vmem:[%s1 + $0x2e8] sm:$0xff]
      %v395 = vld [vmem:[%s1 + $0x2f0] sm:$0xff]
      %v396 = vld [vmem:[%s1 + $0x2f8] sm:$0xff]
      %v397 = vld [vmem:[%s1 + $0x300] sm:$0xff]
      %v398 = vld [vmem:[%s1 + $0x308] sm:$0xff]
      %v399 = vld [vmem:[%s1 + $0x310] sm:$0xff]
      %v400 = vld [vmem:[%s1 + $0x318] sm:$0xff]
      %v401 = vld [vmem:[%s1 + $0x320] sm:$0xff]
      %v402 = vld [vmem:[%s1 + $0x328] sm:$0xff]
      %v403 = vld [vmem:[%s1 + $0x330] sm:$0xff]
      %v404 = vld [vmem:[%s1 + $0x338] sm:$0xff]
      %v405 = vld [vmem:[%s1 + $0x340] sm:$0xff]
      %v406 = vld [vmem:[%s1 + $0x348] sm:$0xff]
      %v407 = vld [vmem:[%s1 + $0x350] sm:$0xff]
      %v408 = vld [vmem:[%s1 + $0x358] sm:$0xff]
      %v409 = vld [vmem:[%s1 + $0x360] sm:$0xff]
      %v410 = vld [vmem:[%s1 + $0x368] sm:$0xff]
      %v411 = vld [vmem:[%s1 + $0x370] sm:$0xff]
      %v412 = vld [vmem:[%s1 + $0x378] sm:$0xff]
      %v413 = vld [vmem:[%s1 + $0x380] sm:$0xff]
      %v414 = vld [vmem:[%s1 + $0x388] sm:$0xff]
      %v415 = vld [vmem:[%s1 + $0x390] sm:$0xff]
      %v416 = vld [vmem:[%s1 + $0x398] sm:$0xff]
      %v417 = vld [vmem:[%s1 + $0x3a0] sm:$0xff]
      %v418 = vld [vmem:[%s1 + $0x3a8] sm:$0xff]
      %v419 = vld [vmem:[%s1 + $0x3b0] sm:$0xff]
      %v420 = vld [vmem:[%s1 + $0x3b8] sm:$0xff]
      %v421 = vld [vmem:[%s1 + $0x3c0] sm:$0xff]
      %v422 = vld [vmem:[%s1 + $0x3c8] sm:$0xff]
      %v423 = vld [vmem:[%s1 + $0x3d0] sm:$0xff]
      %v424 = vld [vmem:[%s1 + $0x3d8] sm:$0xff]
      %v425 = vld [vmem:[%s1 + $0x3e0] sm:$0xff]
      %v426 = vld [vmem:[%s1 + $0x3e8] sm:$0xff]
      %v427 = vld [vmem:[%s1 + $0x3f0] sm:$0xff]
      %v428 = vld [vmem:[%s1 + $0x3f8] sm:$0xff]
      %v429 = vld [vmem:[%s1 + $0x400] sm:$0xff]
      %v430 = vld [vmem:[%s1 + $0x408] sm:$0xff]
      %v431 = vld [vmem:[%s1 + $0x410] sm:$0xff]
      %v432 = vld [vmem:[%s1 + $0x418] sm:$0xff]
      %v433 = vld [vmem:[%s1 + $0x420] sm:$0xff]
      %v434 = vld [vmem:[%s1 + $0x428] sm:$0xff]
      %v435 = vld [vmem:[%s1 + $0x430] sm:$0xff]
      %v436 = vld [vmem:[%s1 + $0x438] sm:$0xff]
      %v437 = vld [vmem:[%s1 + $0x440] sm:$0xff]
      %v438 = vld [vmem:[%s1 + $0x448] sm:$0xff]
      %v439 = vld [vmem:[%s1 + $0x450] sm:$0xff]
      %v440 = vld [vmem:[%s1 + $0x458] sm:$0xff]
      %v441 = vld [vmem:[%s1 + $0x460] sm:$0xff]
      %v442 = vld [vmem:[%s1 + $0x468] sm:$0xff]
      %v443 = vld [vmem:[%s1 + $0x470] sm:$0xff]
      %v444 = vld [vmem:[%s1 + $0x478] sm:$0xff]
      %v445 = vld [vmem:[%s1 + $0x480] sm:$0xff]
      %v446 = vld [vmem:[%s1 + $0x488] sm:$0xff]
      %v447 = vld [vmem:[%s1 + $0x490] sm:$0xff]
      %v448 = vld [vmem:[%s1 + $0x498] sm:$0xff]
      %v449 = vld [vmem:[%s1 + $0x4a0] sm:$0xff]
      %v450 = vld [vmem:[%s1 + $0x4a8] sm:$0xff]
      %v451 = vld [vmem:[%s1 + $0x4b0] sm:$0xff]
      %v452 = vld [vmem:[%s1 + $0x4b8] sm:$0xff]
      %v453 = vld [vmem:[%s1 + $0x4c0] sm:$0xff]
      %v454 = vld [vmem:[%s1 + $0x4c8] sm:$0xff]
      %v455 = vld [vmem:[%s1 + $0x4d0] sm:$0xff]
      %v456 = vld [vmem:[%s1 + $0x4d8] sm:$0xff]
      %v457 = vld [vmem:[%s1 + $0x4e0] sm:$0xff]
      %v458 = vld [vmem:[%s1 + $0x4e8] sm:$0xff]
      %v459 = vld [vmem:[%s1 + $0x4f0] sm:$0xff]
      %v460 = vld [vmem:[%s1 + $0x4f8] sm:$0xff]
      %v461 = vld [vmem:[%s1 + $0x500] sm:$0xff]
      %v462 = vld [vmem:[%s1 + $0x508] sm:$0xff]
      %v463 = vld [vmem:[%s1 + $0x510] sm:$0xff]
      %v464 = vld [vmem:[%s1 + $0x518] sm:$0xff]
      %v465 = vld [vmem:[%s1 + $0x520] sm:$0xff]
      %v466 = vld [vmem:[%s1 + $0x528] sm:$0xff]
      %v467 = vld [vmem:[%s1 + $0x530] sm:$0xff]
      %v468 = vld [vmem:[%s1 + $0x538] sm:$0xff]
      %v469 = vld [vmem:[%s1 + $0x540] sm:$0xff]
      %v470 = vld [vmem:[%s1 + $0x548] sm:$0xff]
      %v471 = vld [vmem:[%s1 + $0x550] sm:$0xff]
      %v472 = vld [vmem:[%s1 + $0x558] sm:$0xff]
      %v473 = vld [vmem:[%s1 + $0x560] sm:$0xff]
      %v474 = vld [vmem:[%s1 + $0x568] sm:$0xff]
      %v475 = vld [vmem:[%s1 + $0x570] sm:$0xff]
      %v476 = vld [vmem:[%s1 + $0x578] sm:$0xff]
      %v477 = vld [vmem:[%s1 + $0x580] sm:$0xff]
      %v478 = vld [vmem:[%s1 + $0x588] sm:$0xff]
      %v479 = vld [vmem:[%s1 + $0x590] sm:$0xff]
      %v480 = vld [vmem:[%s1 + $0x598] sm:$0xff]
      %v481 = vld [vmem:[%s1 + $0x5a0] sm:$0xff]
      %v482 = vld [vmem:[%s1 + $0x5a8] sm:$0xff]
      %v483 = vld [vmem:[%s1 + $0x5b0] sm:$0xff]
      %v484 = vld [vmem:[%s1 + $0x5b8] sm:$0xff]
      %v485 = vld [vmem:[%s1 + $0x5c0] sm:$0xff]
      %v486 = vld [vmem:[%s1 + $0x5c8] sm:$0xff]
      %v487 = vld [vmem:[%s1 + $0x5d0] sm:$0xff]
      %v488 = vld [vmem:[%s1 + $0x5d8] sm:$0xff]
      %v489 = vld [vmem:[%s1 + $0x5e0] sm:$0xff]
      %v490 = vld [vmem:[%s1 + $0x5e8] sm:$0xff]
      %v491 = vld [vmem:[%s1 + $0x5f0] sm:$0xff]
      %v492 = vld [vmem:[%s1 + $0x5f8] sm:$0xff]
      %v493 = vld [vmem:[%s1 + $0x600] sm:$0xff]
      %v494 = vld [vmem:[%s1 + $0x608] sm:$0xff]
      %v495 = vld [vmem:[%s1 + $0x610] sm:$0xff]
      %v496 = vld [vmem:[%s1 + $0x618] sm:$0xff]
      %v497 = vld [vmem:[%s1 + $0x620] sm:$0xff]
      %v498 = vld [vmem:[%s1 + $0x628] sm:$0xff]
      %v499 = vld [vmem:[%s1 + $0x630] sm:$0xff]
      %v500 = vld [vmem:[%s1 + $0x638] sm:$0xff]
      %v501 = vld [vmem:[%s1 + $0x640] sm:$0xff]
      %v502 = vld [vmem:[%s1 + $0x648] sm:$0xff]
      %v503 = vld [vmem:[%s1 + $0x650] sm:$0xff]
      %v504 = vld [vmem:[%s1 + $0x658] sm:$0xff]
      %v505 = vld [vmem:[%s1 + $0x660] sm:$0xff]
      %v506 = vld [vmem:[%s1 + $0x668] sm:$0xff]
      %v507 = vld [vmem:[%s1 + $0x670] sm:$0xff]
      %v508 = vld [vmem:[%s1 + $0x678] sm:$0xff]
      %v509 = vld [vmem:[%s1 + $0x680] sm:$0xff]
      %v510 = vld [vmem:[%s1 + $0x688] sm:$0xff]
      %v511 = vld [vmem:[%s1 + $0x690] sm:$0xff]
      %v512 = vld [vmem:[%s1 + $0x698] sm:$0xff]
      %v513 = vld [vmem:[%s1 + $0x6a0] sm:$0xff]
      %v514 = vld [vmem:[%s1 + $0x6a8] sm:$0xff]
      %v515 = vld [vmem:[%s1 + $0x6b0] sm:$0xff]
      %v516 = vld [vmem:[%s1 + $0x6b8] sm:$0xff]
      %v517 = vld [vmem:[%s1 + $0x6c0] sm:$0xff]
      %v518 = vld [vmem:[%s1 + $0x6c8] sm:$0xff]
      %v519 = vld [vmem:[%s1 + $0x6d0] sm:$0xff]
      %v520 = vld [vmem:[%s1 + $0x6d8] sm:$0xff]
      %v521 = vld [vmem:[%s1 + $0x6e0] sm:$0xff]
      %v522 = vld [vmem:[%s1 + $0x6e8] sm:$0xff]
      %v523 = vld [vmem:[%s1 + $0x6f0] sm:$0xff]
      %v524 = vld [vmem:[%s1 + $0x6f8] sm:$0xff]
      %v525 = vld [vmem:[%s1 + $0x700] sm:$0xff]
      %v526 = vld [vmem:[%s1 + $0x708] sm:$0xff]
      %v527 = vld [vmem:[%s1 + $0x710] sm:$0xff]
      %v528 = vld [vmem:[%s1 + $0x718] sm:$0xff]
      %v529 = vld [vmem:[%s1 + $0x720] sm:$0xff]
      %v530 = vld [vmem:[%s1 + $0x728] sm:$0xff]
      %v531 = vld [vmem:[%s1 + $0x730] sm:$0xff]
      %v532 = vld [vmem:[%s1 + $0x738] sm:$0xff]
      %v533 = vld [vmem:[%s1 + $0x740] sm:$0xff]
      %v534 = vld [vmem:[%s1 + $0x748] sm:$0xff]
      %v535 = vld [vmem:[%s1 + $0x750] sm:$0xff]
      %v536 = vld [vmem:[%s1 + $0x758] sm:$0xff]
      %v537 = vld [vmem:[%s1 + $0x760] sm:$0xff]
      %v538 = vld [vmem:[%s1 + $0x768] sm:$0xff]
      %v539 = vld [vmem:[%s1 + $0x770] sm:$0xff]
      %v540 = vld [vmem:[%s1 + $0x778] sm:$0xff]
      %v541 = vld [vmem:[%s1 + $0x780] sm:$0xff]
      %v542 = vld [vmem:[%s1 + $0x788] sm:$0xff]
      %v543 = vld [vmem:[%s1 + $0x790] sm:$0xff]
      %v544 = vld [vmem:[%s1 + $0x798] sm:$0xff]
      %v545 = vld [vmem:[%s1 + $0x7a0] sm:$0xff]
      %v546 = vld [vmem:[%s1 + $0x7a8] sm:$0xff]
      %v547 = vld [vmem:[%s1 + $0x7b0] sm:$0xff]
      %v548 = vld [vmem:[%s1 + $0x7b8] sm:$0xff]
      %v549 = vld [vmem:[%s1 + $0x7c0] sm:$0xff]
      %v550 = vld [vmem:[%s1 + $0x7c8] sm:$0xff]
      %v551 = vld [vmem:[%s1 + $0x7d0] sm:$0xff]
      %v552 = vld [vmem:[%s1 + $0x7d8] sm:$0xff]
      %v553 = vld [vmem:[%s1 + $0x7e0] sm:$0xff]
      %v554 = vld [vmem:[%s1 + $0x7e8] sm:$0xff]
      %v555 = vld [vmem:[%s1 + $0x7f0] sm:$0xff]
      %v556 = vld [vmem:[%s1 + $0x7f8] sm:$0xff]
      %v557 = vld [vmem:[%s1 + $0x800] sm:$0xff]
      %v558 = vld [vmem:[%s1 + $0x808] sm:$0xff]
      %v559 = vld [vmem:[%s1 + $0x810] sm:$0xff]
      %v560 = vld [vmem:[%s1 + $0x818] sm:$0xff]
      %v561 = vld [vmem:[%s1 + $0x820] sm:$0xff]
      %v562 = vld [vmem:[%s1 + $0x828] sm:$0xff]
      %v563 = vld [vmem:[%s1 + $0x830] sm:$0xff]
      %v564 = vld [vmem:[%s1 + $0x838] sm:$0xff]
      %v565 = vld [vmem:[%s1 + $0x840] sm:$0xff]
      %v566 = vld [vmem:[%s1 + $0x848] sm:$0xff]
      %v567 = vld [vmem:[%s1 + $0x850] sm:$0xff]
      %v568 = vld [vmem:[%s1 + $0x858] sm:$0xff]
      %v569 = vld [vmem:[%s1 + $0x860] sm:$0xff]
      %v570 = vld [vmem:[%s1 + $0x868] sm:$0xff]
      %v571 = vld [vmem:[%s1 + $0x870] sm:$0xff]
      %v572 = vld [vmem:[%s1 + $0x878] sm:$0xff]
      %v573 = vld [vmem:[%s1 + $0x880] sm:$0xff]
      %v574 = vld [vmem:[%s1 + $0x888] sm:$0xff]
      %v575 = vld [vmem:[%s1 + $0x890] sm:$0xff]
      %v576 = vld [vmem:[%s1 + $0x898] sm:$0xff]
      %v577 = vld [vmem:[%s1 + $0x8a0] sm:$0xff]
      %v578 = vld [vmem:[%s1 + $0x8a8] sm:$0xff]
      %v579 = vld [vmem:[%s1 + $0x8b0] sm:$0xff]
      %v580 = vld [vmem:[%s1 + $0x8b8] sm:$0xff]
      %v581 = vld [vmem:[%s1 + $0x8c0] sm:$0xff]
      %v582 = vld [vmem:[%s1 + $0x8c8] sm:$0xff]
      %v583 = vld [vmem:[%s1 + $0x8d0] sm:$0xff]
      %v584 = vld [vmem:[%s1 + $0x8d8] sm:$0xff]
      %v585 = vld [vmem:[%s1 + $0x8e0] sm:$0xff]
      %v586 = vld [vmem:[%s1 + $0x8e8] sm:$0xff]
      %v587 = vld [vmem:[%s1 + $0x8f0] sm:$0xff]
      %v588 = vld [vmem:[%s1 + $0x8f8] sm:$0xff]
      %v589 = vld [vmem:[%s1 + $0x900] sm:$0xff]
      %v590 = vld [vmem:[%s1 + $0x908] sm:$0xff]
      %v591 = vld [vmem:[%s1 + $0x910] sm:$0xff]
      %v592 = vld [vmem:[%s1 + $0x918] sm:$0xff]
      %v593 = vld [vmem:[%s1 + $0x920] sm:$0xff]
      %v594 = vld [vmem:[%s1 + $0x928] sm:$0xff]
      %v595 = vld [vmem:[%s1 + $0x930] sm:$0xff]
      %v596 = vld [vmem:[%s1 + $0x938] sm:$0xff]
      %v597 = vld [vmem:[%s1 + $0x940] sm:$0xff]
      %v598 = vld [vmem:[%s1 + $0x948] sm:$0xff]
      %v599 = vld [vmem:[%s1 + $0x950] sm:$0xff]
      %v600 = vld [vmem:[%s1 + $0x958] sm:$0xff]
      %v601 = vld [vmem:[%s1 + $0x960] sm:$0xff]
      %v602 = vld [vmem:[%s1 + $0x968] sm:$0xff]
      %v603 = vld [vmem:[%s1 + $0x970] sm:$0xff]
      %v604 = vld [vmem:[%s1 + $0x978] sm:$0xff]
      %v605 = vld [vmem:[%s1 + $0x980] sm:$0xff]
      %v606 = vld [vmem:[%s1 + $0x988] sm:$0xff]
      %v607 = vld [vmem:[%s1 + $0x990] sm:$0xff]
      %v608 = vld [vmem:[%s1 + $0x998] sm:$0xff]
      %v609 = vld [vmem:[%s1 + $0x9a0] sm:$0xff]
      %v610 = vld [vmem:[%s1 + $0x9a8] sm:$0xff]
      %v611 = vld [vmem:[%s1 + $0x9b0] sm:$0xff]
      %v612 = vld [vmem:[%s1 + $0x9b8] sm:$0xff]
      %v613 = vld [vmem:[%s1 + $0x9c0] sm:$0xff]
      %v614 = vld [vmem:[%s1 + $0x9c8] sm:$0xff]
      %v615 = vld [vmem:[%s1 + $0x9d0] sm:$0xff]
      %v616 = vld [vmem:[%s1 + $0x9d8] sm:$0xff]
      %v617 = vld [vmem:[%s1 + $0x9e0] sm:$0xff]
      %v618 = vld [vmem:[%s1 + $0x9e8] sm:$0xff]
      %v619 = vld [vmem:[%s1 + $0x9f0] sm:$0xff]
      %v620 = vld [vmem:[%s1 + $0x9f8] sm:$0xff]
      %v621 = vld [vmem:[%s1 + $0xa00] sm:$0xff]
      %v622 = vld [vmem:[%s1 + $0xa08] sm:$0xff]
      %v623 = vld [vmem:[%s1 + $0xa10] sm:$0xff]
      %v624 = vld [vmem:[%s1 + $0xa18] sm:$0xff]
      %v625 = vld [vmem:[%s1 + $0xa20] sm:$0xff]
      %v626 = vld [vmem:[%s1 + $0xa28] sm:$0xff]
      %v627 = vld [vmem:[%s1 + $0xa30] sm:$0xff]
      %v628 = vld [vmem:[%s1 + $0xa38] sm:$0xff]
      %v629 = vld [vmem:[%s1 + $0xa40] sm:$0xff]
      %v630 = vld [vmem:[%s1 + $0xa48] sm:$0xff]
      %v631 = vld [vmem:[%s1 + $0xa50] sm:$0xff]
      %v632 = vld [vmem:[%s1 + $0xa58] sm:$0xff]
      %v633 = vld [vmem:[%s1 + $0xa60] sm:$0xff]
      %v634 = vld [vmem:[%s1 + $0xa68] sm:$0xff]
      %v635 = vld [vmem:[%s1 + $0xa70] sm:$0xff]
      %v636 = vld [vmem:[%s1 + $0xa78] sm:$0xff]
      %v637 = vld [vmem:[%s1 + $0xa80] sm:$0xff]
      %v638 = vld [vmem:[%s1 + $0xa88] sm:$0xff]
      %v639 = vld [vmem:[%s1 + $0xa90] sm:$0xff]
      %v640 = vld [vmem:[%s1 + $0xa98] sm:$0xff]
      %v641 = vld [vmem:[%s1 + $0xaa0] sm:$0xff]
      %v642 = vld [vmem:[%s1 + $0xaa8] sm:$0xff]
      %v643 = vld [vmem:[%s1 + $0xab0] sm:$0xff]
      %v644 = vld [vmem:[%s1 + $0xab8] sm:$0xff]
      %v645 = vld [vmem:[%s1 + $0xac0] sm:$0xff]
      %v646 = vld [vmem:[%s1 + $0xac8] sm:$0xff]
      %v647 = vld [vmem:[%s1 + $0xad0] sm:$0xff]
      %v648 = vld [vmem:[%s1 + $0xad8] sm:$0xff]
      %v649 = vld [vmem:[%s1 + $0xae0] sm:$0xff]
      %v650 = vld [vmem:[%s1 + $0xae8] sm:$0xff]
      %v651 = vld [vmem:[%s1 + $0xaf0] sm:$0xff]
      %v652 = vld [vmem:[%s1 + $0xaf8] sm:$0xff]
      %v653 = vld [vmem:[%s1 + $0xb00] sm:$0xff]
      %v654 = vld [vmem:[%s1 + $0xb08] sm:$0xff]
      %v655 = vld [vmem:[%s1 + $0xb10] sm:$0xff]
      %v656 = vld [vmem:[%s1 + $0xb18] sm:$0xff]
      %v657 = vld [vmem:[%s1 + $0xb20] sm:$0xff]
      %v658 = vld [vmem:[%s1 + $0xb28] sm:$0xff]
      %v659 = vld [vmem:[%s1 + $0xb30] sm:$0xff]
      %v660 = vld [vmem:[%s1 + $0xb38] sm:$0xff]
      %v661 = vld [vmem:[%s1 + $0xb40] sm:$0xff]
      %v662 = vld [vmem:[%s1 + $0xb48] sm:$0xff]
      %v663 = vld [vmem:[%s1 + $0xb50] sm:$0xff]
      %v664 = vld [vmem:[%s1 + $0xb58] sm:$0xff]
      %v665 = vld [vmem:[%s1 + $0xb60] sm:$0xff]
      %v666 = vld [vmem:[%s1 + $0xb68] sm:$0xff]
      %v667 = vld [vmem:[%s1 + $0xb70] sm:$0xff]
      %v668 = vld [vmem:[%s1 + $0xb78] sm:$0xff]
      %v669 = vld [vmem:[%s1 + $0xb80] sm:$0xff]
      %v670 = vld [vmem:[%s1 + $0xb88] sm:$0xff]
      %v671 = vld [vmem:[%s1 + $0xb90] sm:$0xff]
      %v672 = vld [vmem:[%s1 + $0xb98] sm:$0xff]
      %v673 = vld [vmem:[%s1 + $0xba0] sm:$0xff]
      %v674 = vld [vmem:[%s1 + $0xba8] sm:$0xff]
      %v675 = vld [vmem:[%s1 + $0xbb0] sm:$0xff]
      %v676 = vld [vmem:[%s1 + $0xbb8] sm:$0xff]
      %v677 = vld [vmem:[%s1 + $0xbc0] sm:$0xff]
      %v678 = vld [vmem:[%s1 + $0xbc8] sm:$0xff]
      %v679 = vld [vmem:[%s1 + $0xbd0] sm:$0xff]
      %v680 = vld [vmem:[%s1 + $0xbd8] sm:$0xff]
      %v681 = vld [vmem:[%s1 + $0xbe0] sm:$0xff]
      %v682 = vld [vmem:[%s1 + $0xbe8] sm:$0xff]
      %v683 = vld [vmem:[%s1 + $0xbf0] sm:$0xff]
      %v684 = vld [vmem:[%s1 + $0xbf8] sm:$0xff]
      %v685 = vld [vmem:[%s1 + $0xc00] sm:$0xff]
      %v686 = vld [vmem:[%s1 + $0xc08] sm:$0xff]
      %v687 = vld [vmem:[%s1 + $0xc10] sm:$0xff]
      %v688 = vld [vmem:[%s1 + $0xc18] sm:$0xff]
      %v689 = vld [vmem:[%s1 + $0xc20] sm:$0xff]
      %v690 = vld [vmem:[%s1 + $0xc28] sm:$0xff]
      %v691 = vld [vmem:[%s1 + $0xc30] sm:$0xff]
      %v692 = vld [vmem:[%s1 + $0xc38] sm:$0xff]
      %v693 = vld [vmem:[%s1 + $0xc40] sm:$0xff]
      %v694 = vld [vmem:[%s1 + $0xc48] sm:$0xff]
      %v695 = vld [vmem:[%s1 + $0xc50] sm:$0xff]
      %v696 = vld [vmem:[%s1 + $0xc58] sm:$0xff]
      %v697 = vld [vmem:[%s1 + $0xc60] sm:$0xff]
      %v698 = vld [vmem:[%s1 + $0xc68] sm:$0xff]
      %v699 = vld [vmem:[%s1 + $0xc70] sm:$0xff]
      %v700 = vld [vmem:[%s1 + $0xc78] sm:$0xff]
      %v701 = vld [vmem:[%s1 + $0xc80] sm:$0xff]
      %v702 = vld [vmem:[%s1 + $0xc88] sm:$0xff]
      %v703 = vld [vmem:[%s1 + $0xc90] sm:$0xff]
      %v704 = vld [vmem:[%s1 + $0xc98] sm:$0xff]
      %v705 = vld [vmem:[%s1 + $0xca0] sm:$0xff]
      %v706 = vld [vmem:[%s1 + $0xca8] sm:$0xff]
      %v707 = vld [vmem:[%s1 + $0xcb0] sm:$0xff]
      %v708 = vld [vmem:[%s1 + $0xcb8] sm:$0xff]
      %v709 = vld [vmem:[%s1 + $0xcc0] sm:$0xff]
      %v710 = vld [vmem:[%s1 + $0xcc8] sm:$0xff]
      %v711 = vld [vmem:[%s1 + $0xcd0] sm:$0xff]
      %v712 = vld [vmem:[%s1 + $0xcd8] sm:$0xff]
      %v713 = vld [vmem:[%s1 + $0xce0] sm:$0xff]
      %v714 = vld [vmem:[%s1 + $0xce8] sm:$0xff]
      %v715 = vld [vmem:[%s1 + $0xcf0] sm:$0xff]
      %v716 = vld [vmem:[%s1 + $0xcf8] sm:$0xff]
      %v717 = vld [vmem:[%s1 + $0xd00] sm:$0xff]
      %v718 = vld [vmem:[%s1 + $0xd08] sm:$0xff]
      %v719 = vld [vmem:[%s1 + $0xd10] sm:$0xff]
      %v720 = vld [vmem:[%s1 + $0xd18] sm:$0xff]
      %v721 = vld [vmem:[%s1 + $0xd20] sm:$0xff]
      %v722 = vld [vmem:[%s1 + $0xd28] sm:$0xff]
      %v723 = vld [vmem:[%s1 + $0xd30] sm:$0xff]
      %v724 = vld [vmem:[%s1 + $0xd38] sm:$0xff]
      %v725 = vld [vmem:[%s1 + $0xd40] sm:$0xff]
      %v726 = vld [vmem:[%s1 + $0xd48] sm:$0xff]
      %v727 = vld [vmem:[%s1 + $0xd50] sm:$0xff]
      %v728 = vld [vmem:[%s1 + $0xd58] sm:$0xff]
      %v729 = vld [vmem:[%s1 + $0xd60] sm:$0xff]
      %v730 = vld [vmem:[%s1 + $0xd68] sm:$0xff]
      %v731 = vld [vmem:[%s1 + $0xd70] sm:$0xff]
      %v732 = vld [vmem:[%s1 + $0xd78] sm:$0xff]
      %v733 = vld [vmem:[%s1 + $0xd80] sm:$0xff]
      %v734 = vld [vmem:[%s1 + $0xd88] sm:$0xff]
      %v735 = vld [vmem:[%s1 + $0xd90] sm:$0xff]
      %v736 = vld [vmem:[%s1 + $0xd98] sm:$0xff]
      %v737 = vld [vmem:[%s1 + $0xda0] sm:$0xff]
      %v738 = vld [vmem:[%s1 + $0xda8] sm:$0xff]
      %v739 = vld [vmem:[%s1 + $0xdb0] sm:$0xff]
      %v740 = vld [vmem:[%s1 + $0xdb8] sm:$0xff]
      %v741 = vld [vmem:[%s1 + $0xdc0] sm:$0xff]
      %v742 = vld [vmem:[%s1 + $0xdc8] sm:$0xff]
      %v743 = vld [vmem:[%s1 + $0xdd0] sm:$0xff]
      %v744 = vld [vmem:[%s1 + $0xdd8] sm:$0xff]
      %v745 = vld [vmem:[%s1 + $0xde0] sm:$0xff]
      %v746 = vld [vmem:[%s1 + $0xde8] sm:$0xff]
      %v747 = vld [vmem:[%s1 + $0xdf0] sm:$0xff]
      %v748 = vld [vmem:[%s1 + $0xdf8] sm:$0xff]
      %v749 = vld [vmem:[%s1 + $0xe00] sm:$0xff]
      %v750 = vld [vmem:[%s1 + $0xe08] sm:$0xff]
      %v751 = vld [vmem:[%s1 + $0xe10] sm:$0xff]
      %v752 = vld [vmem:[%s1 + $0xe18] sm:$0xff]
      %v753 = vld [vmem:[%s1 + $0xe20] sm:$0xff]
      %v754 = vld [vmem:[%s1 + $0xe28] sm:$0xff]
      %v755 = vld [vmem:[%s1 + $0xe30] sm:$0xff]
      %v756 = vld [vmem:[%s1 + $0xe38] sm:$0xff]
      %v757 = vld [vmem:[%s1 + $0xe40] sm:$0xff]
      %v758 = vld [vmem:[%s1 + $0xe48] sm:$0xff]
      %v759 = vld [vmem:[%s1 + $0xe50] sm:$0xff]
      %v760 = vld [vmem:[%s1 + $0xe58] sm:$0xff]
      %v761 = vld [vmem:[%s1 + $0xe60] sm:$0xff]
      %v762 = vld [vmem:[%s1 + $0xe68] sm:$0xff]
      %v763 = vld [vmem:[%s1 + $0xe70] sm:$0xff]
      %v764 = vld [vmem:[%s1 + $0xe78] sm:$0xff]
      %v765 = vld [vmem:[%s1 + $0xe80] sm:$0xff]
      %v766 = vld [vmem:[%s1 + $0xe88] sm:$0xff]
      %v767 = vld [vmem:[%s1 + $0xe90] sm:$0xff]
      %v768 = vld [vmem:[%s1 + $0xe98] sm:$0xff]
      %v769 = vld [vmem:[%s1 + $0xea0] sm:$0xff]
      %v770 = vld [vmem:[%s1 + $0xea8] sm:$0xff]
      %v771 = vld [vmem:[%s1 + $0xeb0] sm:$0xff]
      %v772 = vld [vmem:[%s1 + $0xeb8] sm:$0xff]
      %v773 = vld [vmem:[%s1 + $0xec0] sm:$0xff]
      %v774 = vld [vmem:[%s1 + $0xec8] sm:$0xff]
      %v775 = vld [vmem:[%s1 + $0xed0] sm:$0xff]
      %v776 = vld [vmem:[%s1 + $0xed8] sm:$0xff]
      %v777 = vld [vmem:[%s1 + $0xee0] sm:$0xff]
      %v778 = vld [vmem:[%s1 + $0xee8] sm:$0xff]
      %v779 = vld [vmem:[%s1 + $0xef0] sm:$0xff]
      %v780 = vld [vmem:[%s1 + $0xef8] sm:$0xff]
      %v781 = vld [vmem:[%s1 + $0xf00] sm:$0xff]
      %v782 = vld [vmem:[%s1 + $0xf08] sm:$0xff]
      %v783 = vld [vmem:[%s1 + $0xf10] sm:$0xff]
      %v784 = vld [vmem:[%s1 + $0xf18] sm:$0xff]
      %v785 = vld [vmem:[%s1 + $0xf20] sm:$0xff]
      %v786 = vld [vmem:[%s1 + $0xf28] sm:$0xff]
      %v787 = vld [vmem:[%s1 + $0xf30] sm:$0xff]
      %v788 = vld [vmem:[%s1 + $0xf38] sm:$0xff]
      %v789 = vld [vmem:[%s1 + $0xf40] sm:$0xff]
      %v790 = vld [vmem:[%s1 + $0xf48] sm:$0xff]
      %v791 = vld [vmem:[%s1 + $0xf50] sm:$0xff]
      %v792 = vld [vmem:[%s1 + $0xf58] sm:$0xff]
      %v793 = vld [vmem:[%s1 + $0xf60] sm:$0xff]
      %v794 = vld [vmem:[%s1 + $0xf68] sm:$0xff]
      %v795 = vld [vmem:[%s1 + $0xf70] sm:$0xff]
      %v796 = vld [vmem:[%s1 + $0xf78] sm:$0xff]
      %v797 = vld [vmem:[%s1 + $0xf80] sm:$0xff]
      %v798 = vld [vmem:[%s1 + $0xf88] sm:$0xff]
      %v799 = vld [vmem:[%s1 + $0xf90] sm:$0xff]
      %v800 = vld [vmem:[%s1 + $0xf98] sm:$0xff]
      %v801 = vld [vmem:[%s1 + $0xfa0] sm:$0xff]
      %v802 = vld [vmem:[%s1 + $0xfa8] sm:$0xff]
      %v803 = vld [vmem:[%s1 + $0xfb0] sm:$0xff]
      %v804 = vld [vmem:[%s1 + $0xfb8] sm:$0xff]
      %v805 = vld [vmem:[%s1 + $0xfc0] sm:$0xff]
      %v806 = vld [vmem:[%s1 + $0xfc8] sm:$0xff]
      %v807 = vld [vmem:[%s1 + $0xfd0] sm:$0xff]
      %v808 = vld [vmem:[%s1 + $0xfd8] sm:$0xff]
      %v809 = vld [vmem:[%s1 + $0xfe0] sm:$0xff]
      %v810 = vld [vmem:[%s1 + $0xfe8] sm:$0xff]
      %v811 = vld [vmem:[%s1 + $0xff0] sm:$0xff]
      %v812 = vld [vmem:[%s1 + $0xff8] sm:$0xff]
      %v1325 = vunpack.c.l.b16 %v301
      %v1326 = vunpack.c.h.b16 %v301
      %v1327 = vunpack.c.l.b16 %v302
      %v1328 = vunpack.c.h.b16 %v302
      %v1329 = vunpack.c.l.b16 %v303
      %v1330 = vunpack.c.h.b16 %v303
      %v1331 = vunpack.c.l.b16 %v304
      %v1332 = vunpack.c.h.b16 %v304
      %v1333 = vunpack.c.l.b16 %v305
      %v1334 = vunpack.c.h.b16 %v305
      %v1335 = vunpack.c.l.b16 %v306
      %v1336 = vunpack.c.h.b16 %v306
      %v1337 = vunpack.c.l.b16 %v307
      %v1338 = vunpack.c.h.b16 %v307
      %v1339 = vunpack.c.l.b16 %v308
      %v1340 = vunpack.c.h.b16 %v308
      %v1341 = vunpack.c.l.b16 %v309
      %v1342 = vunpack.c.h.b16 %v309
      %v1343 = vunpack.c.l.b16 %v310
      %v1344 = vunpack.c.h.b16 %v310
      %v1345 = vunpack.c.l.b16 %v311
      %v1346 = vunpack.c.h.b16 %v311
      %v1347 = vunpack.c.l.b16 %v312
      %v1348 = vunpack.c.h.b16 %v312
      %v1349 = vunpack.c.l.b16 %v313
      %v1350 = vunpack.c.h.b16 %v313
      %v1351 = vunpack.c.l.b16 %v314
      %v1352 = vunpack.c.h.b16 %v314
      %v1353 = vunpack.c.l.b16 %v315
      %v1354 = vunpack.c.h.b16 %v315
      %v1355 = vunpack.c.l.b16 %v316
      %v1356 = vunpack.c.h.b16 %v316
      %v1357 = vunpack.c.l.b16 %v317
      %v1358 = vunpack.c.h.b16 %v317
      %v1359 = vunpack.c.l.b16 %v318
      %v1360 = vunpack.c.h.b16 %v318
      %v1361 = vunpack.c.l.b16 %v319
      %v1362 = vunpack.c.h.b16 %v319
      %v1363 = vunpack.c.l.b16 %v320
      %v1364 = vunpack.c.h.b16 %v320
      %v1365 = vunpack.c.l.b16 %v321
      %v1366 = vunpack.c.h.b16 %v321
      %v1367 = vunpack.c.l.b16 %v322
      %v1368 = vunpack.c.h.b16 %v322
      %v1369 = vunpack.c.l.b16 %v323
      %v1370 = vunpack.c.h.b16 %v323
      %v1371 = vunpack.c.l.b16 %v324
      %v1372 = vunpack.c.h.b16 %v324
      %v1373 = vunpack.c.l.b16 %v325
      %v1374 = vunpack.c.h.b16 %v325
      %v1375 = vunpack.c.l.b16 %v326
      %v1376 = vunpack.c.h.b16 %v326
      %v1377 = vunpack.c.l.b16 %v327
      %v1378 = vunpack.c.h.b16 %v327
      %v1379 = vunpack.c.l.b16 %v328
      %v1380 = vunpack.c.h.b16 %v328
      %v1381 = vunpack.c.l.b16 %v329
      %v1382 = vunpack.c.h.b16 %v329
      %v1383 = vunpack.c.l.b16 %v330
      %v1384 = vunpack.c.h.b16 %v330
      %v1385 = vunpack.c.l.b16 %v331
      %v1386 = vunpack.c.h.b16 %v331
      %v1387 = vunpack.c.l.b16 %v332
      %v1388 = vunpack.c.h.b16 %v332
      %v1389 = vunpack.c.l.b16 %v333
      %v1390 = vunpack.c.h.b16 %v333
      %v1391 = vunpack.c.l.b16 %v334
      %v1392 = vunpack.c.h.b16 %v334
      %v1393 = vunpack.c.l.b16 %v335
      %v1394 = vunpack.c.h.b16 %v335
      %v1395 = vunpack.c.l.b16 %v336
      %v1396 = vunpack.c.h.b16 %v336
      %v1397 = vunpack.c.l.b16 %v337
      %v1398 = vunpack.c.h.b16 %v337
      %v1399 = vunpack.c.l.b16 %v338
      %v1400 = vunpack.c.h.b16 %v338
      %v1401 = vunpack.c.l.b16 %v339
      %v1402 = vunpack.c.h.b16 %v339
      %v1403 = vunpack.c.l.b16 %v340
      %v1404 = vunpack.c.h.b16 %v340
      %v1405 = vunpack.c.l.b16 %v341
      %v1406 = vunpack.c.h.b16 %v341
      %v1407 = vunpack.c.l.b16 %v342
      %v1408 = vunpack.c.h.b16 %v342
      %v1409 = vunpack.c.l.b16 %v343
      %v1410 = vunpack.c.h.b16 %v343
      %v1411 = vunpack.c.l.b16 %v344
      %v1412 = vunpack.c.h.b16 %v344
      %v1413 = vunpack.c.l.b16 %v345
      %v1414 = vunpack.c.h.b16 %v345
      %v1415 = vunpack.c.l.b16 %v346
      %v1416 = vunpack.c.h.b16 %v346
      %v1417 = vunpack.c.l.b16 %v347
      %v1418 = vunpack.c.h.b16 %v347
      %v1419 = vunpack.c.l.b16 %v348
      %v1420 = vunpack.c.h.b16 %v348
      %v1421 = vunpack.c.l.b16 %v349
      %v1422 = vunpack.c.h.b16 %v349
      %v1423 = vunpack.c.l.b16 %v350
      %v1424 = vunpack.c.h.b16 %v350
      %v1425 = vunpack.c.l.b16 %v351
      %v1426 = vunpack.c.h.b16 %v351
      %v1427 = vunpack.c.l.b16 %v352
      %v1428 = vunpack.c.h.b16 %v352
      %v1429 = vunpack.c.l.b16 %v353
      %v1430 = vunpack.c.h.b16 %v353
      %v1431 = vunpack.c.l.b16 %v354
      %v1432 = vunpack.c.h.b16 %v354
      %v1433 = vunpack.c.l.b16 %v355
      %v1434 = vunpack.c.h.b16 %v355
      %v1435 = vunpack.c.l.b16 %v356
      %v1436 = vunpack.c.h.b16 %v356
      %v1437 = vunpack.c.l.b16 %v357
      %v1438 = vunpack.c.h.b16 %v357
      %v1439 = vunpack.c.l.b16 %v358
      %v1440 = vunpack.c.h.b16 %v358
      %v1441 = vunpack.c.l.b16 %v359
      %v1442 = vunpack.c.h.b16 %v359
      %v1443 = vunpack.c.l.b16 %v360
      %v1444 = vunpack.c.h.b16 %v360
      %v1445 = vunpack.c.l.b16 %v361
      %v1446 = vunpack.c.h.b16 %v361
      %v1447 = vunpack.c.l.b16 %v362
      %v1448 = vunpack.c.h.b16 %v362
      %v1449 = vunpack.c.l.b16 %v363
      %v1450 = vunpack.c.h.b16 %v363
      %v1451 = vunpack.c.l.b16 %v364
      %v1452 = vunpack.c.h.b16 %v364
      %v1453 = vunpack.c.l.b16 %v365
      %v1454 = vunpack.c.h.b16 %v365
      %v1455 = vunpack.c.l.b16 %v366
      %v1456 = vunpack.c.h.b16 %v366
      %v1457 = vunpack.c.l.b16 %v367
      %v1458 = vunpack.c.h.b16 %v367
      %v1459 = vunpack.c.l.b16 %v368
      %v1460 = vunpack.c.h.b16 %v368
      %v1461 = vunpack.c.l.b16 %v369
      %v1462 = vunpack.c.h.b16 %v369
      %v1463 = vunpack.c.l.b16 %v370
      %v1464 = vunpack.c.h.b16 %v370
      %v1465 = vunpack.c.l.b16 %v371
      %v1466 = vunpack.c.h.b16 %v371
      %v1467 = vunpack.c.l.b16 %v372
      %v1468 = vunpack.c.h.b16 %v372
      %v1469 = vunpack.c.l.b16 %v373
      %v1470 = vunpack.c.h.b16 %v373
      %v1471 = vunpack.c.l.b16 %v374
      %v1472 = vunpack.c.h.b16 %v374
      %v1473 = vunpack.c.l.b16 %v375
      %v1474 = vunpack.c.h.b16 %v375
      %v1475 = vunpack.c.l.b16 %v376
      %v1476 = vunpack.c.h.b16 %v376
      %v1477 = vunpack.c.l.b16 %v377
      %v1478 = vunpack.c.h.b16 %v377
      %v1479 = vunpack.c.l.b16 %v378
      %v1480 = vunpack.c.h.b16 %v378
      %v1481 = vunpack.c.l.b16 %v379
      %v1482 = vunpack.c.h.b16 %v379
      %v1483 = vunpack.c.l.b16 %v380
      %v1484 = vunpack.c.h.b16 %v380
      %v1485 = vunpack.c.l.b16 %v381
      %v1486 = vunpack.c.h.b16 %v381
      %v1487 = vunpack.c.l.b16 %v382
      %v1488 = vunpack.c.h.b16 %v382
      %v1489 = vunpack.c.l.b16 %v383
      %v1490 = vunpack.c.h.b16 %v383
      %v1491 = vunpack.c.l.b16 %v384
      %v1492 = vunpack.c.h.b16 %v384
      %v1493 = vunpack.c.l.b16 %v385
      %v1494 = vunpack.c.h.b16 %v385
      %v1495 = vunpack.c.l.b16 %v386
      %v1496 = vunpack.c.h.b16 %v386
      %v1497 = vunpack.c.l.b16 %v387
      %v1498 = vunpack.c.h.b16 %v387
      %v1499 = vunpack.c.l.b16 %v388
      %v1500 = vunpack.c.h.b16 %v388
      %v1501 = vunpack.c.l.b16 %v389
      %v1502 = vunpack.c.h.b16 %v389
      %v1503 = vunpack.c.l.b16 %v390
      %v1504 = vunpack.c.h.b16 %v390
      %v1505 = vunpack.c.l.b16 %v391
      %v1506 = vunpack.c.h.b16 %v391
      %v1507 = vunpack.c.l.b16 %v392
      %v1508 = vunpack.c.h.b16 %v392
      %v1509 = vunpack.c.l.b16 %v393
      %v1510 = vunpack.c.h.b16 %v393
      %v1511 = vunpack.c.l.b16 %v394
      %v1512 = vunpack.c.h.b16 %v394
      %v1513 = vunpack.c.l.b16 %v395
      %v1514 = vunpack.c.h.b16 %v395
      %v1515 = vunpack.c.l.b16 %v396
      %v1516 = vunpack.c.h.b16 %v396
      %v1517 = vunpack.c.l.b16 %v397
      %v1518 = vunpack.c.h.b16 %v397
      %v1519 = vunpack.c.l.b16 %v398
      %v1520 = vunpack.c.h.b16 %v398
      %v1521 = vunpack.c.l.b16 %v399
      %v1522 = vunpack.c.h.b16 %v399
      %v1523 = vunpack.c.l.b16 %v400
      %v1524 = vunpack.c.h.b16 %v400
      %v1525 = vunpack.c.l.b16 %v401
      %v1526 = vunpack.c.h.b16 %v401
      %v1527 = vunpack.c.l.b16 %v402
      %v1528 = vunpack.c.h.b16 %v402
      %v1529 = vunpack.c.l.b16 %v403
      %v1530 = vunpack.c.h.b16 %v403
      %v1531 = vunpack.c.l.b16 %v404
      %v1532 = vunpack.c.h.b16 %v404
      %v1533 = vunpack.c.l.b16 %v405
      %v1534 = vunpack.c.h.b16 %v405
      %v1535 = vunpack.c.l.b16 %v406
      %v1536 = vunpack.c.h.b16 %v406
      %v1537 = vunpack.c.l.b16 %v407
      %v1538 = vunpack.c.h.b16 %v407
      %v1539 = vunpack.c.l.b16 %v408
      %v1540 = vunpack.c.h.b16 %v408
      %v1541 = vunpack.c.l.b16 %v409
      %v1542 = vunpack.c.h.b16 %v409
      %v1543 = vunpack.c.l.b16 %v410
      %v1544 = vunpack.c.h.b16 %v410
      %v1545 = vunpack.c.l.b16 %v411
      %v1546 = vunpack.c.h.b16 %v411
      %v1547 = vunpack.c.l.b16 %v412
      %v1548 = vunpack.c.h.b16 %v412
      %v1549 = vunpack.c.l.b16 %v413
      %v1550 = vunpack.c.h.b16 %v413
      %v1551 = vunpack.c.l.b16 %v414
      %v1552 = vunpack.c.h.b16 %v414
      %v1553 = vunpack.c.l.b16 %v415
      %v1554 = vunpack.c.h.b16 %v415
      %v1555 = vunpack.c.l.b16 %v416
      %v1556 = vunpack.c.h.b16 %v416
      %v1557 = vunpack.c.l.b16 %v417
      %v1558 = vunpack.c.h.b16 %v417
      %v1559 = vunpack.c.l.b16 %v418
      %v1560 = vunpack.c.h.b16 %v418
      %v1561 = vunpack.c.l.b16 %v419
      %v1562 = vunpack.c.h.b16 %v419
      %v1563 = vunpack.c.l.b16 %v420
      %v1564 = vunpack.c.h.b16 %v420
      %v1565 = vunpack.c.l.b16 %v421
      %v1566 = vunpack.c.h.b16 %v421
      %v1567 = vunpack.c.l.b16 %v422
      %v1568 = vunpack.c.h.b16 %v422
      %v1569 = vunpack.c.l.b16 %v423
      %v1570 = vunpack.c.h.b16 %v423
      %v1571 = vunpack.c.l.b16 %v424
      %v1572 = vunpack.c.h.b16 %v424
      %v1573 = vunpack.c.l.b16 %v425
      %v1574 = vunpack.c.h.b16 %v425
      %v1575 = vunpack.c.l.b16 %v426
      %v1576 = vunpack.c.h.b16 %v426
      %v1577 = vunpack.c.l.b16 %v427
      %v1578 = vunpack.c.h.b16 %v427
      %v1579 = vunpack.c.l.b16 %v428
      %v1580 = vunpack.c.h.b16 %v428
      %v1581 = vunpack.c.l.b16 %v429
      %v1582 = vunpack.c.h.b16 %v429
      %v1583 = vunpack.c.l.b16 %v430
      %v1584 = vunpack.c.h.b16 %v430
      %v1585 = vunpack.c.l.b16 %v431
      %v1586 = vunpack.c.h.b16 %v431
      %v1587 = vunpack.c.l.b16 %v432
      %v1588 = vunpack.c.h.b16 %v432
      %v1589 = vunpack.c.l.b16 %v433
      %v1590 = vunpack.c.h.b16 %v433
      %v1591 = vunpack.c.l.b16 %v434
      %v1592 = vunpack.c.h.b16 %v434
      %v1593 = vunpack.c.l.b16 %v435
      %v1594 = vunpack.c.h.b16 %v435
      %v1595 = vunpack.c.l.b16 %v436
      %v1596 = vunpack.c.h.b16 %v436
      %v1597 = vunpack.c.l.b16 %v437
      %v1598 = vunpack.c.h.b16 %v437
      %v1599 = vunpack.c.l.b16 %v438
      %v1600 = vunpack.c.h.b16 %v438
      %v1601 = vunpack.c.l.b16 %v439
      %v1602 = vunpack.c.h.b16 %v439
      %v1603 = vunpack.c.l.b16 %v440
      %v1604 = vunpack.c.h.b16 %v440
      %v1605 = vunpack.c.l.b16 %v441
      %v1606 = vunpack.c.h.b16 %v441
      %v1607 = vunpack.c.l.b16 %v442
      %v1608 = vunpack.c.h.b16 %v442
      %v1609 = vunpack.c.l.b16 %v443
      %v1610 = vunpack.c.h.b16 %v443
      %v1611 = vunpack.c.l.b16 %v444
      %v1612 = vunpack.c.h.b16 %v444
      %v1613 = vunpack.c.l.b16 %v445
      %v1614 = vunpack.c.h.b16 %v445
      %v1615 = vunpack.c.l.b16 %v446
      %v1616 = vunpack.c.h.b16 %v446
      %v1617 = vunpack.c.l.b16 %v447
      %v1618 = vunpack.c.h.b16 %v447
      %v1619 = vunpack.c.l.b16 %v448
      %v1620 = vunpack.c.h.b16 %v448
      %v1621 = vunpack.c.l.b16 %v449
      %v1622 = vunpack.c.h.b16 %v449
      %v1623 = vunpack.c.l.b16 %v450
      %v1624 = vunpack.c.h.b16 %v450
      %v1625 = vunpack.c.l.b16 %v451
      %v1626 = vunpack.c.h.b16 %v451
      %v1627 = vunpack.c.l.b16 %v452
      %v1628 = vunpack.c.h.b16 %v452
      %v1629 = vunpack.c.l.b16 %v453
      %v1630 = vunpack.c.h.b16 %v453
      %v1631 = vunpack.c.l.b16 %v454
      %v1632 = vunpack.c.h.b16 %v454
      %v1633 = vunpack.c.l.b16 %v455
      %v1634 = vunpack.c.h.b16 %v455
      %v1635 = vunpack.c.l.b16 %v456
      %v1636 = vunpack.c.h.b16 %v456
      %v1637 = vunpack.c.l.b16 %v457
      %v1638 = vunpack.c.h.b16 %v457
      %v1639 = vunpack.c.l.b16 %v458
      %v1640 = vunpack.c.h.b16 %v458
      %v1641 = vunpack.c.l.b16 %v459
      %v1642 = vunpack.c.h.b16 %v459
      %v1643 = vunpack.c.l.b16 %v460
      %v1644 = vunpack.c.h.b16 %v460
      %v1645 = vunpack.c.l.b16 %v461
      %v1646 = vunpack.c.h.b16 %v461
      %v1647 = vunpack.c.l.b16 %v462
      %v1648 = vunpack.c.h.b16 %v462
      %v1649 = vunpack.c.l.b16 %v463
      %v1650 = vunpack.c.h.b16 %v463
      %v1651 = vunpack.c.l.b16 %v464
      %v1652 = vunpack.c.h.b16 %v464
      %v1653 = vunpack.c.l.b16 %v465
      %v1654 = vunpack.c.h.b16 %v465
      %v1655 = vunpack.c.l.b16 %v466
      %v1656 = vunpack.c.h.b16 %v466
      %v1657 = vunpack.c.l.b16 %v467
      %v1658 = vunpack.c.h.b16 %v467
      %v1659 = vunpack.c.l.b16 %v468
      %v1660 = vunpack.c.h.b16 %v468
      %v1661 = vunpack.c.l.b16 %v469
      %v1662 = vunpack.c.h.b16 %v469
      %v1663 = vunpack.c.l.b16 %v470
      %v1664 = vunpack.c.h.b16 %v470
      %v1665 = vunpack.c.l.b16 %v471
      %v1666 = vunpack.c.h.b16 %v471
      %v1667 = vunpack.c.l.b16 %v472
      %v1668 = vunpack.c.h.b16 %v472
      %v1669 = vunpack.c.l.b16 %v473
      %v1670 = vunpack.c.h.b16 %v473
      %v1671 = vunpack.c.l.b16 %v474
      %v1672 = vunpack.c.h.b16 %v474
      %v1673 = vunpack.c.l.b16 %v475
      %v1674 = vunpack.c.h.b16 %v475
      %v1675 = vunpack.c.l.b16 %v476
      %v1676 = vunpack.c.h.b16 %v476
      %v1677 = vunpack.c.l.b16 %v477
      %v1678 = vunpack.c.h.b16 %v477
      %v1679 = vunpack.c.l.b16 %v478
      %v1680 = vunpack.c.h.b16 %v478
      %v1681 = vunpack.c.l.b16 %v479
      %v1682 = vunpack.c.h.b16 %v479
      %v1683 = vunpack.c.l.b16 %v480
      %v1684 = vunpack.c.h.b16 %v480
      %v1685 = vunpack.c.l.b16 %v481
      %v1686 = vunpack.c.h.b16 %v481
      %v1687 = vunpack.c.l.b16 %v482
      %v1688 = vunpack.c.h.b16 %v482
      %v1689 = vunpack.c.l.b16 %v483
      %v1690 = vunpack.c.h.b16 %v483
      %v1691 = vunpack.c.l.b16 %v484
      %v1692 = vunpack.c.h.b16 %v484
      %v1693 = vunpack.c.l.b16 %v485
      %v1694 = vunpack.c.h.b16 %v485
      %v1695 = vunpack.c.l.b16 %v486
      %v1696 = vunpack.c.h.b16 %v486
      %v1697 = vunpack.c.l.b16 %v487
      %v1698 = vunpack.c.h.b16 %v487
      %v1699 = vunpack.c.l.b16 %v488
      %v1700 = vunpack.c.h.b16 %v488
      %v1701 = vunpack.c.l.b16 %v489
      %v1702 = vunpack.c.h.b16 %v489
      %v1703 = vunpack.c.l.b16 %v490
      %v1704 = vunpack.c.h.b16 %v490
      %v1705 = vunpack.c.l.b16 %v491
      %v1706 = vunpack.c.h.b16 %v491
      %v1707 = vunpack.c.l.b16 %v492
      %v1708 = vunpack.c.h.b16 %v492
      %v1709 = vunpack.c.l.b16 %v493
      %v1710 = vunpack.c.h.b16 %v493
      %v1711 = vunpack.c.l.b16 %v494
      %v1712 = vunpack.c.h.b16 %v494
      %v1713 = vunpack.c.l.b16 %v495
      %v1714 = vunpack.c.h.b16 %v495
      %v1715 = vunpack.c.l.b16 %v496
      %v1716 = vunpack.c.h.b16 %v496
      %v1717 = vunpack.c.l.b16 %v497
      %v1718 = vunpack.c.h.b16 %v497
      %v1719 = vunpack.c.l.b16 %v498
      %v1720 = vunpack.c.h.b16 %v498
      %v1721 = vunpack.c.l.b16 %v499
      %v1722 = vunpack.c.h.b16 %v499
      %v1723 = vunpack.c.l.b16 %v500
      %v1724 = vunpack.c.h.b16 %v500
      %v1725 = vunpack.c.l.b16 %v501
      %v1726 = vunpack.c.h.b16 %v501
      %v1727 = vunpack.c.l.b16 %v502
      %v1728 = vunpack.c.h.b16 %v502
      %v1729 = vunpack.c.l.b16 %v503
      %v1730 = vunpack.c.h.b16 %v503
      %v1731 = vunpack.c.l.b16 %v504
      %v1732 = vunpack.c.h.b16 %v504
      %v1733 = vunpack.c.l.b16 %v505
      %v1734 = vunpack.c.h.b16 %v505
      %v1735 = vunpack.c.l.b16 %v506
      %v1736 = vunpack.c.h.b16 %v506
      %v1737 = vunpack.c.l.b16 %v507
      %v1738 = vunpack.c.h.b16 %v507
      %v1739 = vunpack.c.l.b16 %v508
      %v1740 = vunpack.c.h.b16 %v508
      %v1741 = vunpack.c.l.b16 %v509
      %v1742 = vunpack.c.h.b16 %v509
      %v1743 = vunpack.c.l.b16 %v510
      %v1744 = vunpack.c.h.b16 %v510
      %v1745 = vunpack.c.l.b16 %v511
      %v1746 = vunpack.c.h.b16 %v511
      %v1747 = vunpack.c.l.b16 %v512
      %v1748 = vunpack.c.h.b16 %v512
      %v1749 = vunpack.c.l.b16 %v513
      %v1750 = vunpack.c.h.b16 %v513
      %v1751 = vunpack.c.l.b16 %v514
      %v1752 = vunpack.c.h.b16 %v514
      %v1753 = vunpack.c.l.b16 %v515
      %v1754 = vunpack.c.h.b16 %v515
      %v1755 = vunpack.c.l.b16 %v516
      %v1756 = vunpack.c.h.b16 %v516
      %v1757 = vunpack.c.l.b16 %v517
      %v1758 = vunpack.c.h.b16 %v517
      %v1759 = vunpack.c.l.b16 %v518
      %v1760 = vunpack.c.h.b16 %v518
      %v1761 = vunpack.c.l.b16 %v519
      %v1762 = vunpack.c.h.b16 %v519
      %v1763 = vunpack.c.l.b16 %v520
      %v1764 = vunpack.c.h.b16 %v520
      %v1765 = vunpack.c.l.b16 %v521
      %v1766 = vunpack.c.h.b16 %v521
      %v1767 = vunpack.c.l.b16 %v522
      %v1768 = vunpack.c.h.b16 %v522
      %v1769 = vunpack.c.l.b16 %v523
      %v1770 = vunpack.c.h.b16 %v523
      %v1771 = vunpack.c.l.b16 %v524
      %v1772 = vunpack.c.h.b16 %v524
      %v1773 = vunpack.c.l.b16 %v525
      %v1774 = vunpack.c.h.b16 %v525
      %v1775 = vunpack.c.l.b16 %v526
      %v1776 = vunpack.c.h.b16 %v526
      %v1777 = vunpack.c.l.b16 %v527
      %v1778 = vunpack.c.h.b16 %v527
      %v1779 = vunpack.c.l.b16 %v528
      %v1780 = vunpack.c.h.b16 %v528
      %v1781 = vunpack.c.l.b16 %v529
      %v1782 = vunpack.c.h.b16 %v529
      %v1783 = vunpack.c.l.b16 %v530
      %v1784 = vunpack.c.h.b16 %v530
      %v1785 = vunpack.c.l.b16 %v531
      %v1786 = vunpack.c.h.b16 %v531
      %v1787 = vunpack.c.l.b16 %v532
      %v1788 = vunpack.c.h.b16 %v532
      %v1789 = vunpack.c.l.b16 %v533
      %v1790 = vunpack.c.h.b16 %v533
      %v1791 = vunpack.c.l.b16 %v534
      %v1792 = vunpack.c.h.b16 %v534
      %v1793 = vunpack.c.l.b16 %v535
      %v1794 = vunpack.c.h.b16 %v535
      %v1795 = vunpack.c.l.b16 %v536
      %v1796 = vunpack.c.h.b16 %v536
      %v1797 = vunpack.c.l.b16 %v537
      %v1798 = vunpack.c.h.b16 %v537
      %v1799 = vunpack.c.l.b16 %v538
      %v1800 = vunpack.c.h.b16 %v538
      %v1801 = vunpack.c.l.b16 %v539
      %v1802 = vunpack.c.h.b16 %v539
      %v1803 = vunpack.c.l.b16 %v540
      %v1804 = vunpack.c.h.b16 %v540
      %v1805 = vunpack.c.l.b16 %v541
      %v1806 = vunpack.c.h.b16 %v541
      %v1807 = vunpack.c.l.b16 %v542
      %v1808 = vunpack.c.h.b16 %v542
      %v1809 = vunpack.c.l.b16 %v543
      %v1810 = vunpack.c.h.b16 %v543
      %v1811 = vunpack.c.l.b16 %v544
      %v1812 = vunpack.c.h.b16 %v544
      %v1813 = vunpack.c.l.b16 %v545
      %v1814 = vunpack.c.h.b16 %v545
      %v1815 = vunpack.c.l.b16 %v546
      %v1816 = vunpack.c.h.b16 %v546
      %v1817 = vunpack.c.l.b16 %v547
      %v1818 = vunpack.c.h.b16 %v547
      %v1819 = vunpack.c.l.b16 %v548
      %v1820 = vunpack.c.h.b16 %v548
      %v1821 = vunpack.c.l.b16 %v549
      %v1822 = vunpack.c.h.b16 %v549
      %v1823 = vunpack.c.l.b16 %v550
      %v1824 = vunpack.c.h.b16 %v550
      %v1825 = vunpack.c.l.b16 %v551
      %v1826 = vunpack.c.h.b16 %v551
      %v1827 = vunpack.c.l.b16 %v552
      %v1828 = vunpack.c.h.b16 %v552
      %v1829 = vunpack.c.l.b16 %v553
      %v1830 = vunpack.c.h.b16 %v553
      %v1831 = vunpack.c.l.b16 %v554
      %v1832 = vunpack.c.h.b16 %v554
      %v1833 = vunpack.c.l.b16 %v555
      %v1834 = vunpack.c.h.b16 %v555
      %v1835 = vunpack.c.l.b16 %v556
      %v1836 = vunpack.c.h.b16 %v556
      %v1837 = vunpack.c.l.b16 %v557
      %v1838 = vunpack.c.h.b16 %v557
      %v1839 = vunpack.c.l.b16 %v558
      %v1840 = vunpack.c.h.b16 %v558
      %v1841 = vunpack.c.l.b16 %v559
      %v1842 = vunpack.c.h.b16 %v559
      %v1843 = vunpack.c.l.b16 %v560
      %v1844 = vunpack.c.h.b16 %v560
      %v1845 = vunpack.c.l.b16 %v561
      %v1846 = vunpack.c.h.b16 %v561
      %v1847 = vunpack.c.l.b16 %v562
      %v1848 = vunpack.c.h.b16 %v562
      %v1849 = vunpack.c.l.b16 %v563
      %v1850 = vunpack.c.h.b16 %v563
      %v1851 = vunpack.c.l.b16 %v564
      %v1852 = vunpack.c.h.b16 %v564
      %v1853 = vunpack.c.l.b16 %v565
      %v1854 = vunpack.c.h.b16 %v565
      %v1855 = vunpack.c.l.b16 %v566
      %v1856 = vunpack.c.h.b16 %v566
      %v1857 = vunpack.c.l.b16 %v567
      %v1858 = vunpack.c.h.b16 %v567
      %v1859 = vunpack.c.l.b16 %v568
      %v1860 = vunpack.c.h.b16 %v568
      %v1861 = vunpack.c.l.b16 %v569
      %v1862 = vunpack.c.h.b16 %v569
      %v1863 = vunpack.c.l.b16 %v570
      %v1864 = vunpack.c.h.b16 %v570
      %v1865 = vunpack.c.l.b16 %v571
      %v1866 = vunpack.c.h.b16 %v571
      %v1867 = vunpack.c.l.b16 %v572
      %v1868 = vunpack.c.h.b16 %v572
      %v1869 = vunpack.c.l.b16 %v573
      %v1870 = vunpack.c.h.b16 %v573
      %v1871 = vunpack.c.l.b16 %v574
      %v1872 = vunpack.c.h.b16 %v574
      %v1873 = vunpack.c.l.b16 %v575
      %v1874 = vunpack.c.h.b16 %v575
      %v1875 = vunpack.c.l.b16 %v576
      %v1876 = vunpack.c.h.b16 %v576
      %v1877 = vunpack.c.l.b16 %v577
      %v1878 = vunpack.c.h.b16 %v577
      %v1879 = vunpack.c.l.b16 %v578
      %v1880 = vunpack.c.h.b16 %v578
      %v1881 = vunpack.c.l.b16 %v579
      %v1882 = vunpack.c.h.b16 %v579
      %v1883 = vunpack.c.l.b16 %v580
      %v1884 = vunpack.c.h.b16 %v580
      %v1885 = vunpack.c.l.b16 %v581
      %v1886 = vunpack.c.h.b16 %v581
      %v1887 = vunpack.c.l.b16 %v582
      %v1888 = vunpack.c.h.b16 %v582
      %v1889 = vunpack.c.l.b16 %v583
      %v1890 = vunpack.c.h.b16 %v583
      %v1891 = vunpack.c.l.b16 %v584
      %v1892 = vunpack.c.h.b16 %v584
      %v1893 = vunpack.c.l.b16 %v585
      %v1894 = vunpack.c.h.b16 %v585
      %v1895 = vunpack.c.l.b16 %v586
      %v1896 = vunpack.c.h.b16 %v586
      %v1897 = vunpack.c.l.b16 %v587
      %v1898 = vunpack.c.h.b16 %v587
      %v1899 = vunpack.c.l.b16 %v588
      %v1900 = vunpack.c.h.b16 %v588
      %v1901 = vunpack.c.l.b16 %v589
      %v1902 = vunpack.c.h.b16 %v589
      %v1903 = vunpack.c.l.b16 %v590
      %v1904 = vunpack.c.h.b16 %v590
      %v1905 = vunpack.c.l.b16 %v591
      %v1906 = vunpack.c.h.b16 %v591
      %v1907 = vunpack.c.l.b16 %v592
      %v1908 = vunpack.c.h.b16 %v592
      %v1909 = vunpack.c.l.b16 %v593
      %v1910 = vunpack.c.h.b16 %v593
      %v1911 = vunpack.c.l.b16 %v594
      %v1912 = vunpack.c.h.b16 %v594
      %v1913 = vunpack.c.l.b16 %v595
      %v1914 = vunpack.c.h.b16 %v595
      %v1915 = vunpack.c.l.b16 %v596
      %v1916 = vunpack.c.h.b16 %v596
      %v1917 = vunpack.c.l.b16 %v597
      %v1918 = vunpack.c.h.b16 %v597
      %v1919 = vunpack.c.l.b16 %v598
      %v1920 = vunpack.c.h.b16 %v598
      %v1921 = vunpack.c.l.b16 %v599
      %v1922 = vunpack.c.h.b16 %v599
      %v1923 = vunpack.c.l.b16 %v600
      %v1924 = vunpack.c.h.b16 %v600
      %v1925 = vunpack.c.l.b16 %v601
      %v1926 = vunpack.c.h.b16 %v601
      %v1927 = vunpack.c.l.b16 %v602
      %v1928 = vunpack.c.h.b16 %v602
      %v1929 = vunpack.c.l.b16 %v603
      %v1930 = vunpack.c.h.b16 %v603
      %v1931 = vunpack.c.l.b16 %v604
      %v1932 = vunpack.c.h.b16 %v604
      %v1933 = vunpack.c.l.b16 %v605
      %v1934 = vunpack.c.h.b16 %v605
      %v1935 = vunpack.c.l.b16 %v606
      %v1936 = vunpack.c.h.b16 %v606
      %v1937 = vunpack.c.l.b16 %v607
      %v1938 = vunpack.c.h.b16 %v607
      %v1939 = vunpack.c.l.b16 %v608
      %v1940 = vunpack.c.h.b16 %v608
      %v1941 = vunpack.c.l.b16 %v609
      %v1942 = vunpack.c.h.b16 %v609
      %v1943 = vunpack.c.l.b16 %v610
      %v1944 = vunpack.c.h.b16 %v610
      %v1945 = vunpack.c.l.b16 %v611
      %v1946 = vunpack.c.h.b16 %v611
      %v1947 = vunpack.c.l.b16 %v612
      %v1948 = vunpack.c.h.b16 %v612
      %v1949 = vunpack.c.l.b16 %v613
      %v1950 = vunpack.c.h.b16 %v613
      %v1951 = vunpack.c.l.b16 %v614
      %v1952 = vunpack.c.h.b16 %v614
      %v1953 = vunpack.c.l.b16 %v615
      %v1954 = vunpack.c.h.b16 %v615
      %v1955 = vunpack.c.l.b16 %v616
      %v1956 = vunpack.c.h.b16 %v616
      %v1957 = vunpack.c.l.b16 %v617
      %v1958 = vunpack.c.h.b16 %v617
      %v1959 = vunpack.c.l.b16 %v618
      %v1960 = vunpack.c.h.b16 %v618
      %v1961 = vunpack.c.l.b16 %v619
      %v1962 = vunpack.c.h.b16 %v619
      %v1963 = vunpack.c.l.b16 %v620
      %v1964 = vunpack.c.h.b16 %v620
      %v1965 = vunpack.c.l.b16 %v621
      %v1966 = vunpack.c.h.b16 %v621
      %v1967 = vunpack.c.l.b16 %v622
      %v1968 = vunpack.c.h.b16 %v622
      %v1969 = vunpack.c.l.b16 %v623
      %v1970 = vunpack.c.h.b16 %v623
      %v1971 = vunpack.c.l.b16 %v624
      %v1972 = vunpack.c.h.b16 %v624
      %v1973 = vunpack.c.l.b16 %v625
      %v1974 = vunpack.c.h.b16 %v625
      %v1975 = vunpack.c.l.b16 %v626
      %v1976 = vunpack.c.h.b16 %v626
      %v1977 = vunpack.c.l.b16 %v627
      %v1978 = vunpack.c.h.b16 %v627
      %v1979 = vunpack.c.l.b16 %v628
      %v1980 = vunpack.c.h.b16 %v628
      %v1981 = vunpack.c.l.b16 %v629
      %v1982 = vunpack.c.h.b16 %v629
      %v1983 = vunpack.c.l.b16 %v630
      %v1984 = vunpack.c.h.b16 %v630
      %v1985 = vunpack.c.l.b16 %v631
      %v1986 = vunpack.c.h.b16 %v631
      %v1987 = vunpack.c.l.b16 %v632
      %v1988 = vunpack.c.h.b16 %v632
      %v1989 = vunpack.c.l.b16 %v633
      %v1990 = vunpack.c.h.b16 %v633
      %v1991 = vunpack.c.l.b16 %v634
      %v1992 = vunpack.c.h.b16 %v634
      %v1993 = vunpack.c.l.b16 %v635
      %v1994 = vunpack.c.h.b16 %v635
      %v1995 = vunpack.c.l.b16 %v636
      %v1996 = vunpack.c.h.b16 %v636
      %v1997 = vunpack.c.l.b16 %v637
      %v1998 = vunpack.c.h.b16 %v637
      %v1999 = vunpack.c.l.b16 %v638
      %v2000 = vunpack.c.h.b16 %v638
      %v2001 = vunpack.c.l.b16 %v639
      %v2002 = vunpack.c.h.b16 %v639
      %v2003 = vunpack.c.l.b16 %v640
      %v2004 = vunpack.c.h.b16 %v640
      %v2005 = vunpack.c.l.b16 %v641
      %v2006 = vunpack.c.h.b16 %v641
      %v2007 = vunpack.c.l.b16 %v642
      %v2008 = vunpack.c.h.b16 %v642
      %v2009 = vunpack.c.l.b16 %v643
      %v2010 = vunpack.c.h.b16 %v643
      %v2011 = vunpack.c.l.b16 %v644
      %v2012 = vunpack.c.h.b16 %v644
      %v2013 = vunpack.c.l.b16 %v645
      %v2014 = vunpack.c.h.b16 %v645
      %v2015 = vunpack.c.l.b16 %v646
      %v2016 = vunpack.c.h.b16 %v646
      %v2017 = vunpack.c.l.b16 %v647
      %v2018 = vunpack.c.h.b16 %v647
      %v2019 = vunpack.c.l.b16 %v648
      %v2020 = vunpack.c.h.b16 %v648
      %v2021 = vunpack.c.l.b16 %v649
      %v2022 = vunpack.c.h.b16 %v649
      %v2023 = vunpack.c.l.b16 %v650
      %v2024 = vunpack.c.h.b16 %v650
      %v2025 = vunpack.c.l.b16 %v651
      %v2026 = vunpack.c.h.b16 %v651
      %v2027 = vunpack.c.l.b16 %v652
      %v2028 = vunpack.c.h.b16 %v652
      %v2029 = vunpack.c.l.b16 %v653
      %v2030 = vunpack.c.h.b16 %v653
      %v2031 = vunpack.c.l.b16 %v654
      %v2032 = vunpack.c.h.b16 %v654
      %v2033 = vunpack.c.l.b16 %v655
      %v2034 = vunpack.c.h.b16 %v655
      %v2035 = vunpack.c.l.b16 %v656
      %v2036 = vunpack.c.h.b16 %v656
      %v2037 = vunpack.c.l.b16 %v657
      %v2038 = vunpack.c.h.b16 %v657
      %v2039 = vunpack.c.l.b16 %v658
      %v2040 = vunpack.c.h.b16 %v658
      %v2041 = vunpack.c.l.b16 %v659
      %v2042 = vunpack.c.h.b16 %v659
      %v2043 = vunpack.c.l.b16 %v660
      %v2044 = vunpack.c.h.b16 %v660
      %v2045 = vunpack.c.l.b16 %v661
      %v2046 = vunpack.c.h.b16 %v661
      %v2047 = vunpack.c.l.b16 %v662
      %v2048 = vunpack.c.h.b16 %v662
      %v2049 = vunpack.c.l.b16 %v663
      %v2050 = vunpack.c.h.b16 %v663
      %v2051 = vunpack.c.l.b16 %v664
      %v2052 = vunpack.c.h.b16 %v664
      %v2053 = vunpack.c.l.b16 %v665
      %v2054 = vunpack.c.h.b16 %v665
      %v2055 = vunpack.c.l.b16 %v666
      %v2056 = vunpack.c.h.b16 %v666
      %v2057 = vunpack.c.l.b16 %v667
      %v2058 = vunpack.c.h.b16 %v667
      %v2059 = vunpack.c.l.b16 %v668
      %v2060 = vunpack.c.h.b16 %v668
      %v2061 = vunpack.c.l.b16 %v669
      %v2062 = vunpack.c.h.b16 %v669
      %v2063 = vunpack.c.l.b16 %v670
      %v2064 = vunpack.c.h.b16 %v670
      %v2065 = vunpack.c.l.b16 %v671
      %v2066 = vunpack.c.h.b16 %v671
      %v2067 = vunpack.c.l.b16 %v672
      %v2068 = vunpack.c.h.b16 %v672
      %v2069 = vunpack.c.l.b16 %v673
      %v2070 = vunpack.c.h.b16 %v673
      %v2071 = vunpack.c.l.b16 %v674
      %v2072 = vunpack.c.h.b16 %v674
      %v2073 = vunpack.c.l.b16 %v675
      %v2074 = vunpack.c.h.b16 %v675
      %v2075 = vunpack.c.l.b16 %v676
      %v2076 = vunpack.c.h.b16 %v676
      %v2077 = vunpack.c.l.b16 %v677
      %v2078 = vunpack.c.h.b16 %v677
      %v2079 = vunpack.c.l.b16 %v678
      %v2080 = vunpack.c.h.b16 %v678
      %v2081 = vunpack.c.l.b16 %v679
      %v2082 = vunpack.c.h.b16 %v679
      %v2083 = vunpack.c.l.b16 %v680
      %v2084 = vunpack.c.h.b16 %v680
      %v2085 = vunpack.c.l.b16 %v681
      %v2086 = vunpack.c.h.b16 %v681
      %v2087 = vunpack.c.l.b16 %v682
      %v2088 = vunpack.c.h.b16 %v682
      %v2089 = vunpack.c.l.b16 %v683
      %v2090 = vunpack.c.h.b16 %v683
      %v2091 = vunpack.c.l.b16 %v684
      %v2092 = vunpack.c.h.b16 %v684
      %v2093 = vunpack.c.l.b16 %v685
      %v2094 = vunpack.c.h.b16 %v685
      %v2095 = vunpack.c.l.b16 %v686
      %v2096 = vunpack.c.h.b16 %v686
      %v2097 = vunpack.c.l.b16 %v687
      %v2098 = vunpack.c.h.b16 %v687
      %v2099 = vunpack.c.l.b16 %v688
      %v2100 = vunpack.c.h.b16 %v688
      %v2101 = vunpack.c.l.b16 %v689
      %v2102 = vunpack.c.h.b16 %v689
      %v2103 = vunpack.c.l.b16 %v690
      %v2104 = vunpack.c.h.b16 %v690
      %v2105 = vunpack.c.l.b16 %v691
      %v2106 = vunpack.c.h.b16 %v691
      %v2107 = vunpack.c.l.b16 %v692
      %v2108 = vunpack.c.h.b16 %v692
      %v2109 = vunpack.c.l.b16 %v693
      %v2110 = vunpack.c.h.b16 %v693
      %v2111 = vunpack.c.l.b16 %v694
      %v2112 = vunpack.c.h.b16 %v694
      %v2113 = vunpack.c.l.b16 %v695
      %v2114 = vunpack.c.h.b16 %v695
      %v2115 = vunpack.c.l.b16 %v696
      %v2116 = vunpack.c.h.b16 %v696
      %v2117 = vunpack.c.l.b16 %v697
      %v2118 = vunpack.c.h.b16 %v697
      %v2119 = vunpack.c.l.b16 %v698
      %v2120 = vunpack.c.h.b16 %v698
      %v2121 = vunpack.c.l.b16 %v699
      %v2122 = vunpack.c.h.b16 %v699
      %v2123 = vunpack.c.l.b16 %v700
      %v2124 = vunpack.c.h.b16 %v700
      %v2125 = vunpack.c.l.b16 %v701
      %v2126 = vunpack.c.h.b16 %v701
      %v2127 = vunpack.c.l.b16 %v702
      %v2128 = vunpack.c.h.b16 %v702
      %v2129 = vunpack.c.l.b16 %v703
      %v2130 = vunpack.c.h.b16 %v703
      %v2131 = vunpack.c.l.b16 %v704
      %v2132 = vunpack.c.h.b16 %v704
      %v2133 = vunpack.c.l.b16 %v705
      %v2134 = vunpack.c.h.b16 %v705
      %v2135 = vunpack.c.l.b16 %v706
      %v2136 = vunpack.c.h.b16 %v706
      %v2137 = vunpack.c.l.b16 %v707
      %v2138 = vunpack.c.h.b16 %v707
      %v2139 = vunpack.c.l.b16 %v708
      %v2140 = vunpack.c.h.b16 %v708
      %v2141 = vunpack.c.l.b16 %v709
      %v2142 = vunpack.c.h.b16 %v709
      %v2143 = vunpack.c.l.b16 %v710
      %v2144 = vunpack.c.h.b16 %v710
      %v2145 = vunpack.c.l.b16 %v711
      %v2146 = vunpack.c.h.b16 %v711
      %v2147 = vunpack.c.l.b16 %v712
      %v2148 = vunpack.c.h.b16 %v712
      %v2149 = vunpack.c.l.b16 %v713
      %v2150 = vunpack.c.h.b16 %v713
      %v2151 = vunpack.c.l.b16 %v714
      %v2152 = vunpack.c.h.b16 %v714
      %v2153 = vunpack.c.l.b16 %v715
      %v2154 = vunpack.c.h.b16 %v715
      %v2155 = vunpack.c.l.b16 %v716
      %v2156 = vunpack.c.h.b16 %v716
      %v2157 = vunpack.c.l.b16 %v717
      %v2158 = vunpack.c.h.b16 %v717
      %v2159 = vunpack.c.l.b16 %v718
      %v2160 = vunpack.c.h.b16 %v718
      %v2161 = vunpack.c.l.b16 %v719
      %v2162 = vunpack.c.h.b16 %v719
      %v2163 = vunpack.c.l.b16 %v720
      %v2164 = vunpack.c.h.b16 %v720
      %v2165 = vunpack.c.l.b16 %v721
      %v2166 = vunpack.c.h.b16 %v721
      %v2167 = vunpack.c.l.b16 %v722
      %v2168 = vunpack.c.h.b16 %v722
      %v2169 = vunpack.c.l.b16 %v723
      %v2170 = vunpack.c.h.b16 %v723
      %v2171 = vunpack.c.l.b16 %v724
      %v2172 = vunpack.c.h.b16 %v724
      %v2173 = vunpack.c.l.b16 %v725
      %v2174 = vunpack.c.h.b16 %v725
      %v2175 = vunpack.c.l.b16 %v726
      %v2176 = vunpack.c.h.b16 %v726
      %v2177 = vunpack.c.l.b16 %v727
      %v2178 = vunpack.c.h.b16 %v727
      %v2179 = vunpack.c.l.b16 %v728
      %v2180 = vunpack.c.h.b16 %v728
      %v2181 = vunpack.c.l.b16 %v729
      %v2182 = vunpack.c.h.b16 %v729
      %v2183 = vunpack.c.l.b16 %v730
      %v2184 = vunpack.c.h.b16 %v730
      %v2185 = vunpack.c.l.b16 %v731
      %v2186 = vunpack.c.h.b16 %v731
      %v2187 = vunpack.c.l.b16 %v732
      %v2188 = vunpack.c.h.b16 %v732
      %v2189 = vunpack.c.l.b16 %v733
      %v2190 = vunpack.c.h.b16 %v733
      %v2191 = vunpack.c.l.b16 %v734
      %v2192 = vunpack.c.h.b16 %v734
      %v2193 = vunpack.c.l.b16 %v735
      %v2194 = vunpack.c.h.b16 %v735
      %v2195 = vunpack.c.l.b16 %v736
      %v2196 = vunpack.c.h.b16 %v736
      %v2197 = vunpack.c.l.b16 %v737
      %v2198 = vunpack.c.h.b16 %v737
      %v2199 = vunpack.c.l.b16 %v738
      %v2200 = vunpack.c.h.b16 %v738
      %v2201 = vunpack.c.l.b16 %v739
      %v2202 = vunpack.c.h.b16 %v739
      %v2203 = vunpack.c.l.b16 %v740
      %v2204 = vunpack.c.h.b16 %v740
      %v2205 = vunpack.c.l.b16 %v741
      %v2206 = vunpack.c.h.b16 %v741
      %v2207 = vunpack.c.l.b16 %v742
      %v2208 = vunpack.c.h.b16 %v742
      %v2209 = vunpack.c.l.b16 %v743
      %v2210 = vunpack.c.h.b16 %v743
      %v2211 = vunpack.c.l.b16 %v744
      %v2212 = vunpack.c.h.b16 %v744
      %v2213 = vunpack.c.l.b16 %v745
      %v2214 = vunpack.c.h.b16 %v745
      %v2215 = vunpack.c.l.b16 %v746
      %v2216 = vunpack.c.h.b16 %v746
      %v2217 = vunpack.c.l.b16 %v747
      %v2218 = vunpack.c.h.b16 %v747
      %v2219 = vunpack.c.l.b16 %v748
      %v2220 = vunpack.c.h.b16 %v748
      %v2221 = vunpack.c.l.b16 %v749
      %v2222 = vunpack.c.h.b16 %v749
      %v2223 = vunpack.c.l.b16 %v750
      %v2224 = vunpack.c.h.b16 %v750
      %v2225 = vunpack.c.l.b16 %v751
      %v2226 = vunpack.c.h.b16 %v751
      %v2227 = vunpack.c.l.b16 %v752
      %v2228 = vunpack.c.h.b16 %v752
      %v2229 = vunpack.c.l.b16 %v753
      %v2230 = vunpack.c.h.b16 %v753
      %v2231 = vunpack.c.l.b16 %v754
      %v2232 = vunpack.c.h.b16 %v754
      %v2233 = vunpack.c.l.b16 %v755
      %v2234 = vunpack.c.h.b16 %v755
      %v2235 = vunpack.c.l.b16 %v756
      %v2236 = vunpack.c.h.b16 %v756
      %v2237 = vunpack.c.l.b16 %v757
      %v2238 = vunpack.c.h.b16 %v757
      %v2239 = vunpack.c.l.b16 %v758
      %v2240 = vunpack.c.h.b16 %v758
      %v2241 = vunpack.c.l.b16 %v759
      %v2242 = vunpack.c.h.b16 %v759
      %v2243 = vunpack.c.l.b16 %v760
      %v2244 = vunpack.c.h.b16 %v760
      %v2245 = vunpack.c.l.b16 %v761
      %v2246 = vunpack.c.h.b16 %v761
      %v2247 = vunpack.c.l.b16 %v762
      %v2248 = vunpack.c.h.b16 %v762
      %v2249 = vunpack.c.l.b16 %v763
      %v2250 = vunpack.c.h.b16 %v763
      %v2251 = vunpack.c.l.b16 %v764
      %v2252 = vunpack.c.h.b16 %v764
      %v2253 = vunpack.c.l.b16 %v765
      %v2254 = vunpack.c.h.b16 %v765
      %v2255 = vunpack.c.l.b16 %v766
      %v2256 = vunpack.c.h.b16 %v766
      %v2257 = vunpack.c.l.b16 %v767
      %v2258 = vunpack.c.h.b16 %v767
      %v2259 = vunpack.c.l.b16 %v768
      %v2260 = vunpack.c.h.b16 %v768
      %v2261 = vunpack.c.l.b16 %v769
      %v2262 = vunpack.c.h.b16 %v769
      %v2263 = vunpack.c.l.b16 %v770
      %v2264 = vunpack.c.h.b16 %v770
      %v2265 = vunpack.c.l.b16 %v771
      %v2266 = vunpack.c.h.b16 %v771
      %v2267 = vunpack.c.l.b16 %v772
      %v2268 = vunpack.c.h.b16 %v772
      %v2269 = vunpack.c.l.b16 %v773
      %v2270 = vunpack.c.h.b16 %v773
      %v2271 = vunpack.c.l.b16 %v774
      %v2272 = vunpack.c.h.b16 %v774
      %v2273 = vunpack.c.l.b16 %v775
      %v2274 = vunpack.c.h.b16 %v775
      %v2275 = vunpack.c.l.b16 %v776
      %v2276 = vunpack.c.h.b16 %v776
      %v2277 = vunpack.c.l.b16 %v777
      %v2278 = vunpack.c.h.b16 %v777
      %v2279 = vunpack.c.l.b16 %v778
      %v2280 = vunpack.c.h.b16 %v778
      %v2281 = vunpack.c.l.b16 %v779
      %v2282 = vunpack.c.h.b16 %v779
      %v2283 = vunpack.c.l.b16 %v780
      %v2284 = vunpack.c.h.b16 %v780
      %v2285 = vunpack.c.l.b16 %v781
      %v2286 = vunpack.c.h.b16 %v781
      %v2287 = vunpack.c.l.b16 %v782
      %v2288 = vunpack.c.h.b16 %v782
      %v2289 = vunpack.c.l.b16 %v783
      %v2290 = vunpack.c.h.b16 %v783
      %v2291 = vunpack.c.l.b16 %v784
      %v2292 = vunpack.c.h.b16 %v784
      %v2293 = vunpack.c.l.b16 %v785
      %v2294 = vunpack.c.h.b16 %v785
      %v2295 = vunpack.c.l.b16 %v786
      %v2296 = vunpack.c.h.b16 %v786
      %v2297 = vunpack.c.l.b16 %v787
      %v2298 = vunpack.c.h.b16 %v787
      %v2299 = vunpack.c.l.b16 %v788
      %v2300 = vunpack.c.h.b16 %v788
      %v2301 = vunpack.c.l.b16 %v789
      %v2302 = vunpack.c.h.b16 %v789
      %v2303 = vunpack.c.l.b16 %v790
      %v2304 = vunpack.c.h.b16 %v790
      %v2305 = vunpack.c.l.b16 %v791
      %v2306 = vunpack.c.h.b16 %v791
      %v2307 = vunpack.c.l.b16 %v792
      %v2308 = vunpack.c.h.b16 %v792
      %v2309 = vunpack.c.l.b16 %v793
      %v2310 = vunpack.c.h.b16 %v793
      %v2311 = vunpack.c.l.b16 %v794
      %v2312 = vunpack.c.h.b16 %v794
      %v2313 = vunpack.c.l.b16 %v795
      %v2314 = vunpack.c.h.b16 %v795
      %v2315 = vunpack.c.l.b16 %v796
      %v2316 = vunpack.c.h.b16 %v796
      %v2317 = vunpack.c.l.b16 %v797
      %v2318 = vunpack.c.h.b16 %v797
      %v2319 = vunpack.c.l.b16 %v798
      %v2320 = vunpack.c.h.b16 %v798
      %v2321 = vunpack.c.l.b16 %v799
      %v2322 = vunpack.c.h.b16 %v799
      %v2323 = vunpack.c.l.b16 %v800
      %v2324 = vunpack.c.h.b16 %v800
      %v2325 = vunpack.c.l.b16 %v801
      %v2326 = vunpack.c.h.b16 %v801
      %v2327 = vunpack.c.l.b16 %v802
      %v2328 = vunpack.c.h.b16 %v802
      %v2329 = vunpack.c.l.b16 %v803
      %v2330 = vunpack.c.h.b16 %v803
      %v2331 = vunpack.c.l.b16 %v804
      %v2332 = vunpack.c.h.b16 %v804
      %v2333 = vunpack.c.l.b16 %v805
      %v2334 = vunpack.c.h.b16 %v805
      %v2335 = vunpack.c.l.b16 %v806
      %v2336 = vunpack.c.h.b16 %v806
      %v2337 = vunpack.c.l.b16 %v807
      %v2338 = vunpack.c.h.b16 %v807
      %v2339 = vunpack.c.l.b16 %v808
      %v2340 = vunpack.c.h.b16 %v808
      %v2341 = vunpack.c.l.b16 %v809
      %v2342 = vunpack.c.h.b16 %v809
      %v2343 = vunpack.c.l.b16 %v810
      %v2344 = vunpack.c.h.b16 %v810
      %v2345 = vunpack.c.l.b16 %v811
      %v2346 = vunpack.c.h.b16 %v811
      %v2347 = vunpack.c.l.b16 %v812
      %v2348 = vunpack.c.h.b16 %v812
      %v2349 = vpack.c.b16 %v1333, %v1325
      %v2350 = vpack.c.b16 %v1334, %v1326
      %v2351 = vpack.c.b16 %v1335, %v1327
      %v2352 = vpack.c.b16 %v1336, %v1328
      %v2353 = vpack.c.b16 %v1337, %v1329
      %v2354 = vpack.c.b16 %v1338, %v1330
      %v2355 = vpack.c.b16 %v1339, %v1331
      %v2356 = vpack.c.b16 %v1340, %v1332
      %v2357 = vpack.c.b16 %v1349, %v1341
      %v2358 = vpack.c.b16 %v1350, %v1342
      %v2359 = vpack.c.b16 %v1351, %v1343
      %v2360 = vpack.c.b16 %v1352, %v1344
      %v2361 = vpack.c.b16 %v1353, %v1345
      %v2362 = vpack.c.b16 %v1354, %v1346
      %v2363 = vpack.c.b16 %v1355, %v1347
      %v2364 = vpack.c.b16 %v1356, %v1348
      %v2365 = vpack.c.b16 %v1365, %v1357
      %v2366 = vpack.c.b16 %v1366, %v1358
      %v2367 = vpack.c.b16 %v1367, %v1359
      %v2368 = vpack.c.b16 %v1368, %v1360
      %v2369 = vpack.c.b16 %v1369, %v1361
      %v2370 = vpack.c.b16 %v1370, %v1362
      %v2371 = vpack.c.b16 %v1371, %v1363
      %v2372 = vpack.c.b16 %v1372, %v1364
      %v2373 = vpack.c.b16 %v1381, %v1373
      %v2374 = vpack.c.b16 %v1382, %v1374
      %v2375 = vpack.c.b16 %v1383, %v1375
      %v2376 = vpack.c.b16 %v1384, %v1376
      %v2377 = vpack.c.b16 %v1385, %v1377
      %v2378 = vpack.c.b16 %v1386, %v1378
      %v2379 = vpack.c.b16 %v1387, %v1379
      %v2380 = vpack.c.b16 %v1388, %v1380
      %v2381 = vpack.c.b16 %v1397, %v1389
      %v2382 = vpack.c.b16 %v1398, %v1390
      %v2383 = vpack.c.b16 %v1399, %v1391
      %v2384 = vpack.c.b16 %v1400, %v1392
      %v2385 = vpack.c.b16 %v1401, %v1393
      %v2386 = vpack.c.b16 %v1402, %v1394
      %v2387 = vpack.c.b16 %v1403, %v1395
      %v2388 = vpack.c.b16 %v1404, %v1396
      %v2389 = vpack.c.b16 %v1413, %v1405
      %v2390 = vpack.c.b16 %v1414, %v1406
      %v2391 = vpack.c.b16 %v1415, %v1407
      %v2392 = vpack.c.b16 %v1416, %v1408
      %v2393 = vpack.c.b16 %v1417, %v1409
      %v2394 = vpack.c.b16 %v1418, %v1410
      %v2395 = vpack.c.b16 %v1419, %v1411
      %v2396 = vpack.c.b16 %v1420, %v1412
      %v2397 = vpack.c.b16 %v1429, %v1421
      %v2398 = vpack.c.b16 %v1430, %v1422
      %v2399 = vpack.c.b16 %v1431, %v1423
      %v2400 = vpack.c.b16 %v1432, %v1424
      %v2401 = vpack.c.b16 %v1433, %v1425
      %v2402 = vpack.c.b16 %v1434, %v1426
      %v2403 = vpack.c.b16 %v1435, %v1427
      %v2404 = vpack.c.b16 %v1436, %v1428
      %v2405 = vpack.c.b16 %v1445, %v1437
      %v2406 = vpack.c.b16 %v1446, %v1438
      %v2407 = vpack.c.b16 %v1447, %v1439
      %v2408 = vpack.c.b16 %v1448, %v1440
      %v2409 = vpack.c.b16 %v1449, %v1441
      %v2410 = vpack.c.b16 %v1450, %v1442
      %v2411 = vpack.c.b16 %v1451, %v1443
      %v2412 = vpack.c.b16 %v1452, %v1444
      %v2413 = vpack.c.b16 %v1461, %v1453
      %v2414 = vpack.c.b16 %v1462, %v1454
      %v2415 = vpack.c.b16 %v1463, %v1455
      %v2416 = vpack.c.b16 %v1464, %v1456
      %v2417 = vpack.c.b16 %v1465, %v1457
      %v2418 = vpack.c.b16 %v1466, %v1458
      %v2419 = vpack.c.b16 %v1467, %v1459
      %v2420 = vpack.c.b16 %v1468, %v1460
      %v2421 = vpack.c.b16 %v1477, %v1469
      %v2422 = vpack.c.b16 %v1478, %v1470
      %v2423 = vpack.c.b16 %v1479, %v1471
      %v2424 = vpack.c.b16 %v1480, %v1472
      %v2425 = vpack.c.b16 %v1481, %v1473
      %v2426 = vpack.c.b16 %v1482, %v1474
      %v2427 = vpack.c.b16 %v1483, %v1475
      %v2428 = vpack.c.b16 %v1484, %v1476
      %v2429 = vpack.c.b16 %v1493, %v1485
      %v2430 = vpack.c.b16 %v1494, %v1486
      %v2431 = vpack.c.b16 %v1495, %v1487
      %v2432 = vpack.c.b16 %v1496, %v1488
      %v2433 = vpack.c.b16 %v1497, %v1489
      %v2434 = vpack.c.b16 %v1498, %v1490
      %v2435 = vpack.c.b16 %v1499, %v1491
      %v2436 = vpack.c.b16 %v1500, %v1492
      %v2437 = vpack.c.b16 %v1509, %v1501
      %v2438 = vpack.c.b16 %v1510, %v1502
      %v2439 = vpack.c.b16 %v1511, %v1503
      %v2440 = vpack.c.b16 %v1512, %v1504
      %v2441 = vpack.c.b16 %v1513, %v1505
      %v2442 = vpack.c.b16 %v1514, %v1506
      %v2443 = vpack.c.b16 %v1515, %v1507
      %v2444 = vpack.c.b16 %v1516, %v1508
      %v2445 = vpack.c.b16 %v1525, %v1517
      %v2446 = vpack.c.b16 %v1526, %v1518
      %v2447 = vpack.c.b16 %v1527, %v1519
      %v2448 = vpack.c.b16 %v1528, %v1520
      %v2449 = vpack.c.b16 %v1529, %v1521
      %v2450 = vpack.c.b16 %v1530, %v1522
      %v2451 = vpack.c.b16 %v1531, %v1523
      %v2452 = vpack.c.b16 %v1532, %v1524
      %v2453 = vpack.c.b16 %v1541, %v1533
      %v2454 = vpack.c.b16 %v1542, %v1534
      %v2455 = vpack.c.b16 %v1543, %v1535
      %v2456 = vpack.c.b16 %v1544, %v1536
      %v2457 = vpack.c.b16 %v1545, %v1537
      %v2458 = vpack.c.b16 %v1546, %v1538
      %v2459 = vpack.c.b16 %v1547, %v1539
      %v2460 = vpack.c.b16 %v1548, %v1540
      %v2461 = vpack.c.b16 %v1557, %v1549
      %v2462 = vpack.c.b16 %v1558, %v1550
      %v2463 = vpack.c.b16 %v1559, %v1551
      %v2464 = vpack.c.b16 %v1560, %v1552
      %v2465 = vpack.c.b16 %v1561, %v1553
      %v2466 = vpack.c.b16 %v1562, %v1554
      %v2467 = vpack.c.b16 %v1563, %v1555
      %v2468 = vpack.c.b16 %v1564, %v1556
      %v2469 = vpack.c.b16 %v1573, %v1565
      %v2470 = vpack.c.b16 %v1574, %v1566
      %v2471 = vpack.c.b16 %v1575, %v1567
      %v2472 = vpack.c.b16 %v1576, %v1568
      %v2473 = vpack.c.b16 %v1577, %v1569
      %v2474 = vpack.c.b16 %v1578, %v1570
      %v2475 = vpack.c.b16 %v1579, %v1571
      %v2476 = vpack.c.b16 %v1580, %v1572
      %v2477 = vpack.c.b16 %v1589, %v1581
      %v2478 = vpack.c.b16 %v1590, %v1582
      %v2479 = vpack.c.b16 %v1591, %v1583
      %v2480 = vpack.c.b16 %v1592, %v1584
      %v2481 = vpack.c.b16 %v1593, %v1585
      %v2482 = vpack.c.b16 %v1594, %v1586
      %v2483 = vpack.c.b16 %v1595, %v1587
      %v2484 = vpack.c.b16 %v1596, %v1588
      %v2485 = vpack.c.b16 %v1605, %v1597
      %v2486 = vpack.c.b16 %v1606, %v1598
      %v2487 = vpack.c.b16 %v1607, %v1599
      %v2488 = vpack.c.b16 %v1608, %v1600
      %v2489 = vpack.c.b16 %v1609, %v1601
      %v2490 = vpack.c.b16 %v1610, %v1602
      %v2491 = vpack.c.b16 %v1611, %v1603
      %v2492 = vpack.c.b16 %v1612, %v1604
      %v2493 = vpack.c.b16 %v1621, %v1613
      %v2494 = vpack.c.b16 %v1622, %v1614
      %v2495 = vpack.c.b16 %v1623, %v1615
      %v2496 = vpack.c.b16 %v1624, %v1616
      %v2497 = vpack.c.b16 %v1625, %v1617
      %v2498 = vpack.c.b16 %v1626, %v1618
      %v2499 = vpack.c.b16 %v1627, %v1619
      %v2500 = vpack.c.b16 %v1628, %v1620
      %v2501 = vpack.c.b16 %v1637, %v1629
      %v2502 = vpack.c.b16 %v1638, %v1630
      %v2503 = vpack.c.b16 %v1639, %v1631
      %v2504 = vpack.c.b16 %v1640, %v1632
      %v2505 = vpack.c.b16 %v1641, %v1633
      %v2506 = vpack.c.b16 %v1642, %v1634
      %v2507 = vpack.c.b16 %v1643, %v1635
      %v2508 = vpack.c.b16 %v1644, %v1636
      %v2509 = vpack.c.b16 %v1653, %v1645
      %v2510 = vpack.c.b16 %v1654, %v1646
      %v2511 = vpack.c.b16 %v1655, %v1647
      %v2512 = vpack.c.b16 %v1656, %v1648
      %v2513 = vpack.c.b16 %v1657, %v1649
      %v2514 = vpack.c.b16 %v1658, %v1650
      %v2515 = vpack.c.b16 %v1659, %v1651
      %v2516 = vpack.c.b16 %v1660, %v1652
      %v2517 = vpack.c.b16 %v1669, %v1661
      %v2518 = vpack.c.b16 %v1670, %v1662
      %v2519 = vpack.c.b16 %v1671, %v1663
      %v2520 = vpack.c.b16 %v1672, %v1664
      %v2521 = vpack.c.b16 %v1673, %v1665
      %v2522 = vpack.c.b16 %v1674, %v1666
      %v2523 = vpack.c.b16 %v1675, %v1667
      %v2524 = vpack.c.b16 %v1676, %v1668
      %v2525 = vpack.c.b16 %v1685, %v1677
      %v2526 = vpack.c.b16 %v1686, %v1678
      %v2527 = vpack.c.b16 %v1687, %v1679
      %v2528 = vpack.c.b16 %v1688, %v1680
      %v2529 = vpack.c.b16 %v1689, %v1681
      %v2530 = vpack.c.b16 %v1690, %v1682
      %v2531 = vpack.c.b16 %v1691, %v1683
      %v2532 = vpack.c.b16 %v1692, %v1684
      %v2533 = vpack.c.b16 %v1701, %v1693
      %v2534 = vpack.c.b16 %v1702, %v1694
      %v2535 = vpack.c.b16 %v1703, %v1695
      %v2536 = vpack.c.b16 %v1704, %v1696
      %v2537 = vpack.c.b16 %v1705, %v1697
      %v2538 = vpack.c.b16 %v1706, %v1698
      %v2539 = vpack.c.b16 %v1707, %v1699
      %v2540 = vpack.c.b16 %v1708, %v1700
      %v2541 = vpack.c.b16 %v1717, %v1709
      %v2542 = vpack.c.b16 %v1718, %v1710
      %v2543 = vpack.c.b16 %v1719, %v1711
      %v2544 = vpack.c.b16 %v1720, %v1712
      %v2545 = vpack.c.b16 %v1721, %v1713
      %v2546 = vpack.c.b16 %v1722, %v1714
      %v2547 = vpack.c.b16 %v1723, %v1715
      %v2548 = vpack.c.b16 %v1724, %v1716
      %v2549 = vpack.c.b16 %v1733, %v1725
      %v2550 = vpack.c.b16 %v1734, %v1726
      %v2551 = vpack.c.b16 %v1735, %v1727
      %v2552 = vpack.c.b16 %v1736, %v1728
      %v2553 = vpack.c.b16 %v1737, %v1729
      %v2554 = vpack.c.b16 %v1738, %v1730
      %v2555 = vpack.c.b16 %v1739, %v1731
      %v2556 = vpack.c.b16 %v1740, %v1732
      %v2557 = vpack.c.b16 %v1749, %v1741
      %v2558 = vpack.c.b16 %v1750, %v1742
      %v2559 = vpack.c.b16 %v1751, %v1743
      %v2560 = vpack.c.b16 %v1752, %v1744
      %v2561 = vpack.c.b16 %v1753, %v1745
      %v2562 = vpack.c.b16 %v1754, %v1746
      %v2563 = vpack.c.b16 %v1755, %v1747
      %v2564 = vpack.c.b16 %v1756, %v1748
      %v2565 = vpack.c.b16 %v1765, %v1757
      %v2566 = vpack.c.b16 %v1766, %v1758
      %v2567 = vpack.c.b16 %v1767, %v1759
      %v2568 = vpack.c.b16 %v1768, %v1760
      %v2569 = vpack.c.b16 %v1769, %v1761
      %v2570 = vpack.c.b16 %v1770, %v1762
      %v2571 = vpack.c.b16 %v1771, %v1763
      %v2572 = vpack.c.b16 %v1772, %v1764
      %v2573 = vpack.c.b16 %v1781, %v1773
      %v2574 = vpack.c.b16 %v1782, %v1774
      %v2575 = vpack.c.b16 %v1783, %v1775
      %v2576 = vpack.c.b16 %v1784, %v1776
      %v2577 = vpack.c.b16 %v1785, %v1777
      %v2578 = vpack.c.b16 %v1786, %v1778
      %v2579 = vpack.c.b16 %v1787, %v1779
      %v2580 = vpack.c.b16 %v1788, %v1780
      %v2581 = vpack.c.b16 %v1797, %v1789
      %v2582 = vpack.c.b16 %v1798, %v1790
      %v2583 = vpack.c.b16 %v1799, %v1791
      %v2584 = vpack.c.b16 %v1800, %v1792
      %v2585 = vpack.c.b16 %v1801, %v1793
      %v2586 = vpack.c.b16 %v1802, %v1794
      %v2587 = vpack.c.b16 %v1803, %v1795
      %v2588 = vpack.c.b16 %v1804, %v1796
      %v2589 = vpack.c.b16 %v1813, %v1805
      %v2590 = vpack.c.b16 %v1814, %v1806
      %v2591 = vpack.c.b16 %v1815, %v1807
      %v2592 = vpack.c.b16 %v1816, %v1808
      %v2593 = vpack.c.b16 %v1817, %v1809
      %v2594 = vpack.c.b16 %v1818, %v1810
      %v2595 = vpack.c.b16 %v1819, %v1811
      %v2596 = vpack.c.b16 %v1820, %v1812
      %v2597 = vpack.c.b16 %v1829, %v1821
      %v2598 = vpack.c.b16 %v1830, %v1822
      %v2599 = vpack.c.b16 %v1831, %v1823
      %v2600 = vpack.c.b16 %v1832, %v1824
      %v2601 = vpack.c.b16 %v1833, %v1825
      %v2602 = vpack.c.b16 %v1834, %v1826
      %v2603 = vpack.c.b16 %v1835, %v1827
      %v2604 = vpack.c.b16 %v1836, %v1828
      %v2605 = vpack.c.b16 %v1845, %v1837
      %v2606 = vpack.c.b16 %v1846, %v1838
      %v2607 = vpack.c.b16 %v1847, %v1839
      %v2608 = vpack.c.b16 %v1848, %v1840
      %v2609 = vpack.c.b16 %v1849, %v1841
      %v2610 = vpack.c.b16 %v1850, %v1842
      %v2611 = vpack.c.b16 %v1851, %v1843
      %v2612 = vpack.c.b16 %v1852, %v1844
      %v2613 = vpack.c.b16 %v1861, %v1853
      %v2614 = vpack.c.b16 %v1862, %v1854
      %v2615 = vpack.c.b16 %v1863, %v1855
      %v2616 = vpack.c.b16 %v1864, %v1856
      %v2617 = vpack.c.b16 %v1865, %v1857
      %v2618 = vpack.c.b16 %v1866, %v1858
      %v2619 = vpack.c.b16 %v1867, %v1859
      %v2620 = vpack.c.b16 %v1868, %v1860
      %v2621 = vpack.c.b16 %v1877, %v1869
      %v2622 = vpack.c.b16 %v1878, %v1870
      %v2623 = vpack.c.b16 %v1879, %v1871
      %v2624 = vpack.c.b16 %v1880, %v1872
      %v2625 = vpack.c.b16 %v1881, %v1873
      %v2626 = vpack.c.b16 %v1882, %v1874
      %v2627 = vpack.c.b16 %v1883, %v1875
      %v2628 = vpack.c.b16 %v1884, %v1876
      %v2629 = vpack.c.b16 %v1893, %v1885
      %v2630 = vpack.c.b16 %v1894, %v1886
      %v2631 = vpack.c.b16 %v1895, %v1887
      %v2632 = vpack.c.b16 %v1896, %v1888
      %v2633 = vpack.c.b16 %v1897, %v1889
      %v2634 = vpack.c.b16 %v1898, %v1890
      %v2635 = vpack.c.b16 %v1899, %v1891
      %v2636 = vpack.c.b16 %v1900, %v1892
      %v2637 = vpack.c.b16 %v1909, %v1901
      %v2638 = vpack.c.b16 %v1910, %v1902
      %v2639 = vpack.c.b16 %v1911, %v1903
      %v2640 = vpack.c.b16 %v1912, %v1904
      %v2641 = vpack.c.b16 %v1913, %v1905
      %v2642 = vpack.c.b16 %v1914, %v1906
      %v2643 = vpack.c.b16 %v1915, %v1907
      %v2644 = vpack.c.b16 %v1916, %v1908
      %v2645 = vpack.c.b16 %v1925, %v1917
      %v2646 = vpack.c.b16 %v1926, %v1918
      %v2647 = vpack.c.b16 %v1927, %v1919
      %v2648 = vpack.c.b16 %v1928, %v1920
      %v2649 = vpack.c.b16 %v1929, %v1921
      %v2650 = vpack.c.b16 %v1930, %v1922
      %v2651 = vpack.c.b16 %v1931, %v1923
      %v2652 = vpack.c.b16 %v1932, %v1924
      %v2653 = vpack.c.b16 %v1941, %v1933
      %v2654 = vpack.c.b16 %v1942, %v1934
      %v2655 = vpack.c.b16 %v1943, %v1935
      %v2656 = vpack.c.b16 %v1944, %v1936
      %v2657 = vpack.c.b16 %v1945, %v1937
      %v2658 = vpack.c.b16 %v1946, %v1938
      %v2659 = vpack.c.b16 %v1947, %v1939
      %v2660 = vpack.c.b16 %v1948, %v1940
      %v2661 = vpack.c.b16 %v1957, %v1949
      %v2662 = vpack.c.b16 %v1958, %v1950
      %v2663 = vpack.c.b16 %v1959, %v1951
      %v2664 = vpack.c.b16 %v1960, %v1952
      %v2665 = vpack.c.b16 %v1961, %v1953
      %v2666 = vpack.c.b16 %v1962, %v1954
      %v2667 = vpack.c.b16 %v1963, %v1955
      %v2668 = vpack.c.b16 %v1964, %v1956
      %v2669 = vpack.c.b16 %v1973, %v1965
      %v2670 = vpack.c.b16 %v1974, %v1966
      %v2671 = vpack.c.b16 %v1975, %v1967
      %v2672 = vpack.c.b16 %v1976, %v1968
      %v2673 = vpack.c.b16 %v1977, %v1969
      %v2674 = vpack.c.b16 %v1978, %v1970
      %v2675 = vpack.c.b16 %v1979, %v1971
      %v2676 = vpack.c.b16 %v1980, %v1972
      %v2677 = vpack.c.b16 %v1989, %v1981
      %v2678 = vpack.c.b16 %v1990, %v1982
      %v2679 = vpack.c.b16 %v1991, %v1983
      %v2680 = vpack.c.b16 %v1992, %v1984
      %v2681 = vpack.c.b16 %v1993, %v1985
      %v2682 = vpack.c.b16 %v1994, %v1986
      %v2683 = vpack.c.b16 %v1995, %v1987
      %v2684 = vpack.c.b16 %v1996, %v1988
      %v2685 = vpack.c.b16 %v2005, %v1997
      %v2686 = vpack.c.b16 %v2006, %v1998
      %v2687 = vpack.c.b16 %v2007, %v1999
      %v2688 = vpack.c.b16 %v2008, %v2000
      %v2689 = vpack.c.b16 %v2009, %v2001
      %v2690 = vpack.c.b16 %v2010, %v2002
      %v2691 = vpack.c.b16 %v2011, %v2003
      %v2692 = vpack.c.b16 %v2012, %v2004
      %v2693 = vpack.c.b16 %v2021, %v2013
      %v2694 = vpack.c.b16 %v2022, %v2014
      %v2695 = vpack.c.b16 %v2023, %v2015
      %v2696 = vpack.c.b16 %v2024, %v2016
      %v2697 = vpack.c.b16 %v2025, %v2017
      %v2698 = vpack.c.b16 %v2026, %v2018
      %v2699 = vpack.c.b16 %v2027, %v2019
      %v2700 = vpack.c.b16 %v2028, %v2020
      %v2701 = vpack.c.b16 %v2037, %v2029
      %v2702 = vpack.c.b16 %v2038, %v2030
      %v2703 = vpack.c.b16 %v2039, %v2031
      %v2704 = vpack.c.b16 %v2040, %v2032
      %v2705 = vpack.c.b16 %v2041, %v2033
      %v2706 = vpack.c.b16 %v2042, %v2034
      %v2707 = vpack.c.b16 %v2043, %v2035
      %v2708 = vpack.c.b16 %v2044, %v2036
      %v2709 = vpack.c.b16 %v2053, %v2045
      %v2710 = vpack.c.b16 %v2054, %v2046
      %v2711 = vpack.c.b16 %v2055, %v2047
      %v2712 = vpack.c.b16 %v2056, %v2048
      %v2713 = vpack.c.b16 %v2057, %v2049
      %v2714 = vpack.c.b16 %v2058, %v2050
      %v2715 = vpack.c.b16 %v2059, %v2051
      %v2716 = vpack.c.b16 %v2060, %v2052
      %v2717 = vpack.c.b16 %v2069, %v2061
      %v2718 = vpack.c.b16 %v2070, %v2062
      %v2719 = vpack.c.b16 %v2071, %v2063
      %v2720 = vpack.c.b16 %v2072, %v2064
      %v2721 = vpack.c.b16 %v2073, %v2065
      %v2722 = vpack.c.b16 %v2074, %v2066
      %v2723 = vpack.c.b16 %v2075, %v2067
      %v2724 = vpack.c.b16 %v2076, %v2068
      %v2725 = vpack.c.b16 %v2085, %v2077
      %v2726 = vpack.c.b16 %v2086, %v2078
      %v2727 = vpack.c.b16 %v2087, %v2079
      %v2728 = vpack.c.b16 %v2088, %v2080
      %v2729 = vpack.c.b16 %v2089, %v2081
      %v2730 = vpack.c.b16 %v2090, %v2082
      %v2731 = vpack.c.b16 %v2091, %v2083
      %v2732 = vpack.c.b16 %v2092, %v2084
      %v2733 = vpack.c.b16 %v2101, %v2093
      %v2734 = vpack.c.b16 %v2102, %v2094
      %v2735 = vpack.c.b16 %v2103, %v2095
      %v2736 = vpack.c.b16 %v2104, %v2096
      %v2737 = vpack.c.b16 %v2105, %v2097
      %v2738 = vpack.c.b16 %v2106, %v2098
      %v2739 = vpack.c.b16 %v2107, %v2099
      %v2740 = vpack.c.b16 %v2108, %v2100
      %v2741 = vpack.c.b16 %v2117, %v2109
      %v2742 = vpack.c.b16 %v2118, %v2110
      %v2743 = vpack.c.b16 %v2119, %v2111
      %v2744 = vpack.c.b16 %v2120, %v2112
      %v2745 = vpack.c.b16 %v2121, %v2113
      %v2746 = vpack.c.b16 %v2122, %v2114
      %v2747 = vpack.c.b16 %v2123, %v2115
      %v2748 = vpack.c.b16 %v2124, %v2116
      %v2749 = vpack.c.b16 %v2133, %v2125
      %v2750 = vpack.c.b16 %v2134, %v2126
      %v2751 = vpack.c.b16 %v2135, %v2127
      %v2752 = vpack.c.b16 %v2136, %v2128
      %v2753 = vpack.c.b16 %v2137, %v2129
      %v2754 = vpack.c.b16 %v2138, %v2130
      %v2755 = vpack.c.b16 %v2139, %v2131
      %v2756 = vpack.c.b16 %v2140, %v2132
      %v2757 = vpack.c.b16 %v2149, %v2141
      %v2758 = vpack.c.b16 %v2150, %v2142
      %v2759 = vpack.c.b16 %v2151, %v2143
      %v2760 = vpack.c.b16 %v2152, %v2144
      %v2761 = vpack.c.b16 %v2153, %v2145
      %v2762 = vpack.c.b16 %v2154, %v2146
      %v2763 = vpack.c.b16 %v2155, %v2147
      %v2764 = vpack.c.b16 %v2156, %v2148
      %v2765 = vpack.c.b16 %v2165, %v2157
      %v2766 = vpack.c.b16 %v2166, %v2158
      %v2767 = vpack.c.b16 %v2167, %v2159
      %v2768 = vpack.c.b16 %v2168, %v2160
      %v2769 = vpack.c.b16 %v2169, %v2161
      %v2770 = vpack.c.b16 %v2170, %v2162
      %v2771 = vpack.c.b16 %v2171, %v2163
      %v2772 = vpack.c.b16 %v2172, %v2164
      %v2773 = vpack.c.b16 %v2181, %v2173
      %v2774 = vpack.c.b16 %v2182, %v2174
      %v2775 = vpack.c.b16 %v2183, %v2175
      %v2776 = vpack.c.b16 %v2184, %v2176
      %v2777 = vpack.c.b16 %v2185, %v2177
      %v2778 = vpack.c.b16 %v2186, %v2178
      %v2779 = vpack.c.b16 %v2187, %v2179
      %v2780 = vpack.c.b16 %v2188, %v2180
      %v2781 = vpack.c.b16 %v2197, %v2189
      %v2782 = vpack.c.b16 %v2198, %v2190
      %v2783 = vpack.c.b16 %v2199, %v2191
      %v2784 = vpack.c.b16 %v2200, %v2192
      %v2785 = vpack.c.b16 %v2201, %v2193
      %v2786 = vpack.c.b16 %v2202, %v2194
      %v2787 = vpack.c.b16 %v2203, %v2195
      %v2788 = vpack.c.b16 %v2204, %v2196
      %v2789 = vpack.c.b16 %v2213, %v2205
      %v2790 = vpack.c.b16 %v2214, %v2206
      %v2791 = vpack.c.b16 %v2215, %v2207
      %v2792 = vpack.c.b16 %v2216, %v2208
      %v2793 = vpack.c.b16 %v2217, %v2209
      %v2794 = vpack.c.b16 %v2218, %v2210
      %v2795 = vpack.c.b16 %v2219, %v2211
      %v2796 = vpack.c.b16 %v2220, %v2212
      %v2797 = vpack.c.b16 %v2229, %v2221
      %v2798 = vpack.c.b16 %v2230, %v2222
      %v2799 = vpack.c.b16 %v2231, %v2223
      %v2800 = vpack.c.b16 %v2232, %v2224
      %v2801 = vpack.c.b16 %v2233, %v2225
      %v2802 = vpack.c.b16 %v2234, %v2226
      %v2803 = vpack.c.b16 %v2235, %v2227
      %v2804 = vpack.c.b16 %v2236, %v2228
      %v2805 = vpack.c.b16 %v2245, %v2237
      %v2806 = vpack.c.b16 %v2246, %v2238
      %v2807 = vpack.c.b16 %v2247, %v2239
      %v2808 = vpack.c.b16 %v2248, %v2240
      %v2809 = vpack.c.b16 %v2249, %v2241
      %v2810 = vpack.c.b16 %v2250, %v2242
      %v2811 = vpack.c.b16 %v2251, %v2243
      %v2812 = vpack.c.b16 %v2252, %v2244
      %v2813 = vpack.c.b16 %v2261, %v2253
      %v2814 = vpack.c.b16 %v2262, %v2254
      %v2815 = vpack.c.b16 %v2263, %v2255
      %v2816 = vpack.c.b16 %v2264, %v2256
      %v2817 = vpack.c.b16 %v2265, %v2257
      %v2818 = vpack.c.b16 %v2266, %v2258
      %v2819 = vpack.c.b16 %v2267, %v2259
      %v2820 = vpack.c.b16 %v2268, %v2260
      %v2821 = vpack.c.b16 %v2277, %v2269
      %v2822 = vpack.c.b16 %v2278, %v2270
      %v2823 = vpack.c.b16 %v2279, %v2271
      %v2824 = vpack.c.b16 %v2280, %v2272
      %v2825 = vpack.c.b16 %v2281, %v2273
      %v2826 = vpack.c.b16 %v2282, %v2274
      %v2827 = vpack.c.b16 %v2283, %v2275
      %v2828 = vpack.c.b16 %v2284, %v2276
      %v2829 = vpack.c.b16 %v2293, %v2285
      %v2830 = vpack.c.b16 %v2294, %v2286
      %v2831 = vpack.c.b16 %v2295, %v2287
      %v2832 = vpack.c.b16 %v2296, %v2288
      %v2833 = vpack.c.b16 %v2297, %v2289
      %v2834 = vpack.c.b16 %v2298, %v2290
      %v2835 = vpack.c.b16 %v2299, %v2291
      %v2836 = vpack.c.b16 %v2300, %v2292
      %v2837 = vpack.c.b16 %v2309, %v2301
      %v2838 = vpack.c.b16 %v2310, %v2302
      %v2839 = vpack.c.b16 %v2311, %v2303
      %v2840 = vpack.c.b16 %v2312, %v2304
      %v2841 = vpack.c.b16 %v2313, %v2305
      %v2842 = vpack.c.b16 %v2314, %v2306
      %v2843 = vpack.c.b16 %v2315, %v2307
      %v2844 = vpack.c.b16 %v2316, %v2308
      %v2845 = vpack.c.b16 %v2325, %v2317
      %v2846 = vpack.c.b16 %v2326, %v2318
      %v2847 = vpack.c.b16 %v2327, %v2319
      %v2848 = vpack.c.b16 %v2328, %v2320
      %v2849 = vpack.c.b16 %v2329, %v2321
      %v2850 = vpack.c.b16 %v2330, %v2322
      %v2851 = vpack.c.b16 %v2331, %v2323
      %v2852 = vpack.c.b16 %v2332, %v2324
      %v2853 = vpack.c.b16 %v2341, %v2333
      %v2854 = vpack.c.b16 %v2342, %v2334
      %v2855 = vpack.c.b16 %v2343, %v2335
      %v2856 = vpack.c.b16 %v2344, %v2336
      %v2857 = vpack.c.b16 %v2345, %v2337
      %v2858 = vpack.c.b16 %v2346, %v2338
      %v2859 = vpack.c.b16 %v2347, %v2339
      %v2860 = vpack.c.b16 %v2348, %v2340
      %3373 = vmatpush.bf16.msra.mxu0 %v2405
      %3374 = vmatpush.bf16.msra.mxu0 %v2397
      %3375 = vmatpush.bf16.msra.mxu0 %v2389
      %3376 = vmatpush.bf16.msra.mxu0 %v2381
      %3377 = vmatpush.bf16.msra.mxu0 %v2373
      %3378 = vmatpush.bf16.msra.mxu0 %v2365
      %3379 = vmatpush.bf16.msra.mxu0 %v2357
      %3380 = vmatpush.bf16.msra.mxu0 %v2349
      %3381 = vmatmul.bf16.gmra.mxu0 %v293
      %v3382 = vpop.f32.mrf.mxu0
      %v3383 = vadd.f32 0.0, %v3382
      %v3384 = vpop.f32.mrf.mxu0
      %v3385 = vadd.f32 0.0, %v3384
      %3386 = vdwg.mxu0
      %3387 = vmatpush.bf16.msra.mxu0 %v2469
      %3388 = vmatpush.bf16.msra.mxu0 %v2461
      %3389 = vmatpush.bf16.msra.mxu0 %v2453
      %3390 = vmatpush.bf16.msra.mxu0 %v2445
      %3391 = vmatpush.bf16.msra.mxu0 %v2437
      %3392 = vmatpush.bf16.msra.mxu0 %v2429
      %3393 = vmatpush.bf16.msra.mxu0 %v2421
      %3394 = vmatpush.bf16.msra.mxu0 %v2413
      %3395 = vmatmul.bf16.gmra.mxu0 %v294
      %v3396 = vpop.f32.mrf.mxu0
      %v3397 = vadd.f32 %v3383, %v3396
      %v3398 = vpop.f32.mrf.mxu0
      %v3399 = vadd.f32 %v3385, %v3398
      %3400 = vdwg.mxu0
      %3401 = vmatpush.bf16.msra.mxu0 %v2533
      %3402 = vmatpush.bf16.msra.mxu0 %v2525
      %3403 = vmatpush.bf16.msra.mxu0 %v2517
      %3404 = vmatpush.bf16.msra.mxu0 %v2509
      %3405 = vmatpush.bf16.msra.mxu0 %v2501
      %3406 = vmatpush.bf16.msra.mxu0 %v2493
      %3407 = vmatpush.bf16.msra.mxu0 %v2485
      %3408 = vmatpush.bf16.msra.mxu0 %v2477
      %3409 = vmatmul.bf16.gmra.mxu0 %v295
      %v3410 = vpop.f32.mrf.mxu0
      %v3411 = vadd.f32 %v3397, %v3410
      %v3412 = vpop.f32.mrf.mxu0
      %v3413 = vadd.f32 %v3399, %v3412
      %3414 = vdwg.mxu0
      %3415 = vmatpush.bf16.msra.mxu0 %v2597
      %3416 = vmatpush.bf16.msra.mxu0 %v2589
      %3417 = vmatpush.bf16.msra.mxu0 %v2581
      %3418 = vmatpush.bf16.msra.mxu0 %v2573
      %3419 = vmatpush.bf16.msra.mxu0 %v2565
      %3420 = vmatpush.bf16.msra.mxu0 %v2557
      %3421 = vmatpush.bf16.msra.mxu0 %v2549
      %3422 = vmatpush.bf16.msra.mxu0 %v2541
      %3423 = vmatmul.bf16.gmra.mxu0 %v296
      %v3424 = vpop.f32.mrf.mxu0
      %v3425 = vadd.f32 %v3411, %v3424
      %v3426 = vpop.f32.mrf.mxu0
      %v3427 = vadd.f32 %v3413, %v3426
      %3428 = vdwg.mxu0
      %3429 = vmatpush.bf16.msra.mxu0 %v2661
      %3430 = vmatpush.bf16.msra.mxu0 %v2653
      %3431 = vmatpush.bf16.msra.mxu0 %v2645
      %3432 = vmatpush.bf16.msra.mxu0 %v2637
      %3433 = vmatpush.bf16.msra.mxu0 %v2629
      %3434 = vmatpush.bf16.msra.mxu0 %v2621
      %3435 = vmatpush.bf16.msra.mxu0 %v2613
      %3436 = vmatpush.bf16.msra.mxu0 %v2605
      %3437 = vmatmul.bf16.gmra.mxu0 %v297
      %v3438 = vpop.f32.mrf.mxu0
      %v3439 = vadd.f32 %v3425, %v3438
      %v3440 = vpop.f32.mrf.mxu0
      %v3441 = vadd.f32 %v3427, %v3440
      %3442 = vdwg.mxu0
      %3443 = vmatpush.bf16.msra.mxu0 %v2725
      %3444 = vmatpush.bf16.msra.mxu0 %v2717
      %3445 = vmatpush.bf16.msra.mxu0 %v2709
      %3446 = vmatpush.bf16.msra.mxu0 %v2701
      %3447 = vmatpush.bf16.msra.mxu0 %v2693
      %3448 = vmatpush.bf16.msra.mxu0 %v2685
      %3449 = vmatpush.bf16.msra.mxu0 %v2677
      %3450 = vmatpush.bf16.msra.mxu0 %v2669
      %3451 = vmatmul.bf16.gmra.mxu0 %v298
      %v3452 = vpop.f32.mrf.mxu0
      %v3453 = vadd.f32 %v3439, %v3452
      %v3454 = vpop.f32.mrf.mxu0
      %v3455 = vadd.f32 %v3441, %v3454
      %3456 = vdwg.mxu0
      %3457 = vmatpush.bf16.msra.mxu0 %v2789
      %3458 = vmatpush.bf16.msra.mxu0 %v2781
      %3459 = vmatpush.bf16.msra.mxu0 %v2773
      %3460 = vmatpush.bf16.msra.mxu0 %v2765
      %3461 = vmatpush.bf16.msra.mxu0 %v2757
      %3462 = vmatpush.bf16.msra.mxu0 %v2749
      %3463 = vmatpush.bf16.msra.mxu0 %v2741
      %3464 = vmatpush.bf16.msra.mxu0 %v2733
      %3465 = vmatmul.bf16.gmra.mxu0 %v299
      %v3466 = vpop.f32.mrf.mxu0
      %v3467 = vadd.f32 %v3453, %v3466
      %v3468 = vpop.f32.mrf.mxu0
      %v3469 = vadd.f32 %v3455, %v3468
      %3470 = vdwg.mxu0
      %3471 = vmatpush.bf16.msra.mxu0 %v2853
      %3472 = vmatpush.bf16.msra.mxu0 %v2845
      %3473 = vmatpush.bf16.msra.mxu0 %v2837
      %3474 = vmatpush.bf16.msra.mxu0 %v2829
      %3475 = vmatpush.bf16.msra.mxu0 %v2821
      %3476 = vmatpush.bf16.msra.mxu0 %v2813
      %3477 = vmatpush.bf16.msra.mxu0 %v2805
      %3478 = vmatpush.bf16.msra.mxu0 %v2797
      %3479 = vmatmul.bf16.gmra.mxu0 %v300
      %v3480 = vpop.f32.mrf.mxu0
      %v3481 = vadd.f32 %v3467, %v3480
      %v3482 = vpop.f32.mrf.mxu0
      %v3483 = vadd.f32 %v3469, %v3482
      %3484 = vdwg.mxu0
      %3485 = vmatpush.bf16.msra.mxu0 %v2406
      %3486 = vmatpush.bf16.msra.mxu0 %v2398
      %3487 = vmatpush.bf16.msra.mxu0 %v2390
      %3488 = vmatpush.bf16.msra.mxu0 %v2382
      %3489 = vmatpush.bf16.msra.mxu0 %v2374
      %3490 = vmatpush.bf16.msra.mxu0 %v2366
      %3491 = vmatpush.bf16.msra.mxu0 %v2358
      %3492 = vmatpush.bf16.msra.mxu0 %v2350
      %3493 = vmatmul.bf16.gmra.mxu0 %v293
      %v3494 = vpop.f32.mrf.mxu0
      %v3495 = vadd.f32 0.0, %v3494
      %v3496 = vpop.f32.mrf.mxu0
      %v3497 = vadd.f32 0.0, %v3496
      %3498 = vdwg.mxu0
      %3499 = vmatpush.bf16.msra.mxu0 %v2470
      %3500 = vmatpush.bf16.msra.mxu0 %v2462
      %3501 = vmatpush.bf16.msra.mxu0 %v2454
      %3502 = vmatpush.bf16.msra.mxu0 %v2446
      %3503 = vmatpush.bf16.msra.mxu0 %v2438
      %3504 = vmatpush.bf16.msra.mxu0 %v2430
      %3505 = vmatpush.bf16.msra.mxu0 %v2422
      %3506 = vmatpush.bf16.msra.mxu0 %v2414
      %3507 = vmatmul.bf16.gmra.mxu0 %v294
      %v3508 = vpop.f32.mrf.mxu0
      %v3509 = vadd.f32 %v3495, %v3508
      %v3510 = vpop.f32.mrf.mxu0
      %v3511 = vadd.f32 %v3497, %v3510
      %3512 = vdwg.mxu0
      %3513 = vmatpush.bf16.msra.mxu0 %v2534
      %3514 = vmatpush.bf16.msra.mxu0 %v2526
      %3515 = vmatpush.bf16.msra.mxu0 %v2518
      %3516 = vmatpush.bf16.msra.mxu0 %v2510
      %3517 = vmatpush.bf16.msra.mxu0 %v2502
      %3518 = vmatpush.bf16.msra.mxu0 %v2494
      %3519 = vmatpush.bf16.msra.mxu0 %v2486
      %3520 = vmatpush.bf16.msra.mxu0 %v2478
      %3521 = vmatmul.bf16.gmra.mxu0 %v295
      %v3522 = vpop.f32.mrf.mxu0
      %v3523 = vadd.f32 %v3509, %v3522
      %v3524 = vpop.f32.mrf.mxu0
      %v3525 = vadd.f32 %v3511, %v3524
      %3526 = vdwg.mxu0
      %3527 = vmatpush.bf16.msra.mxu0 %v2598
      %3528 = vmatpush.bf16.msra.mxu0 %v2590
      %3529 = vmatpush.bf16.msra.mxu0 %v2582
      %3530 = vmatpush.bf16.msra.mxu0 %v2574
      %3531 = vmatpush.bf16.msra.mxu0 %v2566
      %3532 = vmatpush.bf16.msra.mxu0 %v2558
      %3533 = vmatpush.bf16.msra.mxu0 %v2550
      %3534 = vmatpush.bf16.msra.mxu0 %v2542
      %3535 = vmatmul.bf16.gmra.mxu0 %v296
      %v3536 = vpop.f32.mrf.mxu0
      %v3537 = vadd.f32 %v3523, %v3536
      %v3538 = vpop.f32.mrf.mxu0
      %v3539 = vadd.f32 %v3525, %v3538
      %3540 = vdwg.mxu0
      %3541 = vmatpush.bf16.msra.mxu0 %v2662
      %3542 = vmatpush.bf16.msra.mxu0 %v2654
      %3543 = vmatpush.bf16.msra.mxu0 %v2646
      %3544 = vmatpush.bf16.msra.mxu0 %v2638
      %3545 = vmatpush.bf16.msra.mxu0 %v2630
      %3546 = vmatpush.bf16.msra.mxu0 %v2622
      %3547 = vmatpush.bf16.msra.mxu0 %v2614
      %3548 = vmatpush.bf16.msra.mxu0 %v2606
      %3549 = vmatmul.bf16.gmra.mxu0 %v297
      %v3550 = vpop.f32.mrf.mxu0
      %v3551 = vadd.f32 %v3537, %v3550
      %v3552 = vpop.f32.mrf.mxu0
      %v3553 = vadd.f32 %v3539, %v3552
      %3554 = vdwg.mxu0
      %3555 = vmatpush.bf16.msra.mxu0 %v2726
      %3556 = vmatpush.bf16.msra.mxu0 %v2718
      %3557 = vmatpush.bf16.msra.mxu0 %v2710
      %3558 = vmatpush.bf16.msra.mxu0 %v2702
      %3559 = vmatpush.bf16.msra.mxu0 %v2694
      %3560 = vmatpush.bf16.msra.mxu0 %v2686
      %3561 = vmatpush.bf16.msra.mxu0 %v2678
      %3562 = vmatpush.bf16.msra.mxu0 %v2670
      %3563 = vmatmul.bf16.gmra.mxu0 %v298
      %v3564 = vpop.f32.mrf.mxu0
      %v3565 = vadd.f32 %v3551, %v3564
      %v3566 = vpop.f32.mrf.mxu0
      %v3567 = vadd.f32 %v3553, %v3566
      %3568 = vdwg.mxu0
      %3569 = vmatpush.bf16.msra.mxu0 %v2790
      %3570 = vmatpush.bf16.msra.mxu0 %v2782
      %3571 = vmatpush.bf16.msra.mxu0 %v2774
      %3572 = vmatpush.bf16.msra.mxu0 %v2766
      %3573 = vmatpush.bf16.msra.mxu0 %v2758
      %3574 = vmatpush.bf16.msra.mxu0 %v2750
      %3575 = vmatpush.bf16.msra.mxu0 %v2742
      %3576 = vmatpush.bf16.msra.mxu0 %v2734
      %3577 = vmatmul.bf16.gmra.mxu0 %v299
      %v3578 = vpop.f32.mrf.mxu0
      %v3579 = vadd.f32 %v3565, %v3578
      %v3580 = vpop.f32.mrf.mxu0
      %v3581 = vadd.f32 %v3567, %v3580
      %3582 = vdwg.mxu0
      %3583 = vmatpush.bf16.msra.mxu0 %v2854
      %3584 = vmatpush.bf16.msra.mxu0 %v2846
      %3585 = vmatpush.bf16.msra.mxu0 %v2838
      %3586 = vmatpush.bf16.msra.mxu0 %v2830
      %3587 = vmatpush.bf16.msra.mxu0 %v2822
      %3588 = vmatpush.bf16.msra.mxu0 %v2814
      %3589 = vmatpush.bf16.msra.mxu0 %v2806
      %3590 = vmatpush.bf16.msra.mxu0 %v2798
      %3591 = vmatmul.bf16.gmra.mxu0 %v300
      %v3592 = vpop.f32.mrf.mxu0
      %v3593 = vadd.f32 %v3579, %v3592
      %v3594 = vpop.f32.mrf.mxu0
      %v3595 = vadd.f32 %v3581, %v3594
      %3596 = vdwg.mxu0
      %3597 = vmatpush.bf16.msra.mxu0 %v2407
      %3598 = vmatpush.bf16.msra.mxu0 %v2399
      %3599 = vmatpush.bf16.msra.mxu0 %v2391
      %3600 = vmatpush.bf16.msra.mxu0 %v2383
      %3601 = vmatpush.bf16.msra.mxu0 %v2375
      %3602 = vmatpush.bf16.msra.mxu0 %v2367
      %3603 = vmatpush.bf16.msra.mxu0 %v2359
      %3604 = vmatpush.bf16.msra.mxu0 %v2351
      %3605 = vmatmul.bf16.gmra.mxu0 %v293
      %v3606 = vpop.f32.mrf.mxu0
      %v3607 = vadd.f32 0.0, %v3606
      %v3608 = vpop.f32.mrf.mxu0
      %v3609 = vadd.f32 0.0, %v3608
      %3610 = vdwg.mxu0
      %3611 = vmatpush.bf16.msra.mxu0 %v2471
      %3612 = vmatpush.bf16.msra.mxu0 %v2463
      %3613 = vmatpush.bf16.msra.mxu0 %v2455
      %3614 = vmatpush.bf16.msra.mxu0 %v2447
      %3615 = vmatpush.bf16.msra.mxu0 %v2439
      %3616 = vmatpush.bf16.msra.mxu0 %v2431
      %3617 = vmatpush.bf16.msra.mxu0 %v2423
      %3618 = vmatpush.bf16.msra.mxu0 %v2415
      %3619 = vmatmul.bf16.gmra.mxu0 %v294
      %v3620 = vpop.f32.mrf.mxu0
      %v3621 = vadd.f32 %v3607, %v3620
      %v3622 = vpop.f32.mrf.mxu0
      %v3623 = vadd.f32 %v3609, %v3622
      %3624 = vdwg.mxu0
      %3625 = vmatpush.bf16.msra.mxu0 %v2535
      %3626 = vmatpush.bf16.msra.mxu0 %v2527
      %3627 = vmatpush.bf16.msra.mxu0 %v2519
      %3628 = vmatpush.bf16.msra.mxu0 %v2511
      %3629 = vmatpush.bf16.msra.mxu0 %v2503
      %3630 = vmatpush.bf16.msra.mxu0 %v2495
      %3631 = vmatpush.bf16.msra.mxu0 %v2487
      %3632 = vmatpush.bf16.msra.mxu0 %v2479
      %3633 = vmatmul.bf16.gmra.mxu0 %v295
      %v3634 = vpop.f32.mrf.mxu0
      %v3635 = vadd.f32 %v3621, %v3634
      %v3636 = vpop.f32.mrf.mxu0
      %v3637 = vadd.f32 %v3623, %v3636
      %3638 = vdwg.mxu0
      %3639 = vmatpush.bf16.msra.mxu0 %v2599
      %3640 = vmatpush.bf16.msra.mxu0 %v2591
      %3641 = vmatpush.bf16.msra.mxu0 %v2583
      %3642 = vmatpush.bf16.msra.mxu0 %v2575
      %3643 = vmatpush.bf16.msra.mxu0 %v2567
      %3644 = vmatpush.bf16.msra.mxu0 %v2559
      %3645 = vmatpush.bf16.msra.mxu0 %v2551
      %3646 = vmatpush.bf16.msra.mxu0 %v2543
      %3647 = vmatmul.bf16.gmra.mxu0 %v296
      %v3648 = vpop.f32.mrf.mxu0
      %v3649 = vadd.f32 %v3635, %v3648
      %v3650 = vpop.f32.mrf.mxu0
      %v3651 = vadd.f32 %v3637, %v3650
      %3652 = vdwg.mxu0
      %3653 = vmatpush.bf16.msra.mxu0 %v2663
      %3654 = vmatpush.bf16.msra.mxu0 %v2655
      %3655 = vmatpush.bf16.msra.mxu0 %v2647
      %3656 = vmatpush.bf16.msra.mxu0 %v2639
      %3657 = vmatpush.bf16.msra.mxu0 %v2631
      %3658 = vmatpush.bf16.msra.mxu0 %v2623
      %3659 = vmatpush.bf16.msra.mxu0 %v2615
      %3660 = vmatpush.bf16.msra.mxu0 %v2607
      %3661 = vmatmul.bf16.gmra.mxu0 %v297
      %v3662 = vpop.f32.mrf.mxu0
      %v3663 = vadd.f32 %v3649, %v3662
      %v3664 = vpop.f32.mrf.mxu0
      %v3665 = vadd.f32 %v3651, %v3664
      %3666 = vdwg.mxu0
      %3667 = vmatpush.bf16.msra.mxu0 %v2727
      %3668 = vmatpush.bf16.msra.mxu0 %v2719
      %3669 = vmatpush.bf16.msra.mxu0 %v2711
      %3670 = vmatpush.bf16.msra.mxu0 %v2703
      %3671 = vmatpush.bf16.msra.mxu0 %v2695
      %3672 = vmatpush.bf16.msra.mxu0 %v2687
      %3673 = vmatpush.bf16.msra.mxu0 %v2679
      %3674 = vmatpush.bf16.msra.mxu0 %v2671
      %3675 = vmatmul.bf16.gmra.mxu0 %v298
      %v3676 = vpop.f32.mrf.mxu0
      %v3677 = vadd.f32 %v3663, %v3676
      %v3678 = vpop.f32.mrf.mxu0
      %v3679 = vadd.f32 %v3665, %v3678
      %3680 = vdwg.mxu0
      %3681 = vmatpush.bf16.msra.mxu0 %v2791
      %3682 = vmatpush.bf16.msra.mxu0 %v2783
      %3683 = vmatpush.bf16.msra.mxu0 %v2775
      %3684 = vmatpush.bf16.msra.mxu0 %v2767
      %3685 = vmatpush.bf16.msra.mxu0 %v2759
      %3686 = vmatpush.bf16.msra.mxu0 %v2751
      %3687 = vmatpush.bf16.msra.mxu0 %v2743
      %3688 = vmatpush.bf16.msra.mxu0 %v2735
      %3689 = vmatmul.bf16.gmra.mxu0 %v299
      %v3690 = vpop.f32.mrf.mxu0
      %v3691 = vadd.f32 %v3677, %v3690
      %v3692 = vpop.f32.mrf.mxu0
      %v3693 = vadd.f32 %v3679, %v3692
      %3694 = vdwg.mxu0
      %3695 = vmatpush.bf16.msra.mxu0 %v2855
      %3696 = vmatpush.bf16.msra.mxu0 %v2847
      %3697 = vmatpush.bf16.msra.mxu0 %v2839
      %3698 = vmatpush.bf16.msra.mxu0 %v2831
      %3699 = vmatpush.bf16.msra.mxu0 %v2823
      %3700 = vmatpush.bf16.msra.mxu0 %v2815
      %3701 = vmatpush.bf16.msra.mxu0 %v2807
      %3702 = vmatpush.bf16.msra.mxu0 %v2799
      %3703 = vmatmul.bf16.gmra.mxu0 %v300
      %v3704 = vpop.f32.mrf.mxu0
      %v3705 = vadd.f32 %v3691, %v3704
      %v3706 = vpop.f32.mrf.mxu0
      %v3707 = vadd.f32 %v3693, %v3706
      %3708 = vdwg.mxu0
      %3709 = vmatpush.bf16.msra.mxu0 %v2408
      %3710 = vmatpush.bf16.msra.mxu0 %v2400
      %3711 = vmatpush.bf16.msra.mxu0 %v2392
      %3712 = vmatpush.bf16.msra.mxu0 %v2384
      %3713 = vmatpush.bf16.msra.mxu0 %v2376
      %3714 = vmatpush.bf16.msra.mxu0 %v2368
      %3715 = vmatpush.bf16.msra.mxu0 %v2360
      %3716 = vmatpush.bf16.msra.mxu0 %v2352
      %3717 = vmatmul.bf16.gmra.mxu0 %v293
      %v3718 = vpop.f32.mrf.mxu0
      %v3719 = vadd.f32 0.0, %v3718
      %v3720 = vpop.f32.mrf.mxu0
      %v3721 = vadd.f32 0.0, %v3720
      %3722 = vdwg.mxu0
      %3723 = vmatpush.bf16.msra.mxu0 %v2472
      %3724 = vmatpush.bf16.msra.mxu0 %v2464
      %3725 = vmatpush.bf16.msra.mxu0 %v2456
      %3726 = vmatpush.bf16.msra.mxu0 %v2448
      %3727 = vmatpush.bf16.msra.mxu0 %v2440
      %3728 = vmatpush.bf16.msra.mxu0 %v2432
      %3729 = vmatpush.bf16.msra.mxu0 %v2424
      %3730 = vmatpush.bf16.msra.mxu0 %v2416
      %3731 = vmatmul.bf16.gmra.mxu0 %v294
      %v3732 = vpop.f32.mrf.mxu0
      %v3733 = vadd.f32 %v3719, %v3732
      %v3734 = vpop.f32.mrf.mxu0
      %v3735 = vadd.f32 %v3721, %v3734
      %3736 = vdwg.mxu0
      %3737 = vmatpush.bf16.msra.mxu0 %v2536
      %3738 = vmatpush.bf16.msra.mxu0 %v2528
      %3739 = vmatpush.bf16.msra.mxu0 %v2520
      %3740 = vmatpush.bf16.msra.mxu0 %v2512
      %3741 = vmatpush.bf16.msra.mxu0 %v2504
      %3742 = vmatpush.bf16.msra.mxu0 %v2496
      %3743 = vmatpush.bf16.msra.mxu0 %v2488
      %3744 = vmatpush.bf16.msra.mxu0 %v2480
      %3745 = vmatmul.bf16.gmra.mxu0 %v295
      %v3746 = vpop.f32.mrf.mxu0
      %v3747 = vadd.f32 %v3733, %v3746
      %v3748 = vpop.f32.mrf.mxu0
      %v3749 = vadd.f32 %v3735, %v3748
      %3750 = vdwg.mxu0
      %3751 = vmatpush.bf16.msra.mxu0 %v2600
      %3752 = vmatpush.bf16.msra.mxu0 %v2592
      %3753 = vmatpush.bf16.msra.mxu0 %v2584
      %3754 = vmatpush.bf16.msra.mxu0 %v2576
      %3755 = vmatpush.bf16.msra.mxu0 %v2568
      %3756 = vmatpush.bf16.msra.mxu0 %v2560
      %3757 = vmatpush.bf16.msra.mxu0 %v2552
      %3758 = vmatpush.bf16.msra.mxu0 %v2544
      %3759 = vmatmul.bf16.gmra.mxu0 %v296
      %v3760 = vpop.f32.mrf.mxu0
      %v3761 = vadd.f32 %v3747, %v3760
      %v3762 = vpop.f32.mrf.mxu0
      %v3763 = vadd.f32 %v3749, %v3762
      %3764 = vdwg.mxu0
      %3765 = vmatpush.bf16.msra.mxu0 %v2664
      %3766 = vmatpush.bf16.msra.mxu0 %v2656
      %3767 = vmatpush.bf16.msra.mxu0 %v2648
      %3768 = vmatpush.bf16.msra.mxu0 %v2640
      %3769 = vmatpush.bf16.msra.mxu0 %v2632
      %3770 = vmatpush.bf16.msra.mxu0 %v2624
      %3771 = vmatpush.bf16.msra.mxu0 %v2616
      %3772 = vmatpush.bf16.msra.mxu0 %v2608
      %3773 = vmatmul.bf16.gmra.mxu0 %v297
      %v3774 = vpop.f32.mrf.mxu0
      %v3775 = vadd.f32 %v3761, %v3774
      %v3776 = vpop.f32.mrf.mxu0
      %v3777 = vadd.f32 %v3763, %v3776
      %3778 = vdwg.mxu0
      %3779 = vmatpush.bf16.msra.mxu0 %v2728
      %3780 = vmatpush.bf16.msra.mxu0 %v2720
      %3781 = vmatpush.bf16.msra.mxu0 %v2712
      %3782 = vmatpush.bf16.msra.mxu0 %v2704
      %3783 = vmatpush.bf16.msra.mxu0 %v2696
      %3784 = vmatpush.bf16.msra.mxu0 %v2688
      %3785 = vmatpush.bf16.msra.mxu0 %v2680
      %3786 = vmatpush.bf16.msra.mxu0 %v2672
      %3787 = vmatmul.bf16.gmra.mxu0 %v298
      %v3788 = vpop.f32.mrf.mxu0
      %v3789 = vadd.f32 %v3775, %v3788
      %v3790 = vpop.f32.mrf.mxu0
      %v3791 = vadd.f32 %v3777, %v3790
      %3792 = vdwg.mxu0
      %3793 = vmatpush.bf16.msra.mxu0 %v2792
      %3794 = vmatpush.bf16.msra.mxu0 %v2784
      %3795 = vmatpush.bf16.msra.mxu0 %v2776
      %3796 = vmatpush.bf16.msra.mxu0 %v2768
      %3797 = vmatpush.bf16.msra.mxu0 %v2760
      %3798 = vmatpush.bf16.msra.mxu0 %v2752
      %3799 = vmatpush.bf16.msra.mxu0 %v2744
      %3800 = vmatpush.bf16.msra.mxu0 %v2736
      %3801 = vmatmul.bf16.gmra.mxu0 %v299
      %v3802 = vpop.f32.mrf.mxu0
      %v3803 = vadd.f32 %v3789, %v3802
      %v3804 = vpop.f32.mrf.mxu0
      %v3805 = vadd.f32 %v3791, %v3804
      %3806 = vdwg.mxu0
      %3807 = vmatpush.bf16.msra.mxu0 %v2856
      %3808 = vmatpush.bf16.msra.mxu0 %v2848
      %3809 = vmatpush.bf16.msra.mxu0 %v2840
      %3810 = vmatpush.bf16.msra.mxu0 %v2832
      %3811 = vmatpush.bf16.msra.mxu0 %v2824
      %3812 = vmatpush.bf16.msra.mxu0 %v2816
      %3813 = vmatpush.bf16.msra.mxu0 %v2808
      %3814 = vmatpush.bf16.msra.mxu0 %v2800
      %3815 = vmatmul.bf16.gmra.mxu0 %v300
      %v3816 = vpop.f32.mrf.mxu0
      %v3817 = vadd.f32 %v3803, %v3816
      %v3818 = vpop.f32.mrf.mxu0
      %v3819 = vadd.f32 %v3805, %v3818
      %3820 = vdwg.mxu0
      %3821 = vmatpush.bf16.msra.mxu0 %v2409
      %3822 = vmatpush.bf16.msra.mxu0 %v2401
      %3823 = vmatpush.bf16.msra.mxu0 %v2393
      %3824 = vmatpush.bf16.msra.mxu0 %v2385
      %3825 = vmatpush.bf16.msra.mxu0 %v2377
      %3826 = vmatpush.bf16.msra.mxu0 %v2369
      %3827 = vmatpush.bf16.msra.mxu0 %v2361
      %3828 = vmatpush.bf16.msra.mxu0 %v2353
      %3829 = vmatmul.bf16.gmra.mxu0 %v293
      %v3830 = vpop.f32.mrf.mxu0
      %v3831 = vadd.f32 0.0, %v3830
      %v3832 = vpop.f32.mrf.mxu0
      %v3833 = vadd.f32 0.0, %v3832
      %3834 = vdwg.mxu0
      %3835 = vmatpush.bf16.msra.mxu0 %v2473
      %3836 = vmatpush.bf16.msra.mxu0 %v2465
      %3837 = vmatpush.bf16.msra.mxu0 %v2457
      %3838 = vmatpush.bf16.msra.mxu0 %v2449
      %3839 = vmatpush.bf16.msra.mxu0 %v2441
      %3840 = vmatpush.bf16.msra.mxu0 %v2433
      %3841 = vmatpush.bf16.msra.mxu0 %v2425
      %3842 = vmatpush.bf16.msra.mxu0 %v2417
      %3843 = vmatmul.bf16.gmra.mxu0 %v294
      %v3844 = vpop.f32.mrf.mxu0
      %v3845 = vadd.f32 %v3831, %v3844
      %v3846 = vpop.f32.mrf.mxu0
      %v3847 = vadd.f32 %v3833, %v3846
      %3848 = vdwg.mxu0
      %3849 = vmatpush.bf16.msra.mxu0 %v2537
      %3850 = vmatpush.bf16.msra.mxu0 %v2529
      %3851 = vmatpush.bf16.msra.mxu0 %v2521
      %3852 = vmatpush.bf16.msra.mxu0 %v2513
      %3853 = vmatpush.bf16.msra.mxu0 %v2505
      %3854 = vmatpush.bf16.msra.mxu0 %v2497
      %3855 = vmatpush.bf16.msra.mxu0 %v2489
      %3856 = vmatpush.bf16.msra.mxu0 %v2481
      %3857 = vmatmul.bf16.gmra.mxu0 %v295
      %v3858 = vpop.f32.mrf.mxu0
      %v3859 = vadd.f32 %v3845, %v3858
      %v3860 = vpop.f32.mrf.mxu0
      %v3861 = vadd.f32 %v3847, %v3860
      %3862 = vdwg.mxu0
      %3863 = vmatpush.bf16.msra.mxu0 %v2601
      %3864 = vmatpush.bf16.msra.mxu0 %v2593
      %3865 = vmatpush.bf16.msra.mxu0 %v2585
      %3866 = vmatpush.bf16.msra.mxu0 %v2577
      %3867 = vmatpush.bf16.msra.mxu0 %v2569
      %3868 = vmatpush.bf16.msra.mxu0 %v2561
      %3869 = vmatpush.bf16.msra.mxu0 %v2553
      %3870 = vmatpush.bf16.msra.mxu0 %v2545
      %3871 = vmatmul.bf16.gmra.mxu0 %v296
      %v3872 = vpop.f32.mrf.mxu0
      %v3873 = vadd.f32 %v3859, %v3872
      %v3874 = vpop.f32.mrf.mxu0
      %v3875 = vadd.f32 %v3861, %v3874
      %3876 = vdwg.mxu0
      %3877 = vmatpush.bf16.msra.mxu0 %v2665
      %3878 = vmatpush.bf16.msra.mxu0 %v2657
      %3879 = vmatpush.bf16.msra.mxu0 %v2649
      %3880 = vmatpush.bf16.msra.mxu0 %v2641
      %3881 = vmatpush.bf16.msra.mxu0 %v2633
      %3882 = vmatpush.bf16.msra.mxu0 %v2625
      %3883 = vmatpush.bf16.msra.mxu0 %v2617
      %3884 = vmatpush.bf16.msra.mxu0 %v2609
      %3885 = vmatmul.bf16.gmra.mxu0 %v297
      %v3886 = vpop.f32.mrf.mxu0
      %v3887 = vadd.f32 %v3873, %v3886
      %v3888 = vpop.f32.mrf.mxu0
      %v3889 = vadd.f32 %v3875, %v3888
      %3890 = vdwg.mxu0
      %3891 = vmatpush.bf16.msra.mxu0 %v2729
      %3892 = vmatpush.bf16.msra.mxu0 %v2721
      %3893 = vmatpush.bf16.msra.mxu0 %v2713
      %3894 = vmatpush.bf16.msra.mxu0 %v2705
      %3895 = vmatpush.bf16.msra.mxu0 %v2697
      %3896 = vmatpush.bf16.msra.mxu0 %v2689
      %3897 = vmatpush.bf16.msra.mxu0 %v2681
      %3898 = vmatpush.bf16.msra.mxu0 %v2673
      %3899 = vmatmul.bf16.gmra.mxu0 %v298
      %v3900 = vpop.f32.mrf.mxu0
      %v3901 = vadd.f32 %v3887, %v3900
      %v3902 = vpop.f32.mrf.mxu0
      %v3903 = vadd.f32 %v3889, %v3902
      %3904 = vdwg.mxu0
      %3905 = vmatpush.bf16.msra.mxu0 %v2793
      %3906 = vmatpush.bf16.msra.mxu0 %v2785
      %3907 = vmatpush.bf16.msra.mxu0 %v2777
      %3908 = vmatpush.bf16.msra.mxu0 %v2769
      %3909 = vmatpush.bf16.msra.mxu0 %v2761
      %3910 = vmatpush.bf16.msra.mxu0 %v2753
      %3911 = vmatpush.bf16.msra.mxu0 %v2745
      %3912 = vmatpush.bf16.msra.mxu0 %v2737
      %3913 = vmatmul.bf16.gmra.mxu0 %v299
      %v3914 = vpop.f32.mrf.mxu0
      %v3915 = vadd.f32 %v3901, %v3914
      %v3916 = vpop.f32.mrf.mxu0
      %v3917 = vadd.f32 %v3903, %v3916
      %3918 = vdwg.mxu0
      %3919 = vmatpush.bf16.msra.mxu0 %v2857
      %3920 = vmatpush.bf16.msra.mxu0 %v2849
      %3921 = vmatpush.bf16.msra.mxu0 %v2841
      %3922 = vmatpush.bf16.msra.mxu0 %v2833
      %3923 = vmatpush.bf16.msra.mxu0 %v2825
      %3924 = vmatpush.bf16.msra.mxu0 %v2817
      %3925 = vmatpush.bf16.msra.mxu0 %v2809
      %3926 = vmatpush.bf16.msra.mxu0 %v2801
      %3927 = vmatmul.bf16.gmra.mxu0 %v300
      %v3928 = vpop.f32.mrf.mxu0
      %v3929 = vadd.f32 %v3915, %v3928
      %v3930 = vpop.f32.mrf.mxu0
      %v3931 = vadd.f32 %v3917, %v3930
      %3932 = vdwg.mxu0
      %3933 = vmatpush.bf16.msra.mxu0 %v2410
      %3934 = vmatpush.bf16.msra.mxu0 %v2402
      %3935 = vmatpush.bf16.msra.mxu0 %v2394
      %3936 = vmatpush.bf16.msra.mxu0 %v2386
      %3937 = vmatpush.bf16.msra.mxu0 %v2378
      %3938 = vmatpush.bf16.msra.mxu0 %v2370
      %3939 = vmatpush.bf16.msra.mxu0 %v2362
      %3940 = vmatpush.bf16.msra.mxu0 %v2354
      %3941 = vmatmul.bf16.gmra.mxu0 %v293
      %v3942 = vpop.f32.mrf.mxu0
      %v3943 = vadd.f32 0.0, %v3942
      %v3944 = vpop.f32.mrf.mxu0
      %v3945 = vadd.f32 0.0, %v3944
      %3946 = vdwg.mxu0
      %3947 = vmatpush.bf16.msra.mxu0 %v2474
      %3948 = vmatpush.bf16.msra.mxu0 %v2466
      %3949 = vmatpush.bf16.msra.mxu0 %v2458
      %3950 = vmatpush.bf16.msra.mxu0 %v2450
      %3951 = vmatpush.bf16.msra.mxu0 %v2442
      %3952 = vmatpush.bf16.msra.mxu0 %v2434
      %3953 = vmatpush.bf16.msra.mxu0 %v2426
      %3954 = vmatpush.bf16.msra.mxu0 %v2418
      %3955 = vmatmul.bf16.gmra.mxu0 %v294
      %v3956 = vpop.f32.mrf.mxu0
      %v3957 = vadd.f32 %v3943, %v3956
      %v3958 = vpop.f32.mrf.mxu0
      %v3959 = vadd.f32 %v3945, %v3958
      %3960 = vdwg.mxu0
      %3961 = vmatpush.bf16.msra.mxu0 %v2538
      %3962 = vmatpush.bf16.msra.mxu0 %v2530
      %3963 = vmatpush.bf16.msra.mxu0 %v2522
      %3964 = vmatpush.bf16.msra.mxu0 %v2514
      %3965 = vmatpush.bf16.msra.mxu0 %v2506
      %3966 = vmatpush.bf16.msra.mxu0 %v2498
      %3967 = vmatpush.bf16.msra.mxu0 %v2490
      %3968 = vmatpush.bf16.msra.mxu0 %v2482
      %3969 = vmatmul.bf16.gmra.mxu0 %v295
      %v3970 = vpop.f32.mrf.mxu0
      %v3971 = vadd.f32 %v3957, %v3970
      %v3972 = vpop.f32.mrf.mxu0
      %v3973 = vadd.f32 %v3959, %v3972
      %3974 = vdwg.mxu0
      %3975 = vmatpush.bf16.msra.mxu0 %v2602
      %3976 = vmatpush.bf16.msra.mxu0 %v2594
      %3977 = vmatpush.bf16.msra.mxu0 %v2586
      %3978 = vmatpush.bf16.msra.mxu0 %v2578
      %3979 = vmatpush.bf16.msra.mxu0 %v2570
      %3980 = vmatpush.bf16.msra.mxu0 %v2562
      %3981 = vmatpush.bf16.msra.mxu0 %v2554
      %3982 = vmatpush.bf16.msra.mxu0 %v2546
      %3983 = vmatmul.bf16.gmra.mxu0 %v296
      %v3984 = vpop.f32.mrf.mxu0
      %v3985 = vadd.f32 %v3971, %v3984
      %v3986 = vpop.f32.mrf.mxu0
      %v3987 = vadd.f32 %v3973, %v3986
      %3988 = vdwg.mxu0
      %3989 = vmatpush.bf16.msra.mxu0 %v2666
      %3990 = vmatpush.bf16.msra.mxu0 %v2658
      %3991 = vmatpush.bf16.msra.mxu0 %v2650
      %3992 = vmatpush.bf16.msra.mxu0 %v2642
      %3993 = vmatpush.bf16.msra.mxu0 %v2634
      %3994 = vmatpush.bf16.msra.mxu0 %v2626
      %3995 = vmatpush.bf16.msra.mxu0 %v2618
      %3996 = vmatpush.bf16.msra.mxu0 %v2610
      %3997 = vmatmul.bf16.gmra.mxu0 %v297
      %v3998 = vpop.f32.mrf.mxu0
      %v3999 = vadd.f32 %v3985, %v3998
      %v4000 = vpop.f32.mrf.mxu0
      %v4001 = vadd.f32 %v3987, %v4000
      %4002 = vdwg.mxu0
      %4003 = vmatpush.bf16.msra.mxu0 %v2730
      %4004 = vmatpush.bf16.msra.mxu0 %v2722
      %4005 = vmatpush.bf16.msra.mxu0 %v2714
      %4006 = vmatpush.bf16.msra.mxu0 %v2706
      %4007 = vmatpush.bf16.msra.mxu0 %v2698
      %4008 = vmatpush.bf16.msra.mxu0 %v2690
      %4009 = vmatpush.bf16.msra.mxu0 %v2682
      %4010 = vmatpush.bf16.msra.mxu0 %v2674
      %4011 = vmatmul.bf16.gmra.mxu0 %v298
      %v4012 = vpop.f32.mrf.mxu0
      %v4013 = vadd.f32 %v3999, %v4012
      %v4014 = vpop.f32.mrf.mxu0
      %v4015 = vadd.f32 %v4001, %v4014
      %4016 = vdwg.mxu0
      %4017 = vmatpush.bf16.msra.mxu0 %v2794
      %4018 = vmatpush.bf16.msra.mxu0 %v2786
      %4019 = vmatpush.bf16.msra.mxu0 %v2778
      %4020 = vmatpush.bf16.msra.mxu0 %v2770
      %4021 = vmatpush.bf16.msra.mxu0 %v2762
      %4022 = vmatpush.bf16.msra.mxu0 %v2754
      %4023 = vmatpush.bf16.msra.mxu0 %v2746
      %4024 = vmatpush.bf16.msra.mxu0 %v2738
      %4025 = vmatmul.bf16.gmra.mxu0 %v299
      %v4026 = vpop.f32.mrf.mxu0
      %v4027 = vadd.f32 %v4013, %v4026
      %v4028 = vpop.f32.mrf.mxu0
      %v4029 = vadd.f32 %v4015, %v4028
      %4030 = vdwg.mxu0
      %4031 = vmatpush.bf16.msra.mxu0 %v2858
      %4032 = vmatpush.bf16.msra.mxu0 %v2850
      %4033 = vmatpush.bf16.msra.mxu0 %v2842
      %4034 = vmatpush.bf16.msra.mxu0 %v2834
      %4035 = vmatpush.bf16.msra.mxu0 %v2826
      %4036 = vmatpush.bf16.msra.mxu0 %v2818
      %4037 = vmatpush.bf16.msra.mxu0 %v2810
      %4038 = vmatpush.bf16.msra.mxu0 %v2802
      %4039 = vmatmul.bf16.gmra.mxu0 %v300
      %v4040 = vpop.f32.mrf.mxu0
      %v4041 = vadd.f32 %v4027, %v4040
      %v4042 = vpop.f32.mrf.mxu0
      %v4043 = vadd.f32 %v4029, %v4042
      %4044 = vdwg.mxu0
      %4045 = vmatpush.bf16.msra.mxu0 %v2411
      %4046 = vmatpush.bf16.msra.mxu0 %v2403
      %4047 = vmatpush.bf16.msra.mxu0 %v2395
      %4048 = vmatpush.bf16.msra.mxu0 %v2387
      %4049 = vmatpush.bf16.msra.mxu0 %v2379
      %4050 = vmatpush.bf16.msra.mxu0 %v2371
      %4051 = vmatpush.bf16.msra.mxu0 %v2363
      %4052 = vmatpush.bf16.msra.mxu0 %v2355
      %4053 = vmatmul.bf16.gmra.mxu0 %v293
      %v4054 = vpop.f32.mrf.mxu0
      %v4055 = vadd.f32 0.0, %v4054
      %v4056 = vpop.f32.mrf.mxu0
      %v4057 = vadd.f32 0.0, %v4056
      %4058 = vdwg.mxu0
      %4059 = vmatpush.bf16.msra.mxu0 %v2475
      %4060 = vmatpush.bf16.msra.mxu0 %v2467
      %4061 = vmatpush.bf16.msra.mxu0 %v2459
      %4062 = vmatpush.bf16.msra.mxu0 %v2451
      %4063 = vmatpush.bf16.msra.mxu0 %v2443
      %4064 = vmatpush.bf16.msra.mxu0 %v2435
      %4065 = vmatpush.bf16.msra.mxu0 %v2427
      %4066 = vmatpush.bf16.msra.mxu0 %v2419
      %4067 = vmatmul.bf16.gmra.mxu0 %v294
      %v4068 = vpop.f32.mrf.mxu0
      %v4069 = vadd.f32 %v4055, %v4068
      %v4070 = vpop.f32.mrf.mxu0
      %v4071 = vadd.f32 %v4057, %v4070
      %4072 = vdwg.mxu0
      %4073 = vmatpush.bf16.msra.mxu0 %v2539
      %4074 = vmatpush.bf16.msra.mxu0 %v2531
      %4075 = vmatpush.bf16.msra.mxu0 %v2523
      %4076 = vmatpush.bf16.msra.mxu0 %v2515
      %4077 = vmatpush.bf16.msra.mxu0 %v2507
      %4078 = vmatpush.bf16.msra.mxu0 %v2499
      %4079 = vmatpush.bf16.msra.mxu0 %v2491
      %4080 = vmatpush.bf16.msra.mxu0 %v2483
      %4081 = vmatmul.bf16.gmra.mxu0 %v295
      %v4082 = vpop.f32.mrf.mxu0
      %v4083 = vadd.f32 %v4069, %v4082
      %v4084 = vpop.f32.mrf.mxu0
      %v4085 = vadd.f32 %v4071, %v4084
      %4086 = vdwg.mxu0
      %4087 = vmatpush.bf16.msra.mxu0 %v2603
      %4088 = vmatpush.bf16.msra.mxu0 %v2595
      %4089 = vmatpush.bf16.msra.mxu0 %v2587
      %4090 = vmatpush.bf16.msra.mxu0 %v2579
      %4091 = vmatpush.bf16.msra.mxu0 %v2571
      %4092 = vmatpush.bf16.msra.mxu0 %v2563
      %4093 = vmatpush.bf16.msra.mxu0 %v2555
      %4094 = vmatpush.bf16.msra.mxu0 %v2547
      %4095 = vmatmul.bf16.gmra.mxu0 %v296
      %v4096 = vpop.f32.mrf.mxu0
      %v4097 = vadd.f32 %v4083, %v4096
      %v4098 = vpop.f32.mrf.mxu0
      %v4099 = vadd.f32 %v4085, %v4098
      %4100 = vdwg.mxu0
      %4101 = vmatpush.bf16.msra.mxu0 %v2667
      %4102 = vmatpush.bf16.msra.mxu0 %v2659
      %4103 = vmatpush.bf16.msra.mxu0 %v2651
      %4104 = vmatpush.bf16.msra.mxu0 %v2643
      %4105 = vmatpush.bf16.msra.mxu0 %v2635
      %4106 = vmatpush.bf16.msra.mxu0 %v2627
      %4107 = vmatpush.bf16.msra.mxu0 %v2619
      %4108 = vmatpush.bf16.msra.mxu0 %v2611
      %4109 = vmatmul.bf16.gmra.mxu0 %v297
      %v4110 = vpop.f32.mrf.mxu0
      %v4111 = vadd.f32 %v4097, %v4110
      %v4112 = vpop.f32.mrf.mxu0
      %v4113 = vadd.f32 %v4099, %v4112
      %4114 = vdwg.mxu0
      %4115 = vmatpush.bf16.msra.mxu0 %v2731
      %4116 = vmatpush.bf16.msra.mxu0 %v2723
      %4117 = vmatpush.bf16.msra.mxu0 %v2715
      %4118 = vmatpush.bf16.msra.mxu0 %v2707
      %4119 = vmatpush.bf16.msra.mxu0 %v2699
      %4120 = vmatpush.bf16.msra.mxu0 %v2691
      %4121 = vmatpush.bf16.msra.mxu0 %v2683
      %4122 = vmatpush.bf16.msra.mxu0 %v2675
      %4123 = vmatmul.bf16.gmra.mxu0 %v298
      %v4124 = vpop.f32.mrf.mxu0
      %v4125 = vadd.f32 %v4111, %v4124
      %v4126 = vpop.f32.mrf.mxu0
      %v4127 = vadd.f32 %v4113, %v4126
      %4128 = vdwg.mxu0
      %4129 = vmatpush.bf16.msra.mxu0 %v2795
      %4130 = vmatpush.bf16.msra.mxu0 %v2787
      %4131 = vmatpush.bf16.msra.mxu0 %v2779
      %4132 = vmatpush.bf16.msra.mxu0 %v2771
      %4133 = vmatpush.bf16.msra.mxu0 %v2763
      %4134 = vmatpush.bf16.msra.mxu0 %v2755
      %4135 = vmatpush.bf16.msra.mxu0 %v2747
      %4136 = vmatpush.bf16.msra.mxu0 %v2739
      %4137 = vmatmul.bf16.gmra.mxu0 %v299
      %v4138 = vpop.f32.mrf.mxu0
      %v4139 = vadd.f32 %v4125, %v4138
      %v4140 = vpop.f32.mrf.mxu0
      %v4141 = vadd.f32 %v4127, %v4140
      %4142 = vdwg.mxu0
      %4143 = vmatpush.bf16.msra.mxu0 %v2859
      %4144 = vmatpush.bf16.msra.mxu0 %v2851
      %4145 = vmatpush.bf16.msra.mxu0 %v2843
      %4146 = vmatpush.bf16.msra.mxu0 %v2835
      %4147 = vmatpush.bf16.msra.mxu0 %v2827
      %4148 = vmatpush.bf16.msra.mxu0 %v2819
      %4149 = vmatpush.bf16.msra.mxu0 %v2811
      %4150 = vmatpush.bf16.msra.mxu0 %v2803
      %4151 = vmatmul.bf16.gmra.mxu0 %v300
      %v4152 = vpop.f32.mrf.mxu0
      %v4153 = vadd.f32 %v4139, %v4152
      %v4154 = vpop.f32.mrf.mxu0
      %v4155 = vadd.f32 %v4141, %v4154
      %4156 = vdwg.mxu0
      %4157 = vmatpush.bf16.msra.mxu0 %v2412
      %4158 = vmatpush.bf16.msra.mxu0 %v2404
      %4159 = vmatpush.bf16.msra.mxu0 %v2396
      %4160 = vmatpush.bf16.msra.mxu0 %v2388
      %4161 = vmatpush.bf16.msra.mxu0 %v2380
      %4162 = vmatpush.bf16.msra.mxu0 %v2372
      %4163 = vmatpush.bf16.msra.mxu0 %v2364
      %4164 = vmatpush.bf16.msra.mxu0 %v2356
      %4165 = vmatmul.bf16.gmra.mxu0 %v293
      %v4166 = vpop.f32.mrf.mxu0
      %v4167 = vadd.f32 0.0, %v4166
      %v4168 = vpop.f32.mrf.mxu0
      %v4169 = vadd.f32 0.0, %v4168
      %4170 = vdwg.mxu0
      %4171 = vmatpush.bf16.msra.mxu0 %v2476
      %4172 = vmatpush.bf16.msra.mxu0 %v2468
      %4173 = vmatpush.bf16.msra.mxu0 %v2460
      %4174 = vmatpush.bf16.msra.mxu0 %v2452
      %4175 = vmatpush.bf16.msra.mxu0 %v2444
      %4176 = vmatpush.bf16.msra.mxu0 %v2436
      %4177 = vmatpush.bf16.msra.mxu0 %v2428
      %4178 = vmatpush.bf16.msra.mxu0 %v2420
      %4179 = vmatmul.bf16.gmra.mxu0 %v294
      %v4180 = vpop.f32.mrf.mxu0
      %v4181 = vadd.f32 %v4167, %v4180
      %v4182 = vpop.f32.mrf.mxu0
      %v4183 = vadd.f32 %v4169, %v4182
      %4184 = vdwg.mxu0
      %4185 = vmatpush.bf16.msra.mxu0 %v2540
      %4186 = vmatpush.bf16.msra.mxu0 %v2532
      %4187 = vmatpush.bf16.msra.mxu0 %v2524
      %4188 = vmatpush.bf16.msra.mxu0 %v2516
      %4189 = vmatpush.bf16.msra.mxu0 %v2508
      %4190 = vmatpush.bf16.msra.mxu0 %v2500
      %4191 = vmatpush.bf16.msra.mxu0 %v2492
      %4192 = vmatpush.bf16.msra.mxu0 %v2484
      %4193 = vmatmul.bf16.gmra.mxu0 %v295
      %v4194 = vpop.f32.mrf.mxu0
      %v4195 = vadd.f32 %v4181, %v4194
      %v4196 = vpop.f32.mrf.mxu0
      %v4197 = vadd.f32 %v4183, %v4196
      %4198 = vdwg.mxu0
      %4199 = vmatpush.bf16.msra.mxu0 %v2604
      %4200 = vmatpush.bf16.msra.mxu0 %v2596
      %4201 = vmatpush.bf16.msra.mxu0 %v2588
      %4202 = vmatpush.bf16.msra.mxu0 %v2580
      %4203 = vmatpush.bf16.msra.mxu0 %v2572
      %4204 = vmatpush.bf16.msra.mxu0 %v2564
      %4205 = vmatpush.bf16.msra.mxu0 %v2556
      %4206 = vmatpush.bf16.msra.mxu0 %v2548
      %4207 = vmatmul.bf16.gmra.mxu0 %v296
      %v4208 = vpop.f32.mrf.mxu0
      %v4209 = vadd.f32 %v4195, %v4208
      %v4210 = vpop.f32.mrf.mxu0
      %v4211 = vadd.f32 %v4197, %v4210
      %4212 = vdwg.mxu0
      %4213 = vmatpush.bf16.msra.mxu0 %v2668
      %4214 = vmatpush.bf16.msra.mxu0 %v2660
      %4215 = vmatpush.bf16.msra.mxu0 %v2652
      %4216 = vmatpush.bf16.msra.mxu0 %v2644
      %4217 = vmatpush.bf16.msra.mxu0 %v2636
      %4218 = vmatpush.bf16.msra.mxu0 %v2628
      %4219 = vmatpush.bf16.msra.mxu0 %v2620
      %4220 = vmatpush.bf16.msra.mxu0 %v2612
      %4221 = vmatmul.bf16.gmra.mxu0 %v297
      %v4222 = vpop.f32.mrf.mxu0
      %v4223 = vadd.f32 %v4209, %v4222
      %v4224 = vpop.f32.mrf.mxu0
      %v4225 = vadd.f32 %v4211, %v4224
      %4226 = vdwg.mxu0
      %4227 = vmatpush.bf16.msra.mxu0 %v2732
      %4228 = vmatpush.bf16.msra.mxu0 %v2724
      %4229 = vmatpush.bf16.msra.mxu0 %v2716
      %4230 = vmatpush.bf16.msra.mxu0 %v2708
      %4231 = vmatpush.bf16.msra.mxu0 %v2700
      %4232 = vmatpush.bf16.msra.mxu0 %v2692
      %4233 = vmatpush.bf16.msra.mxu0 %v2684
      %4234 = vmatpush.bf16.msra.mxu0 %v2676
      %4235 = vmatmul.bf16.gmra.mxu0 %v298
      %v4236 = vpop.f32.mrf.mxu0
      %v4237 = vadd.f32 %v4223, %v4236
      %v4238 = vpop.f32.mrf.mxu0
      %v4239 = vadd.f32 %v4225, %v4238
      %4240 = vdwg.mxu0
      %4241 = vmatpush.bf16.msra.mxu0 %v2796
      %4242 = vmatpush.bf16.msra.mxu0 %v2788
      %4243 = vmatpush.bf16.msra.mxu0 %v2780
      %4244 = vmatpush.bf16.msra.mxu0 %v2772
      %4245 = vmatpush.bf16.msra.mxu0 %v2764
      %4246 = vmatpush.bf16.msra.mxu0 %v2756
      %4247 = vmatpush.bf16.msra.mxu0 %v2748
      %4248 = vmatpush.bf16.msra.mxu0 %v2740
      %4249 = vmatmul.bf16.gmra.mxu0 %v299
      %v4250 = vpop.f32.mrf.mxu0
      %v4251 = vadd.f32 %v4237, %v4250
      %v4252 = vpop.f32.mrf.mxu0
      %v4253 = vadd.f32 %v4239, %v4252
      %4254 = vdwg.mxu0
      %4255 = vmatpush.bf16.msra.mxu0 %v2860
      %4256 = vmatpush.bf16.msra.mxu0 %v2852
      %4257 = vmatpush.bf16.msra.mxu0 %v2844
      %4258 = vmatpush.bf16.msra.mxu0 %v2836
      %4259 = vmatpush.bf16.msra.mxu0 %v2828
      %4260 = vmatpush.bf16.msra.mxu0 %v2820
      %4261 = vmatpush.bf16.msra.mxu0 %v2812
      %4262 = vmatpush.bf16.msra.mxu0 %v2804
      %4263 = vmatmul.bf16.gmra.mxu0 %v300
      %v4264 = vpop.f32.mrf.mxu0
      %v4265 = vadd.f32 %v4251, %v4264
      %v4266 = vpop.f32.mrf.mxu0
      %v4267 = vadd.f32 %v4253, %v4266
      %4268 = vdwg.mxu0
      %v4277 = vunpack.c.l.b16 %v253
      %v4278 = vunpack.c.h.b16 %v253
      %v4279 = vunpack.c.l.b16 %v254
      %v4280 = vunpack.c.h.b16 %v254
      %v4281 = vunpack.c.l.b16 %v255
      %v4282 = vunpack.c.h.b16 %v255
      %v4283 = vunpack.c.l.b16 %v256
      %v4284 = vunpack.c.h.b16 %v256
      %v4285 = vunpack.c.l.b16 %v257
      %v4286 = vunpack.c.h.b16 %v257
      %v4287 = vunpack.c.l.b16 %v258
      %v4288 = vunpack.c.h.b16 %v258
      %v4289 = vunpack.c.l.b16 %v259
      %v4290 = vunpack.c.h.b16 %v259
      %v4291 = vunpack.c.l.b16 %v260
      %v4292 = vunpack.c.h.b16 %v260
      %v4293 = vpack.c.b16 %v4285, %v4277
      %v4294 = vpack.c.b16 %v4286, %v4278
      %v4295 = vpack.c.b16 %v4287, %v4279
      %v4296 = vpack.c.b16 %v4288, %v4280
      %v4297 = vpack.c.b16 %v4289, %v4281
      %v4298 = vpack.c.b16 %v4290, %v4282
      %v4299 = vpack.c.b16 %v4291, %v4283
      %v4300 = vpack.c.b16 %v4292, %v4284
      %4309 = vmatpush.bf16.msra.mxu0 %v2405
      %4310 = vmatpush.bf16.msra.mxu0 %v2397
      %4311 = vmatpush.bf16.msra.mxu0 %v2389
      %4312 = vmatpush.bf16.msra.mxu0 %v2381
      %4313 = vmatpush.bf16.msra.mxu0 %v2373
      %4314 = vmatpush.bf16.msra.mxu0 %v2365
      %4315 = vmatpush.bf16.msra.mxu0 %v2357
      %4316 = vmatpush.bf16.msra.mxu0 %v2349
      %4317 = vmatmul.bf16.gmra.mxu0 %v4293
      %v4318 = vpop.f32.mrf.mxu0
      %v4319 = vadd.f32 %v3481, %v4318
      %v4320 = vpop.f32.mrf.mxu0
      %v4321 = vadd.f32 %v3483, %v4320
      %4322 = vdwg.mxu0
      %4323 = vmatpush.bf16.msra.mxu0 %v2469
      %4324 = vmatpush.bf16.msra.mxu0 %v2461
      %4325 = vmatpush.bf16.msra.mxu0 %v2453
      %4326 = vmatpush.bf16.msra.mxu0 %v2445
      %4327 = vmatpush.bf16.msra.mxu0 %v2437
      %4328 = vmatpush.bf16.msra.mxu0 %v2429
      %4329 = vmatpush.bf16.msra.mxu0 %v2421
      %4330 = vmatpush.bf16.msra.mxu0 %v2413
      %4331 = vmatmul.bf16.gmra.mxu0 %v4294
      %v4332 = vpop.f32.mrf.mxu0
      %v4333 = vadd.f32 %v4319, %v4332
      %v4334 = vpop.f32.mrf.mxu0
      %v4335 = vadd.f32 %v4321, %v4334
      %4336 = vdwg.mxu0
      %4337 = vmatpush.bf16.msra.mxu0 %v2533
      %4338 = vmatpush.bf16.msra.mxu0 %v2525
      %4339 = vmatpush.bf16.msra.mxu0 %v2517
      %4340 = vmatpush.bf16.msra.mxu0 %v2509
      %4341 = vmatpush.bf16.msra.mxu0 %v2501
      %4342 = vmatpush.bf16.msra.mxu0 %v2493
      %4343 = vmatpush.bf16.msra.mxu0 %v2485
      %4344 = vmatpush.bf16.msra.mxu0 %v2477
      %4345 = vmatmul.bf16.gmra.mxu0 %v4295
      %v4346 = vpop.f32.mrf.mxu0
      %v4347 = vadd.f32 %v4333, %v4346
      %v4348 = vpop.f32.mrf.mxu0
      %v4349 = vadd.f32 %v4335, %v4348
      %4350 = vdwg.mxu0
      %4351 = vmatpush.bf16.msra.mxu0 %v2597
      %4352 = vmatpush.bf16.msra.mxu0 %v2589
      %4353 = vmatpush.bf16.msra.mxu0 %v2581
      %4354 = vmatpush.bf16.msra.mxu0 %v2573
      %4355 = vmatpush.bf16.msra.mxu0 %v2565
      %4356 = vmatpush.bf16.msra.mxu0 %v2557
      %4357 = vmatpush.bf16.msra.mxu0 %v2549
      %4358 = vmatpush.bf16.msra.mxu0 %v2541
      %4359 = vmatmul.bf16.gmra.mxu0 %v4296
      %v4360 = vpop.f32.mrf.mxu0
      %v4361 = vadd.f32 %v4347, %v4360
      %v4362 = vpop.f32.mrf.mxu0
      %v4363 = vadd.f32 %v4349, %v4362
      %4364 = vdwg.mxu0
      %4365 = vmatpush.bf16.msra.mxu0 %v2661
      %4366 = vmatpush.bf16.msra.mxu0 %v2653
      %4367 = vmatpush.bf16.msra.mxu0 %v2645
      %4368 = vmatpush.bf16.msra.mxu0 %v2637
      %4369 = vmatpush.bf16.msra.mxu0 %v2629
      %4370 = vmatpush.bf16.msra.mxu0 %v2621
      %4371 = vmatpush.bf16.msra.mxu0 %v2613
      %4372 = vmatpush.bf16.msra.mxu0 %v2605
      %4373 = vmatmul.bf16.gmra.mxu0 %v4297
      %v4374 = vpop.f32.mrf.mxu0
      %v4375 = vadd.f32 %v4361, %v4374
      %v4376 = vpop.f32.mrf.mxu0
      %v4377 = vadd.f32 %v4363, %v4376
      %4378 = vdwg.mxu0
      %4379 = vmatpush.bf16.msra.mxu0 %v2725
      %4380 = vmatpush.bf16.msra.mxu0 %v2717
      %4381 = vmatpush.bf16.msra.mxu0 %v2709
      %4382 = vmatpush.bf16.msra.mxu0 %v2701
      %4383 = vmatpush.bf16.msra.mxu0 %v2693
      %4384 = vmatpush.bf16.msra.mxu0 %v2685
      %4385 = vmatpush.bf16.msra.mxu0 %v2677
      %4386 = vmatpush.bf16.msra.mxu0 %v2669
      %4387 = vmatmul.bf16.gmra.mxu0 %v4298
      %v4388 = vpop.f32.mrf.mxu0
      %v4389 = vadd.f32 %v4375, %v4388
      %v4390 = vpop.f32.mrf.mxu0
      %v4391 = vadd.f32 %v4377, %v4390
      %4392 = vdwg.mxu0
      %4393 = vmatpush.bf16.msra.mxu0 %v2789
      %4394 = vmatpush.bf16.msra.mxu0 %v2781
      %4395 = vmatpush.bf16.msra.mxu0 %v2773
      %4396 = vmatpush.bf16.msra.mxu0 %v2765
      %4397 = vmatpush.bf16.msra.mxu0 %v2757
      %4398 = vmatpush.bf16.msra.mxu0 %v2749
      %4399 = vmatpush.bf16.msra.mxu0 %v2741
      %4400 = vmatpush.bf16.msra.mxu0 %v2733
      %4401 = vmatmul.bf16.gmra.mxu0 %v4299
      %v4402 = vpop.f32.mrf.mxu0
      %v4403 = vadd.f32 %v4389, %v4402
      %v4404 = vpop.f32.mrf.mxu0
      %v4405 = vadd.f32 %v4391, %v4404
      %4406 = vdwg.mxu0
      %4407 = vmatpush.bf16.msra.mxu0 %v2853
      %4408 = vmatpush.bf16.msra.mxu0 %v2845
      %4409 = vmatpush.bf16.msra.mxu0 %v2837
      %4410 = vmatpush.bf16.msra.mxu0 %v2829
      %4411 = vmatpush.bf16.msra.mxu0 %v2821
      %4412 = vmatpush.bf16.msra.mxu0 %v2813
      %4413 = vmatpush.bf16.msra.mxu0 %v2805
      %4414 = vmatpush.bf16.msra.mxu0 %v2797
      %4415 = vmatmul.bf16.gmra.mxu0 %v4300
      %v4416 = vpop.f32.mrf.mxu0
      %v4417 = vadd.f32 %v4403, %v4416
      %v4418 = vpop.f32.mrf.mxu0
      %v4419 = vadd.f32 %v4405, %v4418
      %4420 = vdwg.mxu0
      %4421 = vmatpush.bf16.msra.mxu0 %v2406
      %4422 = vmatpush.bf16.msra.mxu0 %v2398
      %4423 = vmatpush.bf16.msra.mxu0 %v2390
      %4424 = vmatpush.bf16.msra.mxu0 %v2382
      %4425 = vmatpush.bf16.msra.mxu0 %v2374
      %4426 = vmatpush.bf16.msra.mxu0 %v2366
      %4427 = vmatpush.bf16.msra.mxu0 %v2358
      %4428 = vmatpush.bf16.msra.mxu0 %v2350
      %4429 = vmatmul.bf16.gmra.mxu0 %v4293
      %v4430 = vpop.f32.mrf.mxu0
      %v4431 = vadd.f32 %v3593, %v4430
      %v4432 = vpop.f32.mrf.mxu0
      %v4433 = vadd.f32 %v3595, %v4432
      %4434 = vdwg.mxu0
      %4435 = vmatpush.bf16.msra.mxu0 %v2470
      %4436 = vmatpush.bf16.msra.mxu0 %v2462
      %4437 = vmatpush.bf16.msra.mxu0 %v2454
      %4438 = vmatpush.bf16.msra.mxu0 %v2446
      %4439 = vmatpush.bf16.msra.mxu0 %v2438
      %4440 = vmatpush.bf16.msra.mxu0 %v2430
      %4441 = vmatpush.bf16.msra.mxu0 %v2422
      %4442 = vmatpush.bf16.msra.mxu0 %v2414
      %4443 = vmatmul.bf16.gmra.mxu0 %v4294
      %v4444 = vpop.f32.mrf.mxu0
      %v4445 = vadd.f32 %v4431, %v4444
      %v4446 = vpop.f32.mrf.mxu0
      %v4447 = vadd.f32 %v4433, %v4446
      %4448 = vdwg.mxu0
      %4449 = vmatpush.bf16.msra.mxu0 %v2534
      %4450 = vmatpush.bf16.msra.mxu0 %v2526
      %4451 = vmatpush.bf16.msra.mxu0 %v2518
      %4452 = vmatpush.bf16.msra.mxu0 %v2510
      %4453 = vmatpush.bf16.msra.mxu0 %v2502
      %4454 = vmatpush.bf16.msra.mxu0 %v2494
      %4455 = vmatpush.bf16.msra.mxu0 %v2486
      %4456 = vmatpush.bf16.msra.mxu0 %v2478
      %4457 = vmatmul.bf16.gmra.mxu0 %v4295
      %v4458 = vpop.f32.mrf.mxu0
      %v4459 = vadd.f32 %v4445, %v4458
      %v4460 = vpop.f32.mrf.mxu0
      %v4461 = vadd.f32 %v4447, %v4460
      %4462 = vdwg.mxu0
      %4463 = vmatpush.bf16.msra.mxu0 %v2598
      %4464 = vmatpush.bf16.msra.mxu0 %v2590
      %4465 = vmatpush.bf16.msra.mxu0 %v2582
      %4466 = vmatpush.bf16.msra.mxu0 %v2574
      %4467 = vmatpush.bf16.msra.mxu0 %v2566
      %4468 = vmatpush.bf16.msra.mxu0 %v2558
      %4469 = vmatpush.bf16.msra.mxu0 %v2550
      %4470 = vmatpush.bf16.msra.mxu0 %v2542
      %4471 = vmatmul.bf16.gmra.mxu0 %v4296
      %v4472 = vpop.f32.mrf.mxu0
      %v4473 = vadd.f32 %v4459, %v4472
      %v4474 = vpop.f32.mrf.mxu0
      %v4475 = vadd.f32 %v4461, %v4474
      %4476 = vdwg.mxu0
      %4477 = vmatpush.bf16.msra.mxu0 %v2662
      %4478 = vmatpush.bf16.msra.mxu0 %v2654
      %4479 = vmatpush.bf16.msra.mxu0 %v2646
      %4480 = vmatpush.bf16.msra.mxu0 %v2638
      %4481 = vmatpush.bf16.msra.mxu0 %v2630
      %4482 = vmatpush.bf16.msra.mxu0 %v2622
      %4483 = vmatpush.bf16.msra.mxu0 %v2614
      %4484 = vmatpush.bf16.msra.mxu0 %v2606
      %4485 = vmatmul.bf16.gmra.mxu0 %v4297
      %v4486 = vpop.f32.mrf.mxu0
      %v4487 = vadd.f32 %v4473, %v4486
      %v4488 = vpop.f32.mrf.mxu0
      %v4489 = vadd.f32 %v4475, %v4488
      %4490 = vdwg.mxu0
      %4491 = vmatpush.bf16.msra.mxu0 %v2726
      %4492 = vmatpush.bf16.msra.mxu0 %v2718
      %4493 = vmatpush.bf16.msra.mxu0 %v2710
      %4494 = vmatpush.bf16.msra.mxu0 %v2702
      %4495 = vmatpush.bf16.msra.mxu0 %v2694
      %4496 = vmatpush.bf16.msra.mxu0 %v2686
      %4497 = vmatpush.bf16.msra.mxu0 %v2678
      %4498 = vmatpush.bf16.msra.mxu0 %v2670
      %4499 = vmatmul.bf16.gmra.mxu0 %v4298
      %v4500 = vpop.f32.mrf.mxu0
      %v4501 = vadd.f32 %v4487, %v4500
      %v4502 = vpop.f32.mrf.mxu0
      %v4503 = vadd.f32 %v4489, %v4502
      %4504 = vdwg.mxu0
      %4505 = vmatpush.bf16.msra.mxu0 %v2790
      %4506 = vmatpush.bf16.msra.mxu0 %v2782
      %4507 = vmatpush.bf16.msra.mxu0 %v2774
      %4508 = vmatpush.bf16.msra.mxu0 %v2766
      %4509 = vmatpush.bf16.msra.mxu0 %v2758
      %4510 = vmatpush.bf16.msra.mxu0 %v2750
      %4511 = vmatpush.bf16.msra.mxu0 %v2742
      %4512 = vmatpush.bf16.msra.mxu0 %v2734
      %4513 = vmatmul.bf16.gmra.mxu0 %v4299
      %v4514 = vpop.f32.mrf.mxu0
      %v4515 = vadd.f32 %v4501, %v4514
      %v4516 = vpop.f32.mrf.mxu0
      %v4517 = vadd.f32 %v4503, %v4516
      %4518 = vdwg.mxu0
      %4519 = vmatpush.bf16.msra.mxu0 %v2854
      %4520 = vmatpush.bf16.msra.mxu0 %v2846
      %4521 = vmatpush.bf16.msra.mxu0 %v2838
      %4522 = vmatpush.bf16.msra.mxu0 %v2830
      %4523 = vmatpush.bf16.msra.mxu0 %v2822
      %4524 = vmatpush.bf16.msra.mxu0 %v2814
      %4525 = vmatpush.bf16.msra.mxu0 %v2806
      %4526 = vmatpush.bf16.msra.mxu0 %v2798
      %4527 = vmatmul.bf16.gmra.mxu0 %v4300
      %v4528 = vpop.f32.mrf.mxu0
      %v4529 = vadd.f32 %v4515, %v4528
      %v4530 = vpop.f32.mrf.mxu0
      %v4531 = vadd.f32 %v4517, %v4530
      %4532 = vdwg.mxu0
      %4533 = vmatpush.bf16.msra.mxu0 %v2407
      %4534 = vmatpush.bf16.msra.mxu0 %v2399
      %4535 = vmatpush.bf16.msra.mxu0 %v2391
      %4536 = vmatpush.bf16.msra.mxu0 %v2383
      %4537 = vmatpush.bf16.msra.mxu0 %v2375
      %4538 = vmatpush.bf16.msra.mxu0 %v2367
      %4539 = vmatpush.bf16.msra.mxu0 %v2359
      %4540 = vmatpush.bf16.msra.mxu0 %v2351
      %4541 = vmatmul.bf16.gmra.mxu0 %v4293
      %v4542 = vpop.f32.mrf.mxu0
      %v4543 = vadd.f32 %v3705, %v4542
      %v4544 = vpop.f32.mrf.mxu0
      %v4545 = vadd.f32 %v3707, %v4544
      %4546 = vdwg.mxu0
      %4547 = vmatpush.bf16.msra.mxu0 %v2471
      %4548 = vmatpush.bf16.msra.mxu0 %v2463
      %4549 = vmatpush.bf16.msra.mxu0 %v2455
      %4550 = vmatpush.bf16.msra.mxu0 %v2447
      %4551 = vmatpush.bf16.msra.mxu0 %v2439
      %4552 = vmatpush.bf16.msra.mxu0 %v2431
      %4553 = vmatpush.bf16.msra.mxu0 %v2423
      %4554 = vmatpush.bf16.msra.mxu0 %v2415
      %4555 = vmatmul.bf16.gmra.mxu0 %v4294
      %v4556 = vpop.f32.mrf.mxu0
      %v4557 = vadd.f32 %v4543, %v4556
      %v4558 = vpop.f32.mrf.mxu0
      %v4559 = vadd.f32 %v4545, %v4558
      %4560 = vdwg.mxu0
      %4561 = vmatpush.bf16.msra.mxu0 %v2535
      %4562 = vmatpush.bf16.msra.mxu0 %v2527
      %4563 = vmatpush.bf16.msra.mxu0 %v2519
      %4564 = vmatpush.bf16.msra.mxu0 %v2511
      %4565 = vmatpush.bf16.msra.mxu0 %v2503
      %4566 = vmatpush.bf16.msra.mxu0 %v2495
      %4567 = vmatpush.bf16.msra.mxu0 %v2487
      %4568 = vmatpush.bf16.msra.mxu0 %v2479
      %4569 = vmatmul.bf16.gmra.mxu0 %v4295
      %v4570 = vpop.f32.mrf.mxu0
      %v4571 = vadd.f32 %v4557, %v4570
      %v4572 = vpop.f32.mrf.mxu0
      %v4573 = vadd.f32 %v4559, %v4572
      %4574 = vdwg.mxu0
      %4575 = vmatpush.bf16.msra.mxu0 %v2599
      %4576 = vmatpush.bf16.msra.mxu0 %v2591
      %4577 = vmatpush.bf16.msra.mxu0 %v2583
      %4578 = vmatpush.bf16.msra.mxu0 %v2575
      %4579 = vmatpush.bf16.msra.mxu0 %v2567
      %4580 = vmatpush.bf16.msra.mxu0 %v2559
      %4581 = vmatpush.bf16.msra.mxu0 %v2551
      %4582 = vmatpush.bf16.msra.mxu0 %v2543
      %4583 = vmatmul.bf16.gmra.mxu0 %v4296
      %v4584 = vpop.f32.mrf.mxu0
      %v4585 = vadd.f32 %v4571, %v4584
      %v4586 = vpop.f32.mrf.mxu0
      %v4587 = vadd.f32 %v4573, %v4586
      %4588 = vdwg.mxu0
      %4589 = vmatpush.bf16.msra.mxu0 %v2663
      %4590 = vmatpush.bf16.msra.mxu0 %v2655
      %4591 = vmatpush.bf16.msra.mxu0 %v2647
      %4592 = vmatpush.bf16.msra.mxu0 %v2639
      %4593 = vmatpush.bf16.msra.mxu0 %v2631
      %4594 = vmatpush.bf16.msra.mxu0 %v2623
      %4595 = vmatpush.bf16.msra.mxu0 %v2615
      %4596 = vmatpush.bf16.msra.mxu0 %v2607
      %4597 = vmatmul.bf16.gmra.mxu0 %v4297
      %v4598 = vpop.f32.mrf.mxu0
      %v4599 = vadd.f32 %v4585, %v4598
      %v4600 = vpop.f32.mrf.mxu0
      %v4601 = vadd.f32 %v4587, %v4600
      %4602 = vdwg.mxu0
      %4603 = vmatpush.bf16.msra.mxu0 %v2727
      %4604 = vmatpush.bf16.msra.mxu0 %v2719
      %4605 = vmatpush.bf16.msra.mxu0 %v2711
      %4606 = vmatpush.bf16.msra.mxu0 %v2703
      %4607 = vmatpush.bf16.msra.mxu0 %v2695
      %4608 = vmatpush.bf16.msra.mxu0 %v2687
      %4609 = vmatpush.bf16.msra.mxu0 %v2679
      %4610 = vmatpush.bf16.msra.mxu0 %v2671
      %4611 = vmatmul.bf16.gmra.mxu0 %v4298
      %v4612 = vpop.f32.mrf.mxu0
      %v4613 = vadd.f32 %v4599, %v4612
      %v4614 = vpop.f32.mrf.mxu0
      %v4615 = vadd.f32 %v4601, %v4614
      %4616 = vdwg.mxu0
      %4617 = vmatpush.bf16.msra.mxu0 %v2791
      %4618 = vmatpush.bf16.msra.mxu0 %v2783
      %4619 = vmatpush.bf16.msra.mxu0 %v2775
      %4620 = vmatpush.bf16.msra.mxu0 %v2767
      %4621 = vmatpush.bf16.msra.mxu0 %v2759
      %4622 = vmatpush.bf16.msra.mxu0 %v2751
      %4623 = vmatpush.bf16.msra.mxu0 %v2743
      %4624 = vmatpush.bf16.msra.mxu0 %v2735
      %4625 = vmatmul.bf16.gmra.mxu0 %v4299
      %v4626 = vpop.f32.mrf.mxu0
      %v4627 = vadd.f32 %v4613, %v4626
      %v4628 = vpop.f32.mrf.mxu0
      %v4629 = vadd.f32 %v4615, %v4628
      %4630 = vdwg.mxu0
      %4631 = vmatpush.bf16.msra.mxu0 %v2855
      %4632 = vmatpush.bf16.msra.mxu0 %v2847
      %4633 = vmatpush.bf16.msra.mxu0 %v2839
      %4634 = vmatpush.bf16.msra.mxu0 %v2831
      %4635 = vmatpush.bf16.msra.mxu0 %v2823
      %4636 = vmatpush.bf16.msra.mxu0 %v2815
      %4637 = vmatpush.bf16.msra.mxu0 %v2807
      %4638 = vmatpush.bf16.msra.mxu0 %v2799
      %4639 = vmatmul.bf16.gmra.mxu0 %v4300
      %v4640 = vpop.f32.mrf.mxu0
      %v4641 = vadd.f32 %v4627, %v4640
      %v4642 = vpop.f32.mrf.mxu0
      %v4643 = vadd.f32 %v4629, %v4642
      %4644 = vdwg.mxu0
      %4645 = vmatpush.bf16.msra.mxu0 %v2408
      %4646 = vmatpush.bf16.msra.mxu0 %v2400
      %4647 = vmatpush.bf16.msra.mxu0 %v2392
      %4648 = vmatpush.bf16.msra.mxu0 %v2384
      %4649 = vmatpush.bf16.msra.mxu0 %v2376
      %4650 = vmatpush.bf16.msra.mxu0 %v2368
      %4651 = vmatpush.bf16.msra.mxu0 %v2360
      %4652 = vmatpush.bf16.msra.mxu0 %v2352
      %4653 = vmatmul.bf16.gmra.mxu0 %v4293
      %v4654 = vpop.f32.mrf.mxu0
      %v4655 = vadd.f32 %v3817, %v4654
      %v4656 = vpop.f32.mrf.mxu0
      %v4657 = vadd.f32 %v3819, %v4656
      %4658 = vdwg.mxu0
      %4659 = vmatpush.bf16.msra.mxu0 %v2472
      %4660 = vmatpush.bf16.msra.mxu0 %v2464
      %4661 = vmatpush.bf16.msra.mxu0 %v2456
      %4662 = vmatpush.bf16.msra.mxu0 %v2448
      %4663 = vmatpush.bf16.msra.mxu0 %v2440
      %4664 = vmatpush.bf16.msra.mxu0 %v2432
      %4665 = vmatpush.bf16.msra.mxu0 %v2424
      %4666 = vmatpush.bf16.msra.mxu0 %v2416
      %4667 = vmatmul.bf16.gmra.mxu0 %v4294
      %v4668 = vpop.f32.mrf.mxu0
      %v4669 = vadd.f32 %v4655, %v4668
      %v4670 = vpop.f32.mrf.mxu0
      %v4671 = vadd.f32 %v4657, %v4670
      %4672 = vdwg.mxu0
      %4673 = vmatpush.bf16.msra.mxu0 %v2536
      %4674 = vmatpush.bf16.msra.mxu0 %v2528
      %4675 = vmatpush.bf16.msra.mxu0 %v2520
      %4676 = vmatpush.bf16.msra.mxu0 %v2512
      %4677 = vmatpush.bf16.msra.mxu0 %v2504
      %4678 = vmatpush.bf16.msra.mxu0 %v2496
      %4679 = vmatpush.bf16.msra.mxu0 %v2488
      %4680 = vmatpush.bf16.msra.mxu0 %v2480
      %4681 = vmatmul.bf16.gmra.mxu0 %v4295
      %v4682 = vpop.f32.mrf.mxu0
      %v4683 = vadd.f32 %v4669, %v4682
      %v4684 = vpop.f32.mrf.mxu0
      %v4685 = vadd.f32 %v4671, %v4684
      %4686 = vdwg.mxu0
      %4687 = vmatpush.bf16.msra.mxu0 %v2600
      %4688 = vmatpush.bf16.msra.mxu0 %v2592
      %4689 = vmatpush.bf16.msra.mxu0 %v2584
      %4690 = vmatpush.bf16.msra.mxu0 %v2576
      %4691 = vmatpush.bf16.msra.mxu0 %v2568
      %4692 = vmatpush.bf16.msra.mxu0 %v2560
      %4693 = vmatpush.bf16.msra.mxu0 %v2552
      %4694 = vmatpush.bf16.msra.mxu0 %v2544
      %4695 = vmatmul.bf16.gmra.mxu0 %v4296
      %v4696 = vpop.f32.mrf.mxu0
      %v4697 = vadd.f32 %v4683, %v4696
      %v4698 = vpop.f32.mrf.mxu0
      %v4699 = vadd.f32 %v4685, %v4698
      %4700 = vdwg.mxu0
      %4701 = vmatpush.bf16.msra.mxu0 %v2664
      %4702 = vmatpush.bf16.msra.mxu0 %v2656
      %4703 = vmatpush.bf16.msra.mxu0 %v2648
      %4704 = vmatpush.bf16.msra.mxu0 %v2640
      %4705 = vmatpush.bf16.msra.mxu0 %v2632
      %4706 = vmatpush.bf16.msra.mxu0 %v2624
      %4707 = vmatpush.bf16.msra.mxu0 %v2616
      %4708 = vmatpush.bf16.msra.mxu0 %v2608
      %4709 = vmatmul.bf16.gmra.mxu0 %v4297
      %v4710 = vpop.f32.mrf.mxu0
      %v4711 = vadd.f32 %v4697, %v4710
      %v4712 = vpop.f32.mrf.mxu0
      %v4713 = vadd.f32 %v4699, %v4712
      %4714 = vdwg.mxu0
      %4715 = vmatpush.bf16.msra.mxu0 %v2728
      %4716 = vmatpush.bf16.msra.mxu0 %v2720
      %4717 = vmatpush.bf16.msra.mxu0 %v2712
      %4718 = vmatpush.bf16.msra.mxu0 %v2704
      %4719 = vmatpush.bf16.msra.mxu0 %v2696
      %4720 = vmatpush.bf16.msra.mxu0 %v2688
      %4721 = vmatpush.bf16.msra.mxu0 %v2680
      %4722 = vmatpush.bf16.msra.mxu0 %v2672
      %4723 = vmatmul.bf16.gmra.mxu0 %v4298
      %v4724 = vpop.f32.mrf.mxu0
      %v4725 = vadd.f32 %v4711, %v4724
      %v4726 = vpop.f32.mrf.mxu0
      %v4727 = vadd.f32 %v4713, %v4726
      %4728 = vdwg.mxu0
      %4729 = vmatpush.bf16.msra.mxu0 %v2792
      %4730 = vmatpush.bf16.msra.mxu0 %v2784
      %4731 = vmatpush.bf16.msra.mxu0 %v2776
      %4732 = vmatpush.bf16.msra.mxu0 %v2768
      %4733 = vmatpush.bf16.msra.mxu0 %v2760
      %4734 = vmatpush.bf16.msra.mxu0 %v2752
      %4735 = vmatpush.bf16.msra.mxu0 %v2744
      %4736 = vmatpush.bf16.msra.mxu0 %v2736
      %4737 = vmatmul.bf16.gmra.mxu0 %v4299
      %v4738 = vpop.f32.mrf.mxu0
      %v4739 = vadd.f32 %v4725, %v4738
      %v4740 = vpop.f32.mrf.mxu0
      %v4741 = vadd.f32 %v4727, %v4740
      %4742 = vdwg.mxu0
      %4743 = vmatpush.bf16.msra.mxu0 %v2856
      %4744 = vmatpush.bf16.msra.mxu0 %v2848
      %4745 = vmatpush.bf16.msra.mxu0 %v2840
      %4746 = vmatpush.bf16.msra.mxu0 %v2832
      %4747 = vmatpush.bf16.msra.mxu0 %v2824
      %4748 = vmatpush.bf16.msra.mxu0 %v2816
      %4749 = vmatpush.bf16.msra.mxu0 %v2808
      %4750 = vmatpush.bf16.msra.mxu0 %v2800
      %4751 = vmatmul.bf16.gmra.mxu0 %v4300
      %v4752 = vpop.f32.mrf.mxu0
      %v4753 = vadd.f32 %v4739, %v4752
      %v4754 = vpop.f32.mrf.mxu0
      %v4755 = vadd.f32 %v4741, %v4754
      %4756 = vdwg.mxu0
      %4757 = vmatpush.bf16.msra.mxu0 %v2409
      %4758 = vmatpush.bf16.msra.mxu0 %v2401
      %4759 = vmatpush.bf16.msra.mxu0 %v2393
      %4760 = vmatpush.bf16.msra.mxu0 %v2385
      %4761 = vmatpush.bf16.msra.mxu0 %v2377
      %4762 = vmatpush.bf16.msra.mxu0 %v2369
      %4763 = vmatpush.bf16.msra.mxu0 %v2361
      %4764 = vmatpush.bf16.msra.mxu0 %v2353
      %4765 = vmatmul.bf16.gmra.mxu0 %v4293
      %v4766 = vpop.f32.mrf.mxu0
      %v4767 = vadd.f32 %v3929, %v4766
      %v4768 = vpop.f32.mrf.mxu0
      %v4769 = vadd.f32 %v3931, %v4768
      %4770 = vdwg.mxu0
      %4771 = vmatpush.bf16.msra.mxu0 %v2473
      %4772 = vmatpush.bf16.msra.mxu0 %v2465
      %4773 = vmatpush.bf16.msra.mxu0 %v2457
      %4774 = vmatpush.bf16.msra.mxu0 %v2449
      %4775 = vmatpush.bf16.msra.mxu0 %v2441
      %4776 = vmatpush.bf16.msra.mxu0 %v2433
      %4777 = vmatpush.bf16.msra.mxu0 %v2425
      %4778 = vmatpush.bf16.msra.mxu0 %v2417
      %4779 = vmatmul.bf16.gmra.mxu0 %v4294
      %v4780 = vpop.f32.mrf.mxu0
      %v4781 = vadd.f32 %v4767, %v4780
      %v4782 = vpop.f32.mrf.mxu0
      %v4783 = vadd.f32 %v4769, %v4782
      %4784 = vdwg.mxu0
      %4785 = vmatpush.bf16.msra.mxu0 %v2537
      %4786 = vmatpush.bf16.msra.mxu0 %v2529
      %4787 = vmatpush.bf16.msra.mxu0 %v2521
      %4788 = vmatpush.bf16.msra.mxu0 %v2513
      %4789 = vmatpush.bf16.msra.mxu0 %v2505
      %4790 = vmatpush.bf16.msra.mxu0 %v2497
      %4791 = vmatpush.bf16.msra.mxu0 %v2489
      %4792 = vmatpush.bf16.msra.mxu0 %v2481
      %4793 = vmatmul.bf16.gmra.mxu0 %v4295
      %v4794 = vpop.f32.mrf.mxu0
      %v4795 = vadd.f32 %v4781, %v4794
      %v4796 = vpop.f32.mrf.mxu0
      %v4797 = vadd.f32 %v4783, %v4796
      %4798 = vdwg.mxu0
      %4799 = vmatpush.bf16.msra.mxu0 %v2601
      %4800 = vmatpush.bf16.msra.mxu0 %v2593
      %4801 = vmatpush.bf16.msra.mxu0 %v2585
      %4802 = vmatpush.bf16.msra.mxu0 %v2577
      %4803 = vmatpush.bf16.msra.mxu0 %v2569
      %4804 = vmatpush.bf16.msra.mxu0 %v2561
      %4805 = vmatpush.bf16.msra.mxu0 %v2553
      %4806 = vmatpush.bf16.msra.mxu0 %v2545
      %4807 = vmatmul.bf16.gmra.mxu0 %v4296
      %v4808 = vpop.f32.mrf.mxu0
      %v4809 = vadd.f32 %v4795, %v4808
      %v4810 = vpop.f32.mrf.mxu0
      %v4811 = vadd.f32 %v4797, %v4810
      %4812 = vdwg.mxu0
      %4813 = vmatpush.bf16.msra.mxu0 %v2665
      %4814 = vmatpush.bf16.msra.mxu0 %v2657
      %4815 = vmatpush.bf16.msra.mxu0 %v2649
      %4816 = vmatpush.bf16.msra.mxu0 %v2641
      %4817 = vmatpush.bf16.msra.mxu0 %v2633
      %4818 = vmatpush.bf16.msra.mxu0 %v2625
      %4819 = vmatpush.bf16.msra.mxu0 %v2617
      %4820 = vmatpush.bf16.msra.mxu0 %v2609
      %4821 = vmatmul.bf16.gmra.mxu0 %v4297
      %v4822 = vpop.f32.mrf.mxu0
      %v4823 = vadd.f32 %v4809, %v4822
      %v4824 = vpop.f32.mrf.mxu0
      %v4825 = vadd.f32 %v4811, %v4824
      %4826 = vdwg.mxu0
      %4827 = vmatpush.bf16.msra.mxu0 %v2729
      %4828 = vmatpush.bf16.msra.mxu0 %v2721
      %4829 = vmatpush.bf16.msra.mxu0 %v2713
      %4830 = vmatpush.bf16.msra.mxu0 %v2705
      %4831 = vmatpush.bf16.msra.mxu0 %v2697
      %4832 = vmatpush.bf16.msra.mxu0 %v2689
      %4833 = vmatpush.bf16.msra.mxu0 %v2681
      %4834 = vmatpush.bf16.msra.mxu0 %v2673
      %4835 = vmatmul.bf16.gmra.mxu0 %v4298
      %v4836 = vpop.f32.mrf.mxu0
      %v4837 = vadd.f32 %v4823, %v4836
      %v4838 = vpop.f32.mrf.mxu0
      %v4839 = vadd.f32 %v4825, %v4838
      %4840 = vdwg.mxu0
      %4841 = vmatpush.bf16.msra.mxu0 %v2793
      %4842 = vmatpush.bf16.msra.mxu0 %v2785
      %4843 = vmatpush.bf16.msra.mxu0 %v2777
      %4844 = vmatpush.bf16.msra.mxu0 %v2769
      %4845 = vmatpush.bf16.msra.mxu0 %v2761
      %4846 = vmatpush.bf16.msra.mxu0 %v2753
      %4847 = vmatpush.bf16.msra.mxu0 %v2745
      %4848 = vmatpush.bf16.msra.mxu0 %v2737
      %4849 = vmatmul.bf16.gmra.mxu0 %v4299
      %v4850 = vpop.f32.mrf.mxu0
      %v4851 = vadd.f32 %v4837, %v4850
      %v4852 = vpop.f32.mrf.mxu0
      %v4853 = vadd.f32 %v4839, %v4852
      %4854 = vdwg.mxu0
      %4855 = vmatpush.bf16.msra.mxu0 %v2857
      %4856 = vmatpush.bf16.msra.mxu0 %v2849
      %4857 = vmatpush.bf16.msra.mxu0 %v2841
      %4858 = vmatpush.bf16.msra.mxu0 %v2833
      %4859 = vmatpush.bf16.msra.mxu0 %v2825
      %4860 = vmatpush.bf16.msra.mxu0 %v2817
      %4861 = vmatpush.bf16.msra.mxu0 %v2809
      %4862 = vmatpush.bf16.msra.mxu0 %v2801
      %4863 = vmatmul.bf16.gmra.mxu0 %v4300
      %v4864 = vpop.f32.mrf.mxu0
      %v4865 = vadd.f32 %v4851, %v4864
      %v4866 = vpop.f32.mrf.mxu0
      %v4867 = vadd.f32 %v4853, %v4866
      %4868 = vdwg.mxu0
      %4869 = vmatpush.bf16.msra.mxu0 %v2410
      %4870 = vmatpush.bf16.msra.mxu0 %v2402
      %4871 = vmatpush.bf16.msra.mxu0 %v2394
      %4872 = vmatpush.bf16.msra.mxu0 %v2386
      %4873 = vmatpush.bf16.msra.mxu0 %v2378
      %4874 = vmatpush.bf16.msra.mxu0 %v2370
      %4875 = vmatpush.bf16.msra.mxu0 %v2362
      %4876 = vmatpush.bf16.msra.mxu0 %v2354
      %4877 = vmatmul.bf16.gmra.mxu0 %v4293
      %v4878 = vpop.f32.mrf.mxu0
      %v4879 = vadd.f32 %v4041, %v4878
      %v4880 = vpop.f32.mrf.mxu0
      %v4881 = vadd.f32 %v4043, %v4880
      %4882 = vdwg.mxu0
      %4883 = vmatpush.bf16.msra.mxu0 %v2474
      %4884 = vmatpush.bf16.msra.mxu0 %v2466
      %4885 = vmatpush.bf16.msra.mxu0 %v2458
      %4886 = vmatpush.bf16.msra.mxu0 %v2450
      %4887 = vmatpush.bf16.msra.mxu0 %v2442
      %4888 = vmatpush.bf16.msra.mxu0 %v2434
      %4889 = vmatpush.bf16.msra.mxu0 %v2426
      %4890 = vmatpush.bf16.msra.mxu0 %v2418
      %4891 = vmatmul.bf16.gmra.mxu0 %v4294
      %v4892 = vpop.f32.mrf.mxu0
      %v4893 = vadd.f32 %v4879, %v4892
      %v4894 = vpop.f32.mrf.mxu0
      %v4895 = vadd.f32 %v4881, %v4894
      %4896 = vdwg.mxu0
      %4897 = vmatpush.bf16.msra.mxu0 %v2538
      %4898 = vmatpush.bf16.msra.mxu0 %v2530
      %4899 = vmatpush.bf16.msra.mxu0 %v2522
      %4900 = vmatpush.bf16.msra.mxu0 %v2514
      %4901 = vmatpush.bf16.msra.mxu0 %v2506
      %4902 = vmatpush.bf16.msra.mxu0 %v2498
      %4903 = vmatpush.bf16.msra.mxu0 %v2490
      %4904 = vmatpush.bf16.msra.mxu0 %v2482
      %4905 = vmatmul.bf16.gmra.mxu0 %v4295
      %v4906 = vpop.f32.mrf.mxu0
      %v4907 = vadd.f32 %v4893, %v4906
      %v4908 = vpop.f32.mrf.mxu0
      %v4909 = vadd.f32 %v4895, %v4908
      %4910 = vdwg.mxu0
      %4911 = vmatpush.bf16.msra.mxu0 %v2602
      %4912 = vmatpush.bf16.msra.mxu0 %v2594
      %4913 = vmatpush.bf16.msra.mxu0 %v2586
      %4914 = vmatpush.bf16.msra.mxu0 %v2578
      %4915 = vmatpush.bf16.msra.mxu0 %v2570
      %4916 = vmatpush.bf16.msra.mxu0 %v2562
      %4917 = vmatpush.bf16.msra.mxu0 %v2554
      %4918 = vmatpush.bf16.msra.mxu0 %v2546
      %4919 = vmatmul.bf16.gmra.mxu0 %v4296
      %v4920 = vpop.f32.mrf.mxu0
      %v4921 = vadd.f32 %v4907, %v4920
      %v4922 = vpop.f32.mrf.mxu0
      %v4923 = vadd.f32 %v4909, %v4922
      %4924 = vdwg.mxu0
      %4925 = vmatpush.bf16.msra.mxu0 %v2666
      %4926 = vmatpush.bf16.msra.mxu0 %v2658
      %4927 = vmatpush.bf16.msra.mxu0 %v2650
      %4928 = vmatpush.bf16.msra.mxu0 %v2642
      %4929 = vmatpush.bf16.msra.mxu0 %v2634
      %4930 = vmatpush.bf16.msra.mxu0 %v2626
      %4931 = vmatpush.bf16.msra.mxu0 %v2618
      %4932 = vmatpush.bf16.msra.mxu0 %v2610
      %4933 = vmatmul.bf16.gmra.mxu0 %v4297
      %v4934 = vpop.f32.mrf.mxu0
      %v4935 = vadd.f32 %v4921, %v4934
      %v4936 = vpop.f32.mrf.mxu0
      %v4937 = vadd.f32 %v4923, %v4936
      %4938 = vdwg.mxu0
      %4939 = vmatpush.bf16.msra.mxu0 %v2730
      %4940 = vmatpush.bf16.msra.mxu0 %v2722
      %4941 = vmatpush.bf16.msra.mxu0 %v2714
      %4942 = vmatpush.bf16.msra.mxu0 %v2706
      %4943 = vmatpush.bf16.msra.mxu0 %v2698
      %4944 = vmatpush.bf16.msra.mxu0 %v2690
      %4945 = vmatpush.bf16.msra.mxu0 %v2682
      %4946 = vmatpush.bf16.msra.mxu0 %v2674
      %4947 = vmatmul.bf16.gmra.mxu0 %v4298
      %v4948 = vpop.f32.mrf.mxu0
      %v4949 = vadd.f32 %v4935, %v4948
      %v4950 = vpop.f32.mrf.mxu0
      %v4951 = vadd.f32 %v4937, %v4950
      %4952 = vdwg.mxu0
      %4953 = vmatpush.bf16.msra.mxu0 %v2794
      %4954 = vmatpush.bf16.msra.mxu0 %v2786
      %4955 = vmatpush.bf16.msra.mxu0 %v2778
      %4956 = vmatpush.bf16.msra.mxu0 %v2770
      %4957 = vmatpush.bf16.msra.mxu0 %v2762
      %4958 = vmatpush.bf16.msra.mxu0 %v2754
      %4959 = vmatpush.bf16.msra.mxu0 %v2746
      %4960 = vmatpush.bf16.msra.mxu0 %v2738
      %4961 = vmatmul.bf16.gmra.mxu0 %v4299
      %v4962 = vpop.f32.mrf.mxu0
      %v4963 = vadd.f32 %v4949, %v4962
      %v4964 = vpop.f32.mrf.mxu0
      %v4965 = vadd.f32 %v4951, %v4964
      %4966 = vdwg.mxu0
      %4967 = vmatpush.bf16.msra.mxu0 %v2858
      %4968 = vmatpush.bf16.msra.mxu0 %v2850
      %4969 = vmatpush.bf16.msra.mxu0 %v2842
      %4970 = vmatpush.bf16.msra.mxu0 %v2834
      %4971 = vmatpush.bf16.msra.mxu0 %v2826
      %4972 = vmatpush.bf16.msra.mxu0 %v2818
      %4973 = vmatpush.bf16.msra.mxu0 %v2810
      %4974 = vmatpush.bf16.msra.mxu0 %v2802
      %4975 = vmatmul.bf16.gmra.mxu0 %v4300
      %v4976 = vpop.f32.mrf.mxu0
      %v4977 = vadd.f32 %v4963, %v4976
      %v4978 = vpop.f32.mrf.mxu0
      %v4979 = vadd.f32 %v4965, %v4978
      %4980 = vdwg.mxu0
      %4981 = vmatpush.bf16.msra.mxu0 %v2411
      %4982 = vmatpush.bf16.msra.mxu0 %v2403
      %4983 = vmatpush.bf16.msra.mxu0 %v2395
      %4984 = vmatpush.bf16.msra.mxu0 %v2387
      %4985 = vmatpush.bf16.msra.mxu0 %v2379
      %4986 = vmatpush.bf16.msra.mxu0 %v2371
      %4987 = vmatpush.bf16.msra.mxu0 %v2363
      %4988 = vmatpush.bf16.msra.mxu0 %v2355
      %4989 = vmatmul.bf16.gmra.mxu0 %v4293
      %v4990 = vpop.f32.mrf.mxu0
      %v4991 = vadd.f32 %v4153, %v4990
      %v4992 = vpop.f32.mrf.mxu0
      %v4993 = vadd.f32 %v4155, %v4992
      %4994 = vdwg.mxu0
      %4995 = vmatpush.bf16.msra.mxu0 %v2475
      %4996 = vmatpush.bf16.msra.mxu0 %v2467
      %4997 = vmatpush.bf16.msra.mxu0 %v2459
      %4998 = vmatpush.bf16.msra.mxu0 %v2451
      %4999 = vmatpush.bf16.msra.mxu0 %v2443
      %5000 = vmatpush.bf16.msra.mxu0 %v2435
      %5001 = vmatpush.bf16.msra.mxu0 %v2427
      %5002 = vmatpush.bf16.msra.mxu0 %v2419
      %5003 = vmatmul.bf16.gmra.mxu0 %v4294
      %v5004 = vpop.f32.mrf.mxu0
      %v5005 = vadd.f32 %v4991, %v5004
      %v5006 = vpop.f32.mrf.mxu0
      %v5007 = vadd.f32 %v4993, %v5006
      %5008 = vdwg.mxu0
      %5009 = vmatpush.bf16.msra.mxu0 %v2539
      %5010 = vmatpush.bf16.msra.mxu0 %v2531
      %5011 = vmatpush.bf16.msra.mxu0 %v2523
      %5012 = vmatpush.bf16.msra.mxu0 %v2515
      %5013 = vmatpush.bf16.msra.mxu0 %v2507
      %5014 = vmatpush.bf16.msra.mxu0 %v2499
      %5015 = vmatpush.bf16.msra.mxu0 %v2491
      %5016 = vmatpush.bf16.msra.mxu0 %v2483
      %5017 = vmatmul.bf16.gmra.mxu0 %v4295
      %v5018 = vpop.f32.mrf.mxu0
      %v5019 = vadd.f32 %v5005, %v5018
      %v5020 = vpop.f32.mrf.mxu0
      %v5021 = vadd.f32 %v5007, %v5020
      %5022 = vdwg.mxu0
      %5023 = vmatpush.bf16.msra.mxu0 %v2603
      %5024 = vmatpush.bf16.msra.mxu0 %v2595
      %5025 = vmatpush.bf16.msra.mxu0 %v2587
      %5026 = vmatpush.bf16.msra.mxu0 %v2579
      %5027 = vmatpush.bf16.msra.mxu0 %v2571
      %5028 = vmatpush.bf16.msra.mxu0 %v2563
      %5029 = vmatpush.bf16.msra.mxu0 %v2555
      %5030 = vmatpush.bf16.msra.mxu0 %v2547
      %5031 = vmatmul.bf16.gmra.mxu0 %v4296
      %v5032 = vpop.f32.mrf.mxu0
      %v5033 = vadd.f32 %v5019, %v5032
      %v5034 = vpop.f32.mrf.mxu0
      %v5035 = vadd.f32 %v5021, %v5034
      %5036 = vdwg.mxu0
      %5037 = vmatpush.bf16.msra.mxu0 %v2667
      %5038 = vmatpush.bf16.msra.mxu0 %v2659
      %5039 = vmatpush.bf16.msra.mxu0 %v2651
      %5040 = vmatpush.bf16.msra.mxu0 %v2643
      %5041 = vmatpush.bf16.msra.mxu0 %v2635
      %5042 = vmatpush.bf16.msra.mxu0 %v2627
      %5043 = vmatpush.bf16.msra.mxu0 %v2619
      %5044 = vmatpush.bf16.msra.mxu0 %v2611
      %5045 = vmatmul.bf16.gmra.mxu0 %v4297
      %v5046 = vpop.f32.mrf.mxu0
      %v5047 = vadd.f32 %v5033, %v5046
      %v5048 = vpop.f32.mrf.mxu0
      %v5049 = vadd.f32 %v5035, %v5048
      %5050 = vdwg.mxu0
      %5051 = vmatpush.bf16.msra.mxu0 %v2731
      %5052 = vmatpush.bf16.msra.mxu0 %v2723
      %5053 = vmatpush.bf16.msra.mxu0 %v2715
      %5054 = vmatpush.bf16.msra.mxu0 %v2707
      %5055 = vmatpush.bf16.msra.mxu0 %v2699
      %5056 = vmatpush.bf16.msra.mxu0 %v2691
      %5057 = vmatpush.bf16.msra.mxu0 %v2683
      %5058 = vmatpush.bf16.msra.mxu0 %v2675
      %5059 = vmatmul.bf16.gmra.mxu0 %v4298
      %v5060 = vpop.f32.mrf.mxu0
      %v5061 = vadd.f32 %v5047, %v5060
      %v5062 = vpop.f32.mrf.mxu0
      %v5063 = vadd.f32 %v5049, %v5062
      %5064 = vdwg.mxu0
      %5065 = vmatpush.bf16.msra.mxu0 %v2795
      %5066 = vmatpush.bf16.msra.mxu0 %v2787
      %5067 = vmatpush.bf16.msra.mxu0 %v2779
      %5068 = vmatpush.bf16.msra.mxu0 %v2771
      %5069 = vmatpush.bf16.msra.mxu0 %v2763
      %5070 = vmatpush.bf16.msra.mxu0 %v2755
      %5071 = vmatpush.bf16.msra.mxu0 %v2747
      %5072 = vmatpush.bf16.msra.mxu0 %v2739
      %5073 = vmatmul.bf16.gmra.mxu0 %v4299
      %v5074 = vpop.f32.mrf.mxu0
      %v5075 = vadd.f32 %v5061, %v5074
      %v5076 = vpop.f32.mrf.mxu0
      %v5077 = vadd.f32 %v5063, %v5076
      %5078 = vdwg.mxu0
      %5079 = vmatpush.bf16.msra.mxu0 %v2859
      %5080 = vmatpush.bf16.msra.mxu0 %v2851
      %5081 = vmatpush.bf16.msra.mxu0 %v2843
      %5082 = vmatpush.bf16.msra.mxu0 %v2835
      %5083 = vmatpush.bf16.msra.mxu0 %v2827
      %5084 = vmatpush.bf16.msra.mxu0 %v2819
      %5085 = vmatpush.bf16.msra.mxu0 %v2811
      %5086 = vmatpush.bf16.msra.mxu0 %v2803
      %5087 = vmatmul.bf16.gmra.mxu0 %v4300
      %v5088 = vpop.f32.mrf.mxu0
      %v5089 = vadd.f32 %v5075, %v5088
      %v5090 = vpop.f32.mrf.mxu0
      %v5091 = vadd.f32 %v5077, %v5090
      %5092 = vdwg.mxu0
      %5093 = vmatpush.bf16.msra.mxu0 %v2412
      %5094 = vmatpush.bf16.msra.mxu0 %v2404
      %5095 = vmatpush.bf16.msra.mxu0 %v2396
      %5096 = vmatpush.bf16.msra.mxu0 %v2388
      %5097 = vmatpush.bf16.msra.mxu0 %v2380
      %5098 = vmatpush.bf16.msra.mxu0 %v2372
      %5099 = vmatpush.bf16.msra.mxu0 %v2364
      %5100 = vmatpush.bf16.msra.mxu0 %v2356
      %5101 = vmatmul.bf16.gmra.mxu0 %v4293
      %v5102 = vpop.f32.mrf.mxu0
      %v5103 = vadd.f32 %v4265, %v5102
      %v5104 = vpop.f32.mrf.mxu0
      %v5105 = vadd.f32 %v4267, %v5104
      %5106 = vdwg.mxu0
      %5107 = vmatpush.bf16.msra.mxu0 %v2476
      %5108 = vmatpush.bf16.msra.mxu0 %v2468
      %5109 = vmatpush.bf16.msra.mxu0 %v2460
      %5110 = vmatpush.bf16.msra.mxu0 %v2452
      %5111 = vmatpush.bf16.msra.mxu0 %v2444
      %5112 = vmatpush.bf16.msra.mxu0 %v2436
      %5113 = vmatpush.bf16.msra.mxu0 %v2428
      %5114 = vmatpush.bf16.msra.mxu0 %v2420
      %5115 = vmatmul.bf16.gmra.mxu0 %v4294
      %v5116 = vpop.f32.mrf.mxu0
      %v5117 = vadd.f32 %v5103, %v5116
      %v5118 = vpop.f32.mrf.mxu0
      %v5119 = vadd.f32 %v5105, %v5118
      %5120 = vdwg.mxu0
      %5121 = vmatpush.bf16.msra.mxu0 %v2540
      %5122 = vmatpush.bf16.msra.mxu0 %v2532
      %5123 = vmatpush.bf16.msra.mxu0 %v2524
      %5124 = vmatpush.bf16.msra.mxu0 %v2516
      %5125 = vmatpush.bf16.msra.mxu0 %v2508
      %5126 = vmatpush.bf16.msra.mxu0 %v2500
      %5127 = vmatpush.bf16.msra.mxu0 %v2492
      %5128 = vmatpush.bf16.msra.mxu0 %v2484
      %5129 = vmatmul.bf16.gmra.mxu0 %v4295
      %v5130 = vpop.f32.mrf.mxu0
      %v5131 = vadd.f32 %v5117, %v5130
      %v5132 = vpop.f32.mrf.mxu0
      %v5133 = vadd.f32 %v5119, %v5132
      %5134 = vdwg.mxu0
      %5135 = vmatpush.bf16.msra.mxu0 %v2604
      %5136 = vmatpush.bf16.msra.mxu0 %v2596
      %5137 = vmatpush.bf16.msra.mxu0 %v2588
      %5138 = vmatpush.bf16.msra.mxu0 %v2580
      %5139 = vmatpush.bf16.msra.mxu0 %v2572
      %5140 = vmatpush.bf16.msra.mxu0 %v2564
      %5141 = vmatpush.bf16.msra.mxu0 %v2556
      %5142 = vmatpush.bf16.msra.mxu0 %v2548
      %5143 = vmatmul.bf16.gmra.mxu0 %v4296
      %v5144 = vpop.f32.mrf.mxu0
      %v5145 = vadd.f32 %v5131, %v5144
      %v5146 = vpop.f32.mrf.mxu0
      %v5147 = vadd.f32 %v5133, %v5146
      %5148 = vdwg.mxu0
      %5149 = vmatpush.bf16.msra.mxu0 %v2668
      %5150 = vmatpush.bf16.msra.mxu0 %v2660
      %5151 = vmatpush.bf16.msra.mxu0 %v2652
      %5152 = vmatpush.bf16.msra.mxu0 %v2644
      %5153 = vmatpush.bf16.msra.mxu0 %v2636
      %5154 = vmatpush.bf16.msra.mxu0 %v2628
      %5155 = vmatpush.bf16.msra.mxu0 %v2620
      %5156 = vmatpush.bf16.msra.mxu0 %v2612
      %5157 = vmatmul.bf16.gmra.mxu0 %v4297
      %v5158 = vpop.f32.mrf.mxu0
      %v5159 = vadd.f32 %v5145, %v5158
      %v5160 = vpop.f32.mrf.mxu0
      %v5161 = vadd.f32 %v5147, %v5160
      %5162 = vdwg.mxu0
      %5163 = vmatpush.bf16.msra.mxu0 %v2732
      %5164 = vmatpush.bf16.msra.mxu0 %v2724
      %5165 = vmatpush.bf16.msra.mxu0 %v2716
      %5166 = vmatpush.bf16.msra.mxu0 %v2708
      %5167 = vmatpush.bf16.msra.mxu0 %v2700
      %5168 = vmatpush.bf16.msra.mxu0 %v2692
      %5169 = vmatpush.bf16.msra.mxu0 %v2684
      %5170 = vmatpush.bf16.msra.mxu0 %v2676
      %5171 = vmatmul.bf16.gmra.mxu0 %v4298
      %v5172 = vpop.f32.mrf.mxu0
      %v5173 = vadd.f32 %v5159, %v5172
      %v5174 = vpop.f32.mrf.mxu0
      %v5175 = vadd.f32 %v5161, %v5174
      %5176 = vdwg.mxu0
      %5177 = vmatpush.bf16.msra.mxu0 %v2796
      %5178 = vmatpush.bf16.msra.mxu0 %v2788
      %5179 = vmatpush.bf16.msra.mxu0 %v2780
      %5180 = vmatpush.bf16.msra.mxu0 %v2772
      %5181 = vmatpush.bf16.msra.mxu0 %v2764
      %5182 = vmatpush.bf16.msra.mxu0 %v2756
      %5183 = vmatpush.bf16.msra.mxu0 %v2748
      %5184 = vmatpush.bf16.msra.mxu0 %v2740
      %5185 = vmatmul.bf16.gmra.mxu0 %v4299
      %v5186 = vpop.f32.mrf.mxu0
      %v5187 = vadd.f32 %v5173, %v5186
      %v5188 = vpop.f32.mrf.mxu0
      %v5189 = vadd.f32 %v5175, %v5188
      %5190 = vdwg.mxu0
      %5191 = vmatpush.bf16.msra.mxu0 %v2860
      %5192 = vmatpush.bf16.msra.mxu0 %v2852
      %5193 = vmatpush.bf16.msra.mxu0 %v2844
      %5194 = vmatpush.bf16.msra.mxu0 %v2836
      %5195 = vmatpush.bf16.msra.mxu0 %v2828
      %5196 = vmatpush.bf16.msra.mxu0 %v2820
      %5197 = vmatpush.bf16.msra.mxu0 %v2812
      %5198 = vmatpush.bf16.msra.mxu0 %v2804
      %5199 = vmatmul.bf16.gmra.mxu0 %v4300
      %v5200 = vpop.f32.mrf.mxu0
      %v5201 = vadd.f32 %v5187, %v5200
      %v5202 = vpop.f32.mrf.mxu0
      %v5203 = vadd.f32 %v5189, %v5202
      %5204 = vdwg.mxu0
      %v5205 = vld [vmem:[%s2] sm:$0xff]
      %v5206 = vld [vmem:[%s2 + $0x8] sm:$0xff]
      %v5207 = vld [vmem:[%s2 + $0x10] sm:$0xff]
      %v5208 = vld [vmem:[%s2 + $0x18] sm:$0xff]
      %v5209 = vld [vmem:[%s2 + $0x20] sm:$0xff]
      %v5210 = vld [vmem:[%s2 + $0x28] sm:$0xff]
      %v5211 = vld [vmem:[%s2 + $0x30] sm:$0xff]
      %v5212 = vld [vmem:[%s2 + $0x38] sm:$0xff]
      %v5213 = vld [vmem:[%s2 + $0x40] sm:$0xff]
      %v5214 = vld [vmem:[%s2 + $0x48] sm:$0xff]
      %v5215 = vld [vmem:[%s2 + $0x50] sm:$0xff]
      %v5216 = vld [vmem:[%s2 + $0x58] sm:$0xff]
      %v5217 = vld [vmem:[%s2 + $0x60] sm:$0xff]
      %v5218 = vld [vmem:[%s2 + $0x68] sm:$0xff]
      %v5219 = vld [vmem:[%s2 + $0x70] sm:$0xff]
      %v5220 = vld [vmem:[%s2 + $0x78] sm:$0xff]
      %v5221 = vld [vmem:[%s2 + $0x80] sm:$0xff]
      %v5222 = vld [vmem:[%s2 + $0x88] sm:$0xff]
      %v5223 = vld [vmem:[%s2 + $0x90] sm:$0xff]
      %v5224 = vld [vmem:[%s2 + $0x98] sm:$0xff]
      %v5225 = vld [vmem:[%s2 + $0xa0] sm:$0xff]
      %v5226 = vld [vmem:[%s2 + $0xa8] sm:$0xff]
      %v5227 = vld [vmem:[%s2 + $0xb0] sm:$0xff]
      %v5228 = vld [vmem:[%s2 + $0xb8] sm:$0xff]
      %v5229 = vld [vmem:[%s2 + $0xc0] sm:$0xff]
      %v5230 = vld [vmem:[%s2 + $0xc8] sm:$0xff]
      %v5231 = vld [vmem:[%s2 + $0xd0] sm:$0xff]
      %v5232 = vld [vmem:[%s2 + $0xd8] sm:$0xff]
      %v5233 = vld [vmem:[%s2 + $0xe0] sm:$0xff]
      %v5234 = vld [vmem:[%s2 + $0xe8] sm:$0xff]
      %v5235 = vld [vmem:[%s2 + $0xf0] sm:$0xff]
      %v5236 = vld [vmem:[%s2 + $0xf8] sm:$0xff]
      %v5237 = vld [vmem:[%s2 + $0x100] sm:$0xff]
      %v5238 = vld [vmem:[%s2 + $0x108] sm:$0xff]
      %v5239 = vld [vmem:[%s2 + $0x110] sm:$0xff]
      %v5240 = vld [vmem:[%s2 + $0x118] sm:$0xff]
      %v5241 = vld [vmem:[%s2 + $0x120] sm:$0xff]
      %v5242 = vld [vmem:[%s2 + $0x128] sm:$0xff]
      %v5243 = vld [vmem:[%s2 + $0x130] sm:$0xff]
      %v5244 = vld [vmem:[%s2 + $0x138] sm:$0xff]
      %v5245 = vld [vmem:[%s2 + $0x140] sm:$0xff]
      %v5246 = vld [vmem:[%s2 + $0x148] sm:$0xff]
      %v5247 = vld [vmem:[%s2 + $0x150] sm:$0xff]
      %v5248 = vld [vmem:[%s2 + $0x158] sm:$0xff]
      %v5249 = vld [vmem:[%s2 + $0x160] sm:$0xff]
      %v5250 = vld [vmem:[%s2 + $0x168] sm:$0xff]
      %v5251 = vld [vmem:[%s2 + $0x170] sm:$0xff]
      %v5252 = vld [vmem:[%s2 + $0x178] sm:$0xff]
      %v5253 = vld [vmem:[%s2 + $0x180] sm:$0xff]
      %v5254 = vld [vmem:[%s2 + $0x188] sm:$0xff]
      %v5255 = vld [vmem:[%s2 + $0x190] sm:$0xff]
      %v5256 = vld [vmem:[%s2 + $0x198] sm:$0xff]
      %v5257 = vld [vmem:[%s2 + $0x1a0] sm:$0xff]
      %v5258 = vld [vmem:[%s2 + $0x1a8] sm:$0xff]
      %v5259 = vld [vmem:[%s2 + $0x1b0] sm:$0xff]
      %v5260 = vld [vmem:[%s2 + $0x1b8] sm:$0xff]
      %v5261 = vld [vmem:[%s2 + $0x1c0] sm:$0xff]
      %v5262 = vld [vmem:[%s2 + $0x1c8] sm:$0xff]
      %v5263 = vld [vmem:[%s2 + $0x1d0] sm:$0xff]
      %v5264 = vld [vmem:[%s2 + $0x1d8] sm:$0xff]
      %v5265 = vld [vmem:[%s2 + $0x1e0] sm:$0xff]
      %v5266 = vld [vmem:[%s2 + $0x1e8] sm:$0xff]
      %v5267 = vld [vmem:[%s2 + $0x1f0] sm:$0xff]
      %v5268 = vld [vmem:[%s2 + $0x1f8] sm:$0xff]
      %v5269 = vld [vmem:[%s2 + $0x200] sm:$0xff]
      %v5270 = vld [vmem:[%s2 + $0x208] sm:$0xff]
      %v5271 = vld [vmem:[%s2 + $0x210] sm:$0xff]
      %v5272 = vld [vmem:[%s2 + $0x218] sm:$0xff]
      %v5273 = vld [vmem:[%s2 + $0x220] sm:$0xff]
      %v5274 = vld [vmem:[%s2 + $0x228] sm:$0xff]
      %v5275 = vld [vmem:[%s2 + $0x230] sm:$0xff]
      %v5276 = vld [vmem:[%s2 + $0x238] sm:$0xff]
      %v5277 = vld [vmem:[%s2 + $0x240] sm:$0xff]
      %v5278 = vld [vmem:[%s2 + $0x248] sm:$0xff]
      %v5279 = vld [vmem:[%s2 + $0x250] sm:$0xff]
      %v5280 = vld [vmem:[%s2 + $0x258] sm:$0xff]
      %v5281 = vld [vmem:[%s2 + $0x260] sm:$0xff]
      %v5282 = vld [vmem:[%s2 + $0x268] sm:$0xff]
      %v5283 = vld [vmem:[%s2 + $0x270] sm:$0xff]
      %v5284 = vld [vmem:[%s2 + $0x278] sm:$0xff]
      %v5285 = vld [vmem:[%s2 + $0x280] sm:$0xff]
      %v5286 = vld [vmem:[%s2 + $0x288] sm:$0xff]
      %v5287 = vld [vmem:[%s2 + $0x290] sm:$0xff]
      %v5288 = vld [vmem:[%s2 + $0x298] sm:$0xff]
      %v5289 = vld [vmem:[%s2 + $0x2a0] sm:$0xff]
      %v5290 = vld [vmem:[%s2 + $0x2a8] sm:$0xff]
      %v5291 = vld [vmem:[%s2 + $0x2b0] sm:$0xff]
      %v5292 = vld [vmem:[%s2 + $0x2b8] sm:$0xff]
      %v5293 = vld [vmem:[%s2 + $0x2c0] sm:$0xff]
      %v5294 = vld [vmem:[%s2 + $0x2c8] sm:$0xff]
      %v5295 = vld [vmem:[%s2 + $0x2d0] sm:$0xff]
      %v5296 = vld [vmem:[%s2 + $0x2d8] sm:$0xff]
      %v5297 = vld [vmem:[%s2 + $0x2e0] sm:$0xff]
      %v5298 = vld [vmem:[%s2 + $0x2e8] sm:$0xff]
      %v5299 = vld [vmem:[%s2 + $0x2f0] sm:$0xff]
      %v5300 = vld [vmem:[%s2 + $0x2f8] sm:$0xff]
      %v5301 = vld [vmem:[%s2 + $0x300] sm:$0xff]
      %v5302 = vld [vmem:[%s2 + $0x308] sm:$0xff]
      %v5303 = vld [vmem:[%s2 + $0x310] sm:$0xff]
      %v5304 = vld [vmem:[%s2 + $0x318] sm:$0xff]
      %v5305 = vld [vmem:[%s2 + $0x320] sm:$0xff]
      %v5306 = vld [vmem:[%s2 + $0x328] sm:$0xff]
      %v5307 = vld [vmem:[%s2 + $0x330] sm:$0xff]
      %v5308 = vld [vmem:[%s2 + $0x338] sm:$0xff]
      %v5309 = vld [vmem:[%s2 + $0x340] sm:$0xff]
      %v5310 = vld [vmem:[%s2 + $0x348] sm:$0xff]
      %v5311 = vld [vmem:[%s2 + $0x350] sm:$0xff]
      %v5312 = vld [vmem:[%s2 + $0x358] sm:$0xff]
      %v5313 = vld [vmem:[%s2 + $0x360] sm:$0xff]
      %v5314 = vld [vmem:[%s2 + $0x368] sm:$0xff]
      %v5315 = vld [vmem:[%s2 + $0x370] sm:$0xff]
      %v5316 = vld [vmem:[%s2 + $0x378] sm:$0xff]
      %v5317 = vld [vmem:[%s2 + $0x380] sm:$0xff]
      %v5318 = vld [vmem:[%s2 + $0x388] sm:$0xff]
      %v5319 = vld [vmem:[%s2 + $0x390] sm:$0xff]
      %v5320 = vld [vmem:[%s2 + $0x398] sm:$0xff]
      %v5321 = vld [vmem:[%s2 + $0x3a0] sm:$0xff]
      %v5322 = vld [vmem:[%s2 + $0x3a8] sm:$0xff]
      %v5323 = vld [vmem:[%s2 + $0x3b0] sm:$0xff]
      %v5324 = vld [vmem:[%s2 + $0x3b8] sm:$0xff]
      %v5325 = vld [vmem:[%s2 + $0x3c0] sm:$0xff]
      %v5326 = vld [vmem:[%s2 + $0x3c8] sm:$0xff]
      %v5327 = vld [vmem:[%s2 + $0x3d0] sm:$0xff]
      %v5328 = vld [vmem:[%s2 + $0x3d8] sm:$0xff]
      %v5329 = vld [vmem:[%s2 + $0x3e0] sm:$0xff]
      %v5330 = vld [vmem:[%s2 + $0x3e8] sm:$0xff]
      %v5331 = vld [vmem:[%s2 + $0x3f0] sm:$0xff]
      %v5332 = vld [vmem:[%s2 + $0x3f8] sm:$0xff]
      %v5333 = vld [vmem:[%s2 + $0x400] sm:$0xff]
      %v5334 = vld [vmem:[%s2 + $0x408] sm:$0xff]
      %v5335 = vld [vmem:[%s2 + $0x410] sm:$0xff]
      %v5336 = vld [vmem:[%s2 + $0x418] sm:$0xff]
      %v5337 = vld [vmem:[%s2 + $0x420] sm:$0xff]
      %v5338 = vld [vmem:[%s2 + $0x428] sm:$0xff]
      %v5339 = vld [vmem:[%s2 + $0x430] sm:$0xff]
      %v5340 = vld [vmem:[%s2 + $0x438] sm:$0xff]
      %v5341 = vld [vmem:[%s2 + $0x440] sm:$0xff]
      %v5342 = vld [vmem:[%s2 + $0x448] sm:$0xff]
      %v5343 = vld [vmem:[%s2 + $0x450] sm:$0xff]
      %v5344 = vld [vmem:[%s2 + $0x458] sm:$0xff]
      %v5345 = vld [vmem:[%s2 + $0x460] sm:$0xff]
      %v5346 = vld [vmem:[%s2 + $0x468] sm:$0xff]
      %v5347 = vld [vmem:[%s2 + $0x470] sm:$0xff]
      %v5348 = vld [vmem:[%s2 + $0x478] sm:$0xff]
      %v5349 = vld [vmem:[%s2 + $0x480] sm:$0xff]
      %v5350 = vld [vmem:[%s2 + $0x488] sm:$0xff]
      %v5351 = vld [vmem:[%s2 + $0x490] sm:$0xff]
      %v5352 = vld [vmem:[%s2 + $0x498] sm:$0xff]
      %v5353 = vld [vmem:[%s2 + $0x4a0] sm:$0xff]
      %v5354 = vld [vmem:[%s2 + $0x4a8] sm:$0xff]
      %v5355 = vld [vmem:[%s2 + $0x4b0] sm:$0xff]
      %v5356 = vld [vmem:[%s2 + $0x4b8] sm:$0xff]
      %v5357 = vld [vmem:[%s2 + $0x4c0] sm:$0xff]
      %v5358 = vld [vmem:[%s2 + $0x4c8] sm:$0xff]
      %v5359 = vld [vmem:[%s2 + $0x4d0] sm:$0xff]
      %v5360 = vld [vmem:[%s2 + $0x4d8] sm:$0xff]
      %v5361 = vld [vmem:[%s2 + $0x4e0] sm:$0xff]
      %v5362 = vld [vmem:[%s2 + $0x4e8] sm:$0xff]
      %v5363 = vld [vmem:[%s2 + $0x4f0] sm:$0xff]
      %v5364 = vld [vmem:[%s2 + $0x4f8] sm:$0xff]
      %v5365 = vld [vmem:[%s2 + $0x500] sm:$0xff]
      %v5366 = vld [vmem:[%s2 + $0x508] sm:$0xff]
      %v5367 = vld [vmem:[%s2 + $0x510] sm:$0xff]
      %v5368 = vld [vmem:[%s2 + $0x518] sm:$0xff]
      %v5369 = vld [vmem:[%s2 + $0x520] sm:$0xff]
      %v5370 = vld [vmem:[%s2 + $0x528] sm:$0xff]
      %v5371 = vld [vmem:[%s2 + $0x530] sm:$0xff]
      %v5372 = vld [vmem:[%s2 + $0x538] sm:$0xff]
      %v5373 = vld [vmem:[%s2 + $0x540] sm:$0xff]
      %v5374 = vld [vmem:[%s2 + $0x548] sm:$0xff]
      %v5375 = vld [vmem:[%s2 + $0x550] sm:$0xff]
      %v5376 = vld [vmem:[%s2 + $0x558] sm:$0xff]
      %v5377 = vld [vmem:[%s2 + $0x560] sm:$0xff]
      %v5378 = vld [vmem:[%s2 + $0x568] sm:$0xff]
      %v5379 = vld [vmem:[%s2 + $0x570] sm:$0xff]
      %v5380 = vld [vmem:[%s2 + $0x578] sm:$0xff]
      %v5381 = vld [vmem:[%s2 + $0x580] sm:$0xff]
      %v5382 = vld [vmem:[%s2 + $0x588] sm:$0xff]
      %v5383 = vld [vmem:[%s2 + $0x590] sm:$0xff]
      %v5384 = vld [vmem:[%s2 + $0x598] sm:$0xff]
      %v5385 = vld [vmem:[%s2 + $0x5a0] sm:$0xff]
      %v5386 = vld [vmem:[%s2 + $0x5a8] sm:$0xff]
      %v5387 = vld [vmem:[%s2 + $0x5b0] sm:$0xff]
      %v5388 = vld [vmem:[%s2 + $0x5b8] sm:$0xff]
      %v5389 = vld [vmem:[%s2 + $0x5c0] sm:$0xff]
      %v5390 = vld [vmem:[%s2 + $0x5c8] sm:$0xff]
      %v5391 = vld [vmem:[%s2 + $0x5d0] sm:$0xff]
      %v5392 = vld [vmem:[%s2 + $0x5d8] sm:$0xff]
      %v5393 = vld [vmem:[%s2 + $0x5e0] sm:$0xff]
      %v5394 = vld [vmem:[%s2 + $0x5e8] sm:$0xff]
      %v5395 = vld [vmem:[%s2 + $0x5f0] sm:$0xff]
      %v5396 = vld [vmem:[%s2 + $0x5f8] sm:$0xff]
      %v5397 = vld [vmem:[%s2 + $0x600] sm:$0xff]
      %v5398 = vld [vmem:[%s2 + $0x608] sm:$0xff]
      %v5399 = vld [vmem:[%s2 + $0x610] sm:$0xff]
      %v5400 = vld [vmem:[%s2 + $0x618] sm:$0xff]
      %v5401 = vld [vmem:[%s2 + $0x620] sm:$0xff]
      %v5402 = vld [vmem:[%s2 + $0x628] sm:$0xff]
      %v5403 = vld [vmem:[%s2 + $0x630] sm:$0xff]
      %v5404 = vld [vmem:[%s2 + $0x638] sm:$0xff]
      %v5405 = vld [vmem:[%s2 + $0x640] sm:$0xff]
      %v5406 = vld [vmem:[%s2 + $0x648] sm:$0xff]
      %v5407 = vld [vmem:[%s2 + $0x650] sm:$0xff]
      %v5408 = vld [vmem:[%s2 + $0x658] sm:$0xff]
      %v5409 = vld [vmem:[%s2 + $0x660] sm:$0xff]
      %v5410 = vld [vmem:[%s2 + $0x668] sm:$0xff]
      %v5411 = vld [vmem:[%s2 + $0x670] sm:$0xff]
      %v5412 = vld [vmem:[%s2 + $0x678] sm:$0xff]
      %v5413 = vld [vmem:[%s2 + $0x680] sm:$0xff]
      %v5414 = vld [vmem:[%s2 + $0x688] sm:$0xff]
      %v5415 = vld [vmem:[%s2 + $0x690] sm:$0xff]
      %v5416 = vld [vmem:[%s2 + $0x698] sm:$0xff]
      %v5417 = vld [vmem:[%s2 + $0x6a0] sm:$0xff]
      %v5418 = vld [vmem:[%s2 + $0x6a8] sm:$0xff]
      %v5419 = vld [vmem:[%s2 + $0x6b0] sm:$0xff]
      %v5420 = vld [vmem:[%s2 + $0x6b8] sm:$0xff]
      %v5421 = vld [vmem:[%s2 + $0x6c0] sm:$0xff]
      %v5422 = vld [vmem:[%s2 + $0x6c8] sm:$0xff]
      %v5423 = vld [vmem:[%s2 + $0x6d0] sm:$0xff]
      %v5424 = vld [vmem:[%s2 + $0x6d8] sm:$0xff]
      %v5425 = vld [vmem:[%s2 + $0x6e0] sm:$0xff]
      %v5426 = vld [vmem:[%s2 + $0x6e8] sm:$0xff]
      %v5427 = vld [vmem:[%s2 + $0x6f0] sm:$0xff]
      %v5428 = vld [vmem:[%s2 + $0x6f8] sm:$0xff]
      %v5429 = vld [vmem:[%s2 + $0x700] sm:$0xff]
      %v5430 = vld [vmem:[%s2 + $0x708] sm:$0xff]
      %v5431 = vld [vmem:[%s2 + $0x710] sm:$0xff]
      %v5432 = vld [vmem:[%s2 + $0x718] sm:$0xff]
      %v5433 = vld [vmem:[%s2 + $0x720] sm:$0xff]
      %v5434 = vld [vmem:[%s2 + $0x728] sm:$0xff]
      %v5435 = vld [vmem:[%s2 + $0x730] sm:$0xff]
      %v5436 = vld [vmem:[%s2 + $0x738] sm:$0xff]
      %v5437 = vld [vmem:[%s2 + $0x740] sm:$0xff]
      %v5438 = vld [vmem:[%s2 + $0x748] sm:$0xff]
      %v5439 = vld [vmem:[%s2 + $0x750] sm:$0xff]
      %v5440 = vld [vmem:[%s2 + $0x758] sm:$0xff]
      %v5441 = vld [vmem:[%s2 + $0x760] sm:$0xff]
      %v5442 = vld [vmem:[%s2 + $0x768] sm:$0xff]
      %v5443 = vld [vmem:[%s2 + $0x770] sm:$0xff]
      %v5444 = vld [vmem:[%s2 + $0x778] sm:$0xff]
      %v5445 = vld [vmem:[%s2 + $0x780] sm:$0xff]
      %v5446 = vld [vmem:[%s2 + $0x788] sm:$0xff]
      %v5447 = vld [vmem:[%s2 + $0x790] sm:$0xff]
      %v5448 = vld [vmem:[%s2 + $0x798] sm:$0xff]
      %v5449 = vld [vmem:[%s2 + $0x7a0] sm:$0xff]
      %v5450 = vld [vmem:[%s2 + $0x7a8] sm:$0xff]
      %v5451 = vld [vmem:[%s2 + $0x7b0] sm:$0xff]
      %v5452 = vld [vmem:[%s2 + $0x7b8] sm:$0xff]
      %v5453 = vld [vmem:[%s2 + $0x7c0] sm:$0xff]
      %v5454 = vld [vmem:[%s2 + $0x7c8] sm:$0xff]
      %v5455 = vld [vmem:[%s2 + $0x7d0] sm:$0xff]
      %v5456 = vld [vmem:[%s2 + $0x7d8] sm:$0xff]
      %v5457 = vld [vmem:[%s2 + $0x7e0] sm:$0xff]
      %v5458 = vld [vmem:[%s2 + $0x7e8] sm:$0xff]
      %v5459 = vld [vmem:[%s2 + $0x7f0] sm:$0xff]
      %v5460 = vld [vmem:[%s2 + $0x7f8] sm:$0xff]
      %v5461 = vld [vmem:[%s2 + $0x800] sm:$0xff]
      %v5462 = vld [vmem:[%s2 + $0x808] sm:$0xff]
      %v5463 = vld [vmem:[%s2 + $0x810] sm:$0xff]
      %v5464 = vld [vmem:[%s2 + $0x818] sm:$0xff]
      %v5465 = vld [vmem:[%s2 + $0x820] sm:$0xff]
      %v5466 = vld [vmem:[%s2 + $0x828] sm:$0xff]
      %v5467 = vld [vmem:[%s2 + $0x830] sm:$0xff]
      %v5468 = vld [vmem:[%s2 + $0x838] sm:$0xff]
      %v5469 = vld [vmem:[%s2 + $0x840] sm:$0xff]
      %v5470 = vld [vmem:[%s2 + $0x848] sm:$0xff]
      %v5471 = vld [vmem:[%s2 + $0x850] sm:$0xff]
      %v5472 = vld [vmem:[%s2 + $0x858] sm:$0xff]
      %v5473 = vld [vmem:[%s2 + $0x860] sm:$0xff]
      %v5474 = vld [vmem:[%s2 + $0x868] sm:$0xff]
      %v5475 = vld [vmem:[%s2 + $0x870] sm:$0xff]
      %v5476 = vld [vmem:[%s2 + $0x878] sm:$0xff]
      %v5477 = vld [vmem:[%s2 + $0x880] sm:$0xff]
      %v5478 = vld [vmem:[%s2 + $0x888] sm:$0xff]
      %v5479 = vld [vmem:[%s2 + $0x890] sm:$0xff]
      %v5480 = vld [vmem:[%s2 + $0x898] sm:$0xff]
      %v5481 = vld [vmem:[%s2 + $0x8a0] sm:$0xff]
      %v5482 = vld [vmem:[%s2 + $0x8a8] sm:$0xff]
      %v5483 = vld [vmem:[%s2 + $0x8b0] sm:$0xff]
      %v5484 = vld [vmem:[%s2 + $0x8b8] sm:$0xff]
      %v5485 = vld [vmem:[%s2 + $0x8c0] sm:$0xff]
      %v5486 = vld [vmem:[%s2 + $0x8c8] sm:$0xff]
      %v5487 = vld [vmem:[%s2 + $0x8d0] sm:$0xff]
      %v5488 = vld [vmem:[%s2 + $0x8d8] sm:$0xff]
      %v5489 = vld [vmem:[%s2 + $0x8e0] sm:$0xff]
      %v5490 = vld [vmem:[%s2 + $0x8e8] sm:$0xff]
      %v5491 = vld [vmem:[%s2 + $0x8f0] sm:$0xff]
      %v5492 = vld [vmem:[%s2 + $0x8f8] sm:$0xff]
      %v5493 = vld [vmem:[%s2 + $0x900] sm:$0xff]
      %v5494 = vld [vmem:[%s2 + $0x908] sm:$0xff]
      %v5495 = vld [vmem:[%s2 + $0x910] sm:$0xff]
      %v5496 = vld [vmem:[%s2 + $0x918] sm:$0xff]
      %v5497 = vld [vmem:[%s2 + $0x920] sm:$0xff]
      %v5498 = vld [vmem:[%s2 + $0x928] sm:$0xff]
      %v5499 = vld [vmem:[%s2 + $0x930] sm:$0xff]
      %v5500 = vld [vmem:[%s2 + $0x938] sm:$0xff]
      %v5501 = vld [vmem:[%s2 + $0x940] sm:$0xff]
      %v5502 = vld [vmem:[%s2 + $0x948] sm:$0xff]
      %v5503 = vld [vmem:[%s2 + $0x950] sm:$0xff]
      %v5504 = vld [vmem:[%s2 + $0x958] sm:$0xff]
      %v5505 = vld [vmem:[%s2 + $0x960] sm:$0xff]
      %v5506 = vld [vmem:[%s2 + $0x968] sm:$0xff]
      %v5507 = vld [vmem:[%s2 + $0x970] sm:$0xff]
      %v5508 = vld [vmem:[%s2 + $0x978] sm:$0xff]
      %v5509 = vld [vmem:[%s2 + $0x980] sm:$0xff]
      %v5510 = vld [vmem:[%s2 + $0x988] sm:$0xff]
      %v5511 = vld [vmem:[%s2 + $0x990] sm:$0xff]
      %v5512 = vld [vmem:[%s2 + $0x998] sm:$0xff]
      %v5513 = vld [vmem:[%s2 + $0x9a0] sm:$0xff]
      %v5514 = vld [vmem:[%s2 + $0x9a8] sm:$0xff]
      %v5515 = vld [vmem:[%s2 + $0x9b0] sm:$0xff]
      %v5516 = vld [vmem:[%s2 + $0x9b8] sm:$0xff]
      %v5517 = vld [vmem:[%s2 + $0x9c0] sm:$0xff]
      %v5518 = vld [vmem:[%s2 + $0x9c8] sm:$0xff]
      %v5519 = vld [vmem:[%s2 + $0x9d0] sm:$0xff]
      %v5520 = vld [vmem:[%s2 + $0x9d8] sm:$0xff]
      %v5521 = vld [vmem:[%s2 + $0x9e0] sm:$0xff]
      %v5522 = vld [vmem:[%s2 + $0x9e8] sm:$0xff]
      %v5523 = vld [vmem:[%s2 + $0x9f0] sm:$0xff]
      %v5524 = vld [vmem:[%s2 + $0x9f8] sm:$0xff]
      %v5525 = vld [vmem:[%s2 + $0xa00] sm:$0xff]
      %v5526 = vld [vmem:[%s2 + $0xa08] sm:$0xff]
      %v5527 = vld [vmem:[%s2 + $0xa10] sm:$0xff]
      %v5528 = vld [vmem:[%s2 + $0xa18] sm:$0xff]
      %v5529 = vld [vmem:[%s2 + $0xa20] sm:$0xff]
      %v5530 = vld [vmem:[%s2 + $0xa28] sm:$0xff]
      %v5531 = vld [vmem:[%s2 + $0xa30] sm:$0xff]
      %v5532 = vld [vmem:[%s2 + $0xa38] sm:$0xff]
      %v5533 = vld [vmem:[%s2 + $0xa40] sm:$0xff]
      %v5534 = vld [vmem:[%s2 + $0xa48] sm:$0xff]
      %v5535 = vld [vmem:[%s2 + $0xa50] sm:$0xff]
      %v5536 = vld [vmem:[%s2 + $0xa58] sm:$0xff]
      %v5537 = vld [vmem:[%s2 + $0xa60] sm:$0xff]
      %v5538 = vld [vmem:[%s2 + $0xa68] sm:$0xff]
      %v5539 = vld [vmem:[%s2 + $0xa70] sm:$0xff]
      %v5540 = vld [vmem:[%s2 + $0xa78] sm:$0xff]
      %v5541 = vld [vmem:[%s2 + $0xa80] sm:$0xff]
      %v5542 = vld [vmem:[%s2 + $0xa88] sm:$0xff]
      %v5543 = vld [vmem:[%s2 + $0xa90] sm:$0xff]
      %v5544 = vld [vmem:[%s2 + $0xa98] sm:$0xff]
      %v5545 = vld [vmem:[%s2 + $0xaa0] sm:$0xff]
      %v5546 = vld [vmem:[%s2 + $0xaa8] sm:$0xff]
      %v5547 = vld [vmem:[%s2 + $0xab0] sm:$0xff]
      %v5548 = vld [vmem:[%s2 + $0xab8] sm:$0xff]
      %v5549 = vld [vmem:[%s2 + $0xac0] sm:$0xff]
      %v5550 = vld [vmem:[%s2 + $0xac8] sm:$0xff]
      %v5551 = vld [vmem:[%s2 + $0xad0] sm:$0xff]
      %v5552 = vld [vmem:[%s2 + $0xad8] sm:$0xff]
      %v5553 = vld [vmem:[%s2 + $0xae0] sm:$0xff]
      %v5554 = vld [vmem:[%s2 + $0xae8] sm:$0xff]
      %v5555 = vld [vmem:[%s2 + $0xaf0] sm:$0xff]
      %v5556 = vld [vmem:[%s2 + $0xaf8] sm:$0xff]
      %v5557 = vld [vmem:[%s2 + $0xb00] sm:$0xff]
      %v5558 = vld [vmem:[%s2 + $0xb08] sm:$0xff]
      %v5559 = vld [vmem:[%s2 + $0xb10] sm:$0xff]
      %v5560 = vld [vmem:[%s2 + $0xb18] sm:$0xff]
      %v5561 = vld [vmem:[%s2 + $0xb20] sm:$0xff]
      %v5562 = vld [vmem:[%s2 + $0xb28] sm:$0xff]
      %v5563 = vld [vmem:[%s2 + $0xb30] sm:$0xff]
      %v5564 = vld [vmem:[%s2 + $0xb38] sm:$0xff]
      %v5565 = vld [vmem:[%s2 + $0xb40] sm:$0xff]
      %v5566 = vld [vmem:[%s2 + $0xb48] sm:$0xff]
      %v5567 = vld [vmem:[%s2 + $0xb50] sm:$0xff]
      %v5568 = vld [vmem:[%s2 + $0xb58] sm:$0xff]
      %v5569 = vld [vmem:[%s2 + $0xb60] sm:$0xff]
      %v5570 = vld [vmem:[%s2 + $0xb68] sm:$0xff]
      %v5571 = vld [vmem:[%s2 + $0xb70] sm:$0xff]
      %v5572 = vld [vmem:[%s2 + $0xb78] sm:$0xff]
      %v5573 = vld [vmem:[%s2 + $0xb80] sm:$0xff]
      %v5574 = vld [vmem:[%s2 + $0xb88] sm:$0xff]
      %v5575 = vld [vmem:[%s2 + $0xb90] sm:$0xff]
      %v5576 = vld [vmem:[%s2 + $0xb98] sm:$0xff]
      %v5577 = vld [vmem:[%s2 + $0xba0] sm:$0xff]
      %v5578 = vld [vmem:[%s2 + $0xba8] sm:$0xff]
      %v5579 = vld [vmem:[%s2 + $0xbb0] sm:$0xff]
      %v5580 = vld [vmem:[%s2 + $0xbb8] sm:$0xff]
      %v5581 = vld [vmem:[%s2 + $0xbc0] sm:$0xff]
      %v5582 = vld [vmem:[%s2 + $0xbc8] sm:$0xff]
      %v5583 = vld [vmem:[%s2 + $0xbd0] sm:$0xff]
      %v5584 = vld [vmem:[%s2 + $0xbd8] sm:$0xff]
      %v5585 = vld [vmem:[%s2 + $0xbe0] sm:$0xff]
      %v5586 = vld [vmem:[%s2 + $0xbe8] sm:$0xff]
      %v5587 = vld [vmem:[%s2 + $0xbf0] sm:$0xff]
      %v5588 = vld [vmem:[%s2 + $0xbf8] sm:$0xff]
      %v5589 = vld [vmem:[%s2 + $0xc00] sm:$0xff]
      %v5590 = vld [vmem:[%s2 + $0xc08] sm:$0xff]
      %v5591 = vld [vmem:[%s2 + $0xc10] sm:$0xff]
      %v5592 = vld [vmem:[%s2 + $0xc18] sm:$0xff]
      %v5593 = vld [vmem:[%s2 + $0xc20] sm:$0xff]
      %v5594 = vld [vmem:[%s2 + $0xc28] sm:$0xff]
      %v5595 = vld [vmem:[%s2 + $0xc30] sm:$0xff]
      %v5596 = vld [vmem:[%s2 + $0xc38] sm:$0xff]
      %v5597 = vld [vmem:[%s2 + $0xc40] sm:$0xff]
      %v5598 = vld [vmem:[%s2 + $0xc48] sm:$0xff]
      %v5599 = vld [vmem:[%s2 + $0xc50] sm:$0xff]
      %v5600 = vld [vmem:[%s2 + $0xc58] sm:$0xff]
      %v5601 = vld [vmem:[%s2 + $0xc60] sm:$0xff]
      %v5602 = vld [vmem:[%s2 + $0xc68] sm:$0xff]
      %v5603 = vld [vmem:[%s2 + $0xc70] sm:$0xff]
      %v5604 = vld [vmem:[%s2 + $0xc78] sm:$0xff]
      %v5605 = vld [vmem:[%s2 + $0xc80] sm:$0xff]
      %v5606 = vld [vmem:[%s2 + $0xc88] sm:$0xff]
      %v5607 = vld [vmem:[%s2 + $0xc90] sm:$0xff]
      %v5608 = vld [vmem:[%s2 + $0xc98] sm:$0xff]
      %v5609 = vld [vmem:[%s2 + $0xca0] sm:$0xff]
      %v5610 = vld [vmem:[%s2 + $0xca8] sm:$0xff]
      %v5611 = vld [vmem:[%s2 + $0xcb0] sm:$0xff]
      %v5612 = vld [vmem:[%s2 + $0xcb8] sm:$0xff]
      %v5613 = vld [vmem:[%s2 + $0xcc0] sm:$0xff]
      %v5614 = vld [vmem:[%s2 + $0xcc8] sm:$0xff]
      %v5615 = vld [vmem:[%s2 + $0xcd0] sm:$0xff]
      %v5616 = vld [vmem:[%s2 + $0xcd8] sm:$0xff]
      %v5617 = vld [vmem:[%s2 + $0xce0] sm:$0xff]
      %v5618 = vld [vmem:[%s2 + $0xce8] sm:$0xff]
      %v5619 = vld [vmem:[%s2 + $0xcf0] sm:$0xff]
      %v5620 = vld [vmem:[%s2 + $0xcf8] sm:$0xff]
      %v5621 = vld [vmem:[%s2 + $0xd00] sm:$0xff]
      %v5622 = vld [vmem:[%s2 + $0xd08] sm:$0xff]
      %v5623 = vld [vmem:[%s2 + $0xd10] sm:$0xff]
      %v5624 = vld [vmem:[%s2 + $0xd18] sm:$0xff]
      %v5625 = vld [vmem:[%s2 + $0xd20] sm:$0xff]
      %v5626 = vld [vmem:[%s2 + $0xd28] sm:$0xff]
      %v5627 = vld [vmem:[%s2 + $0xd30] sm:$0xff]
      %v5628 = vld [vmem:[%s2 + $0xd38] sm:$0xff]
      %v5629 = vld [vmem:[%s2 + $0xd40] sm:$0xff]
      %v5630 = vld [vmem:[%s2 + $0xd48] sm:$0xff]
      %v5631 = vld [vmem:[%s2 + $0xd50] sm:$0xff]
      %v5632 = vld [vmem:[%s2 + $0xd58] sm:$0xff]
      %v5633 = vld [vmem:[%s2 + $0xd60] sm:$0xff]
      %v5634 = vld [vmem:[%s2 + $0xd68] sm:$0xff]
      %v5635 = vld [vmem:[%s2 + $0xd70] sm:$0xff]
      %v5636 = vld [vmem:[%s2 + $0xd78] sm:$0xff]
      %v5637 = vld [vmem:[%s2 + $0xd80] sm:$0xff]
      %v5638 = vld [vmem:[%s2 + $0xd88] sm:$0xff]
      %v5639 = vld [vmem:[%s2 + $0xd90] sm:$0xff]
      %v5640 = vld [vmem:[%s2 + $0xd98] sm:$0xff]
      %v5641 = vld [vmem:[%s2 + $0xda0] sm:$0xff]
      %v5642 = vld [vmem:[%s2 + $0xda8] sm:$0xff]
      %v5643 = vld [vmem:[%s2 + $0xdb0] sm:$0xff]
      %v5644 = vld [vmem:[%s2 + $0xdb8] sm:$0xff]
      %v5645 = vld [vmem:[%s2 + $0xdc0] sm:$0xff]
      %v5646 = vld [vmem:[%s2 + $0xdc8] sm:$0xff]
      %v5647 = vld [vmem:[%s2 + $0xdd0] sm:$0xff]
      %v5648 = vld [vmem:[%s2 + $0xdd8] sm:$0xff]
      %v5649 = vld [vmem:[%s2 + $0xde0] sm:$0xff]
      %v5650 = vld [vmem:[%s2 + $0xde8] sm:$0xff]
      %v5651 = vld [vmem:[%s2 + $0xdf0] sm:$0xff]
      %v5652 = vld [vmem:[%s2 + $0xdf8] sm:$0xff]
      %v5653 = vld [vmem:[%s2 + $0xe00] sm:$0xff]
      %v5654 = vld [vmem:[%s2 + $0xe08] sm:$0xff]
      %v5655 = vld [vmem:[%s2 + $0xe10] sm:$0xff]
      %v5656 = vld [vmem:[%s2 + $0xe18] sm:$0xff]
      %v5657 = vld [vmem:[%s2 + $0xe20] sm:$0xff]
      %v5658 = vld [vmem:[%s2 + $0xe28] sm:$0xff]
      %v5659 = vld [vmem:[%s2 + $0xe30] sm:$0xff]
      %v5660 = vld [vmem:[%s2 + $0xe38] sm:$0xff]
      %v5661 = vld [vmem:[%s2 + $0xe40] sm:$0xff]
      %v5662 = vld [vmem:[%s2 + $0xe48] sm:$0xff]
      %v5663 = vld [vmem:[%s2 + $0xe50] sm:$0xff]
      %v5664 = vld [vmem:[%s2 + $0xe58] sm:$0xff]
      %v5665 = vld [vmem:[%s2 + $0xe60] sm:$0xff]
      %v5666 = vld [vmem:[%s2 + $0xe68] sm:$0xff]
      %v5667 = vld [vmem:[%s2 + $0xe70] sm:$0xff]
      %v5668 = vld [vmem:[%s2 + $0xe78] sm:$0xff]
      %v5669 = vld [vmem:[%s2 + $0xe80] sm:$0xff]
      %v5670 = vld [vmem:[%s2 + $0xe88] sm:$0xff]
      %v5671 = vld [vmem:[%s2 + $0xe90] sm:$0xff]
      %v5672 = vld [vmem:[%s2 + $0xe98] sm:$0xff]
      %v5673 = vld [vmem:[%s2 + $0xea0] sm:$0xff]
      %v5674 = vld [vmem:[%s2 + $0xea8] sm:$0xff]
      %v5675 = vld [vmem:[%s2 + $0xeb0] sm:$0xff]
      %v5676 = vld [vmem:[%s2 + $0xeb8] sm:$0xff]
      %v5677 = vld [vmem:[%s2 + $0xec0] sm:$0xff]
      %v5678 = vld [vmem:[%s2 + $0xec8] sm:$0xff]
      %v5679 = vld [vmem:[%s2 + $0xed0] sm:$0xff]
      %v5680 = vld [vmem:[%s2 + $0xed8] sm:$0xff]
      %v5681 = vld [vmem:[%s2 + $0xee0] sm:$0xff]
      %v5682 = vld [vmem:[%s2 + $0xee8] sm:$0xff]
      %v5683 = vld [vmem:[%s2 + $0xef0] sm:$0xff]
      %v5684 = vld [vmem:[%s2 + $0xef8] sm:$0xff]
      %v5685 = vld [vmem:[%s2 + $0xf00] sm:$0xff]
      %v5686 = vld [vmem:[%s2 + $0xf08] sm:$0xff]
      %v5687 = vld [vmem:[%s2 + $0xf10] sm:$0xff]
      %v5688 = vld [vmem:[%s2 + $0xf18] sm:$0xff]
      %v5689 = vld [vmem:[%s2 + $0xf20] sm:$0xff]
      %v5690 = vld [vmem:[%s2 + $0xf28] sm:$0xff]
      %v5691 = vld [vmem:[%s2 + $0xf30] sm:$0xff]
      %v5692 = vld [vmem:[%s2 + $0xf38] sm:$0xff]
      %v5693 = vld [vmem:[%s2 + $0xf40] sm:$0xff]
      %v5694 = vld [vmem:[%s2 + $0xf48] sm:$0xff]
      %v5695 = vld [vmem:[%s2 + $0xf50] sm:$0xff]
      %v5696 = vld [vmem:[%s2 + $0xf58] sm:$0xff]
      %v5697 = vld [vmem:[%s2 + $0xf60] sm:$0xff]
      %v5698 = vld [vmem:[%s2 + $0xf68] sm:$0xff]
      %v5699 = vld [vmem:[%s2 + $0xf70] sm:$0xff]
      %v5700 = vld [vmem:[%s2 + $0xf78] sm:$0xff]
      %v5701 = vld [vmem:[%s2 + $0xf80] sm:$0xff]
      %v5702 = vld [vmem:[%s2 + $0xf88] sm:$0xff]
      %v5703 = vld [vmem:[%s2 + $0xf90] sm:$0xff]
      %v5704 = vld [vmem:[%s2 + $0xf98] sm:$0xff]
      %v5705 = vld [vmem:[%s2 + $0xfa0] sm:$0xff]
      %v5706 = vld [vmem:[%s2 + $0xfa8] sm:$0xff]
      %v5707 = vld [vmem:[%s2 + $0xfb0] sm:$0xff]
      %v5708 = vld [vmem:[%s2 + $0xfb8] sm:$0xff]
      %v5709 = vld [vmem:[%s2 + $0xfc0] sm:$0xff]
      %v5710 = vld [vmem:[%s2 + $0xfc8] sm:$0xff]
      %v5711 = vld [vmem:[%s2 + $0xfd0] sm:$0xff]
      %v5712 = vld [vmem:[%s2 + $0xfd8] sm:$0xff]
      %v5713 = vld [vmem:[%s2 + $0xfe0] sm:$0xff]
      %v5714 = vld [vmem:[%s2 + $0xfe8] sm:$0xff]
      %v5715 = vld [vmem:[%s2 + $0xff0] sm:$0xff]
      %v5716 = vld [vmem:[%s2 + $0xff8] sm:$0xff]
      %v6229 = vunpack.c.l.b16 %v5205
      %v6230 = vunpack.c.h.b16 %v5205
      %v6231 = vunpack.c.l.b16 %v5206
      %v6232 = vunpack.c.h.b16 %v5206
      %v6233 = vunpack.c.l.b16 %v5207
      %v6234 = vunpack.c.h.b16 %v5207
      %v6235 = vunpack.c.l.b16 %v5208
      %v6236 = vunpack.c.h.b16 %v5208
      %v6237 = vunpack.c.l.b16 %v5209
      %v6238 = vunpack.c.h.b16 %v5209
      %v6239 = vunpack.c.l.b16 %v5210
      %v6240 = vunpack.c.h.b16 %v5210
      %v6241 = vunpack.c.l.b16 %v5211
      %v6242 = vunpack.c.h.b16 %v5211
      %v6243 = vunpack.c.l.b16 %v5212
      %v6244 = vunpack.c.h.b16 %v5212
      %v6245 = vunpack.c.l.b16 %v5213
      %v6246 = vunpack.c.h.b16 %v5213
      %v6247 = vunpack.c.l.b16 %v5214
      %v6248 = vunpack.c.h.b16 %v5214
      %v6249 = vunpack.c.l.b16 %v5215
      %v6250 = vunpack.c.h.b16 %v5215
      %v6251 = vunpack.c.l.b16 %v5216
      %v6252 = vunpack.c.h.b16 %v5216
      %v6253 = vunpack.c.l.b16 %v5217
      %v6254 = vunpack.c.h.b16 %v5217
      %v6255 = vunpack.c.l.b16 %v5218
      %v6256 = vunpack.c.h.b16 %v5218
      %v6257 = vunpack.c.l.b16 %v5219
      %v6258 = vunpack.c.h.b16 %v5219
      %v6259 = vunpack.c.l.b16 %v5220
      %v6260 = vunpack.c.h.b16 %v5220
      %v6261 = vunpack.c.l.b16 %v5221
      %v6262 = vunpack.c.h.b16 %v5221
      %v6263 = vunpack.c.l.b16 %v5222
      %v6264 = vunpack.c.h.b16 %v5222
      %v6265 = vunpack.c.l.b16 %v5223
      %v6266 = vunpack.c.h.b16 %v5223
      %v6267 = vunpack.c.l.b16 %v5224
      %v6268 = vunpack.c.h.b16 %v5224
      %v6269 = vunpack.c.l.b16 %v5225
      %v6270 = vunpack.c.h.b16 %v5225
      %v6271 = vunpack.c.l.b16 %v5226
      %v6272 = vunpack.c.h.b16 %v5226
      %v6273 = vunpack.c.l.b16 %v5227
      %v6274 = vunpack.c.h.b16 %v5227
      %v6275 = vunpack.c.l.b16 %v5228
      %v6276 = vunpack.c.h.b16 %v5228
      %v6277 = vunpack.c.l.b16 %v5229
      %v6278 = vunpack.c.h.b16 %v5229
      %v6279 = vunpack.c.l.b16 %v5230
      %v6280 = vunpack.c.h.b16 %v5230
      %v6281 = vunpack.c.l.b16 %v5231
      %v6282 = vunpack.c.h.b16 %v5231
      %v6283 = vunpack.c.l.b16 %v5232
      %v6284 = vunpack.c.h.b16 %v5232
      %v6285 = vunpack.c.l.b16 %v5233
      %v6286 = vunpack.c.h.b16 %v5233
      %v6287 = vunpack.c.l.b16 %v5234
      %v6288 = vunpack.c.h.b16 %v5234
      %v6289 = vunpack.c.l.b16 %v5235
      %v6290 = vunpack.c.h.b16 %v5235
      %v6291 = vunpack.c.l.b16 %v5236
      %v6292 = vunpack.c.h.b16 %v5236
      %v6293 = vunpack.c.l.b16 %v5237
      %v6294 = vunpack.c.h.b16 %v5237
      %v6295 = vunpack.c.l.b16 %v5238
      %v6296 = vunpack.c.h.b16 %v5238
      %v6297 = vunpack.c.l.b16 %v5239
      %v6298 = vunpack.c.h.b16 %v5239
      %v6299 = vunpack.c.l.b16 %v5240
      %v6300 = vunpack.c.h.b16 %v5240
      %v6301 = vunpack.c.l.b16 %v5241
      %v6302 = vunpack.c.h.b16 %v5241
      %v6303 = vunpack.c.l.b16 %v5242
      %v6304 = vunpack.c.h.b16 %v5242
      %v6305 = vunpack.c.l.b16 %v5243
      %v6306 = vunpack.c.h.b16 %v5243
      %v6307 = vunpack.c.l.b16 %v5244
      %v6308 = vunpack.c.h.b16 %v5244
      %v6309 = vunpack.c.l.b16 %v5245
      %v6310 = vunpack.c.h.b16 %v5245
      %v6311 = vunpack.c.l.b16 %v5246
      %v6312 = vunpack.c.h.b16 %v5246
      %v6313 = vunpack.c.l.b16 %v5247
      %v6314 = vunpack.c.h.b16 %v5247
      %v6315 = vunpack.c.l.b16 %v5248
      %v6316 = vunpack.c.h.b16 %v5248
      %v6317 = vunpack.c.l.b16 %v5249
      %v6318 = vunpack.c.h.b16 %v5249
      %v6319 = vunpack.c.l.b16 %v5250
      %v6320 = vunpack.c.h.b16 %v5250
      %v6321 = vunpack.c.l.b16 %v5251
      %v6322 = vunpack.c.h.b16 %v5251
      %v6323 = vunpack.c.l.b16 %v5252
      %v6324 = vunpack.c.h.b16 %v5252
      %v6325 = vunpack.c.l.b16 %v5253
      %v6326 = vunpack.c.h.b16 %v5253
      %v6327 = vunpack.c.l.b16 %v5254
      %v6328 = vunpack.c.h.b16 %v5254
      %v6329 = vunpack.c.l.b16 %v5255
      %v6330 = vunpack.c.h.b16 %v5255
      %v6331 = vunpack.c.l.b16 %v5256
      %v6332 = vunpack.c.h.b16 %v5256
      %v6333 = vunpack.c.l.b16 %v5257
      %v6334 = vunpack.c.h.b16 %v5257
      %v6335 = vunpack.c.l.b16 %v5258
      %v6336 = vunpack.c.h.b16 %v5258
      %v6337 = vunpack.c.l.b16 %v5259
      %v6338 = vunpack.c.h.b16 %v5259
      %v6339 = vunpack.c.l.b16 %v5260
      %v6340 = vunpack.c.h.b16 %v5260
      %v6341 = vunpack.c.l.b16 %v5261
      %v6342 = vunpack.c.h.b16 %v5261
      %v6343 = vunpack.c.l.b16 %v5262
      %v6344 = vunpack.c.h.b16 %v5262
      %v6345 = vunpack.c.l.b16 %v5263
      %v6346 = vunpack.c.h.b16 %v5263
      %v6347 = vunpack.c.l.b16 %v5264
      %v6348 = vunpack.c.h.b16 %v5264
      %v6349 = vunpack.c.l.b16 %v5265
      %v6350 = vunpack.c.h.b16 %v5265
      %v6351 = vunpack.c.l.b16 %v5266
      %v6352 = vunpack.c.h.b16 %v5266
      %v6353 = vunpack.c.l.b16 %v5267
      %v6354 = vunpack.c.h.b16 %v5267
      %v6355 = vunpack.c.l.b16 %v5268
      %v6356 = vunpack.c.h.b16 %v5268
      %v6357 = vunpack.c.l.b16 %v5269
      %v6358 = vunpack.c.h.b16 %v5269
      %v6359 = vunpack.c.l.b16 %v5270
      %v6360 = vunpack.c.h.b16 %v5270
      %v6361 = vunpack.c.l.b16 %v5271
      %v6362 = vunpack.c.h.b16 %v5271
      %v6363 = vunpack.c.l.b16 %v5272
      %v6364 = vunpack.c.h.b16 %v5272
      %v6365 = vunpack.c.l.b16 %v5273
      %v6366 = vunpack.c.h.b16 %v5273
      %v6367 = vunpack.c.l.b16 %v5274
      %v6368 = vunpack.c.h.b16 %v5274
      %v6369 = vunpack.c.l.b16 %v5275
      %v6370 = vunpack.c.h.b16 %v5275
      %v6371 = vunpack.c.l.b16 %v5276
      %v6372 = vunpack.c.h.b16 %v5276
      %v6373 = vunpack.c.l.b16 %v5277
      %v6374 = vunpack.c.h.b16 %v5277
      %v6375 = vunpack.c.l.b16 %v5278
      %v6376 = vunpack.c.h.b16 %v5278
      %v6377 = vunpack.c.l.b16 %v5279
      %v6378 = vunpack.c.h.b16 %v5279
      %v6379 = vunpack.c.l.b16 %v5280
      %v6380 = vunpack.c.h.b16 %v5280
      %v6381 = vunpack.c.l.b16 %v5281
      %v6382 = vunpack.c.h.b16 %v5281
      %v6383 = vunpack.c.l.b16 %v5282
      %v6384 = vunpack.c.h.b16 %v5282
      %v6385 = vunpack.c.l.b16 %v5283
      %v6386 = vunpack.c.h.b16 %v5283
      %v6387 = vunpack.c.l.b16 %v5284
      %v6388 = vunpack.c.h.b16 %v5284
      %v6389 = vunpack.c.l.b16 %v5285
      %v6390 = vunpack.c.h.b16 %v5285
      %v6391 = vunpack.c.l.b16 %v5286
      %v6392 = vunpack.c.h.b16 %v5286
      %v6393 = vunpack.c.l.b16 %v5287
      %v6394 = vunpack.c.h.b16 %v5287
      %v6395 = vunpack.c.l.b16 %v5288
      %v6396 = vunpack.c.h.b16 %v5288
      %v6397 = vunpack.c.l.b16 %v5289
      %v6398 = vunpack.c.h.b16 %v5289
      %v6399 = vunpack.c.l.b16 %v5290
      %v6400 = vunpack.c.h.b16 %v5290
      %v6401 = vunpack.c.l.b16 %v5291
      %v6402 = vunpack.c.h.b16 %v5291
      %v6403 = vunpack.c.l.b16 %v5292
      %v6404 = vunpack.c.h.b16 %v5292
      %v6405 = vunpack.c.l.b16 %v5293
      %v6406 = vunpack.c.h.b16 %v5293
      %v6407 = vunpack.c.l.b16 %v5294
      %v6408 = vunpack.c.h.b16 %v5294
      %v6409 = vunpack.c.l.b16 %v5295
      %v6410 = vunpack.c.h.b16 %v5295
      %v6411 = vunpack.c.l.b16 %v5296
      %v6412 = vunpack.c.h.b16 %v5296
      %v6413 = vunpack.c.l.b16 %v5297
      %v6414 = vunpack.c.h.b16 %v5297
      %v6415 = vunpack.c.l.b16 %v5298
      %v6416 = vunpack.c.h.b16 %v5298
      %v6417 = vunpack.c.l.b16 %v5299
      %v6418 = vunpack.c.h.b16 %v5299
      %v6419 = vunpack.c.l.b16 %v5300
      %v6420 = vunpack.c.h.b16 %v5300
      %v6421 = vunpack.c.l.b16 %v5301
      %v6422 = vunpack.c.h.b16 %v5301
      %v6423 = vunpack.c.l.b16 %v5302
      %v6424 = vunpack.c.h.b16 %v5302
      %v6425 = vunpack.c.l.b16 %v5303
      %v6426 = vunpack.c.h.b16 %v5303
      %v6427 = vunpack.c.l.b16 %v5304
      %v6428 = vunpack.c.h.b16 %v5304
      %v6429 = vunpack.c.l.b16 %v5305
      %v6430 = vunpack.c.h.b16 %v5305
      %v6431 = vunpack.c.l.b16 %v5306
      %v6432 = vunpack.c.h.b16 %v5306
      %v6433 = vunpack.c.l.b16 %v5307
      %v6434 = vunpack.c.h.b16 %v5307
      %v6435 = vunpack.c.l.b16 %v5308
      %v6436 = vunpack.c.h.b16 %v5308
      %v6437 = vunpack.c.l.b16 %v5309
      %v6438 = vunpack.c.h.b16 %v5309
      %v6439 = vunpack.c.l.b16 %v5310
      %v6440 = vunpack.c.h.b16 %v5310
      %v6441 = vunpack.c.l.b16 %v5311
      %v6442 = vunpack.c.h.b16 %v5311
      %v6443 = vunpack.c.l.b16 %v5312
      %v6444 = vunpack.c.h.b16 %v5312
      %v6445 = vunpack.c.l.b16 %v5313
      %v6446 = vunpack.c.h.b16 %v5313
      %v6447 = vunpack.c.l.b16 %v5314
      %v6448 = vunpack.c.h.b16 %v5314
      %v6449 = vunpack.c.l.b16 %v5315
      %v6450 = vunpack.c.h.b16 %v5315
      %v6451 = vunpack.c.l.b16 %v5316
      %v6452 = vunpack.c.h.b16 %v5316
      %v6453 = vunpack.c.l.b16 %v5317
      %v6454 = vunpack.c.h.b16 %v5317
      %v6455 = vunpack.c.l.b16 %v5318
      %v6456 = vunpack.c.h.b16 %v5318
      %v6457 = vunpack.c.l.b16 %v5319
      %v6458 = vunpack.c.h.b16 %v5319
      %v6459 = vunpack.c.l.b16 %v5320
      %v6460 = vunpack.c.h.b16 %v5320
      %v6461 = vunpack.c.l.b16 %v5321
      %v6462 = vunpack.c.h.b16 %v5321
      %v6463 = vunpack.c.l.b16 %v5322
      %v6464 = vunpack.c.h.b16 %v5322
      %v6465 = vunpack.c.l.b16 %v5323
      %v6466 = vunpack.c.h.b16 %v5323
      %v6467 = vunpack.c.l.b16 %v5324
      %v6468 = vunpack.c.h.b16 %v5324
      %v6469 = vunpack.c.l.b16 %v5325
      %v6470 = vunpack.c.h.b16 %v5325
      %v6471 = vunpack.c.l.b16 %v5326
      %v6472 = vunpack.c.h.b16 %v5326
      %v6473 = vunpack.c.l.b16 %v5327
      %v6474 = vunpack.c.h.b16 %v5327
      %v6475 = vunpack.c.l.b16 %v5328
      %v6476 = vunpack.c.h.b16 %v5328
      %v6477 = vunpack.c.l.b16 %v5329
      %v6478 = vunpack.c.h.b16 %v5329
      %v6479 = vunpack.c.l.b16 %v5330
      %v6480 = vunpack.c.h.b16 %v5330
      %v6481 = vunpack.c.l.b16 %v5331
      %v6482 = vunpack.c.h.b16 %v5331
      %v6483 = vunpack.c.l.b16 %v5332
      %v6484 = vunpack.c.h.b16 %v5332
      %v6485 = vunpack.c.l.b16 %v5333
      %v6486 = vunpack.c.h.b16 %v5333
      %v6487 = vunpack.c.l.b16 %v5334
      %v6488 = vunpack.c.h.b16 %v5334
      %v6489 = vunpack.c.l.b16 %v5335
      %v6490 = vunpack.c.h.b16 %v5335
      %v6491 = vunpack.c.l.b16 %v5336
      %v6492 = vunpack.c.h.b16 %v5336
      %v6493 = vunpack.c.l.b16 %v5337
      %v6494 = vunpack.c.h.b16 %v5337
      %v6495 = vunpack.c.l.b16 %v5338
      %v6496 = vunpack.c.h.b16 %v5338
      %v6497 = vunpack.c.l.b16 %v5339
      %v6498 = vunpack.c.h.b16 %v5339
      %v6499 = vunpack.c.l.b16 %v5340
      %v6500 = vunpack.c.h.b16 %v5340
      %v6501 = vunpack.c.l.b16 %v5341
      %v6502 = vunpack.c.h.b16 %v5341
      %v6503 = vunpack.c.l.b16 %v5342
      %v6504 = vunpack.c.h.b16 %v5342
      %v6505 = vunpack.c.l.b16 %v5343
      %v6506 = vunpack.c.h.b16 %v5343
      %v6507 = vunpack.c.l.b16 %v5344
      %v6508 = vunpack.c.h.b16 %v5344
      %v6509 = vunpack.c.l.b16 %v5345
      %v6510 = vunpack.c.h.b16 %v5345
      %v6511 = vunpack.c.l.b16 %v5346
      %v6512 = vunpack.c.h.b16 %v5346
      %v6513 = vunpack.c.l.b16 %v5347
      %v6514 = vunpack.c.h.b16 %v5347
      %v6515 = vunpack.c.l.b16 %v5348
      %v6516 = vunpack.c.h.b16 %v5348
      %v6517 = vunpack.c.l.b16 %v5349
      %v6518 = vunpack.c.h.b16 %v5349
      %v6519 = vunpack.c.l.b16 %v5350
      %v6520 = vunpack.c.h.b16 %v5350
      %v6521 = vunpack.c.l.b16 %v5351
      %v6522 = vunpack.c.h.b16 %v5351
      %v6523 = vunpack.c.l.b16 %v5352
      %v6524 = vunpack.c.h.b16 %v5352
      %v6525 = vunpack.c.l.b16 %v5353
      %v6526 = vunpack.c.h.b16 %v5353
      %v6527 = vunpack.c.l.b16 %v5354
      %v6528 = vunpack.c.h.b16 %v5354
      %v6529 = vunpack.c.l.b16 %v5355
      %v6530 = vunpack.c.h.b16 %v5355
      %v6531 = vunpack.c.l.b16 %v5356
      %v6532 = vunpack.c.h.b16 %v5356
      %v6533 = vunpack.c.l.b16 %v5357
      %v6534 = vunpack.c.h.b16 %v5357
      %v6535 = vunpack.c.l.b16 %v5358
      %v6536 = vunpack.c.h.b16 %v5358
      %v6537 = vunpack.c.l.b16 %v5359
      %v6538 = vunpack.c.h.b16 %v5359
      %v6539 = vunpack.c.l.b16 %v5360
      %v6540 = vunpack.c.h.b16 %v5360
      %v6541 = vunpack.c.l.b16 %v5361
      %v6542 = vunpack.c.h.b16 %v5361
      %v6543 = vunpack.c.l.b16 %v5362
      %v6544 = vunpack.c.h.b16 %v5362
      %v6545 = vunpack.c.l.b16 %v5363
      %v6546 = vunpack.c.h.b16 %v5363
      %v6547 = vunpack.c.l.b16 %v5364
      %v6548 = vunpack.c.h.b16 %v5364
      %v6549 = vunpack.c.l.b16 %v5365
      %v6550 = vunpack.c.h.b16 %v5365
      %v6551 = vunpack.c.l.b16 %v5366
      %v6552 = vunpack.c.h.b16 %v5366
      %v6553 = vunpack.c.l.b16 %v5367
      %v6554 = vunpack.c.h.b16 %v5367
      %v6555 = vunpack.c.l.b16 %v5368
      %v6556 = vunpack.c.h.b16 %v5368
      %v6557 = vunpack.c.l.b16 %v5369
      %v6558 = vunpack.c.h.b16 %v5369
      %v6559 = vunpack.c.l.b16 %v5370
      %v6560 = vunpack.c.h.b16 %v5370
      %v6561 = vunpack.c.l.b16 %v5371
      %v6562 = vunpack.c.h.b16 %v5371
      %v6563 = vunpack.c.l.b16 %v5372
      %v6564 = vunpack.c.h.b16 %v5372
      %v6565 = vunpack.c.l.b16 %v5373
      %v6566 = vunpack.c.h.b16 %v5373
      %v6567 = vunpack.c.l.b16 %v5374
      %v6568 = vunpack.c.h.b16 %v5374
      %v6569 = vunpack.c.l.b16 %v5375
      %v6570 = vunpack.c.h.b16 %v5375
      %v6571 = vunpack.c.l.b16 %v5376
      %v6572 = vunpack.c.h.b16 %v5376
      %v6573 = vunpack.c.l.b16 %v5377
      %v6574 = vunpack.c.h.b16 %v5377
      %v6575 = vunpack.c.l.b16 %v5378
      %v6576 = vunpack.c.h.b16 %v5378
      %v6577 = vunpack.c.l.b16 %v5379
      %v6578 = vunpack.c.h.b16 %v5379
      %v6579 = vunpack.c.l.b16 %v5380
      %v6580 = vunpack.c.h.b16 %v5380
      %v6581 = vunpack.c.l.b16 %v5381
      %v6582 = vunpack.c.h.b16 %v5381
      %v6583 = vunpack.c.l.b16 %v5382
      %v6584 = vunpack.c.h.b16 %v5382
      %v6585 = vunpack.c.l.b16 %v5383
      %v6586 = vunpack.c.h.b16 %v5383
      %v6587 = vunpack.c.l.b16 %v5384
      %v6588 = vunpack.c.h.b16 %v5384
      %v6589 = vunpack.c.l.b16 %v5385
      %v6590 = vunpack.c.h.b16 %v5385
      %v6591 = vunpack.c.l.b16 %v5386
      %v6592 = vunpack.c.h.b16 %v5386
      %v6593 = vunpack.c.l.b16 %v5387
      %v6594 = vunpack.c.h.b16 %v5387
      %v6595 = vunpack.c.l.b16 %v5388
      %v6596 = vunpack.c.h.b16 %v5388
      %v6597 = vunpack.c.l.b16 %v5389
      %v6598 = vunpack.c.h.b16 %v5389
      %v6599 = vunpack.c.l.b16 %v5390
      %v6600 = vunpack.c.h.b16 %v5390
      %v6601 = vunpack.c.l.b16 %v5391
      %v6602 = vunpack.c.h.b16 %v5391
      %v6603 = vunpack.c.l.b16 %v5392
      %v6604 = vunpack.c.h.b16 %v5392
      %v6605 = vunpack.c.l.b16 %v5393
      %v6606 = vunpack.c.h.b16 %v5393
      %v6607 = vunpack.c.l.b16 %v5394
      %v6608 = vunpack.c.h.b16 %v5394
      %v6609 = vunpack.c.l.b16 %v5395
      %v6610 = vunpack.c.h.b16 %v5395
      %v6611 = vunpack.c.l.b16 %v5396
      %v6612 = vunpack.c.h.b16 %v5396
      %v6613 = vunpack.c.l.b16 %v5397
      %v6614 = vunpack.c.h.b16 %v5397
      %v6615 = vunpack.c.l.b16 %v5398
      %v6616 = vunpack.c.h.b16 %v5398
      %v6617 = vunpack.c.l.b16 %v5399
      %v6618 = vunpack.c.h.b16 %v5399
      %v6619 = vunpack.c.l.b16 %v5400
      %v6620 = vunpack.c.h.b16 %v5400
      %v6621 = vunpack.c.l.b16 %v5401
      %v6622 = vunpack.c.h.b16 %v5401
      %v6623 = vunpack.c.l.b16 %v5402
      %v6624 = vunpack.c.h.b16 %v5402
      %v6625 = vunpack.c.l.b16 %v5403
      %v6626 = vunpack.c.h.b16 %v5403
      %v6627 = vunpack.c.l.b16 %v5404
      %v6628 = vunpack.c.h.b16 %v5404
      %v6629 = vunpack.c.l.b16 %v5405
      %v6630 = vunpack.c.h.b16 %v5405
      %v6631 = vunpack.c.l.b16 %v5406
      %v6632 = vunpack.c.h.b16 %v5406
      %v6633 = vunpack.c.l.b16 %v5407
      %v6634 = vunpack.c.h.b16 %v5407
      %v6635 = vunpack.c.l.b16 %v5408
      %v6636 = vunpack.c.h.b16 %v5408
      %v6637 = vunpack.c.l.b16 %v5409
      %v6638 = vunpack.c.h.b16 %v5409
      %v6639 = vunpack.c.l.b16 %v5410
      %v6640 = vunpack.c.h.b16 %v5410
      %v6641 = vunpack.c.l.b16 %v5411
      %v6642 = vunpack.c.h.b16 %v5411
      %v6643 = vunpack.c.l.b16 %v5412
      %v6644 = vunpack.c.h.b16 %v5412
      %v6645 = vunpack.c.l.b16 %v5413
      %v6646 = vunpack.c.h.b16 %v5413
      %v6647 = vunpack.c.l.b16 %v5414
      %v6648 = vunpack.c.h.b16 %v5414
      %v6649 = vunpack.c.l.b16 %v5415
      %v6650 = vunpack.c.h.b16 %v5415
      %v6651 = vunpack.c.l.b16 %v5416
      %v6652 = vunpack.c.h.b16 %v5416
      %v6653 = vunpack.c.l.b16 %v5417
      %v6654 = vunpack.c.h.b16 %v5417
      %v6655 = vunpack.c.l.b16 %v5418
      %v6656 = vunpack.c.h.b16 %v5418
      %v6657 = vunpack.c.l.b16 %v5419
      %v6658 = vunpack.c.h.b16 %v5419
      %v6659 = vunpack.c.l.b16 %v5420
      %v6660 = vunpack.c.h.b16 %v5420
      %v6661 = vunpack.c.l.b16 %v5421
      %v6662 = vunpack.c.h.b16 %v5421
      %v6663 = vunpack.c.l.b16 %v5422
      %v6664 = vunpack.c.h.b16 %v5422
      %v6665 = vunpack.c.l.b16 %v5423
      %v6666 = vunpack.c.h.b16 %v5423
      %v6667 = vunpack.c.l.b16 %v5424
      %v6668 = vunpack.c.h.b16 %v5424
      %v6669 = vunpack.c.l.b16 %v5425
      %v6670 = vunpack.c.h.b16 %v5425
      %v6671 = vunpack.c.l.b16 %v5426
      %v6672 = vunpack.c.h.b16 %v5426
      %v6673 = vunpack.c.l.b16 %v5427
      %v6674 = vunpack.c.h.b16 %v5427
      %v6675 = vunpack.c.l.b16 %v5428
      %v6676 = vunpack.c.h.b16 %v5428
      %v6677 = vunpack.c.l.b16 %v5429
      %v6678 = vunpack.c.h.b16 %v5429
      %v6679 = vunpack.c.l.b16 %v5430
      %v6680 = vunpack.c.h.b16 %v5430
      %v6681 = vunpack.c.l.b16 %v5431
      %v6682 = vunpack.c.h.b16 %v5431
      %v6683 = vunpack.c.l.b16 %v5432
      %v6684 = vunpack.c.h.b16 %v5432
      %v6685 = vunpack.c.l.b16 %v5433
      %v6686 = vunpack.c.h.b16 %v5433
      %v6687 = vunpack.c.l.b16 %v5434
      %v6688 = vunpack.c.h.b16 %v5434
      %v6689 = vunpack.c.l.b16 %v5435
      %v6690 = vunpack.c.h.b16 %v5435
      %v6691 = vunpack.c.l.b16 %v5436
      %v6692 = vunpack.c.h.b16 %v5436
      %v6693 = vunpack.c.l.b16 %v5437
      %v6694 = vunpack.c.h.b16 %v5437
      %v6695 = vunpack.c.l.b16 %v5438
      %v6696 = vunpack.c.h.b16 %v5438
      %v6697 = vunpack.c.l.b16 %v5439
      %v6698 = vunpack.c.h.b16 %v5439
      %v6699 = vunpack.c.l.b16 %v5440
      %v6700 = vunpack.c.h.b16 %v5440
      %v6701 = vunpack.c.l.b16 %v5441
      %v6702 = vunpack.c.h.b16 %v5441
      %v6703 = vunpack.c.l.b16 %v5442
      %v6704 = vunpack.c.h.b16 %v5442
      %v6705 = vunpack.c.l.b16 %v5443
      %v6706 = vunpack.c.h.b16 %v5443
      %v6707 = vunpack.c.l.b16 %v5444
      %v6708 = vunpack.c.h.b16 %v5444
      %v6709 = vunpack.c.l.b16 %v5445
      %v6710 = vunpack.c.h.b16 %v5445
      %v6711 = vunpack.c.l.b16 %v5446
      %v6712 = vunpack.c.h.b16 %v5446
      %v6713 = vunpack.c.l.b16 %v5447
      %v6714 = vunpack.c.h.b16 %v5447
      %v6715 = vunpack.c.l.b16 %v5448
      %v6716 = vunpack.c.h.b16 %v5448
      %v6717 = vunpack.c.l.b16 %v5449
      %v6718 = vunpack.c.h.b16 %v5449
      %v6719 = vunpack.c.l.b16 %v5450
      %v6720 = vunpack.c.h.b16 %v5450
      %v6721 = vunpack.c.l.b16 %v5451
      %v6722 = vunpack.c.h.b16 %v5451
      %v6723 = vunpack.c.l.b16 %v5452
      %v6724 = vunpack.c.h.b16 %v5452
      %v6725 = vunpack.c.l.b16 %v5453
      %v6726 = vunpack.c.h.b16 %v5453
      %v6727 = vunpack.c.l.b16 %v5454
      %v6728 = vunpack.c.h.b16 %v5454
      %v6729 = vunpack.c.l.b16 %v5455
      %v6730 = vunpack.c.h.b16 %v5455
      %v6731 = vunpack.c.l.b16 %v5456
      %v6732 = vunpack.c.h.b16 %v5456
      %v6733 = vunpack.c.l.b16 %v5457
      %v6734 = vunpack.c.h.b16 %v5457
      %v6735 = vunpack.c.l.b16 %v5458
      %v6736 = vunpack.c.h.b16 %v5458
      %v6737 = vunpack.c.l.b16 %v5459
      %v6738 = vunpack.c.h.b16 %v5459
      %v6739 = vunpack.c.l.b16 %v5460
      %v6740 = vunpack.c.h.b16 %v5460
      %v6741 = vunpack.c.l.b16 %v5461
      %v6742 = vunpack.c.h.b16 %v5461
      %v6743 = vunpack.c.l.b16 %v5462
      %v6744 = vunpack.c.h.b16 %v5462
      %v6745 = vunpack.c.l.b16 %v5463
      %v6746 = vunpack.c.h.b16 %v5463
      %v6747 = vunpack.c.l.b16 %v5464
      %v6748 = vunpack.c.h.b16 %v5464
      %v6749 = vunpack.c.l.b16 %v5465
      %v6750 = vunpack.c.h.b16 %v5465
      %v6751 = vunpack.c.l.b16 %v5466
      %v6752 = vunpack.c.h.b16 %v5466
      %v6753 = vunpack.c.l.b16 %v5467
      %v6754 = vunpack.c.h.b16 %v5467
      %v6755 = vunpack.c.l.b16 %v5468
      %v6756 = vunpack.c.h.b16 %v5468
      %v6757 = vunpack.c.l.b16 %v5469
      %v6758 = vunpack.c.h.b16 %v5469
      %v6759 = vunpack.c.l.b16 %v5470
      %v6760 = vunpack.c.h.b16 %v5470
      %v6761 = vunpack.c.l.b16 %v5471
      %v6762 = vunpack.c.h.b16 %v5471
      %v6763 = vunpack.c.l.b16 %v5472
      %v6764 = vunpack.c.h.b16 %v5472
      %v6765 = vunpack.c.l.b16 %v5473
      %v6766 = vunpack.c.h.b16 %v5473
      %v6767 = vunpack.c.l.b16 %v5474
      %v6768 = vunpack.c.h.b16 %v5474
      %v6769 = vunpack.c.l.b16 %v5475
      %v6770 = vunpack.c.h.b16 %v5475
      %v6771 = vunpack.c.l.b16 %v5476
      %v6772 = vunpack.c.h.b16 %v5476
      %v6773 = vunpack.c.l.b16 %v5477
      %v6774 = vunpack.c.h.b16 %v5477
      %v6775 = vunpack.c.l.b16 %v5478
      %v6776 = vunpack.c.h.b16 %v5478
      %v6777 = vunpack.c.l.b16 %v5479
      %v6778 = vunpack.c.h.b16 %v5479
      %v6779 = vunpack.c.l.b16 %v5480
      %v6780 = vunpack.c.h.b16 %v5480
      %v6781 = vunpack.c.l.b16 %v5481
      %v6782 = vunpack.c.h.b16 %v5481
      %v6783 = vunpack.c.l.b16 %v5482
      %v6784 = vunpack.c.h.b16 %v5482
      %v6785 = vunpack.c.l.b16 %v5483
      %v6786 = vunpack.c.h.b16 %v5483
      %v6787 = vunpack.c.l.b16 %v5484
      %v6788 = vunpack.c.h.b16 %v5484
      %v6789 = vunpack.c.l.b16 %v5485
      %v6790 = vunpack.c.h.b16 %v5485
      %v6791 = vunpack.c.l.b16 %v5486
      %v6792 = vunpack.c.h.b16 %v5486
      %v6793 = vunpack.c.l.b16 %v5487
      %v6794 = vunpack.c.h.b16 %v5487
      %v6795 = vunpack.c.l.b16 %v5488
      %v6796 = vunpack.c.h.b16 %v5488
      %v6797 = vunpack.c.l.b16 %v5489
      %v6798 = vunpack.c.h.b16 %v5489
      %v6799 = vunpack.c.l.b16 %v5490
      %v6800 = vunpack.c.h.b16 %v5490
      %v6801 = vunpack.c.l.b16 %v5491
      %v6802 = vunpack.c.h.b16 %v5491
      %v6803 = vunpack.c.l.b16 %v5492
      %v6804 = vunpack.c.h.b16 %v5492
      %v6805 = vunpack.c.l.b16 %v5493
      %v6806 = vunpack.c.h.b16 %v5493
      %v6807 = vunpack.c.l.b16 %v5494
      %v6808 = vunpack.c.h.b16 %v5494
      %v6809 = vunpack.c.l.b16 %v5495
      %v6810 = vunpack.c.h.b16 %v5495
      %v6811 = vunpack.c.l.b16 %v5496
      %v6812 = vunpack.c.h.b16 %v5496
      %v6813 = vunpack.c.l.b16 %v5497
      %v6814 = vunpack.c.h.b16 %v5497
      %v6815 = vunpack.c.l.b16 %v5498
      %v6816 = vunpack.c.h.b16 %v5498
      %v6817 = vunpack.c.l.b16 %v5499
      %v6818 = vunpack.c.h.b16 %v5499
      %v6819 = vunpack.c.l.b16 %v5500
      %v6820 = vunpack.c.h.b16 %v5500
      %v6821 = vunpack.c.l.b16 %v5501
      %v6822 = vunpack.c.h.b16 %v5501
      %v6823 = vunpack.c.l.b16 %v5502
      %v6824 = vunpack.c.h.b16 %v5502
      %v6825 = vunpack.c.l.b16 %v5503
      %v6826 = vunpack.c.h.b16 %v5503
      %v6827 = vunpack.c.l.b16 %v5504
      %v6828 = vunpack.c.h.b16 %v5504
      %v6829 = vunpack.c.l.b16 %v5505
      %v6830 = vunpack.c.h.b16 %v5505
      %v6831 = vunpack.c.l.b16 %v5506
      %v6832 = vunpack.c.h.b16 %v5506
      %v6833 = vunpack.c.l.b16 %v5507
      %v6834 = vunpack.c.h.b16 %v5507
      %v6835 = vunpack.c.l.b16 %v5508
      %v6836 = vunpack.c.h.b16 %v5508
      %v6837 = vunpack.c.l.b16 %v5509
      %v6838 = vunpack.c.h.b16 %v5509
      %v6839 = vunpack.c.l.b16 %v5510
      %v6840 = vunpack.c.h.b16 %v5510
      %v6841 = vunpack.c.l.b16 %v5511
      %v6842 = vunpack.c.h.b16 %v5511
      %v6843 = vunpack.c.l.b16 %v5512
      %v6844 = vunpack.c.h.b16 %v5512
      %v6845 = vunpack.c.l.b16 %v5513
      %v6846 = vunpack.c.h.b16 %v5513
      %v6847 = vunpack.c.l.b16 %v5514
      %v6848 = vunpack.c.h.b16 %v5514
      %v6849 = vunpack.c.l.b16 %v5515
      %v6850 = vunpack.c.h.b16 %v5515
      %v6851 = vunpack.c.l.b16 %v5516
      %v6852 = vunpack.c.h.b16 %v5516
      %v6853 = vunpack.c.l.b16 %v5517
      %v6854 = vunpack.c.h.b16 %v5517
      %v6855 = vunpack.c.l.b16 %v5518
      %v6856 = vunpack.c.h.b16 %v5518
      %v6857 = vunpack.c.l.b16 %v5519
      %v6858 = vunpack.c.h.b16 %v5519
      %v6859 = vunpack.c.l.b16 %v5520
      %v6860 = vunpack.c.h.b16 %v5520
      %v6861 = vunpack.c.l.b16 %v5521
      %v6862 = vunpack.c.h.b16 %v5521
      %v6863 = vunpack.c.l.b16 %v5522
      %v6864 = vunpack.c.h.b16 %v5522
      %v6865 = vunpack.c.l.b16 %v5523
      %v6866 = vunpack.c.h.b16 %v5523
      %v6867 = vunpack.c.l.b16 %v5524
      %v6868 = vunpack.c.h.b16 %v5524
      %v6869 = vunpack.c.l.b16 %v5525
      %v6870 = vunpack.c.h.b16 %v5525
      %v6871 = vunpack.c.l.b16 %v5526
      %v6872 = vunpack.c.h.b16 %v5526
      %v6873 = vunpack.c.l.b16 %v5527
      %v6874 = vunpack.c.h.b16 %v5527
      %v6875 = vunpack.c.l.b16 %v5528
      %v6876 = vunpack.c.h.b16 %v5528
      %v6877 = vunpack.c.l.b16 %v5529
      %v6878 = vunpack.c.h.b16 %v5529
      %v6879 = vunpack.c.l.b16 %v5530
      %v6880 = vunpack.c.h.b16 %v5530
      %v6881 = vunpack.c.l.b16 %v5531
      %v6882 = vunpack.c.h.b16 %v5531
      %v6883 = vunpack.c.l.b16 %v5532
      %v6884 = vunpack.c.h.b16 %v5532
      %v6885 = vunpack.c.l.b16 %v5533
      %v6886 = vunpack.c.h.b16 %v5533
      %v6887 = vunpack.c.l.b16 %v5534
      %v6888 = vunpack.c.h.b16 %v5534
      %v6889 = vunpack.c.l.b16 %v5535
      %v6890 = vunpack.c.h.b16 %v5535
      %v6891 = vunpack.c.l.b16 %v5536
      %v6892 = vunpack.c.h.b16 %v5536
      %v6893 = vunpack.c.l.b16 %v5537
      %v6894 = vunpack.c.h.b16 %v5537
      %v6895 = vunpack.c.l.b16 %v5538
      %v6896 = vunpack.c.h.b16 %v5538
      %v6897 = vunpack.c.l.b16 %v5539
      %v6898 = vunpack.c.h.b16 %v5539
      %v6899 = vunpack.c.l.b16 %v5540
      %v6900 = vunpack.c.h.b16 %v5540
      %v6901 = vunpack.c.l.b16 %v5541
      %v6902 = vunpack.c.h.b16 %v5541
      %v6903 = vunpack.c.l.b16 %v5542
      %v6904 = vunpack.c.h.b16 %v5542
      %v6905 = vunpack.c.l.b16 %v5543
      %v6906 = vunpack.c.h.b16 %v5543
      %v6907 = vunpack.c.l.b16 %v5544
      %v6908 = vunpack.c.h.b16 %v5544
      %v6909 = vunpack.c.l.b16 %v5545
      %v6910 = vunpack.c.h.b16 %v5545
      %v6911 = vunpack.c.l.b16 %v5546
      %v6912 = vunpack.c.h.b16 %v5546
      %v6913 = vunpack.c.l.b16 %v5547
      %v6914 = vunpack.c.h.b16 %v5547
      %v6915 = vunpack.c.l.b16 %v5548
      %v6916 = vunpack.c.h.b16 %v5548
      %v6917 = vunpack.c.l.b16 %v5549
      %v6918 = vunpack.c.h.b16 %v5549
      %v6919 = vunpack.c.l.b16 %v5550
      %v6920 = vunpack.c.h.b16 %v5550
      %v6921 = vunpack.c.l.b16 %v5551
      %v6922 = vunpack.c.h.b16 %v5551
      %v6923 = vunpack.c.l.b16 %v5552
      %v6924 = vunpack.c.h.b16 %v5552
      %v6925 = vunpack.c.l.b16 %v5553
      %v6926 = vunpack.c.h.b16 %v5553
      %v6927 = vunpack.c.l.b16 %v5554
      %v6928 = vunpack.c.h.b16 %v5554
      %v6929 = vunpack.c.l.b16 %v5555
      %v6930 = vunpack.c.h.b16 %v5555
      %v6931 = vunpack.c.l.b16 %v5556
      %v6932 = vunpack.c.h.b16 %v5556
      %v6933 = vunpack.c.l.b16 %v5557
      %v6934 = vunpack.c.h.b16 %v5557
      %v6935 = vunpack.c.l.b16 %v5558
      %v6936 = vunpack.c.h.b16 %v5558
      %v6937 = vunpack.c.l.b16 %v5559
      %v6938 = vunpack.c.h.b16 %v5559
      %v6939 = vunpack.c.l.b16 %v5560
      %v6940 = vunpack.c.h.b16 %v5560
      %v6941 = vunpack.c.l.b16 %v5561
      %v6942 = vunpack.c.h.b16 %v5561
      %v6943 = vunpack.c.l.b16 %v5562
      %v6944 = vunpack.c.h.b16 %v5562
      %v6945 = vunpack.c.l.b16 %v5563
      %v6946 = vunpack.c.h.b16 %v5563
      %v6947 = vunpack.c.l.b16 %v5564
      %v6948 = vunpack.c.h.b16 %v5564
      %v6949 = vunpack.c.l.b16 %v5565
      %v6950 = vunpack.c.h.b16 %v5565
      %v6951 = vunpack.c.l.b16 %v5566
      %v6952 = vunpack.c.h.b16 %v5566
      %v6953 = vunpack.c.l.b16 %v5567
      %v6954 = vunpack.c.h.b16 %v5567
      %v6955 = vunpack.c.l.b16 %v5568
      %v6956 = vunpack.c.h.b16 %v5568
      %v6957 = vunpack.c.l.b16 %v5569
      %v6958 = vunpack.c.h.b16 %v5569
      %v6959 = vunpack.c.l.b16 %v5570
      %v6960 = vunpack.c.h.b16 %v5570
      %v6961 = vunpack.c.l.b16 %v5571
      %v6962 = vunpack.c.h.b16 %v5571
      %v6963 = vunpack.c.l.b16 %v5572
      %v6964 = vunpack.c.h.b16 %v5572
      %v6965 = vunpack.c.l.b16 %v5573
      %v6966 = vunpack.c.h.b16 %v5573
      %v6967 = vunpack.c.l.b16 %v5574
      %v6968 = vunpack.c.h.b16 %v5574
      %v6969 = vunpack.c.l.b16 %v5575
      %v6970 = vunpack.c.h.b16 %v5575
      %v6971 = vunpack.c.l.b16 %v5576
      %v6972 = vunpack.c.h.b16 %v5576
      %v6973 = vunpack.c.l.b16 %v5577
      %v6974 = vunpack.c.h.b16 %v5577
      %v6975 = vunpack.c.l.b16 %v5578
      %v6976 = vunpack.c.h.b16 %v5578
      %v6977 = vunpack.c.l.b16 %v5579
      %v6978 = vunpack.c.h.b16 %v5579
      %v6979 = vunpack.c.l.b16 %v5580
      %v6980 = vunpack.c.h.b16 %v5580
      %v6981 = vunpack.c.l.b16 %v5581
      %v6982 = vunpack.c.h.b16 %v5581
      %v6983 = vunpack.c.l.b16 %v5582
      %v6984 = vunpack.c.h.b16 %v5582
      %v6985 = vunpack.c.l.b16 %v5583
      %v6986 = vunpack.c.h.b16 %v5583
      %v6987 = vunpack.c.l.b16 %v5584
      %v6988 = vunpack.c.h.b16 %v5584
      %v6989 = vunpack.c.l.b16 %v5585
      %v6990 = vunpack.c.h.b16 %v5585
      %v6991 = vunpack.c.l.b16 %v5586
      %v6992 = vunpack.c.h.b16 %v5586
      %v6993 = vunpack.c.l.b16 %v5587
      %v6994 = vunpack.c.h.b16 %v5587
      %v6995 = vunpack.c.l.b16 %v5588
      %v6996 = vunpack.c.h.b16 %v5588
      %v6997 = vunpack.c.l.b16 %v5589
      %v6998 = vunpack.c.h.b16 %v5589
      %v6999 = vunpack.c.l.b16 %v5590
      %v7000 = vunpack.c.h.b16 %v5590
      %v7001 = vunpack.c.l.b16 %v5591
      %v7002 = vunpack.c.h.b16 %v5591
      %v7003 = vunpack.c.l.b16 %v5592
      %v7004 = vunpack.c.h.b16 %v5592
      %v7005 = vunpack.c.l.b16 %v5593
      %v7006 = vunpack.c.h.b16 %v5593
      %v7007 = vunpack.c.l.b16 %v5594
      %v7008 = vunpack.c.h.b16 %v5594
      %v7009 = vunpack.c.l.b16 %v5595
      %v7010 = vunpack.c.h.b16 %v5595
      %v7011 = vunpack.c.l.b16 %v5596
      %v7012 = vunpack.c.h.b16 %v5596
      %v7013 = vunpack.c.l.b16 %v5597
      %v7014 = vunpack.c.h.b16 %v5597
      %v7015 = vunpack.c.l.b16 %v5598
      %v7016 = vunpack.c.h.b16 %v5598
      %v7017 = vunpack.c.l.b16 %v5599
      %v7018 = vunpack.c.h.b16 %v5599
      %v7019 = vunpack.c.l.b16 %v5600
      %v7020 = vunpack.c.h.b16 %v5600
      %v7021 = vunpack.c.l.b16 %v5601
      %v7022 = vunpack.c.h.b16 %v5601
      %v7023 = vunpack.c.l.b16 %v5602
      %v7024 = vunpack.c.h.b16 %v5602
      %v7025 = vunpack.c.l.b16 %v5603
      %v7026 = vunpack.c.h.b16 %v5603
      %v7027 = vunpack.c.l.b16 %v5604
      %v7028 = vunpack.c.h.b16 %v5604
      %v7029 = vunpack.c.l.b16 %v5605
      %v7030 = vunpack.c.h.b16 %v5605
      %v7031 = vunpack.c.l.b16 %v5606
      %v7032 = vunpack.c.h.b16 %v5606
      %v7033 = vunpack.c.l.b16 %v5607
      %v7034 = vunpack.c.h.b16 %v5607
      %v7035 = vunpack.c.l.b16 %v5608
      %v7036 = vunpack.c.h.b16 %v5608
      %v7037 = vunpack.c.l.b16 %v5609
      %v7038 = vunpack.c.h.b16 %v5609
      %v7039 = vunpack.c.l.b16 %v5610
      %v7040 = vunpack.c.h.b16 %v5610
      %v7041 = vunpack.c.l.b16 %v5611
      %v7042 = vunpack.c.h.b16 %v5611
      %v7043 = vunpack.c.l.b16 %v5612
      %v7044 = vunpack.c.h.b16 %v5612
      %v7045 = vunpack.c.l.b16 %v5613
      %v7046 = vunpack.c.h.b16 %v5613
      %v7047 = vunpack.c.l.b16 %v5614
      %v7048 = vunpack.c.h.b16 %v5614
      %v7049 = vunpack.c.l.b16 %v5615
      %v7050 = vunpack.c.h.b16 %v5615
      %v7051 = vunpack.c.l.b16 %v5616
      %v7052 = vunpack.c.h.b16 %v5616
      %v7053 = vunpack.c.l.b16 %v5617
      %v7054 = vunpack.c.h.b16 %v5617
      %v7055 = vunpack.c.l.b16 %v5618
      %v7056 = vunpack.c.h.b16 %v5618
      %v7057 = vunpack.c.l.b16 %v5619
      %v7058 = vunpack.c.h.b16 %v5619
      %v7059 = vunpack.c.l.b16 %v5620
      %v7060 = vunpack.c.h.b16 %v5620
      %v7061 = vunpack.c.l.b16 %v5621
      %v7062 = vunpack.c.h.b16 %v5621
      %v7063 = vunpack.c.l.b16 %v5622
      %v7064 = vunpack.c.h.b16 %v5622
      %v7065 = vunpack.c.l.b16 %v5623
      %v7066 = vunpack.c.h.b16 %v5623
      %v7067 = vunpack.c.l.b16 %v5624
      %v7068 = vunpack.c.h.b16 %v5624
      %v7069 = vunpack.c.l.b16 %v5625
      %v7070 = vunpack.c.h.b16 %v5625
      %v7071 = vunpack.c.l.b16 %v5626
      %v7072 = vunpack.c.h.b16 %v5626
      %v7073 = vunpack.c.l.b16 %v5627
      %v7074 = vunpack.c.h.b16 %v5627
      %v7075 = vunpack.c.l.b16 %v5628
      %v7076 = vunpack.c.h.b16 %v5628
      %v7077 = vunpack.c.l.b16 %v5629
      %v7078 = vunpack.c.h.b16 %v5629
      %v7079 = vunpack.c.l.b16 %v5630
      %v7080 = vunpack.c.h.b16 %v5630
      %v7081 = vunpack.c.l.b16 %v5631
      %v7082 = vunpack.c.h.b16 %v5631
      %v7083 = vunpack.c.l.b16 %v5632
      %v7084 = vunpack.c.h.b16 %v5632
      %v7085 = vunpack.c.l.b16 %v5633
      %v7086 = vunpack.c.h.b16 %v5633
      %v7087 = vunpack.c.l.b16 %v5634
      %v7088 = vunpack.c.h.b16 %v5634
      %v7089 = vunpack.c.l.b16 %v5635
      %v7090 = vunpack.c.h.b16 %v5635
      %v7091 = vunpack.c.l.b16 %v5636
      %v7092 = vunpack.c.h.b16 %v5636
      %v7093 = vunpack.c.l.b16 %v5637
      %v7094 = vunpack.c.h.b16 %v5637
      %v7095 = vunpack.c.l.b16 %v5638
      %v7096 = vunpack.c.h.b16 %v5638
      %v7097 = vunpack.c.l.b16 %v5639
      %v7098 = vunpack.c.h.b16 %v5639
      %v7099 = vunpack.c.l.b16 %v5640
      %v7100 = vunpack.c.h.b16 %v5640
      %v7101 = vunpack.c.l.b16 %v5641
      %v7102 = vunpack.c.h.b16 %v5641
      %v7103 = vunpack.c.l.b16 %v5642
      %v7104 = vunpack.c.h.b16 %v5642
      %v7105 = vunpack.c.l.b16 %v5643
      %v7106 = vunpack.c.h.b16 %v5643
      %v7107 = vunpack.c.l.b16 %v5644
      %v7108 = vunpack.c.h.b16 %v5644
      %v7109 = vunpack.c.l.b16 %v5645
      %v7110 = vunpack.c.h.b16 %v5645
      %v7111 = vunpack.c.l.b16 %v5646
      %v7112 = vunpack.c.h.b16 %v5646
      %v7113 = vunpack.c.l.b16 %v5647
      %v7114 = vunpack.c.h.b16 %v5647
      %v7115 = vunpack.c.l.b16 %v5648
      %v7116 = vunpack.c.h.b16 %v5648
      %v7117 = vunpack.c.l.b16 %v5649
      %v7118 = vunpack.c.h.b16 %v5649
      %v7119 = vunpack.c.l.b16 %v5650
      %v7120 = vunpack.c.h.b16 %v5650
      %v7121 = vunpack.c.l.b16 %v5651
      %v7122 = vunpack.c.h.b16 %v5651
      %v7123 = vunpack.c.l.b16 %v5652
      %v7124 = vunpack.c.h.b16 %v5652
      %v7125 = vunpack.c.l.b16 %v5653
      %v7126 = vunpack.c.h.b16 %v5653
      %v7127 = vunpack.c.l.b16 %v5654
      %v7128 = vunpack.c.h.b16 %v5654
      %v7129 = vunpack.c.l.b16 %v5655
      %v7130 = vunpack.c.h.b16 %v5655
      %v7131 = vunpack.c.l.b16 %v5656
      %v7132 = vunpack.c.h.b16 %v5656
      %v7133 = vunpack.c.l.b16 %v5657
      %v7134 = vunpack.c.h.b16 %v5657
      %v7135 = vunpack.c.l.b16 %v5658
      %v7136 = vunpack.c.h.b16 %v5658
      %v7137 = vunpack.c.l.b16 %v5659
      %v7138 = vunpack.c.h.b16 %v5659
      %v7139 = vunpack.c.l.b16 %v5660
      %v7140 = vunpack.c.h.b16 %v5660
      %v7141 = vunpack.c.l.b16 %v5661
      %v7142 = vunpack.c.h.b16 %v5661
      %v7143 = vunpack.c.l.b16 %v5662
      %v7144 = vunpack.c.h.b16 %v5662
      %v7145 = vunpack.c.l.b16 %v5663
      %v7146 = vunpack.c.h.b16 %v5663
      %v7147 = vunpack.c.l.b16 %v5664
      %v7148 = vunpack.c.h.b16 %v5664
      %v7149 = vunpack.c.l.b16 %v5665
      %v7150 = vunpack.c.h.b16 %v5665
      %v7151 = vunpack.c.l.b16 %v5666
      %v7152 = vunpack.c.h.b16 %v5666
      %v7153 = vunpack.c.l.b16 %v5667
      %v7154 = vunpack.c.h.b16 %v5667
      %v7155 = vunpack.c.l.b16 %v5668
      %v7156 = vunpack.c.h.b16 %v5668
      %v7157 = vunpack.c.l.b16 %v5669
      %v7158 = vunpack.c.h.b16 %v5669
      %v7159 = vunpack.c.l.b16 %v5670
      %v7160 = vunpack.c.h.b16 %v5670
      %v7161 = vunpack.c.l.b16 %v5671
      %v7162 = vunpack.c.h.b16 %v5671
      %v7163 = vunpack.c.l.b16 %v5672
      %v7164 = vunpack.c.h.b16 %v5672
      %v7165 = vunpack.c.l.b16 %v5673
      %v7166 = vunpack.c.h.b16 %v5673
      %v7167 = vunpack.c.l.b16 %v5674
      %v7168 = vunpack.c.h.b16 %v5674
      %v7169 = vunpack.c.l.b16 %v5675
      %v7170 = vunpack.c.h.b16 %v5675
      %v7171 = vunpack.c.l.b16 %v5676
      %v7172 = vunpack.c.h.b16 %v5676
      %v7173 = vunpack.c.l.b16 %v5677
      %v7174 = vunpack.c.h.b16 %v5677
      %v7175 = vunpack.c.l.b16 %v5678
      %v7176 = vunpack.c.h.b16 %v5678
      %v7177 = vunpack.c.l.b16 %v5679
      %v7178 = vunpack.c.h.b16 %v5679
      %v7179 = vunpack.c.l.b16 %v5680
      %v7180 = vunpack.c.h.b16 %v5680
      %v7181 = vunpack.c.l.b16 %v5681
      %v7182 = vunpack.c.h.b16 %v5681
      %v7183 = vunpack.c.l.b16 %v5682
      %v7184 = vunpack.c.h.b16 %v5682
      %v7185 = vunpack.c.l.b16 %v5683
      %v7186 = vunpack.c.h.b16 %v5683
      %v7187 = vunpack.c.l.b16 %v5684
      %v7188 = vunpack.c.h.b16 %v5684
      %v7189 = vunpack.c.l.b16 %v5685
      %v7190 = vunpack.c.h.b16 %v5685
      %v7191 = vunpack.c.l.b16 %v5686
      %v7192 = vunpack.c.h.b16 %v5686
      %v7193 = vunpack.c.l.b16 %v5687
      %v7194 = vunpack.c.h.b16 %v5687
      %v7195 = vunpack.c.l.b16 %v5688
      %v7196 = vunpack.c.h.b16 %v5688
      %v7197 = vunpack.c.l.b16 %v5689
      %v7198 = vunpack.c.h.b16 %v5689
      %v7199 = vunpack.c.l.b16 %v5690
      %v7200 = vunpack.c.h.b16 %v5690
      %v7201 = vunpack.c.l.b16 %v5691
      %v7202 = vunpack.c.h.b16 %v5691
      %v7203 = vunpack.c.l.b16 %v5692
      %v7204 = vunpack.c.h.b16 %v5692
      %v7205 = vunpack.c.l.b16 %v5693
      %v7206 = vunpack.c.h.b16 %v5693
      %v7207 = vunpack.c.l.b16 %v5694
      %v7208 = vunpack.c.h.b16 %v5694
      %v7209 = vunpack.c.l.b16 %v5695
      %v7210 = vunpack.c.h.b16 %v5695
      %v7211 = vunpack.c.l.b16 %v5696
      %v7212 = vunpack.c.h.b16 %v5696
      %v7213 = vunpack.c.l.b16 %v5697
      %v7214 = vunpack.c.h.b16 %v5697
      %v7215 = vunpack.c.l.b16 %v5698
      %v7216 = vunpack.c.h.b16 %v5698
      %v7217 = vunpack.c.l.b16 %v5699
      %v7218 = vunpack.c.h.b16 %v5699
      %v7219 = vunpack.c.l.b16 %v5700
      %v7220 = vunpack.c.h.b16 %v5700
      %v7221 = vunpack.c.l.b16 %v5701
      %v7222 = vunpack.c.h.b16 %v5701
      %v7223 = vunpack.c.l.b16 %v5702
      %v7224 = vunpack.c.h.b16 %v5702
      %v7225 = vunpack.c.l.b16 %v5703
      %v7226 = vunpack.c.h.b16 %v5703
      %v7227 = vunpack.c.l.b16 %v5704
      %v7228 = vunpack.c.h.b16 %v5704
      %v7229 = vunpack.c.l.b16 %v5705
      %v7230 = vunpack.c.h.b16 %v5705
      %v7231 = vunpack.c.l.b16 %v5706
      %v7232 = vunpack.c.h.b16 %v5706
      %v7233 = vunpack.c.l.b16 %v5707
      %v7234 = vunpack.c.h.b16 %v5707
      %v7235 = vunpack.c.l.b16 %v5708
      %v7236 = vunpack.c.h.b16 %v5708
      %v7237 = vunpack.c.l.b16 %v5709
      %v7238 = vunpack.c.h.b16 %v5709
      %v7239 = vunpack.c.l.b16 %v5710
      %v7240 = vunpack.c.h.b16 %v5710
      %v7241 = vunpack.c.l.b16 %v5711
      %v7242 = vunpack.c.h.b16 %v5711
      %v7243 = vunpack.c.l.b16 %v5712
      %v7244 = vunpack.c.h.b16 %v5712
      %v7245 = vunpack.c.l.b16 %v5713
      %v7246 = vunpack.c.h.b16 %v5713
      %v7247 = vunpack.c.l.b16 %v5714
      %v7248 = vunpack.c.h.b16 %v5714
      %v7249 = vunpack.c.l.b16 %v5715
      %v7250 = vunpack.c.h.b16 %v5715
      %v7251 = vunpack.c.l.b16 %v5716
      %v7252 = vunpack.c.h.b16 %v5716
      %v7253 = vpack.c.b16 %v6237, %v6229
      %v7254 = vpack.c.b16 %v6238, %v6230
      %v7255 = vpack.c.b16 %v6239, %v6231
      %v7256 = vpack.c.b16 %v6240, %v6232
      %v7257 = vpack.c.b16 %v6241, %v6233
      %v7258 = vpack.c.b16 %v6242, %v6234
      %v7259 = vpack.c.b16 %v6243, %v6235
      %v7260 = vpack.c.b16 %v6244, %v6236
      %v7261 = vpack.c.b16 %v6253, %v6245
      %v7262 = vpack.c.b16 %v6254, %v6246
      %v7263 = vpack.c.b16 %v6255, %v6247
      %v7264 = vpack.c.b16 %v6256, %v6248
      %v7265 = vpack.c.b16 %v6257, %v6249
      %v7266 = vpack.c.b16 %v6258, %v6250
      %v7267 = vpack.c.b16 %v6259, %v6251
      %v7268 = vpack.c.b16 %v6260, %v6252
      %v7269 = vpack.c.b16 %v6269, %v6261
      %v7270 = vpack.c.b16 %v6270, %v6262
      %v7271 = vpack.c.b16 %v6271, %v6263
      %v7272 = vpack.c.b16 %v6272, %v6264
      %v7273 = vpack.c.b16 %v6273, %v6265
      %v7274 = vpack.c.b16 %v6274, %v6266
      %v7275 = vpack.c.b16 %v6275, %v6267
      %v7276 = vpack.c.b16 %v6276, %v6268
      %v7277 = vpack.c.b16 %v6285, %v6277
      %v7278 = vpack.c.b16 %v6286, %v6278
      %v7279 = vpack.c.b16 %v6287, %v6279
      %v7280 = vpack.c.b16 %v6288, %v6280
      %v7281 = vpack.c.b16 %v6289, %v6281
      %v7282 = vpack.c.b16 %v6290, %v6282
      %v7283 = vpack.c.b16 %v6291, %v6283
      %v7284 = vpack.c.b16 %v6292, %v6284
      %v7285 = vpack.c.b16 %v6301, %v6293
      %v7286 = vpack.c.b16 %v6302, %v6294
      %v7287 = vpack.c.b16 %v6303, %v6295
      %v7288 = vpack.c.b16 %v6304, %v6296
      %v7289 = vpack.c.b16 %v6305, %v6297
      %v7290 = vpack.c.b16 %v6306, %v6298
      %v7291 = vpack.c.b16 %v6307, %v6299
      %v7292 = vpack.c.b16 %v6308, %v6300
      %v7293 = vpack.c.b16 %v6317, %v6309
      %v7294 = vpack.c.b16 %v6318, %v6310
      %v7295 = vpack.c.b16 %v6319, %v6311
      %v7296 = vpack.c.b16 %v6320, %v6312
      %v7297 = vpack.c.b16 %v6321, %v6313
      %v7298 = vpack.c.b16 %v6322, %v6314
      %v7299 = vpack.c.b16 %v6323, %v6315
      %v7300 = vpack.c.b16 %v6324, %v6316
      %v7301 = vpack.c.b16 %v6333, %v6325
      %v7302 = vpack.c.b16 %v6334, %v6326
      %v7303 = vpack.c.b16 %v6335, %v6327
      %v7304 = vpack.c.b16 %v6336, %v6328
      %v7305 = vpack.c.b16 %v6337, %v6329
      %v7306 = vpack.c.b16 %v6338, %v6330
      %v7307 = vpack.c.b16 %v6339, %v6331
      %v7308 = vpack.c.b16 %v6340, %v6332
      %v7309 = vpack.c.b16 %v6349, %v6341
      %v7310 = vpack.c.b16 %v6350, %v6342
      %v7311 = vpack.c.b16 %v6351, %v6343
      %v7312 = vpack.c.b16 %v6352, %v6344
      %v7313 = vpack.c.b16 %v6353, %v6345
      %v7314 = vpack.c.b16 %v6354, %v6346
      %v7315 = vpack.c.b16 %v6355, %v6347
      %v7316 = vpack.c.b16 %v6356, %v6348
      %v7317 = vpack.c.b16 %v6365, %v6357
      %v7318 = vpack.c.b16 %v6366, %v6358
      %v7319 = vpack.c.b16 %v6367, %v6359
      %v7320 = vpack.c.b16 %v6368, %v6360
      %v7321 = vpack.c.b16 %v6369, %v6361
      %v7322 = vpack.c.b16 %v6370, %v6362
      %v7323 = vpack.c.b16 %v6371, %v6363
      %v7324 = vpack.c.b16 %v6372, %v6364
      %v7325 = vpack.c.b16 %v6381, %v6373
      %v7326 = vpack.c.b16 %v6382, %v6374
      %v7327 = vpack.c.b16 %v6383, %v6375
      %v7328 = vpack.c.b16 %v6384, %v6376
      %v7329 = vpack.c.b16 %v6385, %v6377
      %v7330 = vpack.c.b16 %v6386, %v6378
      %v7331 = vpack.c.b16 %v6387, %v6379
      %v7332 = vpack.c.b16 %v6388, %v6380
      %v7333 = vpack.c.b16 %v6397, %v6389
      %v7334 = vpack.c.b16 %v6398, %v6390
      %v7335 = vpack.c.b16 %v6399, %v6391
      %v7336 = vpack.c.b16 %v6400, %v6392
      %v7337 = vpack.c.b16 %v6401, %v6393
      %v7338 = vpack.c.b16 %v6402, %v6394
      %v7339 = vpack.c.b16 %v6403, %v6395
      %v7340 = vpack.c.b16 %v6404, %v6396
      %v7341 = vpack.c.b16 %v6413, %v6405
      %v7342 = vpack.c.b16 %v6414, %v6406
      %v7343 = vpack.c.b16 %v6415, %v6407
      %v7344 = vpack.c.b16 %v6416, %v6408
      %v7345 = vpack.c.b16 %v6417, %v6409
      %v7346 = vpack.c.b16 %v6418, %v6410
      %v7347 = vpack.c.b16 %v6419, %v6411
      %v7348 = vpack.c.b16 %v6420, %v6412
      %v7349 = vpack.c.b16 %v6429, %v6421
      %v7350 = vpack.c.b16 %v6430, %v6422
      %v7351 = vpack.c.b16 %v6431, %v6423
      %v7352 = vpack.c.b16 %v6432, %v6424
      %v7353 = vpack.c.b16 %v6433, %v6425
      %v7354 = vpack.c.b16 %v6434, %v6426
      %v7355 = vpack.c.b16 %v6435, %v6427
      %v7356 = vpack.c.b16 %v6436, %v6428
      %v7357 = vpack.c.b16 %v6445, %v6437
      %v7358 = vpack.c.b16 %v6446, %v6438
      %v7359 = vpack.c.b16 %v6447, %v6439
      %v7360 = vpack.c.b16 %v6448, %v6440
      %v7361 = vpack.c.b16 %v6449, %v6441
      %v7362 = vpack.c.b16 %v6450, %v6442
      %v7363 = vpack.c.b16 %v6451, %v6443
      %v7364 = vpack.c.b16 %v6452, %v6444
      %v7365 = vpack.c.b16 %v6461, %v6453
      %v7366 = vpack.c.b16 %v6462, %v6454
      %v7367 = vpack.c.b16 %v6463, %v6455
      %v7368 = vpack.c.b16 %v6464, %v6456
      %v7369 = vpack.c.b16 %v6465, %v6457
      %v7370 = vpack.c.b16 %v6466, %v6458
      %v7371 = vpack.c.b16 %v6467, %v6459
      %v7372 = vpack.c.b16 %v6468, %v6460
      %v7373 = vpack.c.b16 %v6477, %v6469
      %v7374 = vpack.c.b16 %v6478, %v6470
      %v7375 = vpack.c.b16 %v6479, %v6471
      %v7376 = vpack.c.b16 %v6480, %v6472
      %v7377 = vpack.c.b16 %v6481, %v6473
      %v7378 = vpack.c.b16 %v6482, %v6474
      %v7379 = vpack.c.b16 %v6483, %v6475
      %v7380 = vpack.c.b16 %v6484, %v6476
      %v7381 = vpack.c.b16 %v6493, %v6485
      %v7382 = vpack.c.b16 %v6494, %v6486
      %v7383 = vpack.c.b16 %v6495, %v6487
      %v7384 = vpack.c.b16 %v6496, %v6488
      %v7385 = vpack.c.b16 %v6497, %v6489
      %v7386 = vpack.c.b16 %v6498, %v6490
      %v7387 = vpack.c.b16 %v6499, %v6491
      %v7388 = vpack.c.b16 %v6500, %v6492
      %v7389 = vpack.c.b16 %v6509, %v6501
      %v7390 = vpack.c.b16 %v6510, %v6502
      %v7391 = vpack.c.b16 %v6511, %v6503
      %v7392 = vpack.c.b16 %v6512, %v6504
      %v7393 = vpack.c.b16 %v6513, %v6505
      %v7394 = vpack.c.b16 %v6514, %v6506
      %v7395 = vpack.c.b16 %v6515, %v6507
      %v7396 = vpack.c.b16 %v6516, %v6508
      %v7397 = vpack.c.b16 %v6525, %v6517
      %v7398 = vpack.c.b16 %v6526, %v6518
      %v7399 = vpack.c.b16 %v6527, %v6519
      %v7400 = vpack.c.b16 %v6528, %v6520
      %v7401 = vpack.c.b16 %v6529, %v6521
      %v7402 = vpack.c.b16 %v6530, %v6522
      %v7403 = vpack.c.b16 %v6531, %v6523
      %v7404 = vpack.c.b16 %v6532, %v6524
      %v7405 = vpack.c.b16 %v6541, %v6533
      %v7406 = vpack.c.b16 %v6542, %v6534
      %v7407 = vpack.c.b16 %v6543, %v6535
      %v7408 = vpack.c.b16 %v6544, %v6536
      %v7409 = vpack.c.b16 %v6545, %v6537
      %v7410 = vpack.c.b16 %v6546, %v6538
      %v7411 = vpack.c.b16 %v6547, %v6539
      %v7412 = vpack.c.b16 %v6548, %v6540
      %v7413 = vpack.c.b16 %v6557, %v6549
      %v7414 = vpack.c.b16 %v6558, %v6550
      %v7415 = vpack.c.b16 %v6559, %v6551
      %v7416 = vpack.c.b16 %v6560, %v6552
      %v7417 = vpack.c.b16 %v6561, %v6553
      %v7418 = vpack.c.b16 %v6562, %v6554
      %v7419 = vpack.c.b16 %v6563, %v6555
      %v7420 = vpack.c.b16 %v6564, %v6556
      %v7421 = vpack.c.b16 %v6573, %v6565
      %v7422 = vpack.c.b16 %v6574, %v6566
      %v7423 = vpack.c.b16 %v6575, %v6567
      %v7424 = vpack.c.b16 %v6576, %v6568
      %v7425 = vpack.c.b16 %v6577, %v6569
      %v7426 = vpack.c.b16 %v6578, %v6570
      %v7427 = vpack.c.b16 %v6579, %v6571
      %v7428 = vpack.c.b16 %v6580, %v6572
      %v7429 = vpack.c.b16 %v6589, %v6581
      %v7430 = vpack.c.b16 %v6590, %v6582
      %v7431 = vpack.c.b16 %v6591, %v6583
      %v7432 = vpack.c.b16 %v6592, %v6584
      %v7433 = vpack.c.b16 %v6593, %v6585
      %v7434 = vpack.c.b16 %v6594, %v6586
      %v7435 = vpack.c.b16 %v6595, %v6587
      %v7436 = vpack.c.b16 %v6596, %v6588
      %v7437 = vpack.c.b16 %v6605, %v6597
      %v7438 = vpack.c.b16 %v6606, %v6598
      %v7439 = vpack.c.b16 %v6607, %v6599
      %v7440 = vpack.c.b16 %v6608, %v6600
      %v7441 = vpack.c.b16 %v6609, %v6601
      %v7442 = vpack.c.b16 %v6610, %v6602
      %v7443 = vpack.c.b16 %v6611, %v6603
      %v7444 = vpack.c.b16 %v6612, %v6604
      %v7445 = vpack.c.b16 %v6621, %v6613
      %v7446 = vpack.c.b16 %v6622, %v6614
      %v7447 = vpack.c.b16 %v6623, %v6615
      %v7448 = vpack.c.b16 %v6624, %v6616
      %v7449 = vpack.c.b16 %v6625, %v6617
      %v7450 = vpack.c.b16 %v6626, %v6618
      %v7451 = vpack.c.b16 %v6627, %v6619
      %v7452 = vpack.c.b16 %v6628, %v6620
      %v7453 = vpack.c.b16 %v6637, %v6629
      %v7454 = vpack.c.b16 %v6638, %v6630
      %v7455 = vpack.c.b16 %v6639, %v6631
      %v7456 = vpack.c.b16 %v6640, %v6632
      %v7457 = vpack.c.b16 %v6641, %v6633
      %v7458 = vpack.c.b16 %v6642, %v6634
      %v7459 = vpack.c.b16 %v6643, %v6635
      %v7460 = vpack.c.b16 %v6644, %v6636
      %v7461 = vpack.c.b16 %v6653, %v6645
      %v7462 = vpack.c.b16 %v6654, %v6646
      %v7463 = vpack.c.b16 %v6655, %v6647
      %v7464 = vpack.c.b16 %v6656, %v6648
      %v7465 = vpack.c.b16 %v6657, %v6649
      %v7466 = vpack.c.b16 %v6658, %v6650
      %v7467 = vpack.c.b16 %v6659, %v6651
      %v7468 = vpack.c.b16 %v6660, %v6652
      %v7469 = vpack.c.b16 %v6669, %v6661
      %v7470 = vpack.c.b16 %v6670, %v6662
      %v7471 = vpack.c.b16 %v6671, %v6663
      %v7472 = vpack.c.b16 %v6672, %v6664
      %v7473 = vpack.c.b16 %v6673, %v6665
      %v7474 = vpack.c.b16 %v6674, %v6666
      %v7475 = vpack.c.b16 %v6675, %v6667
      %v7476 = vpack.c.b16 %v6676, %v6668
      %v7477 = vpack.c.b16 %v6685, %v6677
      %v7478 = vpack.c.b16 %v6686, %v6678
      %v7479 = vpack.c.b16 %v6687, %v6679
      %v7480 = vpack.c.b16 %v6688, %v6680
      %v7481 = vpack.c.b16 %v6689, %v6681
      %v7482 = vpack.c.b16 %v6690, %v6682
      %v7483 = vpack.c.b16 %v6691, %v6683
      %v7484 = vpack.c.b16 %v6692, %v6684
      %v7485 = vpack.c.b16 %v6701, %v6693
      %v7486 = vpack.c.b16 %v6702, %v6694
      %v7487 = vpack.c.b16 %v6703, %v6695
      %v7488 = vpack.c.b16 %v6704, %v6696
      %v7489 = vpack.c.b16 %v6705, %v6697
      %v7490 = vpack.c.b16 %v6706, %v6698
      %v7491 = vpack.c.b16 %v6707, %v6699
      %v7492 = vpack.c.b16 %v6708, %v6700
      %v7493 = vpack.c.b16 %v6717, %v6709
      %v7494 = vpack.c.b16 %v6718, %v6710
      %v7495 = vpack.c.b16 %v6719, %v6711
      %v7496 = vpack.c.b16 %v6720, %v6712
      %v7497 = vpack.c.b16 %v6721, %v6713
      %v7498 = vpack.c.b16 %v6722, %v6714
      %v7499 = vpack.c.b16 %v6723, %v6715
      %v7500 = vpack.c.b16 %v6724, %v6716
      %v7501 = vpack.c.b16 %v6733, %v6725
      %v7502 = vpack.c.b16 %v6734, %v6726
      %v7503 = vpack.c.b16 %v6735, %v6727
      %v7504 = vpack.c.b16 %v6736, %v6728
      %v7505 = vpack.c.b16 %v6737, %v6729
      %v7506 = vpack.c.b16 %v6738, %v6730
      %v7507 = vpack.c.b16 %v6739, %v6731
      %v7508 = vpack.c.b16 %v6740, %v6732
      %v7509 = vpack.c.b16 %v6749, %v6741
      %v7510 = vpack.c.b16 %v6750, %v6742
      %v7511 = vpack.c.b16 %v6751, %v6743
      %v7512 = vpack.c.b16 %v6752, %v6744
      %v7513 = vpack.c.b16 %v6753, %v6745
      %v7514 = vpack.c.b16 %v6754, %v6746
      %v7515 = vpack.c.b16 %v6755, %v6747
      %v7516 = vpack.c.b16 %v6756, %v6748
      %v7517 = vpack.c.b16 %v6765, %v6757
      %v7518 = vpack.c.b16 %v6766, %v6758
      %v7519 = vpack.c.b16 %v6767, %v6759
      %v7520 = vpack.c.b16 %v6768, %v6760
      %v7521 = vpack.c.b16 %v6769, %v6761
      %v7522 = vpack.c.b16 %v6770, %v6762
      %v7523 = vpack.c.b16 %v6771, %v6763
      %v7524 = vpack.c.b16 %v6772, %v6764
      %v7525 = vpack.c.b16 %v6781, %v6773
      %v7526 = vpack.c.b16 %v6782, %v6774
      %v7527 = vpack.c.b16 %v6783, %v6775
      %v7528 = vpack.c.b16 %v6784, %v6776
      %v7529 = vpack.c.b16 %v6785, %v6777
      %v7530 = vpack.c.b16 %v6786, %v6778
      %v7531 = vpack.c.b16 %v6787, %v6779
      %v7532 = vpack.c.b16 %v6788, %v6780
      %v7533 = vpack.c.b16 %v6797, %v6789
      %v7534 = vpack.c.b16 %v6798, %v6790
      %v7535 = vpack.c.b16 %v6799, %v6791
      %v7536 = vpack.c.b16 %v6800, %v6792
      %v7537 = vpack.c.b16 %v6801, %v6793
      %v7538 = vpack.c.b16 %v6802, %v6794
      %v7539 = vpack.c.b16 %v6803, %v6795
      %v7540 = vpack.c.b16 %v6804, %v6796
      %v7541 = vpack.c.b16 %v6813, %v6805
      %v7542 = vpack.c.b16 %v6814, %v6806
      %v7543 = vpack.c.b16 %v6815, %v6807
      %v7544 = vpack.c.b16 %v6816, %v6808
      %v7545 = vpack.c.b16 %v6817, %v6809
      %v7546 = vpack.c.b16 %v6818, %v6810
      %v7547 = vpack.c.b16 %v6819, %v6811
      %v7548 = vpack.c.b16 %v6820, %v6812
      %v7549 = vpack.c.b16 %v6829, %v6821
      %v7550 = vpack.c.b16 %v6830, %v6822
      %v7551 = vpack.c.b16 %v6831, %v6823
      %v7552 = vpack.c.b16 %v6832, %v6824
      %v7553 = vpack.c.b16 %v6833, %v6825
      %v7554 = vpack.c.b16 %v6834, %v6826
      %v7555 = vpack.c.b16 %v6835, %v6827
      %v7556 = vpack.c.b16 %v6836, %v6828
      %v7557 = vpack.c.b16 %v6845, %v6837
      %v7558 = vpack.c.b16 %v6846, %v6838
      %v7559 = vpack.c.b16 %v6847, %v6839
      %v7560 = vpack.c.b16 %v6848, %v6840
      %v7561 = vpack.c.b16 %v6849, %v6841
      %v7562 = vpack.c.b16 %v6850, %v6842
      %v7563 = vpack.c.b16 %v6851, %v6843
      %v7564 = vpack.c.b16 %v6852, %v6844
      %v7565 = vpack.c.b16 %v6861, %v6853
      %v7566 = vpack.c.b16 %v6862, %v6854
      %v7567 = vpack.c.b16 %v6863, %v6855
      %v7568 = vpack.c.b16 %v6864, %v6856
      %v7569 = vpack.c.b16 %v6865, %v6857
      %v7570 = vpack.c.b16 %v6866, %v6858
      %v7571 = vpack.c.b16 %v6867, %v6859
      %v7572 = vpack.c.b16 %v6868, %v6860
      %v7573 = vpack.c.b16 %v6877, %v6869
      %v7574 = vpack.c.b16 %v6878, %v6870
      %v7575 = vpack.c.b16 %v6879, %v6871
      %v7576 = vpack.c.b16 %v6880, %v6872
      %v7577 = vpack.c.b16 %v6881, %v6873
      %v7578 = vpack.c.b16 %v6882, %v6874
      %v7579 = vpack.c.b16 %v6883, %v6875
      %v7580 = vpack.c.b16 %v6884, %v6876
      %v7581 = vpack.c.b16 %v6893, %v6885
      %v7582 = vpack.c.b16 %v6894, %v6886
      %v7583 = vpack.c.b16 %v6895, %v6887
      %v7584 = vpack.c.b16 %v6896, %v6888
      %v7585 = vpack.c.b16 %v6897, %v6889
      %v7586 = vpack.c.b16 %v6898, %v6890
      %v7587 = vpack.c.b16 %v6899, %v6891
      %v7588 = vpack.c.b16 %v6900, %v6892
      %v7589 = vpack.c.b16 %v6909, %v6901
      %v7590 = vpack.c.b16 %v6910, %v6902
      %v7591 = vpack.c.b16 %v6911, %v6903
      %v7592 = vpack.c.b16 %v6912, %v6904
      %v7593 = vpack.c.b16 %v6913, %v6905
      %v7594 = vpack.c.b16 %v6914, %v6906
      %v7595 = vpack.c.b16 %v6915, %v6907
      %v7596 = vpack.c.b16 %v6916, %v6908
      %v7597 = vpack.c.b16 %v6925, %v6917
      %v7598 = vpack.c.b16 %v6926, %v6918
      %v7599 = vpack.c.b16 %v6927, %v6919
      %v7600 = vpack.c.b16 %v6928, %v6920
      %v7601 = vpack.c.b16 %v6929, %v6921
      %v7602 = vpack.c.b16 %v6930, %v6922
      %v7603 = vpack.c.b16 %v6931, %v6923
      %v7604 = vpack.c.b16 %v6932, %v6924
      %v7605 = vpack.c.b16 %v6941, %v6933
      %v7606 = vpack.c.b16 %v6942, %v6934
      %v7607 = vpack.c.b16 %v6943, %v6935
      %v7608 = vpack.c.b16 %v6944, %v6936
      %v7609 = vpack.c.b16 %v6945, %v6937
      %v7610 = vpack.c.b16 %v6946, %v6938
      %v7611 = vpack.c.b16 %v6947, %v6939
      %v7612 = vpack.c.b16 %v6948, %v6940
      %v7613 = vpack.c.b16 %v6957, %v6949
      %v7614 = vpack.c.b16 %v6958, %v6950
      %v7615 = vpack.c.b16 %v6959, %v6951
      %v7616 = vpack.c.b16 %v6960, %v6952
      %v7617 = vpack.c.b16 %v6961, %v6953
      %v7618 = vpack.c.b16 %v6962, %v6954
      %v7619 = vpack.c.b16 %v6963, %v6955
      %v7620 = vpack.c.b16 %v6964, %v6956
      %v7621 = vpack.c.b16 %v6973, %v6965
      %v7622 = vpack.c.b16 %v6974, %v6966
      %v7623 = vpack.c.b16 %v6975, %v6967
      %v7624 = vpack.c.b16 %v6976, %v6968
      %v7625 = vpack.c.b16 %v6977, %v6969
      %v7626 = vpack.c.b16 %v6978, %v6970
      %v7627 = vpack.c.b16 %v6979, %v6971
      %v7628 = vpack.c.b16 %v6980, %v6972
      %v7629 = vpack.c.b16 %v6989, %v6981
      %v7630 = vpack.c.b16 %v6990, %v6982
      %v7631 = vpack.c.b16 %v6991, %v6983
      %v7632 = vpack.c.b16 %v6992, %v6984
      %v7633 = vpack.c.b16 %v6993, %v6985
      %v7634 = vpack.c.b16 %v6994, %v6986
      %v7635 = vpack.c.b16 %v6995, %v6987
      %v7636 = vpack.c.b16 %v6996, %v6988
      %v7637 = vpack.c.b16 %v7005, %v6997
      %v7638 = vpack.c.b16 %v7006, %v6998
      %v7639 = vpack.c.b16 %v7007, %v6999
      %v7640 = vpack.c.b16 %v7008, %v7000
      %v7641 = vpack.c.b16 %v7009, %v7001
      %v7642 = vpack.c.b16 %v7010, %v7002
      %v7643 = vpack.c.b16 %v7011, %v7003
      %v7644 = vpack.c.b16 %v7012, %v7004
      %v7645 = vpack.c.b16 %v7021, %v7013
      %v7646 = vpack.c.b16 %v7022, %v7014
      %v7647 = vpack.c.b16 %v7023, %v7015
      %v7648 = vpack.c.b16 %v7024, %v7016
      %v7649 = vpack.c.b16 %v7025, %v7017
      %v7650 = vpack.c.b16 %v7026, %v7018
      %v7651 = vpack.c.b16 %v7027, %v7019
      %v7652 = vpack.c.b16 %v7028, %v7020
      %v7653 = vpack.c.b16 %v7037, %v7029
      %v7654 = vpack.c.b16 %v7038, %v7030
      %v7655 = vpack.c.b16 %v7039, %v7031
      %v7656 = vpack.c.b16 %v7040, %v7032
      %v7657 = vpack.c.b16 %v7041, %v7033
      %v7658 = vpack.c.b16 %v7042, %v7034
      %v7659 = vpack.c.b16 %v7043, %v7035
      %v7660 = vpack.c.b16 %v7044, %v7036
      %v7661 = vpack.c.b16 %v7053, %v7045
      %v7662 = vpack.c.b16 %v7054, %v7046
      %v7663 = vpack.c.b16 %v7055, %v7047
      %v7664 = vpack.c.b16 %v7056, %v7048
      %v7665 = vpack.c.b16 %v7057, %v7049
      %v7666 = vpack.c.b16 %v7058, %v7050
      %v7667 = vpack.c.b16 %v7059, %v7051
      %v7668 = vpack.c.b16 %v7060, %v7052
      %v7669 = vpack.c.b16 %v7069, %v7061
      %v7670 = vpack.c.b16 %v7070, %v7062
      %v7671 = vpack.c.b16 %v7071, %v7063
      %v7672 = vpack.c.b16 %v7072, %v7064
      %v7673 = vpack.c.b16 %v7073, %v7065
      %v7674 = vpack.c.b16 %v7074, %v7066
      %v7675 = vpack.c.b16 %v7075, %v7067
      %v7676 = vpack.c.b16 %v7076, %v7068
      %v7677 = vpack.c.b16 %v7085, %v7077
      %v7678 = vpack.c.b16 %v7086, %v7078
      %v7679 = vpack.c.b16 %v7087, %v7079
      %v7680 = vpack.c.b16 %v7088, %v7080
      %v7681 = vpack.c.b16 %v7089, %v7081
      %v7682 = vpack.c.b16 %v7090, %v7082
      %v7683 = vpack.c.b16 %v7091, %v7083
      %v7684 = vpack.c.b16 %v7092, %v7084
      %v7685 = vpack.c.b16 %v7101, %v7093
      %v7686 = vpack.c.b16 %v7102, %v7094
      %v7687 = vpack.c.b16 %v7103, %v7095
      %v7688 = vpack.c.b16 %v7104, %v7096
      %v7689 = vpack.c.b16 %v7105, %v7097
      %v7690 = vpack.c.b16 %v7106, %v7098
      %v7691 = vpack.c.b16 %v7107, %v7099
      %v7692 = vpack.c.b16 %v7108, %v7100
      %v7693 = vpack.c.b16 %v7117, %v7109
      %v7694 = vpack.c.b16 %v7118, %v7110
      %v7695 = vpack.c.b16 %v7119, %v7111
      %v7696 = vpack.c.b16 %v7120, %v7112
      %v7697 = vpack.c.b16 %v7121, %v7113
      %v7698 = vpack.c.b16 %v7122, %v7114
      %v7699 = vpack.c.b16 %v7123, %v7115
      %v7700 = vpack.c.b16 %v7124, %v7116
      %v7701 = vpack.c.b16 %v7133, %v7125
      %v7702 = vpack.c.b16 %v7134, %v7126
      %v7703 = vpack.c.b16 %v7135, %v7127
      %v7704 = vpack.c.b16 %v7136, %v7128
      %v7705 = vpack.c.b16 %v7137, %v7129
      %v7706 = vpack.c.b16 %v7138, %v7130
      %v7707 = vpack.c.b16 %v7139, %v7131
      %v7708 = vpack.c.b16 %v7140, %v7132
      %v7709 = vpack.c.b16 %v7149, %v7141
      %v7710 = vpack.c.b16 %v7150, %v7142
      %v7711 = vpack.c.b16 %v7151, %v7143
      %v7712 = vpack.c.b16 %v7152, %v7144
      %v7713 = vpack.c.b16 %v7153, %v7145
      %v7714 = vpack.c.b16 %v7154, %v7146
      %v7715 = vpack.c.b16 %v7155, %v7147
      %v7716 = vpack.c.b16 %v7156, %v7148
      %v7717 = vpack.c.b16 %v7165, %v7157
      %v7718 = vpack.c.b16 %v7166, %v7158
      %v7719 = vpack.c.b16 %v7167, %v7159
      %v7720 = vpack.c.b16 %v7168, %v7160
      %v7721 = vpack.c.b16 %v7169, %v7161
      %v7722 = vpack.c.b16 %v7170, %v7162
      %v7723 = vpack.c.b16 %v7171, %v7163
      %v7724 = vpack.c.b16 %v7172, %v7164
      %v7725 = vpack.c.b16 %v7181, %v7173
      %v7726 = vpack.c.b16 %v7182, %v7174
      %v7727 = vpack.c.b16 %v7183, %v7175
      %v7728 = vpack.c.b16 %v7184, %v7176
      %v7729 = vpack.c.b16 %v7185, %v7177
      %v7730 = vpack.c.b16 %v7186, %v7178
      %v7731 = vpack.c.b16 %v7187, %v7179
      %v7732 = vpack.c.b16 %v7188, %v7180
      %v7733 = vpack.c.b16 %v7197, %v7189
      %v7734 = vpack.c.b16 %v7198, %v7190
      %v7735 = vpack.c.b16 %v7199, %v7191
      %v7736 = vpack.c.b16 %v7200, %v7192
      %v7737 = vpack.c.b16 %v7201, %v7193
      %v7738 = vpack.c.b16 %v7202, %v7194
      %v7739 = vpack.c.b16 %v7203, %v7195
      %v7740 = vpack.c.b16 %v7204, %v7196
      %v7741 = vpack.c.b16 %v7213, %v7205
      %v7742 = vpack.c.b16 %v7214, %v7206
      %v7743 = vpack.c.b16 %v7215, %v7207
      %v7744 = vpack.c.b16 %v7216, %v7208
      %v7745 = vpack.c.b16 %v7217, %v7209
      %v7746 = vpack.c.b16 %v7218, %v7210
      %v7747 = vpack.c.b16 %v7219, %v7211
      %v7748 = vpack.c.b16 %v7220, %v7212
      %v7749 = vpack.c.b16 %v7229, %v7221
      %v7750 = vpack.c.b16 %v7230, %v7222
      %v7751 = vpack.c.b16 %v7231, %v7223
      %v7752 = vpack.c.b16 %v7232, %v7224
      %v7753 = vpack.c.b16 %v7233, %v7225
      %v7754 = vpack.c.b16 %v7234, %v7226
      %v7755 = vpack.c.b16 %v7235, %v7227
      %v7756 = vpack.c.b16 %v7236, %v7228
      %v7757 = vpack.c.b16 %v7245, %v7237
      %v7758 = vpack.c.b16 %v7246, %v7238
      %v7759 = vpack.c.b16 %v7247, %v7239
      %v7760 = vpack.c.b16 %v7248, %v7240
      %v7761 = vpack.c.b16 %v7249, %v7241
      %v7762 = vpack.c.b16 %v7250, %v7242
      %v7763 = vpack.c.b16 %v7251, %v7243
      %v7764 = vpack.c.b16 %v7252, %v7244
      %8277 = vmatpush.bf16.msra.mxu0 %v7309
      %8278 = vmatpush.bf16.msra.mxu0 %v7301
      %8279 = vmatpush.bf16.msra.mxu0 %v7293
      %8280 = vmatpush.bf16.msra.mxu0 %v7285
      %8281 = vmatpush.bf16.msra.mxu0 %v7277
      %8282 = vmatpush.bf16.msra.mxu0 %v7269
      %8283 = vmatpush.bf16.msra.mxu0 %v7261
      %8284 = vmatpush.bf16.msra.mxu0 %v7253
      %8285 = vmatmul.bf16.gmra.mxu0 %v4293
      %v8286 = vpop.f32.mrf.mxu0
      %v8287 = vadd.f32 0.0, %v8286
      %v8288 = vpop.f32.mrf.mxu0
      %v8289 = vadd.f32 0.0, %v8288
      %8290 = vdwg.mxu0
      %8291 = vmatpush.bf16.msra.mxu0 %v7373
      %8292 = vmatpush.bf16.msra.mxu0 %v7365
      %8293 = vmatpush.bf16.msra.mxu0 %v7357
      %8294 = vmatpush.bf16.msra.mxu0 %v7349
      %8295 = vmatpush.bf16.msra.mxu0 %v7341
      %8296 = vmatpush.bf16.msra.mxu0 %v7333
      %8297 = vmatpush.bf16.msra.mxu0 %v7325
      %8298 = vmatpush.bf16.msra.mxu0 %v7317
      %8299 = vmatmul.bf16.gmra.mxu0 %v4294
      %v8300 = vpop.f32.mrf.mxu0
      %v8301 = vadd.f32 %v8287, %v8300
      %v8302 = vpop.f32.mrf.mxu0
      %v8303 = vadd.f32 %v8289, %v8302
      %8304 = vdwg.mxu0
      %8305 = vmatpush.bf16.msra.mxu0 %v7437
      %8306 = vmatpush.bf16.msra.mxu0 %v7429
      %8307 = vmatpush.bf16.msra.mxu0 %v7421
      %8308 = vmatpush.bf16.msra.mxu0 %v7413
      %8309 = vmatpush.bf16.msra.mxu0 %v7405
      %8310 = vmatpush.bf16.msra.mxu0 %v7397
      %8311 = vmatpush.bf16.msra.mxu0 %v7389
      %8312 = vmatpush.bf16.msra.mxu0 %v7381
      %8313 = vmatmul.bf16.gmra.mxu0 %v4295
      %v8314 = vpop.f32.mrf.mxu0
      %v8315 = vadd.f32 %v8301, %v8314
      %v8316 = vpop.f32.mrf.mxu0
      %v8317 = vadd.f32 %v8303, %v8316
      %8318 = vdwg.mxu0
      %8319 = vmatpush.bf16.msra.mxu0 %v7501
      %8320 = vmatpush.bf16.msra.mxu0 %v7493
      %8321 = vmatpush.bf16.msra.mxu0 %v7485
      %8322 = vmatpush.bf16.msra.mxu0 %v7477
      %8323 = vmatpush.bf16.msra.mxu0 %v7469
      %8324 = vmatpush.bf16.msra.mxu0 %v7461
      %8325 = vmatpush.bf16.msra.mxu0 %v7453
      %8326 = vmatpush.bf16.msra.mxu0 %v7445
      %8327 = vmatmul.bf16.gmra.mxu0 %v4296
      %v8328 = vpop.f32.mrf.mxu0
      %v8329 = vadd.f32 %v8315, %v8328
      %v8330 = vpop.f32.mrf.mxu0
      %v8331 = vadd.f32 %v8317, %v8330
      %8332 = vdwg.mxu0
      %8333 = vmatpush.bf16.msra.mxu0 %v7565
      %8334 = vmatpush.bf16.msra.mxu0 %v7557
      %8335 = vmatpush.bf16.msra.mxu0 %v7549
      %8336 = vmatpush.bf16.msra.mxu0 %v7541
      %8337 = vmatpush.bf16.msra.mxu0 %v7533
      %8338 = vmatpush.bf16.msra.mxu0 %v7525
      %8339 = vmatpush.bf16.msra.mxu0 %v7517
      %8340 = vmatpush.bf16.msra.mxu0 %v7509
      %8341 = vmatmul.bf16.gmra.mxu0 %v4297
      %v8342 = vpop.f32.mrf.mxu0
      %v8343 = vadd.f32 %v8329, %v8342
      %v8344 = vpop.f32.mrf.mxu0
      %v8345 = vadd.f32 %v8331, %v8344
      %8346 = vdwg.mxu0
      %8347 = vmatpush.bf16.msra.mxu0 %v7629
      %8348 = vmatpush.bf16.msra.mxu0 %v7621
      %8349 = vmatpush.bf16.msra.mxu0 %v7613
      %8350 = vmatpush.bf16.msra.mxu0 %v7605
      %8351 = vmatpush.bf16.msra.mxu0 %v7597
      %8352 = vmatpush.bf16.msra.mxu0 %v7589
      %8353 = vmatpush.bf16.msra.mxu0 %v7581
      %8354 = vmatpush.bf16.msra.mxu0 %v7573
      %8355 = vmatmul.bf16.gmra.mxu0 %v4298
      %v8356 = vpop.f32.mrf.mxu0
      %v8357 = vadd.f32 %v8343, %v8356
      %v8358 = vpop.f32.mrf.mxu0
      %v8359 = vadd.f32 %v8345, %v8358
      %8360 = vdwg.mxu0
      %8361 = vmatpush.bf16.msra.mxu0 %v7693
      %8362 = vmatpush.bf16.msra.mxu0 %v7685
      %8363 = vmatpush.bf16.msra.mxu0 %v7677
      %8364 = vmatpush.bf16.msra.mxu0 %v7669
      %8365 = vmatpush.bf16.msra.mxu0 %v7661
      %8366 = vmatpush.bf16.msra.mxu0 %v7653
      %8367 = vmatpush.bf16.msra.mxu0 %v7645
      %8368 = vmatpush.bf16.msra.mxu0 %v7637
      %8369 = vmatmul.bf16.gmra.mxu0 %v4299
      %v8370 = vpop.f32.mrf.mxu0
      %v8371 = vadd.f32 %v8357, %v8370
      %v8372 = vpop.f32.mrf.mxu0
      %v8373 = vadd.f32 %v8359, %v8372
      %8374 = vdwg.mxu0
      %8375 = vmatpush.bf16.msra.mxu0 %v7757
      %8376 = vmatpush.bf16.msra.mxu0 %v7749
      %8377 = vmatpush.bf16.msra.mxu0 %v7741
      %8378 = vmatpush.bf16.msra.mxu0 %v7733
      %8379 = vmatpush.bf16.msra.mxu0 %v7725
      %8380 = vmatpush.bf16.msra.mxu0 %v7717
      %8381 = vmatpush.bf16.msra.mxu0 %v7709
      %8382 = vmatpush.bf16.msra.mxu0 %v7701
      %8383 = vmatmul.bf16.gmra.mxu0 %v4300
      %v8384 = vpop.f32.mrf.mxu0
      %v8385 = vadd.f32 %v8371, %v8384
      %v8386 = vpop.f32.mrf.mxu0
      %v8387 = vadd.f32 %v8373, %v8386
      %8388 = vdwg.mxu0
      %8389 = vmatpush.bf16.msra.mxu0 %v7310
      %8390 = vmatpush.bf16.msra.mxu0 %v7302
      %8391 = vmatpush.bf16.msra.mxu0 %v7294
      %8392 = vmatpush.bf16.msra.mxu0 %v7286
      %8393 = vmatpush.bf16.msra.mxu0 %v7278
      %8394 = vmatpush.bf16.msra.mxu0 %v7270
      %8395 = vmatpush.bf16.msra.mxu0 %v7262
      %8396 = vmatpush.bf16.msra.mxu0 %v7254
      %8397 = vmatmul.bf16.gmra.mxu0 %v4293
      %v8398 = vpop.f32.mrf.mxu0
      %v8399 = vadd.f32 0.0, %v8398
      %v8400 = vpop.f32.mrf.mxu0
      %v8401 = vadd.f32 0.0, %v8400
      %8402 = vdwg.mxu0
      %8403 = vmatpush.bf16.msra.mxu0 %v7374
      %8404 = vmatpush.bf16.msra.mxu0 %v7366
      %8405 = vmatpush.bf16.msra.mxu0 %v7358
      %8406 = vmatpush.bf16.msra.mxu0 %v7350
      %8407 = vmatpush.bf16.msra.mxu0 %v7342
      %8408 = vmatpush.bf16.msra.mxu0 %v7334
      %8409 = vmatpush.bf16.msra.mxu0 %v7326
      %8410 = vmatpush.bf16.msra.mxu0 %v7318
      %8411 = vmatmul.bf16.gmra.mxu0 %v4294
      %v8412 = vpop.f32.mrf.mxu0
      %v8413 = vadd.f32 %v8399, %v8412
      %v8414 = vpop.f32.mrf.mxu0
      %v8415 = vadd.f32 %v8401, %v8414
      %8416 = vdwg.mxu0
      %8417 = vmatpush.bf16.msra.mxu0 %v7438
      %8418 = vmatpush.bf16.msra.mxu0 %v7430
      %8419 = vmatpush.bf16.msra.mxu0 %v7422
      %8420 = vmatpush.bf16.msra.mxu0 %v7414
      %8421 = vmatpush.bf16.msra.mxu0 %v7406
      %8422 = vmatpush.bf16.msra.mxu0 %v7398
      %8423 = vmatpush.bf16.msra.mxu0 %v7390
      %8424 = vmatpush.bf16.msra.mxu0 %v7382
      %8425 = vmatmul.bf16.gmra.mxu0 %v4295
      %v8426 = vpop.f32.mrf.mxu0
      %v8427 = vadd.f32 %v8413, %v8426
      %v8428 = vpop.f32.mrf.mxu0
      %v8429 = vadd.f32 %v8415, %v8428
      %8430 = vdwg.mxu0
      %8431 = vmatpush.bf16.msra.mxu0 %v7502
      %8432 = vmatpush.bf16.msra.mxu0 %v7494
      %8433 = vmatpush.bf16.msra.mxu0 %v7486
      %8434 = vmatpush.bf16.msra.mxu0 %v7478
      %8435 = vmatpush.bf16.msra.mxu0 %v7470
      %8436 = vmatpush.bf16.msra.mxu0 %v7462
      %8437 = vmatpush.bf16.msra.mxu0 %v7454
      %8438 = vmatpush.bf16.msra.mxu0 %v7446
      %8439 = vmatmul.bf16.gmra.mxu0 %v4296
      %v8440 = vpop.f32.mrf.mxu0
      %v8441 = vadd.f32 %v8427, %v8440
      %v8442 = vpop.f32.mrf.mxu0
      %v8443 = vadd.f32 %v8429, %v8442
      %8444 = vdwg.mxu0
      %8445 = vmatpush.bf16.msra.mxu0 %v7566
      %8446 = vmatpush.bf16.msra.mxu0 %v7558
      %8447 = vmatpush.bf16.msra.mxu0 %v7550
      %8448 = vmatpush.bf16.msra.mxu0 %v7542
      %8449 = vmatpush.bf16.msra.mxu0 %v7534
      %8450 = vmatpush.bf16.msra.mxu0 %v7526
      %8451 = vmatpush.bf16.msra.mxu0 %v7518
      %8452 = vmatpush.bf16.msra.mxu0 %v7510
      %8453 = vmatmul.bf16.gmra.mxu0 %v4297
      %v8454 = vpop.f32.mrf.mxu0
      %v8455 = vadd.f32 %v8441, %v8454
      %v8456 = vpop.f32.mrf.mxu0
      %v8457 = vadd.f32 %v8443, %v8456
      %8458 = vdwg.mxu0
      %8459 = vmatpush.bf16.msra.mxu0 %v7630
      %8460 = vmatpush.bf16.msra.mxu0 %v7622
      %8461 = vmatpush.bf16.msra.mxu0 %v7614
      %8462 = vmatpush.bf16.msra.mxu0 %v7606
      %8463 = vmatpush.bf16.msra.mxu0 %v7598
      %8464 = vmatpush.bf16.msra.mxu0 %v7590
      %8465 = vmatpush.bf16.msra.mxu0 %v7582
      %8466 = vmatpush.bf16.msra.mxu0 %v7574
      %8467 = vmatmul.bf16.gmra.mxu0 %v4298
      %v8468 = vpop.f32.mrf.mxu0
      %v8469 = vadd.f32 %v8455, %v8468
      %v8470 = vpop.f32.mrf.mxu0
      %v8471 = vadd.f32 %v8457, %v8470
      %8472 = vdwg.mxu0
      %8473 = vmatpush.bf16.msra.mxu0 %v7694
      %8474 = vmatpush.bf16.msra.mxu0 %v7686
      %8475 = vmatpush.bf16.msra.mxu0 %v7678
      %8476 = vmatpush.bf16.msra.mxu0 %v7670
      %8477 = vmatpush.bf16.msra.mxu0 %v7662
      %8478 = vmatpush.bf16.msra.mxu0 %v7654
      %8479 = vmatpush.bf16.msra.mxu0 %v7646
      %8480 = vmatpush.bf16.msra.mxu0 %v7638
      %8481 = vmatmul.bf16.gmra.mxu0 %v4299
      %v8482 = vpop.f32.mrf.mxu0
      %v8483 = vadd.f32 %v8469, %v8482
      %v8484 = vpop.f32.mrf.mxu0
      %v8485 = vadd.f32 %v8471, %v8484
      %8486 = vdwg.mxu0
      %8487 = vmatpush.bf16.msra.mxu0 %v7758
      %8488 = vmatpush.bf16.msra.mxu0 %v7750
      %8489 = vmatpush.bf16.msra.mxu0 %v7742
      %8490 = vmatpush.bf16.msra.mxu0 %v7734
      %8491 = vmatpush.bf16.msra.mxu0 %v7726
      %8492 = vmatpush.bf16.msra.mxu0 %v7718
      %8493 = vmatpush.bf16.msra.mxu0 %v7710
      %8494 = vmatpush.bf16.msra.mxu0 %v7702
      %8495 = vmatmul.bf16.gmra.mxu0 %v4300
      %v8496 = vpop.f32.mrf.mxu0
      %v8497 = vadd.f32 %v8483, %v8496
      %v8498 = vpop.f32.mrf.mxu0
      %v8499 = vadd.f32 %v8485, %v8498
      %8500 = vdwg.mxu0
      %8501 = vmatpush.bf16.msra.mxu0 %v7311
      %8502 = vmatpush.bf16.msra.mxu0 %v7303
      %8503 = vmatpush.bf16.msra.mxu0 %v7295
      %8504 = vmatpush.bf16.msra.mxu0 %v7287
      %8505 = vmatpush.bf16.msra.mxu0 %v7279
      %8506 = vmatpush.bf16.msra.mxu0 %v7271
      %8507 = vmatpush.bf16.msra.mxu0 %v7263
      %8508 = vmatpush.bf16.msra.mxu0 %v7255
      %8509 = vmatmul.bf16.gmra.mxu0 %v4293
      %v8510 = vpop.f32.mrf.mxu0
      %v8511 = vadd.f32 0.0, %v8510
      %v8512 = vpop.f32.mrf.mxu0
      %v8513 = vadd.f32 0.0, %v8512
      %8514 = vdwg.mxu0
      %8515 = vmatpush.bf16.msra.mxu0 %v7375
      %8516 = vmatpush.bf16.msra.mxu0 %v7367
      %8517 = vmatpush.bf16.msra.mxu0 %v7359
      %8518 = vmatpush.bf16.msra.mxu0 %v7351
      %8519 = vmatpush.bf16.msra.mxu0 %v7343
      %8520 = vmatpush.bf16.msra.mxu0 %v7335
      %8521 = vmatpush.bf16.msra.mxu0 %v7327
      %8522 = vmatpush.bf16.msra.mxu0 %v7319
      %8523 = vmatmul.bf16.gmra.mxu0 %v4294
      %v8524 = vpop.f32.mrf.mxu0
      %v8525 = vadd.f32 %v8511, %v8524
      %v8526 = vpop.f32.mrf.mxu0
      %v8527 = vadd.f32 %v8513, %v8526
      %8528 = vdwg.mxu0
      %8529 = vmatpush.bf16.msra.mxu0 %v7439
      %8530 = vmatpush.bf16.msra.mxu0 %v7431
      %8531 = vmatpush.bf16.msra.mxu0 %v7423
      %8532 = vmatpush.bf16.msra.mxu0 %v7415
      %8533 = vmatpush.bf16.msra.mxu0 %v7407
      %8534 = vmatpush.bf16.msra.mxu0 %v7399
      %8535 = vmatpush.bf16.msra.mxu0 %v7391
      %8536 = vmatpush.bf16.msra.mxu0 %v7383
      %8537 = vmatmul.bf16.gmra.mxu0 %v4295
      %v8538 = vpop.f32.mrf.mxu0
      %v8539 = vadd.f32 %v8525, %v8538
      %v8540 = vpop.f32.mrf.mxu0
      %v8541 = vadd.f32 %v8527, %v8540
      %8542 = vdwg.mxu0
      %8543 = vmatpush.bf16.msra.mxu0 %v7503
      %8544 = vmatpush.bf16.msra.mxu0 %v7495
      %8545 = vmatpush.bf16.msra.mxu0 %v7487
      %8546 = vmatpush.bf16.msra.mxu0 %v7479
      %8547 = vmatpush.bf16.msra.mxu0 %v7471
      %8548 = vmatpush.bf16.msra.mxu0 %v7463
      %8549 = vmatpush.bf16.msra.mxu0 %v7455
      %8550 = vmatpush.bf16.msra.mxu0 %v7447
      %8551 = vmatmul.bf16.gmra.mxu0 %v4296
      %v8552 = vpop.f32.mrf.mxu0
      %v8553 = vadd.f32 %v8539, %v8552
      %v8554 = vpop.f32.mrf.mxu0
      %v8555 = vadd.f32 %v8541, %v8554
      %8556 = vdwg.mxu0
      %8557 = vmatpush.bf16.msra.mxu0 %v7567
      %8558 = vmatpush.bf16.msra.mxu0 %v7559
      %8559 = vmatpush.bf16.msra.mxu0 %v7551
      %8560 = vmatpush.bf16.msra.mxu0 %v7543
      %8561 = vmatpush.bf16.msra.mxu0 %v7535
      %8562 = vmatpush.bf16.msra.mxu0 %v7527
      %8563 = vmatpush.bf16.msra.mxu0 %v7519
      %8564 = vmatpush.bf16.msra.mxu0 %v7511
      %8565 = vmatmul.bf16.gmra.mxu0 %v4297
      %v8566 = vpop.f32.mrf.mxu0
      %v8567 = vadd.f32 %v8553, %v8566
      %v8568 = vpop.f32.mrf.mxu0
      %v8569 = vadd.f32 %v8555, %v8568
      %8570 = vdwg.mxu0
      %8571 = vmatpush.bf16.msra.mxu0 %v7631
      %8572 = vmatpush.bf16.msra.mxu0 %v7623
      %8573 = vmatpush.bf16.msra.mxu0 %v7615
      %8574 = vmatpush.bf16.msra.mxu0 %v7607
      %8575 = vmatpush.bf16.msra.mxu0 %v7599
      %8576 = vmatpush.bf16.msra.mxu0 %v7591
      %8577 = vmatpush.bf16.msra.mxu0 %v7583
      %8578 = vmatpush.bf16.msra.mxu0 %v7575
      %8579 = vmatmul.bf16.gmra.mxu0 %v4298
      %v8580 = vpop.f32.mrf.mxu0
      %v8581 = vadd.f32 %v8567, %v8580
      %v8582 = vpop.f32.mrf.mxu0
      %v8583 = vadd.f32 %v8569, %v8582
      %8584 = vdwg.mxu0
      %8585 = vmatpush.bf16.msra.mxu0 %v7695
      %8586 = vmatpush.bf16.msra.mxu0 %v7687
      %8587 = vmatpush.bf16.msra.mxu0 %v7679
      %8588 = vmatpush.bf16.msra.mxu0 %v7671
      %8589 = vmatpush.bf16.msra.mxu0 %v7663
      %8590 = vmatpush.bf16.msra.mxu0 %v7655
      %8591 = vmatpush.bf16.msra.mxu0 %v7647
      %8592 = vmatpush.bf16.msra.mxu0 %v7639
      %8593 = vmatmul.bf16.gmra.mxu0 %v4299
      %v8594 = vpop.f32.mrf.mxu0
      %v8595 = vadd.f32 %v8581, %v8594
      %v8596 = vpop.f32.mrf.mxu0
      %v8597 = vadd.f32 %v8583, %v8596
      %8598 = vdwg.mxu0
      %8599 = vmatpush.bf16.msra.mxu0 %v7759
      %8600 = vmatpush.bf16.msra.mxu0 %v7751
      %8601 = vmatpush.bf16.msra.mxu0 %v7743
      %8602 = vmatpush.bf16.msra.mxu0 %v7735
      %8603 = vmatpush.bf16.msra.mxu0 %v7727
      %8604 = vmatpush.bf16.msra.mxu0 %v7719
      %8605 = vmatpush.bf16.msra.mxu0 %v7711
      %8606 = vmatpush.bf16.msra.mxu0 %v7703
      %8607 = vmatmul.bf16.gmra.mxu0 %v4300
      %v8608 = vpop.f32.mrf.mxu0
      %v8609 = vadd.f32 %v8595, %v8608
      %v8610 = vpop.f32.mrf.mxu0
      %v8611 = vadd.f32 %v8597, %v8610
      %8612 = vdwg.mxu0
      %8613 = vmatpush.bf16.msra.mxu0 %v7312
      %8614 = vmatpush.bf16.msra.mxu0 %v7304
      %8615 = vmatpush.bf16.msra.mxu0 %v7296
      %8616 = vmatpush.bf16.msra.mxu0 %v7288
      %8617 = vmatpush.bf16.msra.mxu0 %v7280
      %8618 = vmatpush.bf16.msra.mxu0 %v7272
      %8619 = vmatpush.bf16.msra.mxu0 %v7264
      %8620 = vmatpush.bf16.msra.mxu0 %v7256
      %8621 = vmatmul.bf16.gmra.mxu0 %v4293
      %v8622 = vpop.f32.mrf.mxu0
      %v8623 = vadd.f32 0.0, %v8622
      %v8624 = vpop.f32.mrf.mxu0
      %v8625 = vadd.f32 0.0, %v8624
      %8626 = vdwg.mxu0
      %8627 = vmatpush.bf16.msra.mxu0 %v7376
      %8628 = vmatpush.bf16.msra.mxu0 %v7368
      %8629 = vmatpush.bf16.msra.mxu0 %v7360
      %8630 = vmatpush.bf16.msra.mxu0 %v7352
      %8631 = vmatpush.bf16.msra.mxu0 %v7344
      %8632 = vmatpush.bf16.msra.mxu0 %v7336
      %8633 = vmatpush.bf16.msra.mxu0 %v7328
      %8634 = vmatpush.bf16.msra.mxu0 %v7320
      %8635 = vmatmul.bf16.gmra.mxu0 %v4294
      %v8636 = vpop.f32.mrf.mxu0
      %v8637 = vadd.f32 %v8623, %v8636
      %v8638 = vpop.f32.mrf.mxu0
      %v8639 = vadd.f32 %v8625, %v8638
      %8640 = vdwg.mxu0
      %8641 = vmatpush.bf16.msra.mxu0 %v7440
      %8642 = vmatpush.bf16.msra.mxu0 %v7432
      %8643 = vmatpush.bf16.msra.mxu0 %v7424
      %8644 = vmatpush.bf16.msra.mxu0 %v7416
      %8645 = vmatpush.bf16.msra.mxu0 %v7408
      %8646 = vmatpush.bf16.msra.mxu0 %v7400
      %8647 = vmatpush.bf16.msra.mxu0 %v7392
      %8648 = vmatpush.bf16.msra.mxu0 %v7384
      %8649 = vmatmul.bf16.gmra.mxu0 %v4295
      %v8650 = vpop.f32.mrf.mxu0
      %v8651 = vadd.f32 %v8637, %v8650
      %v8652 = vpop.f32.mrf.mxu0
      %v8653 = vadd.f32 %v8639, %v8652
      %8654 = vdwg.mxu0
      %8655 = vmatpush.bf16.msra.mxu0 %v7504
      %8656 = vmatpush.bf16.msra.mxu0 %v7496
      %8657 = vmatpush.bf16.msra.mxu0 %v7488
      %8658 = vmatpush.bf16.msra.mxu0 %v7480
      %8659 = vmatpush.bf16.msra.mxu0 %v7472
      %8660 = vmatpush.bf16.msra.mxu0 %v7464
      %8661 = vmatpush.bf16.msra.mxu0 %v7456
      %8662 = vmatpush.bf16.msra.mxu0 %v7448
      %8663 = vmatmul.bf16.gmra.mxu0 %v4296
      %v8664 = vpop.f32.mrf.mxu0
      %v8665 = vadd.f32 %v8651, %v8664
      %v8666 = vpop.f32.mrf.mxu0
      %v8667 = vadd.f32 %v8653, %v8666
      %8668 = vdwg.mxu0
      %8669 = vmatpush.bf16.msra.mxu0 %v7568
      %8670 = vmatpush.bf16.msra.mxu0 %v7560
      %8671 = vmatpush.bf16.msra.mxu0 %v7552
      %8672 = vmatpush.bf16.msra.mxu0 %v7544
      %8673 = vmatpush.bf16.msra.mxu0 %v7536
      %8674 = vmatpush.bf16.msra.mxu0 %v7528
      %8675 = vmatpush.bf16.msra.mxu0 %v7520
      %8676 = vmatpush.bf16.msra.mxu0 %v7512
      %8677 = vmatmul.bf16.gmra.mxu0 %v4297
      %v8678 = vpop.f32.mrf.mxu0
      %v8679 = vadd.f32 %v8665, %v8678
      %v8680 = vpop.f32.mrf.mxu0
      %v8681 = vadd.f32 %v8667, %v8680
      %8682 = vdwg.mxu0
      %8683 = vmatpush.bf16.msra.mxu0 %v7632
      %8684 = vmatpush.bf16.msra.mxu0 %v7624
      %8685 = vmatpush.bf16.msra.mxu0 %v7616
      %8686 = vmatpush.bf16.msra.mxu0 %v7608
      %8687 = vmatpush.bf16.msra.mxu0 %v7600
      %8688 = vmatpush.bf16.msra.mxu0 %v7592
      %8689 = vmatpush.bf16.msra.mxu0 %v7584
      %8690 = vmatpush.bf16.msra.mxu0 %v7576
      %8691 = vmatmul.bf16.gmra.mxu0 %v4298
      %v8692 = vpop.f32.mrf.mxu0
      %v8693 = vadd.f32 %v8679, %v8692
      %v8694 = vpop.f32.mrf.mxu0
      %v8695 = vadd.f32 %v8681, %v8694
      %8696 = vdwg.mxu0
      %8697 = vmatpush.bf16.msra.mxu0 %v7696
      %8698 = vmatpush.bf16.msra.mxu0 %v7688
      %8699 = vmatpush.bf16.msra.mxu0 %v7680
      %8700 = vmatpush.bf16.msra.mxu0 %v7672
      %8701 = vmatpush.bf16.msra.mxu0 %v7664
      %8702 = vmatpush.bf16.msra.mxu0 %v7656
      %8703 = vmatpush.bf16.msra.mxu0 %v7648
      %8704 = vmatpush.bf16.msra.mxu0 %v7640
      %8705 = vmatmul.bf16.gmra.mxu0 %v4299
      %v8706 = vpop.f32.mrf.mxu0
      %v8707 = vadd.f32 %v8693, %v8706
      %v8708 = vpop.f32.mrf.mxu0
      %v8709 = vadd.f32 %v8695, %v8708
      %8710 = vdwg.mxu0
      %8711 = vmatpush.bf16.msra.mxu0 %v7760
      %8712 = vmatpush.bf16.msra.mxu0 %v7752
      %8713 = vmatpush.bf16.msra.mxu0 %v7744
      %8714 = vmatpush.bf16.msra.mxu0 %v7736
      %8715 = vmatpush.bf16.msra.mxu0 %v7728
      %8716 = vmatpush.bf16.msra.mxu0 %v7720
      %8717 = vmatpush.bf16.msra.mxu0 %v7712
      %8718 = vmatpush.bf16.msra.mxu0 %v7704
      %8719 = vmatmul.bf16.gmra.mxu0 %v4300
      %v8720 = vpop.f32.mrf.mxu0
      %v8721 = vadd.f32 %v8707, %v8720
      %v8722 = vpop.f32.mrf.mxu0
      %v8723 = vadd.f32 %v8709, %v8722
      %8724 = vdwg.mxu0
      %8725 = vmatpush.bf16.msra.mxu0 %v7313
      %8726 = vmatpush.bf16.msra.mxu0 %v7305
      %8727 = vmatpush.bf16.msra.mxu0 %v7297
      %8728 = vmatpush.bf16.msra.mxu0 %v7289
      %8729 = vmatpush.bf16.msra.mxu0 %v7281
      %8730 = vmatpush.bf16.msra.mxu0 %v7273
      %8731 = vmatpush.bf16.msra.mxu0 %v7265
      %8732 = vmatpush.bf16.msra.mxu0 %v7257
      %8733 = vmatmul.bf16.gmra.mxu0 %v4293
      %v8734 = vpop.f32.mrf.mxu0
      %v8735 = vadd.f32 0.0, %v8734
      %v8736 = vpop.f32.mrf.mxu0
      %v8737 = vadd.f32 0.0, %v8736
      %8738 = vdwg.mxu0
      %8739 = vmatpush.bf16.msra.mxu0 %v7377
      %8740 = vmatpush.bf16.msra.mxu0 %v7369
      %8741 = vmatpush.bf16.msra.mxu0 %v7361
      %8742 = vmatpush.bf16.msra.mxu0 %v7353
      %8743 = vmatpush.bf16.msra.mxu0 %v7345
      %8744 = vmatpush.bf16.msra.mxu0 %v7337
      %8745 = vmatpush.bf16.msra.mxu0 %v7329
      %8746 = vmatpush.bf16.msra.mxu0 %v7321
      %8747 = vmatmul.bf16.gmra.mxu0 %v4294
      %v8748 = vpop.f32.mrf.mxu0
      %v8749 = vadd.f32 %v8735, %v8748
      %v8750 = vpop.f32.mrf.mxu0
      %v8751 = vadd.f32 %v8737, %v8750
      %8752 = vdwg.mxu0
      %8753 = vmatpush.bf16.msra.mxu0 %v7441
      %8754 = vmatpush.bf16.msra.mxu0 %v7433
      %8755 = vmatpush.bf16.msra.mxu0 %v7425
      %8756 = vmatpush.bf16.msra.mxu0 %v7417
      %8757 = vmatpush.bf16.msra.mxu0 %v7409
      %8758 = vmatpush.bf16.msra.mxu0 %v7401
      %8759 = vmatpush.bf16.msra.mxu0 %v7393
      %8760 = vmatpush.bf16.msra.mxu0 %v7385
      %8761 = vmatmul.bf16.gmra.mxu0 %v4295
      %v8762 = vpop.f32.mrf.mxu0
      %v8763 = vadd.f32 %v8749, %v8762
      %v8764 = vpop.f32.mrf.mxu0
      %v8765 = vadd.f32 %v8751, %v8764
      %8766 = vdwg.mxu0
      %8767 = vmatpush.bf16.msra.mxu0 %v7505
      %8768 = vmatpush.bf16.msra.mxu0 %v7497
      %8769 = vmatpush.bf16.msra.mxu0 %v7489
      %8770 = vmatpush.bf16.msra.mxu0 %v7481
      %8771 = vmatpush.bf16.msra.mxu0 %v7473
      %8772 = vmatpush.bf16.msra.mxu0 %v7465
      %8773 = vmatpush.bf16.msra.mxu0 %v7457
      %8774 = vmatpush.bf16.msra.mxu0 %v7449
      %8775 = vmatmul.bf16.gmra.mxu0 %v4296
      %v8776 = vpop.f32.mrf.mxu0
      %v8777 = vadd.f32 %v8763, %v8776
      %v8778 = vpop.f32.mrf.mxu0
      %v8779 = vadd.f32 %v8765, %v8778
      %8780 = vdwg.mxu0
      %8781 = vmatpush.bf16.msra.mxu0 %v7569
      %8782 = vmatpush.bf16.msra.mxu0 %v7561
      %8783 = vmatpush.bf16.msra.mxu0 %v7553
      %8784 = vmatpush.bf16.msra.mxu0 %v7545
      %8785 = vmatpush.bf16.msra.mxu0 %v7537
      %8786 = vmatpush.bf16.msra.mxu0 %v7529
      %8787 = vmatpush.bf16.msra.mxu0 %v7521
      %8788 = vmatpush.bf16.msra.mxu0 %v7513
      %8789 = vmatmul.bf16.gmra.mxu0 %v4297
      %v8790 = vpop.f32.mrf.mxu0
      %v8791 = vadd.f32 %v8777, %v8790
      %v8792 = vpop.f32.mrf.mxu0
      %v8793 = vadd.f32 %v8779, %v8792
      %8794 = vdwg.mxu0
      %8795 = vmatpush.bf16.msra.mxu0 %v7633
      %8796 = vmatpush.bf16.msra.mxu0 %v7625
      %8797 = vmatpush.bf16.msra.mxu0 %v7617
      %8798 = vmatpush.bf16.msra.mxu0 %v7609
      %8799 = vmatpush.bf16.msra.mxu0 %v7601
      %8800 = vmatpush.bf16.msra.mxu0 %v7593
      %8801 = vmatpush.bf16.msra.mxu0 %v7585
      %8802 = vmatpush.bf16.msra.mxu0 %v7577
      %8803 = vmatmul.bf16.gmra.mxu0 %v4298
      %v8804 = vpop.f32.mrf.mxu0
      %v8805 = vadd.f32 %v8791, %v8804
      %v8806 = vpop.f32.mrf.mxu0
      %v8807 = vadd.f32 %v8793, %v8806
      %8808 = vdwg.mxu0
      %8809 = vmatpush.bf16.msra.mxu0 %v7697
      %8810 = vmatpush.bf16.msra.mxu0 %v7689
      %8811 = vmatpush.bf16.msra.mxu0 %v7681
      %8812 = vmatpush.bf16.msra.mxu0 %v7673
      %8813 = vmatpush.bf16.msra.mxu0 %v7665
      %8814 = vmatpush.bf16.msra.mxu0 %v7657
      %8815 = vmatpush.bf16.msra.mxu0 %v7649
      %8816 = vmatpush.bf16.msra.mxu0 %v7641
      %8817 = vmatmul.bf16.gmra.mxu0 %v4299
      %v8818 = vpop.f32.mrf.mxu0
      %v8819 = vadd.f32 %v8805, %v8818
      %v8820 = vpop.f32.mrf.mxu0
      %v8821 = vadd.f32 %v8807, %v8820
      %8822 = vdwg.mxu0
      %8823 = vmatpush.bf16.msra.mxu0 %v7761
      %8824 = vmatpush.bf16.msra.mxu0 %v7753
      %8825 = vmatpush.bf16.msra.mxu0 %v7745
      %8826 = vmatpush.bf16.msra.mxu0 %v7737
      %8827 = vmatpush.bf16.msra.mxu0 %v7729
      %8828 = vmatpush.bf16.msra.mxu0 %v7721
      %8829 = vmatpush.bf16.msra.mxu0 %v7713
      %8830 = vmatpush.bf16.msra.mxu0 %v7705
      %8831 = vmatmul.bf16.gmra.mxu0 %v4300
      %v8832 = vpop.f32.mrf.mxu0
      %v8833 = vadd.f32 %v8819, %v8832
      %v8834 = vpop.f32.mrf.mxu0
      %v8835 = vadd.f32 %v8821, %v8834
      %8836 = vdwg.mxu0
      %8837 = vmatpush.bf16.msra.mxu0 %v7314
      %8838 = vmatpush.bf16.msra.mxu0 %v7306
      %8839 = vmatpush.bf16.msra.mxu0 %v7298
      %8840 = vmatpush.bf16.msra.mxu0 %v7290
      %8841 = vmatpush.bf16.msra.mxu0 %v7282
      %8842 = vmatpush.bf16.msra.mxu0 %v7274
      %8843 = vmatpush.bf16.msra.mxu0 %v7266
      %8844 = vmatpush.bf16.msra.mxu0 %v7258
      %8845 = vmatmul.bf16.gmra.mxu0 %v4293
      %v8846 = vpop.f32.mrf.mxu0
      %v8847 = vadd.f32 0.0, %v8846
      %v8848 = vpop.f32.mrf.mxu0
      %v8849 = vadd.f32 0.0, %v8848
      %8850 = vdwg.mxu0
      %8851 = vmatpush.bf16.msra.mxu0 %v7378
      %8852 = vmatpush.bf16.msra.mxu0 %v7370
      %8853 = vmatpush.bf16.msra.mxu0 %v7362
      %8854 = vmatpush.bf16.msra.mxu0 %v7354
      %8855 = vmatpush.bf16.msra.mxu0 %v7346
      %8856 = vmatpush.bf16.msra.mxu0 %v7338
      %8857 = vmatpush.bf16.msra.mxu0 %v7330
      %8858 = vmatpush.bf16.msra.mxu0 %v7322
      %8859 = vmatmul.bf16.gmra.mxu0 %v4294
      %v8860 = vpop.f32.mrf.mxu0
      %v8861 = vadd.f32 %v8847, %v8860
      %v8862 = vpop.f32.mrf.mxu0
      %v8863 = vadd.f32 %v8849, %v8862
      %8864 = vdwg.mxu0
      %8865 = vmatpush.bf16.msra.mxu0 %v7442
      %8866 = vmatpush.bf16.msra.mxu0 %v7434
      %8867 = vmatpush.bf16.msra.mxu0 %v7426
      %8868 = vmatpush.bf16.msra.mxu0 %v7418
      %8869 = vmatpush.bf16.msra.mxu0 %v7410
      %8870 = vmatpush.bf16.msra.mxu0 %v7402
      %8871 = vmatpush.bf16.msra.mxu0 %v7394
      %8872 = vmatpush.bf16.msra.mxu0 %v7386
      %8873 = vmatmul.bf16.gmra.mxu0 %v4295
      %v8874 = vpop.f32.mrf.mxu0
      %v8875 = vadd.f32 %v8861, %v8874
      %v8876 = vpop.f32.mrf.mxu0
      %v8877 = vadd.f32 %v8863, %v8876
      %8878 = vdwg.mxu0
      %8879 = vmatpush.bf16.msra.mxu0 %v7506
      %8880 = vmatpush.bf16.msra.mxu0 %v7498
      %8881 = vmatpush.bf16.msra.mxu0 %v7490
      %8882 = vmatpush.bf16.msra.mxu0 %v7482
      %8883 = vmatpush.bf16.msra.mxu0 %v7474
      %8884 = vmatpush.bf16.msra.mxu0 %v7466
      %8885 = vmatpush.bf16.msra.mxu0 %v7458
      %8886 = vmatpush.bf16.msra.mxu0 %v7450
      %8887 = vmatmul.bf16.gmra.mxu0 %v4296
      %v8888 = vpop.f32.mrf.mxu0
      %v8889 = vadd.f32 %v8875, %v8888
      %v8890 = vpop.f32.mrf.mxu0
      %v8891 = vadd.f32 %v8877, %v8890
      %8892 = vdwg.mxu0
      %8893 = vmatpush.bf16.msra.mxu0 %v7570
      %8894 = vmatpush.bf16.msra.mxu0 %v7562
      %8895 = vmatpush.bf16.msra.mxu0 %v7554
      %8896 = vmatpush.bf16.msra.mxu0 %v7546
      %8897 = vmatpush.bf16.msra.mxu0 %v7538
      %8898 = vmatpush.bf16.msra.mxu0 %v7530
      %8899 = vmatpush.bf16.msra.mxu0 %v7522
      %8900 = vmatpush.bf16.msra.mxu0 %v7514
      %8901 = vmatmul.bf16.gmra.mxu0 %v4297
      %v8902 = vpop.f32.mrf.mxu0
      %v8903 = vadd.f32 %v8889, %v8902
      %v8904 = vpop.f32.mrf.mxu0
      %v8905 = vadd.f32 %v8891, %v8904
      %8906 = vdwg.mxu0
      %8907 = vmatpush.bf16.msra.mxu0 %v7634
      %8908 = vmatpush.bf16.msra.mxu0 %v7626
      %8909 = vmatpush.bf16.msra.mxu0 %v7618
      %8910 = vmatpush.bf16.msra.mxu0 %v7610
      %8911 = vmatpush.bf16.msra.mxu0 %v7602
      %8912 = vmatpush.bf16.msra.mxu0 %v7594
      %8913 = vmatpush.bf16.msra.mxu0 %v7586
      %8914 = vmatpush.bf16.msra.mxu0 %v7578
      %8915 = vmatmul.bf16.gmra.mxu0 %v4298
      %v8916 = vpop.f32.mrf.mxu0
      %v8917 = vadd.f32 %v8903, %v8916
      %v8918 = vpop.f32.mrf.mxu0
      %v8919 = vadd.f32 %v8905, %v8918
      %8920 = vdwg.mxu0
      %8921 = vmatpush.bf16.msra.mxu0 %v7698
      %8922 = vmatpush.bf16.msra.mxu0 %v7690
      %8923 = vmatpush.bf16.msra.mxu0 %v7682
      %8924 = vmatpush.bf16.msra.mxu0 %v7674
      %8925 = vmatpush.bf16.msra.mxu0 %v7666
      %8926 = vmatpush.bf16.msra.mxu0 %v7658
      %8927 = vmatpush.bf16.msra.mxu0 %v7650
      %8928 = vmatpush.bf16.msra.mxu0 %v7642
      %8929 = vmatmul.bf16.gmra.mxu0 %v4299
      %v8930 = vpop.f32.mrf.mxu0
      %v8931 = vadd.f32 %v8917, %v8930
      %v8932 = vpop.f32.mrf.mxu0
      %v8933 = vadd.f32 %v8919, %v8932
      %8934 = vdwg.mxu0
      %8935 = vmatpush.bf16.msra.mxu0 %v7762
      %8936 = vmatpush.bf16.msra.mxu0 %v7754
      %8937 = vmatpush.bf16.msra.mxu0 %v7746
      %8938 = vmatpush.bf16.msra.mxu0 %v7738
      %8939 = vmatpush.bf16.msra.mxu0 %v7730
      %8940 = vmatpush.bf16.msra.mxu0 %v7722
      %8941 = vmatpush.bf16.msra.mxu0 %v7714
      %8942 = vmatpush.bf16.msra.mxu0 %v7706
      %8943 = vmatmul.bf16.gmra.mxu0 %v4300
      %v8944 = vpop.f32.mrf.mxu0
      %v8945 = vadd.f32 %v8931, %v8944
      %v8946 = vpop.f32.mrf.mxu0
      %v8947 = vadd.f32 %v8933, %v8946
      %8948 = vdwg.mxu0
      %8949 = vmatpush.bf16.msra.mxu0 %v7315
      %8950 = vmatpush.bf16.msra.mxu0 %v7307
      %8951 = vmatpush.bf16.msra.mxu0 %v7299
      %8952 = vmatpush.bf16.msra.mxu0 %v7291
      %8953 = vmatpush.bf16.msra.mxu0 %v7283
      %8954 = vmatpush.bf16.msra.mxu0 %v7275
      %8955 = vmatpush.bf16.msra.mxu0 %v7267
      %8956 = vmatpush.bf16.msra.mxu0 %v7259
      %8957 = vmatmul.bf16.gmra.mxu0 %v4293
      %v8958 = vpop.f32.mrf.mxu0
      %v8959 = vadd.f32 0.0, %v8958
      %v8960 = vpop.f32.mrf.mxu0
      %v8961 = vadd.f32 0.0, %v8960
      %8962 = vdwg.mxu0
      %8963 = vmatpush.bf16.msra.mxu0 %v7379
      %8964 = vmatpush.bf16.msra.mxu0 %v7371
      %8965 = vmatpush.bf16.msra.mxu0 %v7363
      %8966 = vmatpush.bf16.msra.mxu0 %v7355
      %8967 = vmatpush.bf16.msra.mxu0 %v7347
      %8968 = vmatpush.bf16.msra.mxu0 %v7339
      %8969 = vmatpush.bf16.msra.mxu0 %v7331
      %8970 = vmatpush.bf16.msra.mxu0 %v7323
      %8971 = vmatmul.bf16.gmra.mxu0 %v4294
      %v8972 = vpop.f32.mrf.mxu0
      %v8973 = vadd.f32 %v8959, %v8972
      %v8974 = vpop.f32.mrf.mxu0
      %v8975 = vadd.f32 %v8961, %v8974
      %8976 = vdwg.mxu0
      %8977 = vmatpush.bf16.msra.mxu0 %v7443
      %8978 = vmatpush.bf16.msra.mxu0 %v7435
      %8979 = vmatpush.bf16.msra.mxu0 %v7427
      %8980 = vmatpush.bf16.msra.mxu0 %v7419
      %8981 = vmatpush.bf16.msra.mxu0 %v7411
      %8982 = vmatpush.bf16.msra.mxu0 %v7403
      %8983 = vmatpush.bf16.msra.mxu0 %v7395
      %8984 = vmatpush.bf16.msra.mxu0 %v7387
      %8985 = vmatmul.bf16.gmra.mxu0 %v4295
      %v8986 = vpop.f32.mrf.mxu0
      %v8987 = vadd.f32 %v8973, %v8986
      %v8988 = vpop.f32.mrf.mxu0
      %v8989 = vadd.f32 %v8975, %v8988
      %8990 = vdwg.mxu0
      %8991 = vmatpush.bf16.msra.mxu0 %v7507
      %8992 = vmatpush.bf16.msra.mxu0 %v7499
      %8993 = vmatpush.bf16.msra.mxu0 %v7491
      %8994 = vmatpush.bf16.msra.mxu0 %v7483
      %8995 = vmatpush.bf16.msra.mxu0 %v7475
      %8996 = vmatpush.bf16.msra.mxu0 %v7467
      %8997 = vmatpush.bf16.msra.mxu0 %v7459
      %8998 = vmatpush.bf16.msra.mxu0 %v7451
      %8999 = vmatmul.bf16.gmra.mxu0 %v4296
      %v9000 = vpop.f32.mrf.mxu0
      %v9001 = vadd.f32 %v8987, %v9000
      %v9002 = vpop.f32.mrf.mxu0
      %v9003 = vadd.f32 %v8989, %v9002
      %9004 = vdwg.mxu0
      %9005 = vmatpush.bf16.msra.mxu0 %v7571
      %9006 = vmatpush.bf16.msra.mxu0 %v7563
      %9007 = vmatpush.bf16.msra.mxu0 %v7555
      %9008 = vmatpush.bf16.msra.mxu0 %v7547
      %9009 = vmatpush.bf16.msra.mxu0 %v7539
      %9010 = vmatpush.bf16.msra.mxu0 %v7531
      %9011 = vmatpush.bf16.msra.mxu0 %v7523
      %9012 = vmatpush.bf16.msra.mxu0 %v7515
      %9013 = vmatmul.bf16.gmra.mxu0 %v4297
      %v9014 = vpop.f32.mrf.mxu0
      %v9015 = vadd.f32 %v9001, %v9014
      %v9016 = vpop.f32.mrf.mxu0
      %v9017 = vadd.f32 %v9003, %v9016
      %9018 = vdwg.mxu0
      %9019 = vmatpush.bf16.msra.mxu0 %v7635
      %9020 = vmatpush.bf16.msra.mxu0 %v7627
      %9021 = vmatpush.bf16.msra.mxu0 %v7619
      %9022 = vmatpush.bf16.msra.mxu0 %v7611
      %9023 = vmatpush.bf16.msra.mxu0 %v7603
      %9024 = vmatpush.bf16.msra.mxu0 %v7595
      %9025 = vmatpush.bf16.msra.mxu0 %v7587
      %9026 = vmatpush.bf16.msra.mxu0 %v7579
      %9027 = vmatmul.bf16.gmra.mxu0 %v4298
      %v9028 = vpop.f32.mrf.mxu0
      %v9029 = vadd.f32 %v9015, %v9028
      %v9030 = vpop.f32.mrf.mxu0
      %v9031 = vadd.f32 %v9017, %v9030
      %9032 = vdwg.mxu0
      %9033 = vmatpush.bf16.msra.mxu0 %v7699
      %9034 = vmatpush.bf16.msra.mxu0 %v7691
      %9035 = vmatpush.bf16.msra.mxu0 %v7683
      %9036 = vmatpush.bf16.msra.mxu0 %v7675
      %9037 = vmatpush.bf16.msra.mxu0 %v7667
      %9038 = vmatpush.bf16.msra.mxu0 %v7659
      %9039 = vmatpush.bf16.msra.mxu0 %v7651
      %9040 = vmatpush.bf16.msra.mxu0 %v7643
      %9041 = vmatmul.bf16.gmra.mxu0 %v4299
      %v9042 = vpop.f32.mrf.mxu0
      %v9043 = vadd.f32 %v9029, %v9042
      %v9044 = vpop.f32.mrf.mxu0
      %v9045 = vadd.f32 %v9031, %v9044
      %9046 = vdwg.mxu0
      %9047 = vmatpush.bf16.msra.mxu0 %v7763
      %9048 = vmatpush.bf16.msra.mxu0 %v7755
      %9049 = vmatpush.bf16.msra.mxu0 %v7747
      %9050 = vmatpush.bf16.msra.mxu0 %v7739
      %9051 = vmatpush.bf16.msra.mxu0 %v7731
      %9052 = vmatpush.bf16.msra.mxu0 %v7723
      %9053 = vmatpush.bf16.msra.mxu0 %v7715
      %9054 = vmatpush.bf16.msra.mxu0 %v7707
      %9055 = vmatmul.bf16.gmra.mxu0 %v4300
      %v9056 = vpop.f32.mrf.mxu0
      %v9057 = vadd.f32 %v9043, %v9056
      %v9058 = vpop.f32.mrf.mxu0
      %v9059 = vadd.f32 %v9045, %v9058
      %9060 = vdwg.mxu0
      %9061 = vmatpush.bf16.msra.mxu0 %v7316
      %9062 = vmatpush.bf16.msra.mxu0 %v7308
      %9063 = vmatpush.bf16.msra.mxu0 %v7300
      %9064 = vmatpush.bf16.msra.mxu0 %v7292
      %9065 = vmatpush.bf16.msra.mxu0 %v7284
      %9066 = vmatpush.bf16.msra.mxu0 %v7276
      %9067 = vmatpush.bf16.msra.mxu0 %v7268
      %9068 = vmatpush.bf16.msra.mxu0 %v7260
      %9069 = vmatmul.bf16.gmra.mxu0 %v4293
      %v9070 = vpop.f32.mrf.mxu0
      %v9071 = vadd.f32 0.0, %v9070
      %v9072 = vpop.f32.mrf.mxu0
      %v9073 = vadd.f32 0.0, %v9072
      %9074 = vdwg.mxu0
      %9075 = vmatpush.bf16.msra.mxu0 %v7380
      %9076 = vmatpush.bf16.msra.mxu0 %v7372
      %9077 = vmatpush.bf16.msra.mxu0 %v7364
      %9078 = vmatpush.bf16.msra.mxu0 %v7356
      %9079 = vmatpush.bf16.msra.mxu0 %v7348
      %9080 = vmatpush.bf16.msra.mxu0 %v7340
      %9081 = vmatpush.bf16.msra.mxu0 %v7332
      %9082 = vmatpush.bf16.msra.mxu0 %v7324
      %9083 = vmatmul.bf16.gmra.mxu0 %v4294
      %v9084 = vpop.f32.mrf.mxu0
      %v9085 = vadd.f32 %v9071, %v9084
      %v9086 = vpop.f32.mrf.mxu0
      %v9087 = vadd.f32 %v9073, %v9086
      %9088 = vdwg.mxu0
      %9089 = vmatpush.bf16.msra.mxu0 %v7444
      %9090 = vmatpush.bf16.msra.mxu0 %v7436
      %9091 = vmatpush.bf16.msra.mxu0 %v7428
      %9092 = vmatpush.bf16.msra.mxu0 %v7420
      %9093 = vmatpush.bf16.msra.mxu0 %v7412
      %9094 = vmatpush.bf16.msra.mxu0 %v7404
      %9095 = vmatpush.bf16.msra.mxu0 %v7396
      %9096 = vmatpush.bf16.msra.mxu0 %v7388
      %9097 = vmatmul.bf16.gmra.mxu0 %v4295
      %v9098 = vpop.f32.mrf.mxu0
      %v9099 = vadd.f32 %v9085, %v9098
      %v9100 = vpop.f32.mrf.mxu0
      %v9101 = vadd.f32 %v9087, %v9100
      %9102 = vdwg.mxu0
      %9103 = vmatpush.bf16.msra.mxu0 %v7508
      %9104 = vmatpush.bf16.msra.mxu0 %v7500
      %9105 = vmatpush.bf16.msra.mxu0 %v7492
      %9106 = vmatpush.bf16.msra.mxu0 %v7484
      %9107 = vmatpush.bf16.msra.mxu0 %v7476
      %9108 = vmatpush.bf16.msra.mxu0 %v7468
      %9109 = vmatpush.bf16.msra.mxu0 %v7460
      %9110 = vmatpush.bf16.msra.mxu0 %v7452
      %9111 = vmatmul.bf16.gmra.mxu0 %v4296
      %v9112 = vpop.f32.mrf.mxu0
      %v9113 = vadd.f32 %v9099, %v9112
      %v9114 = vpop.f32.mrf.mxu0
      %v9115 = vadd.f32 %v9101, %v9114
      %9116 = vdwg.mxu0
      %9117 = vmatpush.bf16.msra.mxu0 %v7572
      %9118 = vmatpush.bf16.msra.mxu0 %v7564
      %9119 = vmatpush.bf16.msra.mxu0 %v7556
      %9120 = vmatpush.bf16.msra.mxu0 %v7548
      %9121 = vmatpush.bf16.msra.mxu0 %v7540
      %9122 = vmatpush.bf16.msra.mxu0 %v7532
      %9123 = vmatpush.bf16.msra.mxu0 %v7524
      %9124 = vmatpush.bf16.msra.mxu0 %v7516
      %9125 = vmatmul.bf16.gmra.mxu0 %v4297
      %v9126 = vpop.f32.mrf.mxu0
      %v9127 = vadd.f32 %v9113, %v9126
      %v9128 = vpop.f32.mrf.mxu0
      %v9129 = vadd.f32 %v9115, %v9128
      %9130 = vdwg.mxu0
      %9131 = vmatpush.bf16.msra.mxu0 %v7636
      %9132 = vmatpush.bf16.msra.mxu0 %v7628
      %9133 = vmatpush.bf16.msra.mxu0 %v7620
      %9134 = vmatpush.bf16.msra.mxu0 %v7612
      %9135 = vmatpush.bf16.msra.mxu0 %v7604
      %9136 = vmatpush.bf16.msra.mxu0 %v7596
      %9137 = vmatpush.bf16.msra.mxu0 %v7588
      %9138 = vmatpush.bf16.msra.mxu0 %v7580
      %9139 = vmatmul.bf16.gmra.mxu0 %v4298
      %v9140 = vpop.f32.mrf.mxu0
      %v9141 = vadd.f32 %v9127, %v9140
      %v9142 = vpop.f32.mrf.mxu0
      %v9143 = vadd.f32 %v9129, %v9142
      %9144 = vdwg.mxu0
      %9145 = vmatpush.bf16.msra.mxu0 %v7700
      %9146 = vmatpush.bf16.msra.mxu0 %v7692
      %9147 = vmatpush.bf16.msra.mxu0 %v7684
      %9148 = vmatpush.bf16.msra.mxu0 %v7676
      %9149 = vmatpush.bf16.msra.mxu0 %v7668
      %9150 = vmatpush.bf16.msra.mxu0 %v7660
      %9151 = vmatpush.bf16.msra.mxu0 %v7652
      %9152 = vmatpush.bf16.msra.mxu0 %v7644
      %9153 = vmatmul.bf16.gmra.mxu0 %v4299
      %v9154 = vpop.f32.mrf.mxu0
      %v9155 = vadd.f32 %v9141, %v9154
      %v9156 = vpop.f32.mrf.mxu0
      %v9157 = vadd.f32 %v9143, %v9156
      %9158 = vdwg.mxu0
      %9159 = vmatpush.bf16.msra.mxu0 %v7764
      %9160 = vmatpush.bf16.msra.mxu0 %v7756
      %9161 = vmatpush.bf16.msra.mxu0 %v7748
      %9162 = vmatpush.bf16.msra.mxu0 %v7740
      %9163 = vmatpush.bf16.msra.mxu0 %v7732
      %9164 = vmatpush.bf16.msra.mxu0 %v7724
      %9165 = vmatpush.bf16.msra.mxu0 %v7716
      %9166 = vmatpush.bf16.msra.mxu0 %v7708
      %9167 = vmatmul.bf16.gmra.mxu0 %v4300
      %v9168 = vpop.f32.mrf.mxu0
      %v9169 = vadd.f32 %v9155, %v9168
      %v9170 = vpop.f32.mrf.mxu0
      %v9171 = vadd.f32 %v9157, %v9170
      %9172 = vdwg.mxu0
      %v9173 = vadd.f32 %v4417, %v8385
      %v9174 = vadd.f32 %v4529, %v8497
      %v9175 = vadd.f32 %v4641, %v8609
      %v9176 = vadd.f32 %v4753, %v8721
      %v9177 = vadd.f32 %v4865, %v8833
      %v9178 = vadd.f32 %v4977, %v8945
      %v9179 = vadd.f32 %v5089, %v9057
      %v9180 = vadd.f32 %v5201, %v9169
      %v9181 = vadd.f32 %v4419, %v8387
      %v9182 = vadd.f32 %v4531, %v8499
      %v9183 = vadd.f32 %v4643, %v8611
      %v9184 = vadd.f32 %v4755, %v8723
      %v9185 = vadd.f32 %v4867, %v8835
      %v9186 = vadd.f32 %v4979, %v8947
      %v9187 = vadd.f32 %v5091, %v9059
      %v9188 = vadd.f32 %v5203, %v9171
      %v9189 = vmul.f32 %v9173, %v9173
      %v9190 = vmul.f32 %v9174, %v9174
      %v9191 = vmul.f32 %v9175, %v9175
      %v9192 = vmul.f32 %v9176, %v9176
      %v9193 = vmul.f32 %v9181, %v9181
      %v9194 = vmul.f32 %v9182, %v9182
      %v9195 = vmul.f32 %v9183, %v9183
      %v9196 = vmul.f32 %v9184, %v9184
      %v9197 = vmul.f32 %v9177, %v9177
      %v9198 = vmul.f32 %v9178, %v9178
      %v9199 = vmul.f32 %v9179, %v9179
      %v9200 = vmul.f32 %v9180, %v9180
      %v9201 = vmul.f32 %v9185, %v9185
      %v9202 = vmul.f32 %v9186, %v9186
      %v9203 = vmul.f32 %v9187, %v9187
      %v9204 = vmul.f32 %v9188, %v9188
      %v9205 = vadd.f32 %v9189, %v9197
      %v9206 = vadd.f32 %v9190, %v9198
      %v9207 = vadd.f32 %v9191, %v9199
      %v9208 = vadd.f32 %v9192, %v9200
      %v9209 = vadd.f32 %v9193, %v9201
      %v9210 = vadd.f32 %v9194, %v9202
      %v9211 = vadd.f32 %v9195, %v9203
      %v9212 = vadd.f32 %v9196, %v9204
      %v9213 = vld [vmem:[%s3] sm:$0xff]
      %v9214 = vld [vmem:[%s3 + $0x8] sm:$0xff]
      %v9215 = vld [vmem:[%s3 + $0x10] sm:$0xff]
      %v9216 = vld [vmem:[%s3 + $0x18] sm:$0xff]
      %v9217 = vld [vmem:[%s3 + $0x20] sm:$0xff]
      %v9218 = vld [vmem:[%s3 + $0x28] sm:$0xff]
      %v9219 = vld [vmem:[%s3 + $0x30] sm:$0xff]
      %v9220 = vld [vmem:[%s3 + $0x38] sm:$0xff]
      %v9221 = vld [vmem:[%s3 + $0x40] sm:$0xff]
      %v9222 = vld [vmem:[%s3 + $0x48] sm:$0xff]
      %v9223 = vld [vmem:[%s3 + $0x50] sm:$0xff]
      %v9224 = vld [vmem:[%s3 + $0x58] sm:$0xff]
      %v9225 = vld [vmem:[%s3 + $0x60] sm:$0xff]
      %v9226 = vld [vmem:[%s3 + $0x68] sm:$0xff]
      %v9227 = vld [vmem:[%s3 + $0x70] sm:$0xff]
      %v9228 = vld [vmem:[%s3 + $0x78] sm:$0xff]
      %v9229 = vld [vmem:[%s3 + $0x80] sm:$0xff]
      %v9230 = vld [vmem:[%s3 + $0x88] sm:$0xff]
      %v9231 = vld [vmem:[%s3 + $0x90] sm:$0xff]
      %v9232 = vld [vmem:[%s3 + $0x98] sm:$0xff]
      %v9233 = vld [vmem:[%s3 + $0xa0] sm:$0xff]
      %v9234 = vld [vmem:[%s3 + $0xa8] sm:$0xff]
      %v9235 = vld [vmem:[%s3 + $0xb0] sm:$0xff]
      %v9236 = vld [vmem:[%s3 + $0xb8] sm:$0xff]
      %v9237 = vld [vmem:[%s3 + $0xc0] sm:$0xff]
      %v9238 = vld [vmem:[%s3 + $0xc8] sm:$0xff]
      %v9239 = vld [vmem:[%s3 + $0xd0] sm:$0xff]
      %v9240 = vld [vmem:[%s3 + $0xd8] sm:$0xff]
      %v9241 = vld [vmem:[%s3 + $0xe0] sm:$0xff]
      %v9242 = vld [vmem:[%s3 + $0xe8] sm:$0xff]
      %v9243 = vld [vmem:[%s3 + $0xf0] sm:$0xff]
      %v9244 = vld [vmem:[%s3 + $0xf8] sm:$0xff]
      %v9245 = vld [vmem:[%s3 + $0x100] sm:$0xff]
      %v9246 = vld [vmem:[%s3 + $0x108] sm:$0xff]
      %v9247 = vld [vmem:[%s3 + $0x110] sm:$0xff]
      %v9248 = vld [vmem:[%s3 + $0x118] sm:$0xff]
      %v9249 = vld [vmem:[%s3 + $0x120] sm:$0xff]
      %v9250 = vld [vmem:[%s3 + $0x128] sm:$0xff]
      %v9251 = vld [vmem:[%s3 + $0x130] sm:$0xff]
      %v9252 = vld [vmem:[%s3 + $0x138] sm:$0xff]
      %v9253 = vld [vmem:[%s3 + $0x140] sm:$0xff]
      %v9254 = vld [vmem:[%s3 + $0x148] sm:$0xff]
      %v9255 = vld [vmem:[%s3 + $0x150] sm:$0xff]
      %v9256 = vld [vmem:[%s3 + $0x158] sm:$0xff]
      %v9257 = vld [vmem:[%s3 + $0x160] sm:$0xff]
      %v9258 = vld [vmem:[%s3 + $0x168] sm:$0xff]
      %v9259 = vld [vmem:[%s3 + $0x170] sm:$0xff]
      %v9260 = vld [vmem:[%s3 + $0x178] sm:$0xff]
      %v9261 = vld [vmem:[%s3 + $0x180] sm:$0xff]
      %v9262 = vld [vmem:[%s3 + $0x188] sm:$0xff]
      %v9263 = vld [vmem:[%s3 + $0x190] sm:$0xff]
      %v9264 = vld [vmem:[%s3 + $0x198] sm:$0xff]
      %v9265 = vld [vmem:[%s3 + $0x1a0] sm:$0xff]
      %v9266 = vld [vmem:[%s3 + $0x1a8] sm:$0xff]
      %v9267 = vld [vmem:[%s3 + $0x1b0] sm:$0xff]
      %v9268 = vld [vmem:[%s3 + $0x1b8] sm:$0xff]
      %v9269 = vld [vmem:[%s3 + $0x1c0] sm:$0xff]
      %v9270 = vld [vmem:[%s3 + $0x1c8] sm:$0xff]
      %v9271 = vld [vmem:[%s3 + $0x1d0] sm:$0xff]
      %v9272 = vld [vmem:[%s3 + $0x1d8] sm:$0xff]
      %v9273 = vld [vmem:[%s3 + $0x1e0] sm:$0xff]
      %v9274 = vld [vmem:[%s3 + $0x1e8] sm:$0xff]
      %v9275 = vld [vmem:[%s3 + $0x1f0] sm:$0xff]
      %v9276 = vld [vmem:[%s3 + $0x1f8] sm:$0xff]
      %9277 = vmatpush.msra.mxu0 %v9228
      %9278 = vmatpush.msra.mxu0 %v9227
      %9279 = vmatpush.msra.mxu0 %v9226
      %9280 = vmatpush.msra.mxu0 %v9225
      %9281 = vmatpush.msra.mxu0 %v9224
      %9282 = vmatpush.msra.mxu0 %v9223
      %9283 = vmatpush.msra.mxu0 %v9222
      %9284 = vmatpush.msra.mxu0 %v9221
      %9285 = vmatpush.msra.mxu0 %v9220
      %9286 = vmatpush.msra.mxu0 %v9219
      %9287 = vmatpush.msra.mxu0 %v9218
      %9288 = vmatpush.msra.mxu0 %v9217
      %9289 = vmatpush.msra.mxu0 %v9216
      %9290 = vmatpush.msra.mxu0 %v9215
      %9291 = vmatpush.msra.mxu0 %v9214
      %9292 = vmatpush.msra.mxu0 %v9213
      %9293 = vmatmul.f32.gmra.mxu0 %v9205
      %v9294 = vpop.f32.mrf.mxu0
      %v9295 = vadd.f32 0.0, %v9294
      %9296 = vmatmul.f32.gmra.mxu0 %v9209
      %v9297 = vpop.f32.mrf.mxu0
      %v9298 = vadd.f32 0.0, %v9297
      %9299 = vdwg.mxu0
      %9300 = vmatpush.msra.mxu0 %v9244
      %9301 = vmatpush.msra.mxu0 %v9243
      %9302 = vmatpush.msra.mxu0 %v9242
      %9303 = vmatpush.msra.mxu0 %v9241
      %9304 = vmatpush.msra.mxu0 %v9240
      %9305 = vmatpush.msra.mxu0 %v9239
      %9306 = vmatpush.msra.mxu0 %v9238
      %9307 = vmatpush.msra.mxu0 %v9237
      %9308 = vmatpush.msra.mxu0 %v9236
      %9309 = vmatpush.msra.mxu0 %v9235
      %9310 = vmatpush.msra.mxu0 %v9234
      %9311 = vmatpush.msra.mxu0 %v9233
      %9312 = vmatpush.msra.mxu0 %v9232
      %9313 = vmatpush.msra.mxu0 %v9231
      %9314 = vmatpush.msra.mxu0 %v9230
      %9315 = vmatpush.msra.mxu0 %v9229
      %9316 = vmatmul.f32.gmra.mxu0 %v9206
      %v9317 = vpop.f32.mrf.mxu0
      %v9318 = vadd.f32 %v9295, %v9317
      %9319 = vmatmul.f32.gmra.mxu0 %v9210
      %v9320 = vpop.f32.mrf.mxu0
      %v9321 = vadd.f32 %v9298, %v9320
      %9322 = vdwg.mxu0
      %9323 = vmatpush.msra.mxu0 %v9260
      %9324 = vmatpush.msra.mxu0 %v9259
      %9325 = vmatpush.msra.mxu0 %v9258
      %9326 = vmatpush.msra.mxu0 %v9257
      %9327 = vmatpush.msra.mxu0 %v9256
      %9328 = vmatpush.msra.mxu0 %v9255
      %9329 = vmatpush.msra.mxu0 %v9254
      %9330 = vmatpush.msra.mxu0 %v9253
      %9331 = vmatpush.msra.mxu0 %v9252
      %9332 = vmatpush.msra.mxu0 %v9251
      %9333 = vmatpush.msra.mxu0 %v9250
      %9334 = vmatpush.msra.mxu0 %v9249
      %9335 = vmatpush.msra.mxu0 %v9248
      %9336 = vmatpush.msra.mxu0 %v9247
      %9337 = vmatpush.msra.mxu0 %v9246
      %9338 = vmatpush.msra.mxu0 %v9245
      %9339 = vmatmul.f32.gmra.mxu0 %v9207
      %v9340 = vpop.f32.mrf.mxu0
      %v9341 = vadd.f32 %v9318, %v9340
      %9342 = vmatmul.f32.gmra.mxu0 %v9211
      %v9343 = vpop.f32.mrf.mxu0
      %v9344 = vadd.f32 %v9321, %v9343
      %9345 = vdwg.mxu0
      %9346 = vmatpush.msra.mxu0 %v9276
      %9347 = vmatpush.msra.mxu0 %v9275
      %9348 = vmatpush.msra.mxu0 %v9274
      %9349 = vmatpush.msra.mxu0 %v9273
      %9350 = vmatpush.msra.mxu0 %v9272
      %9351 = vmatpush.msra.mxu0 %v9271
      %9352 = vmatpush.msra.mxu0 %v9270
      %9353 = vmatpush.msra.mxu0 %v9269
      %9354 = vmatpush.msra.mxu0 %v9268
      %9355 = vmatpush.msra.mxu0 %v9267
      %9356 = vmatpush.msra.mxu0 %v9266
      %9357 = vmatpush.msra.mxu0 %v9265
      %9358 = vmatpush.msra.mxu0 %v9264
      %9359 = vmatpush.msra.mxu0 %v9263
      %9360 = vmatpush.msra.mxu0 %v9262
      %9361 = vmatpush.msra.mxu0 %v9261
      %9362 = vmatmul.f32.gmra.mxu0 %v9208
      %v9363 = vpop.f32.mrf.mxu0
      %v9364 = vadd.f32 %v9341, %v9363
      %9365 = vmatmul.f32.gmra.mxu0 %v9212
      %v9366 = vpop.f32.mrf.mxu0
      %v9367 = vadd.f32 %v9344, %v9366
      %9368 = vdwg.mxu0
      %9369 = vxpose.xlu0.b32.start [1/16] %v9364, 128
      %9370 = vxpose.xlu0.b32.cont [2/16] %v9367, 128
      %9371 = vxpose.xlu0.b32.cont [3/16] 0.0, 128
      %9372 = vxpose.xlu0.b32.cont [4/16] 0.0, 128
      %9373 = vxpose.xlu0.b32.cont [5/16] 0.0, 128
      %9374 = vxpose.xlu0.b32.cont [6/16] 0.0, 128
      %9375 = vxpose.xlu0.b32.cont [7/16] 0.0, 128
      %9376 = vxpose.xlu0.b32.cont [8/16] 0.0, 128
      %9377 = vxpose.xlu0.b32.cont [9/16] 0.0, 128
      %9378 = vxpose.xlu0.b32.cont [10/16] 0.0, 128
      %9379 = vxpose.xlu0.b32.cont [11/16] 0.0, 128
      %9380 = vxpose.xlu0.b32.cont [12/16] 0.0, 128
      %9381 = vxpose.xlu0.b32.cont [13/16] 0.0, 128
      %9382 = vxpose.xlu0.b32.cont [14/16] 0.0, 128
      %9383 = vxpose.xlu0.b32.cont [15/16] 0.0, 128
      %9384 = vxpose.xlu0.b32.end [16/16] 0.0, 128
      %v9385 = vpop.trf.xlu0
      %v9386 = vpop.trf.xlu0
      %v9387 = vpop.trf.xlu0
      %v9388 = vpop.trf.xlu0
      %v9389 = vpop.trf.xlu0
      %v9390 = vpop.trf.xlu0
      %v9391 = vpop.trf.xlu0
      %v9392 = vpop.trf.xlu0
      %v9393 = vpop.trf.xlu0
      %v9394 = vpop.trf.xlu0
      %v9395 = vpop.trf.xlu0
      %v9396 = vpop.trf.xlu0
      %v9397 = vpop.trf.xlu0
      %v9398 = vpop.trf.xlu0
      %v9399 = vpop.trf.xlu0
      %v9400 = vpop.trf.xlu0
      %v9401 = vmax.f32 %v9385, 1e-10
      %v9402 = vmax.f32 %v9386, 1e-10
      %v9403 = vmax.f32 %v9387, 1e-10
      %v9404 = vmax.f32 %v9388, 1e-10
      %v9405 = vmax.f32 %v9389, 1e-10
      %v9406 = vmax.f32 %v9390, 1e-10
      %v9407 = vmax.f32 %v9391, 1e-10
      %v9408 = vmax.f32 %v9392, 1e-10
      %v9409 = vlog2.pop %v9401
      %v9410 = vmul.f32 %v9409, 0.6931472
      %v9411 = vlog2.pop %v9402
      %v9412 = vmul.f32 %v9411, 0.6931472
      %v9413 = vlog2.pop %v9403
      %v9414 = vmul.f32 %v9413, 0.6931472
      %v9415 = vlog2.pop %v9404
      %v9416 = vmul.f32 %v9415, 0.6931472
      %v9417 = vlog2.pop %v9405
      %v9418 = vmul.f32 %v9417, 0.6931472
      %v9419 = vlog2.pop %v9406
      %v9420 = vmul.f32 %v9419, 0.6931472
      %v9421 = vlog2.pop %v9407
      %v9422 = vmul.f32 %v9421, 0.6931472
      %v9423 = vlog2.pop %v9408
      %v9424 = vmul.f32 %v9423, 0.6931472
      %v9425 = vmul.f32 %v9410, 0.4342945
      %v9426 = vmul.f32 %v9412, 0.4342945
      %v9427 = vmul.f32 %v9414, 0.4342945
      %v9428 = vmul.f32 %v9416, 0.4342945
      %v9429 = vmul.f32 %v9418, 0.4342945
      %v9430 = vmul.f32 %v9420, 0.4342945
      %v9431 = vmul.f32 %v9422, 0.4342945
      %v9432 = vmul.f32 %v9424, 0.4342945
      %v9433 = vmul.f32 %v9425, 10.0
      %v9434 = vmul.f32 %v9426, 10.0
      %v9435 = vmul.f32 %v9427, 10.0
      %v9436 = vmul.f32 %v9428, 10.0
      %v9437 = vmul.f32 %v9429, 10.0
      %v9438 = vmul.f32 %v9430, 10.0
      %v9439 = vmul.f32 %v9431, 10.0
      %v9440 = vmul.f32 %v9432, 10.0
      %vm9441 = vcmask 130048
      %9442 = vst.msk [vmem:[%s236] sm:$0xff] %vm9441, %v9433
      %9443 = vst.msk [vmem:[%s236 + $0x8] sm:$0xff] %vm9441, %v9434
      %9444 = vst.msk [vmem:[%s236 + $0x10] sm:$0xff] %vm9441, %v9435
      %9445 = vst.msk [vmem:[%s236 + $0x18] sm:$0xff] %vm9441, %v9436
      %9446 = vst.msk [vmem:[%s236 + $0x20] sm:$0xff] %vm9441, %v9437
      %9447 = vst.msk [vmem:[%s236 + $0x28] sm:$0xff] %vm9441, %v9438
      %9448 = vst.msk [vmem:[%s236 + $0x30] sm:$0xff] %vm9441, %v9439
      %9449 = vst.msk [vmem:[%s236 + $0x38] sm:$0xff] %vm9441, %v9440
      %p9450 = scmp.lt.s32.totalorder %s19, 1
      %s9451 = scalar_select %p9450, %s19, 1
      %p9452 = scmp.lt.s32.totalorder %s20, 0
      %s9453 = scalar_select %p9452, %s20, 0
      %s9454 = smul.addr %s9451, 8
      %s9455 = sadd.s32 %s9453, %s9454
      %s9456 = smul.addr %s9455, 8
      %s9457 = scalar_lea.vmem %s4, %s9456
      // Predicated region
      $region37: #{wav2spec.1} parent=35 // pred_check
        %p9458 = pneg %p138
      $region38: #{wav2spec.1} parent=35 // pred_check_branch
        %9460 = sbr.rel (%p9458) target = $region40
      $region39: #{wav2spec.1} parent=35 // pred_region
        _
      $region40: #{wav2spec.1} parent=35 // pred_fallthru
        _
    $region36: #{wav2spec.1} parent=5 // pred_fallthru
      _
    %p9461 = scmp.le.s32.totalorder 2, %s10
    // Predicated region
    $region41: #{wav2spec.1} parent=5 // pred_check
      %p9462 = pneg %p9461
    $region42: #{wav2spec.1} parent=5 // pred_check_branch
      %9464 = sbr.rel (%p9462) target = $region44
    $region43: #{wav2spec.1} parent=5 // pred_region
      %s9465 = ssub.s32 %s10, 2
      // Predicated region
      $region45: #{wav2spec.1} parent=43 // pred_check
        %p9466 = pneg %p144
      $region46: #{wav2spec.1} parent=43 // pred_check_branch
        %9468 = sbr.rel (%p9466) target = $region48
      $region47: #{wav2spec.1} parent=43 // pred_region
        %p9469 = scmp.lt.s32.totalorder %s21, 1
        %s9470 = scalar_select %p9469, %s21, 1
        %p9471 = scmp.lt.s32.totalorder %s22, 0
        %s9472 = scalar_select %p9471, %s22, 0
        %s9473 = smul.addr %s9470, 8
        %s9474 = sadd.s32 %s9472, %s9473
        %s9475 = smul.addr %s9474, 8
        %s9476 = scalar_lea.vmem %s4, %s9475
      $region48: #{wav2spec.1} parent=43 // pred_fallthru
        _
    $region44: #{wav2spec.1} parent=5 // pred_fallthru
      _
  $region6: #{wav2spec.1} parent=0 // loop_footer
    %s14 = sadd.s32 1, %s10
  $region7: #{wav2spec.1} parent=0 // loop_footer_branch
    %9 = sbr.rel target = $region3
  $region8: #{wav2spec.1} parent=0 // loop_exit
    _

</llo_original>
